<compile_context>
chip_gen: v7x
topology: tpu7x:2x2x1
jax: 0.10.0
libtpu: 0.0.40
codegen_flags: <defaults>
</compile_context>

<pallas_src>
import numpy as np
import jax
import jax.numpy as jnp
from jax.experimental import pallas as pl
from jax.experimental.pallas import tpu as pltpu

LEAKY_SLOPE = 0.01
BN_EPS = 1e-5
VMEM_LIMIT = 32 * 1024 * 1024


# ---------------- batch tiling ----------------

def _batch_tiling(b):
    """Return (padded_batch, images_per_grid_step); both multiples of 8."""
    if b <= 8:
        return 8, 8
    bp = -(-b // 16) * 16              # pad to a multiple of 16
    tb = min(64, bp // 2)              # >=2 grid steps, tile multiple of 8
    while bp % tb:
        tb -= 8
    return bp, tb


# ---------------- Pallas kernels + wrappers ----------------

def conv_pool_stage(x, w_big, scale, shift, *, rows_per_img, tile):
    """Fused valid conv (stride 1) + folded-BN affine + LeakyReLU + 2x2 maxpool.

    x      : (Bp*rows_per_img, K) bf16  row-pair im2row of the stage input
    w_big  : (K, 4*c)            bf16  quadrant block-Toeplitz weight (resident)
    scale, shift : (1, 4*c)      f32   folded BN affine, tiled per quadrant/col
    returns  (Bp*rows_per_img, c) bf16  pooled activations, cols = (w', cout)
    """
    MR, K = x.shape
    KW, N = w_big.shape
    assert KW == K and N % 4 == 0
    c = N // 4
    bm = tile * rows_per_img
    assert MR % bm == 0 and bm % 8 == 0

    def kernel(x_ref, w_ref, s_ref, h_ref, o_ref):
        acc = jnp.dot(x_ref[...], w_ref[...],
                      preferred_element_type=jnp.float32)
        y = acc * s_ref[...] + h_ref[...]
        y = jnp.where(y > 0, y, LEAKY_SLOPE * y)
        # 2x2 max-pool = max over the four quadrant column groups (128-aligned)
        p = jnp.maximum(jnp.maximum(y[:, 0 * c:1 * c], y[:, 1 * c:2 * c]),
                        jnp.maximum(y[:, 2 * c:3 * c], y[:, 3 * c:4 * c]))
        o_ref[...] = p.astype(o_ref.dtype)

    return pl.pallas_call(
        kernel,
        out_shape=jax.ShapeDtypeStruct((MR, c), jnp.bfloat16),
        grid=(MR // bm,),
        in_specs=[
            pl.BlockSpec((bm, K), lambda i: (i, 0)),
            pl.BlockSpec((K, N), lambda i: (0, 0)),      # resident weight
            pl.BlockSpec((1, N), lambda i: (0, 0)),
            pl.BlockSpec((1, N), lambda i: (0, 0)),
        ],
        out_specs=pl.BlockSpec((bm, c), lambda i: (i, 0)),
        compiler_params=pltpu.CompilerParams(
            dimension_semantics=("parallel",),
            vmem_limit_bytes=VMEM_LIMIT),
    )(x, w_big, scale, shift)


def fc_head(x, w1, b1, w2, b2, *, tile):
    """Fused fc1 + LeakyReLU + (dropout=id) + fc2 + log_softmax.

    x: (Bp, 1024) bf16; w1: (1024, 128) bf16; w2: (128, 10) bf16.
    """
    B, K = x.shape
    N1 = w1.shape[1]
    N2 = w2.shape[1]
    assert B % tile == 0

    def kernel(x_ref, w1_ref, b1_ref, w2_ref, b2_ref, o_ref):
        h = jnp.dot(x_ref[...], w1_ref[...],
                    preferred_element_type=jnp.float32) + b1_ref[...]
        h = jnp.where(h > 0, h, LEAKY_SLOPE * h)
        # TODO(synk): F.dropout(p=0.5) is stochastic; eval-mode identity here.
        z = jnp.dot(h.astype(w2_ref.dtype), w2_ref[...],
                    preferred_element_type=jnp.float32) + b2_ref[...]
        m = jnp.max(z, axis=-1, keepdims=True)
        lse = m + jnp.log(jnp.sum(jnp.exp(z - m), axis=-1, keepdims=True))
        o_ref[...] = z - lse

    return pl.pallas_call(
        kernel,
        out_shape=jax.ShapeDtypeStruct((B, N2), jnp.float32),
        grid=(B // tile,),
        in_specs=[
            pl.BlockSpec((tile, K), lambda i: (i, 0)),
            pl.BlockSpec((K, N1), lambda i: (0, 0)),
            pl.BlockSpec((1, N1), lambda i: (0, 0)),
            pl.BlockSpec((N1, N2), lambda i: (0, 0)),
            pl.BlockSpec((1, N2), lambda i: (0, 0)),
        ],
        out_specs=pl.BlockSpec((tile, N2), lambda i: (i, 0)),
        compiler_params=pltpu.CompilerParams(
            dimension_semantics=("parallel",),
            vmem_limit_bytes=VMEM_LIMIT),
    )(x, w1, b1, w2, b2)


# ---------------- parameter preparation (done once, pure JAX/numpy) ----------------

def _placement(kh, kw, w_in, pairs):
    """0/1 placement tensor mapping conv taps to (row-pair im2row K, quadrant N).

    K rows are indexed by (a, parity, wpos): input row 2*i' + 2a + parity,
    input col wpos.  N cols are indexed by (quadrant q=(hp,wp), pooled col j').
    Entry is 1 iff tap (dh, dw) of output (2i'+hp, 2j'+wp) reads that input.
    """
    w_out = w_in - kw + 1
    wo2 = w_out // 2
    P = np.zeros((kh, kw, pairs * 2 * w_in, 4 * wo2), np.float32)
    for hp in range(2):
        for wp in range(2):
            q = hp * 2 + wp
            for dh in range(kh):
                a, par = divmod(hp + dh, 2)
                if a >= pairs:
                    continue
                for dw in range(kw):
                    for jp in range(wo2):
                        wpos = 2 * jp + wp + dw
                        P[dh, dw, (a * 2 + par) * w_in + wpos, q * wo2 + jp] = 1.0
    return P


def _conv_pool_weight(w_hwio, w_in, pairs=3):
    """(KH,KW,Cin,Cout) conv weight -> (pairs*2*w_in*Cin, 4*(w_out/2)*Cout)."""
    kh, kw, cin, cout = w_hwio.shape
    P = jnp.asarray(_placement(kh, kw, w_in, pairs))
    w_big = jnp.einsum('xyAJ,xyio->AiJo', P, w_hwio)
    return w_big.reshape(pairs * 2 * w_in * cin, P.shape[3] * cout)


def prepare_params(p):
    """Fold BN into scale/shift, build quadrant Toeplitz weights, permute fc1."""
    out = {}
    # conv1 + bn1 : input 28x28x1 -> conv 24x24x32 -> pool 12x12x32
    s1 = p['bn1_gamma'] / jnp.sqrt(p['bn1_var'] + BN_EPS)
    sh1 = (p['conv1_b'] - p['bn1_mean']) * s1 + p['bn1_beta']
    out['w1'] = _conv_pool_weight(p['conv1_w'], 28).astype(jnp.bfloat16)   # (168, 1536)
    out['s1'] = jnp.tile(s1, 48).reshape(1, 1536)
    out['h1'] = jnp.tile(sh1, 48).reshape(1, 1536)
    # conv2 + bn2 : input 12x12x32 -> conv 8x8x64 -> pool 4x4x64
    s2 = p['bn2_gamma'] / jnp.sqrt(p['bn2_var'] + BN_EPS)
    sh2 = (p['conv2_b'] - p['bn2_mean']) * s2 + p['bn2_beta']
    out['w2'] = _conv_pool_weight(p['conv2_w'], 12).astype(jnp.bfloat16)   # (2304, 1024)
    out['s2'] = jnp.tile(s2, 16).reshape(1, 1024)
    out['h2'] = jnp.tile(sh2, 16).reshape(1, 1024)
    # fc1: permute rows from torch NCHW-flatten (c,h,w) to our (h,w,c) flatten
    w_fc1 = p['fc1_w'].reshape(64, 4, 4, 128).transpose(1, 2, 0, 3).reshape(1024, 128)
    out['fc1_w'] = w_fc1.astype(jnp.bfloat16)
    out['fc1_b'] = p['fc1_b'].reshape(1, 128)
    out['fc2_w'] = p['fc2_w'].astype(jnp.bfloat16)
    out['fc2_b'] = p['fc2_b'].reshape(1, 10)
    return out


def init_params(key):
    ks = jax.random.split(key, 16)
    p = {}
    # conv weights stored as (kh, kw, cin, cout) (HWIO)
    p['conv1_w'] = 0.10 * jax.random.normal(ks[0], (5, 5, 1, 32), jnp.float32)
    p['conv1_b'] = 0.10 * jax.random.normal(ks[1], (32,), jnp.float32)
    p['bn1_gamma'] = 1.0 + 0.1 * jax.random.normal(ks[2], (32,), jnp.float32)
    p['bn1_beta'] = 0.1 * jax.random.normal(ks[3], (32,), jnp.float32)
    p['bn1_mean'] = 0.1 * jax.random.normal(ks[4], (32,), jnp.float32)
    p['bn1_var'] = jnp.abs(1.0 + 0.1 * jax.random.normal(ks[5], (32,), jnp.float32))
    p['conv2_w'] = 0.05 * jax.random.normal(ks[6], (5, 5, 32, 64), jnp.float32)
    p['conv2_b'] = 0.05 * jax.random.normal(ks[7], (64,), jnp.float32)
    p['bn2_gamma'] = 1.0 + 0.1 * jax.random.normal(ks[8], (64,), jnp.float32)
    p['bn2_beta'] = 0.1 * jax.random.normal(ks[9], (64,), jnp.float32)
    p['bn2_mean'] = 0.1 * jax.random.normal(ks[10], (64,), jnp.float32)
    p['bn2_var'] = jnp.abs(1.0 + 0.1 * jax.random.normal(ks[11], (64,), jnp.float32))
    # fc layers stored as (in, out); fc1 rows in torch NCHW-flatten order (c,h,w)
    p['fc1_w'] = 0.03 * jax.random.normal(ks[12], (1024, 128), jnp.float32)
    p['fc1_b'] = 0.03 * jax.random.normal(ks[13], (128,), jnp.float32)
    p['fc2_w'] = 0.08 * jax.random.normal(ks[14], (128, 10), jnp.float32)
    p['fc2_b'] = 0.08 * jax.random.normal(ks[15], (10,), jnp.float32)
    return p


# ---------------- forward pass (Pallas) ----------------

def net_forward(prep, x_nchw):
    B = x_nchw.shape[0]
    Bp, TB = _batch_tiling(B)

    # (B,1,28,28) NCHW with Cin=1 -> (Bp, 28, 28) bf16 (zero-pad the batch)
    x = x_nchw.reshape(B, 28, 28).astype(jnp.bfloat16)
    if Bp != B:
        x = jnp.pad(x, ((0, Bp - B), (0, 0), (0, 0)))

    # stage 1: conv1(5x5,1->32) + bn1 + leaky_relu + 2x2 maxpool
    # row-pair im2row of the raw input: (Bp,14,56) -> (Bp*12, 168)
    xp = x.reshape(Bp, 14, 56)
    x1 = jnp.concatenate([xp[:, 0:12], xp[:, 1:13], xp[:, 2:14]], axis=-1)
    x1 = x1.reshape(Bp * 12, 3 * 56)
    p1 = conv_pool_stage(x1, prep['w1'], prep['s1'], prep['h1'],
                         rows_per_img=12, tile=TB)            # (Bp*12, 384) bf16

    # stage 2: conv2(5x5,32->64) (+Dropout2d eval-identity) + bn2 + lrelu + pool
    # TODO(synk): nn.Dropout2d(p=0.5) is stochastic; eval-mode identity here.
    pr = p1.reshape(Bp, 6, 768)
    x2 = jnp.concatenate([pr[:, 0:4], pr[:, 1:5], pr[:, 2:6]], axis=-1)
    x2 = x2.reshape(Bp * 4, 3 * 768)
    p2 = conv_pool_stage(x2, prep['w2'], prep['s2'], prep['h2'],
                         rows_per_img=4, tile=TB)             # (Bp*4, 256) bf16

    # flatten per image in (h, w, c) order (fc1 rows pre-permuted to match torch)
    feats = p2.reshape(Bp, 1024)

    # fc1 + leaky_relu + (dropout id) + fc2 + log_softmax, fused
    out = fc_head(feats, prep['fc1_w'], prep['fc1_b'],
                  prep['fc2_w'], prep['fc2_b'], tile=TB)
    return out[:B]


# ---------------- pure-JAX reference (for correctness check) ----------------

def _bn(x, gamma, beta, mean, var):
    return (x - mean) / jnp.sqrt(var + BN_EPS) * gamma + beta


def _lrelu(x):
    return jnp.where(x > 0, x, LEAKY_SLOPE * x)


def net_forward_reference(p, x_nchw):
    x = jnp.transpose(x_nchw, (0, 2, 3, 1))
    y = jax.lax.conv_general_dilated(
        x, p['conv1_w'], (1, 1), 'VALID',
        dimension_numbers=('NHWC', 'HWIO', 'NHWC')) + p['conv1_b']
    y = _lrelu(_bn(y, p['bn1_gamma'], p['bn1_beta'], p['bn1_mean'], p['bn1_var']))
    y = jax.lax.reduce_window(y, -jnp.inf, jax.lax.max,
                              (1, 2, 2, 1), (1, 2, 2, 1), 'VALID')
    y = jax.lax.conv_general_dilated(
        y, p['conv2_w'], (1, 1), 'VALID',
        dimension_numbers=('NHWC', 'HWIO', 'NHWC')) + p['conv2_b']
    y = _lrelu(_bn(y, p['bn2_gamma'], p['bn2_beta'], p['bn2_mean'], p['bn2_var']))
    y = jax.lax.reduce_window(y, -jnp.inf, jax.lax.max,
                              (1, 2, 2, 1), (1, 2, 2, 1), 'VALID')
    y = jnp.transpose(y, (0, 3, 1, 2)).reshape(y.shape[0], -1)  # torch flatten
    y = _lrelu(y @ p['fc1_w'] + p['fc1_b'])
    z = y @ p['fc2_w'] + p['fc2_b']
    return jax.nn.log_softmax(z, axis=-1)


if __name__ == "__main__":
    key = jax.random.PRNGKey(0)
    pkey, xkey = jax.random.split(key)
    params = init_params(pkey)
    # Input must be 1x28x28 so the flattened feature size is 64*4*4 = 1024.
    x = jax.random.normal(xkey, (2, 1, 28, 28), jnp.float32)

    prep = prepare_params(params)
    out = jax.jit(net_forward)(prep, x)
    out = jax.block_until_ready(out)

    assert out.shape == (2, 10), out.shape
    # log_softmax sanity: exp of each row sums to 1 (computed exactly in f32)
    row_sums = jnp.sum(jnp.exp(out), axis=1)
    assert bool(jnp.all(jnp.abs(row_sums - 1.0) < 1e-4)), row_sums

    # end-to-end check vs an f32 pure-JAX reference (loose tol for bf16 matmuls)
    ref = jax.jit(net_forward_reference)(params, x)
    max_err = float(jnp.max(jnp.abs(out - ref)))
    assert max_err < 0.2, max_err

    print("KERNEL_OK")
</pallas_src>

<mosaic_0001>
module attributes {stable_mosaic.version = 11 : i64} {
  func.func @kernel(%arg0: i32, %arg1: memref<96x168xbf16, #tpu.memory_space<vmem>>, %arg2: memref<168x1536xbf16, #tpu.memory_space<vmem>>, %arg3: memref<1x1536xf32, #tpu.memory_space<vmem>>, %arg4: memref<1x1536xf32, #tpu.memory_space<vmem>>, %arg5: memref<96x384xbf16, #tpu.memory_space<vmem>>) attributes {dimension_semantics = [#tpu.dimension_semantics<parallel>], iteration_bounds = array<i64: 1>, scalar_prefetch = 0 : i64, scratch_operands = 0 : i64, tpu.core_type = #tpu.core_type<tc>, window_params = [{transform_indices = @transform_0, window_bounds = array<i64: 96, 168>}, {pipeline_mode = #tpu.pipeline_mode<synchronous>, transform_indices = @transform_1, window_bounds = array<i64: 168, 1536>}, {pipeline_mode = #tpu.pipeline_mode<synchronous>, transform_indices = @transform_2, window_bounds = array<i64: 1, 1536>}, {pipeline_mode = #tpu.pipeline_mode<synchronous>, transform_indices = @transform_3, window_bounds = array<i64: 1, 1536>}, {transform_indices = @transform_4, window_bounds = array<i64: 96, 384>}]} {
    %c0 = arith.constant 0 : index
    %c0_0 = arith.constant 0 : index
    %0 = vector.load %arg1[%c0, %c0_0] : memref<96x168xbf16, #tpu.memory_space<vmem>>, vector<96x168xbf16>
    %c0_1 = arith.constant 0 : index
    %c0_2 = arith.constant 0 : index
    %1 = vector.load %arg2[%c0_1, %c0_2] : memref<168x1536xbf16, #tpu.memory_space<vmem>>, vector<168x1536xbf16>
    %cst = arith.constant dense<0.000000e+00> : vector<96x1536xf32>
    %2 = tpu.matmul %0, %1, %cst {dimension_numbers = #tpu.dot_dimension_numbers<[1], [0], [0], [1], [0, 0, 1, 1], [], []>} : vector<96x168xbf16>, vector<168x1536xbf16>, vector<96x1536xf32> -> vector<96x1536xf32>
    %c0_3 = arith.constant 0 : index
    %c0_4 = arith.constant 0 : index
    %3 = vector.load %arg3[%c0_3, %c0_4] : memref<1x1536xf32, #tpu.memory_space<vmem>>, vector<1x1536xf32>
    %4 = vector.broadcast %3 : vector<1x1536xf32> to vector<96x1536xf32>
    %5 = arith.mulf %2, %4 : vector<96x1536xf32>
    %c0_5 = arith.constant 0 : index
    %c0_6 = arith.constant 0 : index
    %6 = vector.load %arg4[%c0_5, %c0_6] : memref<1x1536xf32, #tpu.memory_space<vmem>>, vector<1x1536xf32>
    %7 = vector.broadcast %6 : vector<1x1536xf32> to vector<96x1536xf32>
    %8 = arith.addf %5, %7 : vector<96x1536xf32>
    %cst_7 = arith.constant 0.000000e+00 : f32
    %9 = vector.broadcast %cst_7 : f32 to vector<96x1536xf32>
    %10 = arith.cmpf ogt, %8, %9 : vector<96x1536xf32>
    %cst_8 = arith.constant 0.00999999977 : f32
    %11 = vector.broadcast %cst_8 : f32 to vector<96x1536xf32>
    %12 = arith.mulf %11, %8 : vector<96x1536xf32>
    %13 = arith.select %10, %8, %12 : vector<96x1536xi1>, vector<96x1536xf32>
    %14 = vector.extract_strided_slice %13 {offsets = [0, 0], sizes = [96, 384], strides = [1, 1]} : vector<96x1536xf32> to vector<96x384xf32>
    %15 = vector.extract_strided_slice %13 {offsets = [0, 384], sizes = [96, 384], strides = [1, 1]} : vector<96x1536xf32> to vector<96x384xf32>
    %16 = arith.maximumf %14, %15 : vector<96x384xf32>
    %17 = vector.extract_strided_slice %13 {offsets = [0, 768], sizes = [96, 384], strides = [1, 1]} : vector<96x1536xf32> to vector<96x384xf32>
    %18 = vector.extract_strided_slice %13 {offsets = [0, 1152], sizes = [96, 384], strides = [1, 1]} : vector<96x1536xf32> to vector<96x384xf32>
    %19 = arith.maximumf %17, %18 : vector<96x384xf32>
    %20 = arith.maximumf %16, %19 : vector<96x384xf32>
    %21 = arith.truncf %20 : vector<96x384xf32> to vector<96x384xbf16>
    %c0_9 = arith.constant 0 : index
    %c0_10 = arith.constant 0 : index
    %22 = vector.load %arg5[%c0_9, %c0_10] : memref<96x384xbf16, #tpu.memory_space<vmem>>, vector<96x384xbf16>
    tpu.vector_store %arg5[%c0_9, %c0_10], %21 {strides = array<i32>} : memref<96x384xbf16, #tpu.memory_space<vmem>>, vector<96x384xbf16>,
    return
  }
  func.func @transform_0(%arg0: i32) -> (i32, i32) {
    %c0_i32 = arith.constant 0 : i32
    %c0_i32_0 = arith.constant 0 : i32
    return %arg0, %c0_i32 : i32, i32
  }
  func.func @transform_1(%arg0: i32) -> (i32, i32) {
    %c0_i32 = arith.constant 0 : i32
    %c0_i32_0 = arith.constant 0 : i32
    %c0_i32_1 = arith.constant 0 : i32
    return %c0_i32, %c0_i32_0 : i32, i32
  }
  func.func @transform_2(%arg0: i32) -> (i32, i32) {
    %c0_i32 = arith.constant 0 : i32
    %c0_i32_0 = arith.constant 0 : i32
    %c0_i32_1 = arith.constant 0 : i32
    return %c0_i32, %c0_i32_0 : i32, i32
  }
  func.func @transform_3(%arg0: i32) -> (i32, i32) {
    %c0_i32 = arith.constant 0 : i32
    %c0_i32_0 = arith.constant 0 : i32
    %c0_i32_1 = arith.constant 0 : i32
    return %c0_i32, %c0_i32_0 : i32, i32
  }
  func.func @transform_4(%arg0: i32) -> (i32, i32) {
    %c0_i32 = arith.constant 0 : i32
    %c0_i32_0 = arith.constant 0 : i32
    return %arg0, %c0_i32 : i32, i32
  }
}

module attributes {stable_mosaic.version = 11 : i64} {
  func.func @kernel(%arg0: i32, %arg1: memref<32x2304xbf16, #tpu.memory_space<vmem>>, %arg2: memref<2304x1024xbf16, #tpu.memory_space<vmem>>, %arg3: memref<1x1024xf32, #tpu.memory_space<vmem>>, %arg4: memref<1x1024xf32, #tpu.memory_space<vmem>>, %arg5: memref<32x256xbf16, #tpu.memory_space<vmem>>) attributes {dimension_semantics = [#tpu.dimension_semantics<parallel>], iteration_bounds = array<i64: 1>, scalar_prefetch = 0 : i64, scratch_operands = 0 : i64, tpu.core_type = #tpu.core_type<tc>, window_params = [{transform_indices = @transform_0, window_bounds = array<i64: 32, 2304>}, {pipeline_mode = #tpu.pipeline_mode<synchronous>, transform_indices = @transform_1, window_bounds = array<i64: 2304, 1024>}, {pipeline_mode = #tpu.pipeline_mode<synchronous>, transform_indices = @transform_2, window_bounds = array<i64: 1, 1024>}, {pipeline_mode = #tpu.pipeline_mode<synchronous>, transform_indices = @transform_3, window_bounds = array<i64: 1, 1024>}, {transform_indices = @transform_4, window_bounds = array<i64: 32, 256>}]} {
    %c0 = arith.constant 0 : index
    %c0_0 = arith.constant 0 : index
    %0 = vector.load %arg1[%c0, %c0_0] : memref<32x2304xbf16, #tpu.memory_space<vmem>>, vector<32x2304xbf16>
    %c0_1 = arith.constant 0 : index
    %c0_2 = arith.constant 0 : index
    %1 = vector.load %arg2[%c0_1, %c0_2] : memref<2304x1024xbf16, #tpu.memory_space<vmem>>, vector<2304x1024xbf16>
    %cst = arith.constant dense<0.000000e+00> : vector<32x1024xf32>
    %2 = tpu.matmul %0, %1, %cst {dimension_numbers = #tpu.dot_dimension_numbers<[1], [0], [0], [1], [0, 0, 1, 1], [], []>} : vector<32x2304xbf16>, vector<2304x1024xbf16>, vector<32x1024xf32> -> vector<32x1024xf32>
    %c0_3 = arith.constant 0 : index
    %c0_4 = arith.constant 0 : index
    %3 = vector.load %arg3[%c0_3, %c0_4] : memref<1x1024xf32, #tpu.memory_space<vmem>>, vector<1x1024xf32>
    %4 = vector.broadcast %3 : vector<1x1024xf32> to vector<32x1024xf32>
    %5 = arith.mulf %2, %4 : vector<32x1024xf32>
    %c0_5 = arith.constant 0 : index
    %c0_6 = arith.constant 0 : index
    %6 = vector.load %arg4[%c0_5, %c0_6] : memref<1x1024xf32, #tpu.memory_space<vmem>>, vector<1x1024xf32>
    %7 = vector.broadcast %6 : vector<1x1024xf32> to vector<32x1024xf32>
    %8 = arith.addf %5, %7 : vector<32x1024xf32>
    %cst_7 = arith.constant 0.000000e+00 : f32
    %9 = vector.broadcast %cst_7 : f32 to vector<32x1024xf32>
    %10 = arith.cmpf ogt, %8, %9 : vector<32x1024xf32>
    %cst_8 = arith.constant 0.00999999977 : f32
    %11 = vector.broadcast %cst_8 : f32 to vector<32x1024xf32>
    %12 = arith.mulf %11, %8 : vector<32x1024xf32>
    %13 = arith.select %10, %8, %12 : vector<32x1024xi1>, vector<32x1024xf32>
    %14 = vector.extract_strided_slice %13 {offsets = [0, 0], sizes = [32, 256], strides = [1, 1]} : vector<32x1024xf32> to vector<32x256xf32>
    %15 = vector.extract_strided_slice %13 {offsets = [0, 256], sizes = [32, 256], strides = [1, 1]} : vector<32x1024xf32> to vector<32x256xf32>
    %16 = arith.maximumf %14, %15 : vector<32x256xf32>
    %17 = vector.extract_strided_slice %13 {offsets = [0, 512], sizes = [32, 256], strides = [1, 1]} : vector<32x1024xf32> to vector<32x256xf32>
    %18 = vector.extract_strided_slice %13 {offsets = [0, 768], sizes = [32, 256], strides = [1, 1]} : vector<32x1024xf32> to vector<32x256xf32>
    %19 = arith.maximumf %17, %18 : vector<32x256xf32>
    %20 = arith.maximumf %16, %19 : vector<32x256xf32>
    %21 = arith.truncf %20 : vector<32x256xf32> to vector<32x256xbf16>
    %c0_9 = arith.constant 0 : index
    %c0_10 = arith.constant 0 : index
    %22 = vector.load %arg5[%c0_9, %c0_10] : memref<32x256xbf16, #tpu.memory_space<vmem>>, vector<32x256xbf16>
    tpu.vector_store %arg5[%c0_9, %c0_10], %21 {strides = array<i32>} : memref<32x256xbf16, #tpu.memory_space<vmem>>, vector<32x256xbf16>,
    return
  }
  func.func @transform_0(%arg0: i32) -> (i32, i32) {
    %c0_i32 = arith.constant 0 : i32
    %c0_i32_0 = arith.constant 0 : i32
    return %arg0, %c0_i32 : i32, i32
  }
  func.func @transform_1(%arg0: i32) -> (i32, i32) {
    %c0_i32 = arith.constant 0 : i32
    %c0_i32_0 = arith.constant 0 : i32
    %c0_i32_1 = arith.constant 0 : i32
    return %c0_i32, %c0_i32_0 : i32, i32
  }
  func.func @transform_2(%arg0: i32) -> (i32, i32) {
    %c0_i32 = arith.constant 0 : i32
    %c0_i32_0 = arith.constant 0 : i32
    %c0_i32_1 = arith.constant 0 : i32
    return %c0_i32, %c0_i32_0 : i32, i32
  }
  func.func @transform_3(%arg0: i32) -> (i32, i32) {
    %c0_i32 = arith.constant 0 : i32
    %c0_i32_0 = arith.constant 0 : i32
    %c0_i32_1 = arith.constant 0 : i32
    return %c0_i32, %c0_i32_0 : i32, i32
  }
  func.func @transform_4(%arg0: i32) -> (i32, i32) {
    %c0_i32 = arith.constant 0 : i32
    %c0_i32_0 = arith.constant 0 : i32
    return %arg0, %c0_i32 : i32, i32
  }
}

module attributes {stable_mosaic.version = 11 : i64} {
  func.func @kernel(%arg0: i32, %arg1: memref<8x1024xbf16, #tpu.memory_space<vmem>>, %arg2: memref<1024x128xbf16, #tpu.memory_space<vmem>>, %arg3: memref<1x128xf32, #tpu.memory_space<vmem>>, %arg4: memref<128x10xbf16, #tpu.memory_space<vmem>>, %arg5: memref<1x10xf32, #tpu.memory_space<vmem>>, %arg6: memref<8x10xf32, #tpu.memory_space<vmem>>) attributes {dimension_semantics = [#tpu.dimension_semantics<parallel>], iteration_bounds = array<i64: 1>, scalar_prefetch = 0 : i64, scratch_operands = 0 : i64, tpu.core_type = #tpu.core_type<tc>, window_params = [{transform_indices = @transform_0, window_bounds = array<i64: 8, 1024>}, {pipeline_mode = #tpu.pipeline_mode<synchronous>, transform_indices = @transform_1, window_bounds = array<i64: 1024, 128>}, {pipeline_mode = #tpu.pipeline_mode<synchronous>, transform_indices = @transform_2, window_bounds = array<i64: 1, 128>}, {pipeline_mode = #tpu.pipeline_mode<synchronous>, transform_indices = @transform_3, window_bounds = array<i64: 128, 10>}, {pipeline_mode = #tpu.pipeline_mode<synchronous>, transform_indices = @transform_4, window_bounds = array<i64: 1, 10>}, {transform_indices = @transform_5, window_bounds = array<i64: 8, 10>}]} {
    %c0 = arith.constant 0 : index
    %c0_0 = arith.constant 0 : index
    %0 = vector.load %arg1[%c0, %c0_0] : memref<8x1024xbf16, #tpu.memory_space<vmem>>, vector<8x1024xbf16>
    %c0_1 = arith.constant 0 : index
    %c0_2 = arith.constant 0 : index
    %1 = vector.load %arg2[%c0_1, %c0_2] : memref<1024x128xbf16, #tpu.memory_space<vmem>>, vector<1024x128xbf16>
    %cst = arith.constant dense<0.000000e+00> : vector<8x128xf32>
    %2 = tpu.matmul %0, %1, %cst {dimension_numbers = #tpu.dot_dimension_numbers<[1], [0], [0], [1], [0, 0, 1, 1], [], []>} : vector<8x1024xbf16>, vector<1024x128xbf16>, vector<8x128xf32> -> vector<8x128xf32>
    %c0_3 = arith.constant 0 : index
    %c0_4 = arith.constant 0 : index
    %3 = vector.load %arg3[%c0_3, %c0_4] : memref<1x128xf32, #tpu.memory_space<vmem>>, vector<1x128xf32>
    %4 = vector.broadcast %3 : vector<1x128xf32> to vector<8x128xf32>
    %5 = arith.addf %2, %4 : vector<8x128xf32>
    %cst_5 = arith.constant 0.000000e+00 : f32
    %6 = vector.broadcast %cst_5 : f32 to vector<8x128xf32>
    %7 = arith.cmpf ogt, %5, %6 : vector<8x128xf32>
    %cst_6 = arith.constant 0.00999999977 : f32
    %8 = vector.broadcast %cst_6 : f32 to vector<8x128xf32>
    %9 = arith.mulf %8, %5 : vector<8x128xf32>
    %10 = arith.select %7, %5, %9 : vector<8x128xi1>, vector<8x128xf32>
    %11 = arith.truncf %10 : vector<8x128xf32> to vector<8x128xbf16>
    %c0_7 = arith.constant 0 : index
    %c0_8 = arith.constant 0 : index
    %12 = vector.load %arg4[%c0_7, %c0_8] : memref<128x10xbf16, #tpu.memory_space<vmem>>, vector<128x10xbf16>
    %cst_9 = arith.constant dense<0.000000e+00> : vector<8x10xf32>
    %13 = tpu.matmul %11, %12, %cst_9 {dimension_numbers = #tpu.dot_dimension_numbers<[1], [0], [0], [1], [0, 0, 1, 1], [], []>} : vector<8x128xbf16>, vector<128x10xbf16>, vector<8x10xf32> -> vector<8x10xf32>
    %c0_10 = arith.constant 0 : index
    %c0_11 = arith.constant 0 : index
    %14 = vector.load %arg5[%c0_10, %c0_11] : memref<1x10xf32, #tpu.memory_space<vmem>>, vector<1x10xf32>
    %15 = vector.broadcast %14 : vector<1x10xf32> to vector<8x10xf32>
    %16 = arith.addf %13, %15 : vector<8x10xf32>
    %cst_12 = arith.constant dense<0xFF800000> : vector<8xf32>
    %17 = vector.multi_reduction <maximumf>, %16, %cst_12 [1] : vector<8x10xf32> to vector<8xf32>
    %18 = vector.shape_cast %17 : vector<8xf32> to vector<8x1xf32>
    %19 = vector.broadcast %18 : vector<8x1xf32> to vector<8x10xf32>
    %20 = arith.subf %16, %19 : vector<8x10xf32>
    %21 = math.exp %20 : vector<8x10xf32>
    %cst_13 = arith.constant dense<0.000000e+00> : vector<8xf32>
    %22 = vector.multi_reduction <add>, %21, %cst_13 [1] : vector<8x10xf32> to vector<8xf32>
    %23 = vector.shape_cast %22 : vector<8xf32> to vector<8x1xf32>
    %24 = math.log %23 : vector<8x1xf32>
    %25 = arith.addf %18, %24 : vector<8x1xf32>
    %26 = vector.broadcast %25 : vector<8x1xf32> to vector<8x10xf32>
    %27 = arith.subf %16, %26 : vector<8x10xf32>
    %c0_14 = arith.constant 0 : index
    %c0_15 = arith.constant 0 : index
    %28 = vector.load %arg6[%c0_14, %c0_15] : memref<8x10xf32, #tpu.memory_space<vmem>>, vector<8x10xf32>
    tpu.vector_store %arg6[%c0_14, %c0_15], %27 {strides = array<i32>} : memref<8x10xf32, #tpu.memory_space<vmem>>, vector<8x10xf32>,
    return
  }
  func.func @transform_0(%arg0: i32) -> (i32, i32) {
    %c0_i32 = arith.constant 0 : i32
    %c0_i32_0 = arith.constant 0 : i32
    return %arg0, %c0_i32 : i32, i32
  }
  func.func @transform_1(%arg0: i32) -> (i32, i32) {
    %c0_i32 = arith.constant 0 : i32
    %c0_i32_0 = arith.constant 0 : i32
    %c0_i32_1 = arith.constant 0 : i32
    return %c0_i32, %c0_i32_0 : i32, i32
  }
  func.func @transform_2(%arg0: i32) -> (i32, i32) {
    %c0_i32 = arith.constant 0 : i32
    %c0_i32_0 = arith.constant 0 : i32
    %c0_i32_1 = arith.constant 0 : i32
    return %c0_i32, %c0_i32_0 : i32, i32
  }
  func.func @transform_3(%arg0: i32) -> (i32, i32) {
    %c0_i32 = arith.constant 0 : i32
    %c0_i32_0 = arith.constant 0 : i32
    %c0_i32_1 = arith.constant 0 : i32
    return %c0_i32, %c0_i32_0 : i32, i32
  }
  func.func @transform_4(%arg0: i32) -> (i32, i32) {
    %c0_i32 = arith.constant 0 : i32
    %c0_i32_0 = arith.constant 0 : i32
    %c0_i32_1 = arith.constant 0 : i32
    return %c0_i32, %c0_i32_0 : i32, i32
  }
  func.func @transform_5(%arg0: i32) -> (i32, i32) {
    %c0_i32 = arith.constant 0 : i32
    %c0_i32_0 = arith.constant 0 : i32
    return %arg0, %c0_i32 : i32, i32
  }
}

</mosaic_0001>

<llo_original>
// kernel: net_forward.3
$region0: #{net_forward.3}
  #allocation0 [shape = 'u32[]', space=smem, size = 0x4, offset = 0x4, fixed_abs, tag = 'smem constant byte address 0x4 - core index']
  #allocation1 [shape = 'u32[144,128]{1,0:T(1,128)}', space=vmem, size = 0x12000, scoped, tag = 'internal scratch']
  %s0 = inlined_call_operand.vmem [shape: bf16[96,168], index: 0, kind: input, shape index: {}]
  %s1 = inlined_call_operand.hbm [shape: bf16[168,1536], index: 1, kind: input, shape index: {}]
  %s2 = inlined_call_operand.hbm [shape: f32[1,1536], index: 2, kind: input, shape index: {}]
  %s3 = inlined_call_operand.hbm [shape: f32[1,1536], index: 3, kind: input, shape index: {}]
  %s4 = inlined_call_operand.vmem [shape: bf16[96,384], index: 4, kind: output, shape index: {}]
  %s5 = sld [smem:[#allocation0]]
  $region38: #{net_forward.3} parent=0
    _
  %s7 = ssub.s32 1, %s5
  %s8 = scalar_select 0, %s7, %s5
  $region1: #{net_forward.3} parent=0
    #allocation2 [shape = 'u8[516096]{0}', space=vmem, size = 0x7e000, scoped, tag = 'input window, operand 1, single buffered']
    #allocation3 [shape = 's32[1]{0}', space=sflag, size = 0x4, scoped, tag = 'scoped memory for net_forward.3']
    #allocation4 [shape = 'u8[6144]{0}', space=vmem, size = 0x1800, scoped, tag = 'input window, operand 2, single buffered']
    #allocation5 [shape = 's32[1]{0}', space=sflag, size = 0x4, scoped, tag = 'scoped memory for net_forward.3']
    #allocation6 [shape = 'u8[6144]{0}', space=vmem, size = 0x1800, scoped, tag = 'input window, operand 3, single buffered']
    %9 = vsyncpa [#allocation3], 0
    %10 = vsyncpa [#allocation5], 0
    // Predicated region
    $region2: #{net_forward.3} parent=1 // pred_check
      _
    $region3: #{net_forward.3} parent=1 // pred_check_branch
      %12 = sbr.rel (0) target = $region5
    $region4: #{net_forward.3} parent=1 // pred_region
      _
    $region5: #{net_forward.3} parent=1 // pred_fallthru
      _
    // Predicated region
    $region6: #{net_forward.3} parent=1 // pred_check
      _
    $region7: #{net_forward.3} parent=1 // pred_check_branch
      %14 = sbr.rel (0) target = $region9
    $region8: #{net_forward.3} parent=1 // pred_region
      %s16 = ssub.s32 16128, 16128
      %17 = vsyncadd [#allocation3], %s16
      %s18 = sshll.u32 [#allocation2], 4
      %s19 = int_to_ptr.vmem [resolvable:$true] %s18
      %24 = dma.hbm_to_vmem [thread:$0]  %s1, 16128, %s19, [#allocation3], 768, 768, 48
    $region9: #{net_forward.3} parent=1 // pred_fallthru
      _
    // Predicated region
    $region10: #{net_forward.3} parent=1 // pred_check
      _
    $region11: #{net_forward.3} parent=1 // pred_check_branch
      %26 = sbr.rel (0) target = $region13
    $region12: #{net_forward.3} parent=1 // pred_region
      %s28 = ssub.s32 192, 192
      %29 = vsyncadd [#allocation5], %s28
      %s31 = sshll.u32 [#allocation4], 4
      %s32 = int_to_ptr.vmem [resolvable:$true] %s31
      %34 = dma.hbm_to_vmem [thread:$0]  %s2, 192, %s32, [#allocation5]
    $region13: #{net_forward.3} parent=1 // pred_fallthru
      _
    // Predicated region
    $region14: #{net_forward.3} parent=1 // pred_check
      _
    $region15: #{net_forward.3} parent=1 // pred_check_branch
      %36 = sbr.rel (0) target = $region17
    $region16: #{net_forward.3} parent=1 // pred_region
      %s38 = ssub.s32 192, 192
      %39 = vsyncadd [#allocation5], %s38
      %s41 = sshll.u32 [#allocation6], 4
      %s42 = int_to_ptr.vmem [resolvable:$true] %s41
      %44 = dma.hbm_to_vmem [thread:$0]  %s3, 192, %s42, [#allocation5]
    $region17: #{net_forward.3} parent=1 // pred_fallthru
      _
    // Predicated region
    $region18: #{net_forward.3} parent=1 // pred_check
      _
    $region19: #{net_forward.3} parent=1 // pred_check_branch
      %46 = sbr.rel (0) target = $region21
    $region20: #{net_forward.3} parent=1 // pred_region
      %47 = dma.done [#allocation3], 16128
    $region21: #{net_forward.3} parent=1 // pred_fallthru
      _
    // Predicated region
    $region22: #{net_forward.3} parent=1 // pred_check
      _
    $region23: #{net_forward.3} parent=1 // pred_check_branch
      %49 = sbr.rel (0) target = $region25
    $region24: #{net_forward.3} parent=1 // pred_region
      %50 = dma.done [#allocation5], 192
    $region25: #{net_forward.3} parent=1 // pred_fallthru
      _
    // Predicated region
    $region26: #{net_forward.3} parent=1 // pred_check
      _
    $region27: #{net_forward.3} parent=1 // pred_check_branch
      %52 = sbr.rel (0) target = $region29
    $region28: #{net_forward.3} parent=1 // pred_region
      %53 = dma.done [#allocation5], 192
    $region29: #{net_forward.3} parent=1 // pred_fallthru
      _
    %v55 = vld [vmem:[%s0] sm:$0xff]
    %v56 = vld [vmem:[%s0 + $0x8] sm:$0xff]
    %v57 = vld [vmem:[%s0 + $0x10] sm:$0xff]
    %v58 = vld [vmem:[%s0 + $0x18] sm:$0xff]
    %v59 = vld [vmem:[%s0 + $0x20] sm:$0xff]
    %v60 = vld [vmem:[%s0 + $0x28] sm:$0xff]
    %v61 = vld [vmem:[%s0 + $0x30] sm:$0xff]
    %v62 = vld [vmem:[%s0 + $0x38] sm:$0xff]
    %v63 = vld [vmem:[%s0 + $0x40] sm:$0xff]
    %v64 = vld [vmem:[%s0 + $0x48] sm:$0xff]
    %v65 = vld [vmem:[%s0 + $0x50] sm:$0xff]
    %v66 = vld [vmem:[%s0 + $0x58] sm:$0xff]
    %v67 = vld [vmem:[#allocation2] sm:$0xff]
    %v68 = vld [vmem:[#allocation2 + $0x8] sm:$0xff]
    %v69 = vld [vmem:[#allocation2 + $0x10] sm:$0xff]
    %v70 = vld [vmem:[#allocation2 + $0x18] sm:$0xff]
    %v71 = vld [vmem:[#allocation2 + $0x20] sm:$0xff]
    %v72 = vld [vmem:[#allocation2 + $0x28] sm:$0xff]
    %v73 = vld [vmem:[#allocation2 + $0x30] sm:$0xff]
    %v74 = vld [vmem:[#allocation2 + $0x38] sm:$0xff]
    %v75 = vld [vmem:[#allocation2 + $0x40] sm:$0xff]
    %v76 = vld [vmem:[#allocation2 + $0x48] sm:$0xff]
    %v77 = vld [vmem:[#allocation2 + $0x50] sm:$0xff]
    %v78 = vld [vmem:[#allocation2 + $0x58] sm:$0xff]
    %v79 = vld [vmem:[#allocation2 + $0x60] sm:$0xff]
    %v80 = vld [vmem:[#allocation2 + $0x68] sm:$0xff]
    %v81 = vld [vmem:[#allocation2 + $0x70] sm:$0xff]
    %v82 = vld [vmem:[#allocation2 + $0x78] sm:$0xff]
    %v83 = vld [vmem:[#allocation2 + $0x80] sm:$0xff]
    %v84 = vld [vmem:[#allocation2 + $0x88] sm:$0xff]
    %v85 = vld [vmem:[#allocation2 + $0x90] sm:$0xff]
    %v86 = vld [vmem:[#allocation2 + $0x98] sm:$0xff]
    %v87 = vld [vmem:[#allocation2 + $0xa0] sm:$0xff]
    %v88 = vld [vmem:[#allocation2 + $0xa8] sm:$0xff]
    %v89 = vld [vmem:[#allocation2 + $0xb0] sm:$0xff]
    %v90 = vld [vmem:[#allocation2 + $0xb8] sm:$0xff]
    %v91 = vld [vmem:[#allocation2 + $0xc0] sm:$0xff]
    %v92 = vld [vmem:[#allocation2 + $0xc8] sm:$0xff]
    %v93 = vld [vmem:[#allocation2 + $0xd0] sm:$0xff]
    %v94 = vld [vmem:[#allocation2 + $0xd8] sm:$0xff]
    %v95 = vld [vmem:[#allocation2 + $0xe0] sm:$0xff]
    %v96 = vld [vmem:[#allocation2 + $0xe8] sm:$0xff]
    %v97 = vld [vmem:[#allocation2 + $0xf0] sm:$0xff]
    %v98 = vld [vmem:[#allocation2 + $0xf8] sm:$0xff]
    %v99 = vld [vmem:[#allocation2 + $0x100] sm:$0xff]
    %v100 = vld [vmem:[#allocation2 + $0x108] sm:$0xff]
    %v101 = vld [vmem:[#allocation2 + $0x110] sm:$0xff]
    %v102 = vld [vmem:[#allocation2 + $0x118] sm:$0xff]
    %v103 = vld [vmem:[#allocation2 + $0x120] sm:$0xff]
    %v104 = vld [vmem:[#allocation2 + $0x128] sm:$0xff]
    %v105 = vld [vmem:[#allocation2 + $0x130] sm:$0xff]
    %v106 = vld [vmem:[#allocation2 + $0x138] sm:$0xff]
    %v107 = vld [vmem:[#allocation2 + $0x140] sm:$0xff]
    %v108 = vld [vmem:[#allocation2 + $0x148] sm:$0xff]
    %v109 = vld [vmem:[#allocation2 + $0x150] sm:$0xff]
    %v110 = vld [vmem:[#allocation2 + $0x158] sm:$0xff]
    %v111 = vld [vmem:[#allocation2 + $0x160] sm:$0xff]
    %v112 = vld [vmem:[#allocation2 + $0x168] sm:$0xff]
    %v113 = vld [vmem:[#allocation2 + $0x170] sm:$0xff]
    %v114 = vld [vmem:[#allocation2 + $0x178] sm:$0xff]
    %v115 = vld [vmem:[#allocation2 + $0x180] sm:$0xff]
    %v116 = vld [vmem:[#allocation2 + $0x188] sm:$0xff]
    %v117 = vld [vmem:[#allocation2 + $0x190] sm:$0xff]
    %v118 = vld [vmem:[#allocation2 + $0x198] sm:$0xff]
    %v119 = vld [vmem:[#allocation2 + $0x1a0] sm:$0xff]
    %v120 = vld [vmem:[#allocation2 + $0x1a8] sm:$0xff]
    %v121 = vld [vmem:[#allocation2 + $0x1b0] sm:$0xff]
    %v122 = vld [vmem:[#allocation2 + $0x1b8] sm:$0xff]
    %v123 = vld [vmem:[#allocation2 + $0x1c0] sm:$0xff]
    %v124 = vld [vmem:[#allocation2 + $0x1c8] sm:$0xff]
    %v125 = vld [vmem:[#allocation2 + $0x1d0] sm:$0xff]
    %v126 = vld [vmem:[#allocation2 + $0x1d8] sm:$0xff]
    %v127 = vld [vmem:[#allocation2 + $0x1e0] sm:$0xff]
    %v128 = vld [vmem:[#allocation2 + $0x1e8] sm:$0xff]
    %v129 = vld [vmem:[#allocation2 + $0x1f0] sm:$0xff]
    %v130 = vld [vmem:[#allocation2 + $0x1f8] sm:$0xff]
    %v131 = vld [vmem:[#allocation2 + $0x200] sm:$0xff]
    %v132 = vld [vmem:[#allocation2 + $0x208] sm:$0xff]
    %v133 = vld [vmem:[#allocation2 + $0x210] sm:$0xff]
    %v134 = vld [vmem:[#allocation2 + $0x218] sm:$0xff]
    %v135 = vld [vmem:[#allocation2 + $0x220] sm:$0xff]
    %v136 = vld [vmem:[#allocation2 + $0x228] sm:$0xff]
    %v137 = vld [vmem:[#allocation2 + $0x230] sm:$0xff]
    %v138 = vld [vmem:[#allocation2 + $0x238] sm:$0xff]
    %v139 = vld [vmem:[#allocation2 + $0x240] sm:$0xff]
    %v140 = vld [vmem:[#allocation2 + $0x248] sm:$0xff]
    %v141 = vld [vmem:[#allocation2 + $0x250] sm:$0xff]
    %v142 = vld [vmem:[#allocation2 + $0x258] sm:$0xff]
    %v143 = vld [vmem:[#allocation2 + $0x260] sm:$0xff]
    %v144 = vld [vmem:[#allocation2 + $0x268] sm:$0xff]
    %v145 = vld [vmem:[#allocation2 + $0x270] sm:$0xff]
    %v146 = vld [vmem:[#allocation2 + $0x278] sm:$0xff]
    %v147 = vld [vmem:[#allocation2 + $0x280] sm:$0xff]
    %v148 = vld [vmem:[#allocation2 + $0x288] sm:$0xff]
    %v149 = vld [vmem:[#allocation2 + $0x290] sm:$0xff]
    %v150 = vld [vmem:[#allocation2 + $0x298] sm:$0xff]
    %v151 = vld [vmem:[#allocation2 + $0x2a0] sm:$0xff]
    %v152 = vld [vmem:[#allocation2 + $0x2a8] sm:$0xff]
    %v153 = vld [vmem:[#allocation2 + $0x2b0] sm:$0xff]
    %v154 = vld [vmem:[#allocation2 + $0x2b8] sm:$0xff]
    %v155 = vld [vmem:[#allocation2 + $0x2c0] sm:$0xff]
    %v156 = vld [vmem:[#allocation2 + $0x2c8] sm:$0xff]
    %v157 = vld [vmem:[#allocation2 + $0x2d0] sm:$0xff]
    %v158 = vld [vmem:[#allocation2 + $0x2d8] sm:$0xff]
    %v159 = vld [vmem:[#allocation2 + $0x2e0] sm:$0xff]
    %v160 = vld [vmem:[#allocation2 + $0x2e8] sm:$0xff]
    %v161 = vld [vmem:[#allocation2 + $0x2f0] sm:$0xff]
    %v162 = vld [vmem:[#allocation2 + $0x2f8] sm:$0xff]
    %v163 = vld [vmem:[#allocation2 + $0x300] sm:$0xff]
    %v164 = vld [vmem:[#allocation2 + $0x308] sm:$0xff]
    %v165 = vld [vmem:[#allocation2 + $0x310] sm:$0xff]
    %v166 = vld [vmem:[#allocation2 + $0x318] sm:$0xff]
    %v167 = vld [vmem:[#allocation2 + $0x320] sm:$0xff]
    %v168 = vld [vmem:[#allocation2 + $0x328] sm:$0xff]
    %v169 = vld [vmem:[#allocation2 + $0x330] sm:$0xff]
    %v170 = vld [vmem:[#allocation2 + $0x338] sm:$0xff]
    %v171 = vld [vmem:[#allocation2 + $0x340] sm:$0xff]
    %v172 = vld [vmem:[#allocation2 + $0x348] sm:$0xff]
    %v173 = vld [vmem:[#allocation2 + $0x350] sm:$0xff]
    %v174 = vld [vmem:[#allocation2 + $0x358] sm:$0xff]
    %v175 = vld [vmem:[#allocation2 + $0x360] sm:$0xff]
    %v176 = vld [vmem:[#allocation2 + $0x368] sm:$0xff]
    %v177 = vld [vmem:[#allocation2 + $0x370] sm:$0xff]
    %v178 = vld [vmem:[#allocation2 + $0x378] sm:$0xff]
    %v179 = vld [vmem:[#allocation2 + $0x380] sm:$0xff]
    %v180 = vld [vmem:[#allocation2 + $0x388] sm:$0xff]
    %v181 = vld [vmem:[#allocation2 + $0x390] sm:$0xff]
    %v182 = vld [vmem:[#allocation2 + $0x398] sm:$0xff]
    %v183 = vld [vmem:[#allocation2 + $0x3a0] sm:$0xff]
    %v184 = vld [vmem:[#allocation2 + $0x3a8] sm:$0xff]
    %v185 = vld [vmem:[#allocation2 + $0x3b0] sm:$0xff]
    %v186 = vld [vmem:[#allocation2 + $0x3b8] sm:$0xff]
    %v187 = vld [vmem:[#allocation2 + $0x3c0] sm:$0xff]
    %v188 = vld [vmem:[#allocation2 + $0x3c8] sm:$0xff]
    %v189 = vld [vmem:[#allocation2 + $0x3d0] sm:$0xff]
    %v190 = vld [vmem:[#allocation2 + $0x3d8] sm:$0xff]
    %v191 = vld [vmem:[#allocation2 + $0x3e0] sm:$0xff]
    %v192 = vld [vmem:[#allocation2 + $0x3e8] sm:$0xff]
    %v205 = vunpack.c.l.b16 %v55
    %v206 = vunpack.c.h.b16 %v55
    %v207 = vunpack.c.l.b16 %v56
    %v208 = vunpack.c.h.b16 %v56
    %v209 = vunpack.c.l.b16 %v57
    %v210 = vunpack.c.h.b16 %v57
    %v211 = vunpack.c.l.b16 %v58
    %v212 = vunpack.c.h.b16 %v58
    %v213 = vunpack.c.l.b16 %v59
    %v214 = vunpack.c.h.b16 %v59
    %v215 = vunpack.c.l.b16 %v60
    %v216 = vunpack.c.h.b16 %v60
    %v217 = vunpack.c.l.b16 %v61
    %v218 = vunpack.c.h.b16 %v61
    %v219 = vunpack.c.l.b16 %v62
    %v220 = vunpack.c.h.b16 %v62
    %v221 = vunpack.c.l.b16 %v63
    %v222 = vunpack.c.h.b16 %v63
    %v223 = vunpack.c.l.b16 %v64
    %v224 = vunpack.c.h.b16 %v64
    %v225 = vunpack.c.l.b16 %v65
    %v226 = vunpack.c.h.b16 %v65
    %v227 = vunpack.c.l.b16 %v66
    %v228 = vunpack.c.h.b16 %v66
    %v229 = vpack.c.b16 %v207, %v205
    %v230 = vpack.c.b16 %v208, %v206
    %v231 = vpack.c.b16 %v211, %v209
    %v232 = vpack.c.b16 %v212, %v210
    %v233 = vpack.c.b16 %v215, %v213
    %v234 = vpack.c.b16 %v216, %v214
    %v235 = vpack.c.b16 %v219, %v217
    %v236 = vpack.c.b16 %v220, %v218
    %v237 = vpack.c.b16 %v223, %v221
    %v238 = vpack.c.b16 %v224, %v222
    %v239 = vpack.c.b16 %v227, %v225
    %v240 = vpack.c.b16 %v228, %v226
    %v373 = vunpack.c.l.b16 %v67
    %v374 = vunpack.c.h.b16 %v67
    %v375 = vunpack.c.l.b16 %v68
    %v376 = vunpack.c.h.b16 %v68
    %v377 = vunpack.c.l.b16 %v69
    %v378 = vunpack.c.h.b16 %v69
    %v379 = vunpack.c.l.b16 %v70
    %v380 = vunpack.c.h.b16 %v70
    %v381 = vunpack.c.l.b16 %v71
    %v382 = vunpack.c.h.b16 %v71
    %v383 = vunpack.c.l.b16 %v72
    %v384 = vunpack.c.h.b16 %v72
    %v385 = vunpack.c.l.b16 %v73
    %v386 = vunpack.c.h.b16 %v73
    %v387 = vunpack.c.l.b16 %v74
    %v388 = vunpack.c.h.b16 %v74
    %v389 = vunpack.c.l.b16 %v75
    %v390 = vunpack.c.h.b16 %v75
    %v391 = vunpack.c.l.b16 %v76
    %v392 = vunpack.c.h.b16 %v76
    %v393 = vunpack.c.l.b16 %v77
    %v394 = vunpack.c.h.b16 %v77
    %v395 = vunpack.c.l.b16 %v78
    %v396 = vunpack.c.h.b16 %v78
    %v397 = vunpack.c.l.b16 %v79
    %v398 = vunpack.c.h.b16 %v79
    %v399 = vunpack.c.l.b16 %v80
    %v400 = vunpack.c.h.b16 %v80
    %v401 = vunpack.c.l.b16 %v81
    %v402 = vunpack.c.h.b16 %v81
    %v403 = vunpack.c.l.b16 %v82
    %v404 = vunpack.c.h.b16 %v82
    %v405 = vunpack.c.l.b16 %v83
    %v406 = vunpack.c.h.b16 %v83
    %v407 = vunpack.c.l.b16 %v84
    %v408 = vunpack.c.h.b16 %v84
    %v409 = vunpack.c.l.b16 %v85
    %v410 = vunpack.c.h.b16 %v85
    %v411 = vunpack.c.l.b16 %v86
    %v412 = vunpack.c.h.b16 %v86
    %v413 = vunpack.c.l.b16 %v87
    %v414 = vunpack.c.h.b16 %v87
    %v415 = vunpack.c.l.b16 %v88
    %v416 = vunpack.c.h.b16 %v88
    %v417 = vunpack.c.l.b16 %v89
    %v418 = vunpack.c.h.b16 %v89
    %v419 = vunpack.c.l.b16 %v90
    %v420 = vunpack.c.h.b16 %v90
    %v421 = vunpack.c.l.b16 %v91
    %v422 = vunpack.c.h.b16 %v91
    %v423 = vunpack.c.l.b16 %v92
    %v424 = vunpack.c.h.b16 %v92
    %v425 = vunpack.c.l.b16 %v93
    %v426 = vunpack.c.h.b16 %v93
    %v427 = vunpack.c.l.b16 %v94
    %v428 = vunpack.c.h.b16 %v94
    %v429 = vunpack.c.l.b16 %v95
    %v430 = vunpack.c.h.b16 %v95
    %v431 = vunpack.c.l.b16 %v96
    %v432 = vunpack.c.h.b16 %v96
    %v433 = vunpack.c.l.b16 %v97
    %v434 = vunpack.c.h.b16 %v97
    %v435 = vunpack.c.l.b16 %v98
    %v436 = vunpack.c.h.b16 %v98
    %v437 = vunpack.c.l.b16 %v99
    %v438 = vunpack.c.h.b16 %v99
    %v439 = vunpack.c.l.b16 %v100
    %v440 = vunpack.c.h.b16 %v100
    %v441 = vunpack.c.l.b16 %v101
    %v442 = vunpack.c.h.b16 %v101
    %v443 = vunpack.c.l.b16 %v102
    %v444 = vunpack.c.h.b16 %v102
    %v445 = vunpack.c.l.b16 %v103
    %v446 = vunpack.c.h.b16 %v103
    %v447 = vunpack.c.l.b16 %v104
    %v448 = vunpack.c.h.b16 %v104
    %v449 = vunpack.c.l.b16 %v105
    %v450 = vunpack.c.h.b16 %v105
    %v451 = vunpack.c.l.b16 %v106
    %v452 = vunpack.c.h.b16 %v106
    %v453 = vunpack.c.l.b16 %v107
    %v454 = vunpack.c.h.b16 %v107
    %v455 = vunpack.c.l.b16 %v108
    %v456 = vunpack.c.h.b16 %v108
    %v457 = vunpack.c.l.b16 %v109
    %v458 = vunpack.c.h.b16 %v109
    %v459 = vunpack.c.l.b16 %v110
    %v460 = vunpack.c.h.b16 %v110
    %v461 = vunpack.c.l.b16 %v111
    %v462 = vunpack.c.h.b16 %v111
    %v463 = vunpack.c.l.b16 %v112
    %v464 = vunpack.c.h.b16 %v112
    %v465 = vunpack.c.l.b16 %v113
    %v466 = vunpack.c.h.b16 %v113
    %v467 = vunpack.c.l.b16 %v114
    %v468 = vunpack.c.h.b16 %v114
    %v469 = vunpack.c.l.b16 %v115
    %v470 = vunpack.c.h.b16 %v115
    %v471 = vunpack.c.l.b16 %v116
    %v472 = vunpack.c.h.b16 %v116
    %v473 = vunpack.c.l.b16 %v117
    %v474 = vunpack.c.h.b16 %v117
    %v475 = vunpack.c.l.b16 %v118
    %v476 = vunpack.c.h.b16 %v118
    %v477 = vunpack.c.l.b16 %v119
    %v478 = vunpack.c.h.b16 %v119
    %v479 = vunpack.c.l.b16 %v120
    %v480 = vunpack.c.h.b16 %v120
    %v481 = vunpack.c.l.b16 %v121
    %v482 = vunpack.c.h.b16 %v121
    %v483 = vunpack.c.l.b16 %v122
    %v484 = vunpack.c.h.b16 %v122
    %v485 = vunpack.c.l.b16 %v123
    %v486 = vunpack.c.h.b16 %v123
    %v487 = vunpack.c.l.b16 %v124
    %v488 = vunpack.c.h.b16 %v124
    %v489 = vunpack.c.l.b16 %v125
    %v490 = vunpack.c.h.b16 %v125
    %v491 = vunpack.c.l.b16 %v126
    %v492 = vunpack.c.h.b16 %v126
    %v493 = vunpack.c.l.b16 %v127
    %v494 = vunpack.c.h.b16 %v127
    %v495 = vunpack.c.l.b16 %v128
    %v496 = vunpack.c.h.b16 %v128
    %v497 = vunpack.c.l.b16 %v129
    %v498 = vunpack.c.h.b16 %v129
    %v499 = vunpack.c.l.b16 %v130
    %v500 = vunpack.c.h.b16 %v130
    %v501 = vunpack.c.l.b16 %v131
    %v502 = vunpack.c.h.b16 %v131
    %v503 = vunpack.c.l.b16 %v132
    %v504 = vunpack.c.h.b16 %v132
    %v505 = vunpack.c.l.b16 %v133
    %v506 = vunpack.c.h.b16 %v133
    %v507 = vunpack.c.l.b16 %v134
    %v508 = vunpack.c.h.b16 %v134
    %v509 = vunpack.c.l.b16 %v135
    %v510 = vunpack.c.h.b16 %v135
    %v511 = vunpack.c.l.b16 %v136
    %v512 = vunpack.c.h.b16 %v136
    %v513 = vunpack.c.l.b16 %v137
    %v514 = vunpack.c.h.b16 %v137
    %v515 = vunpack.c.l.b16 %v138
    %v516 = vunpack.c.h.b16 %v138
    %v517 = vunpack.c.l.b16 %v139
    %v518 = vunpack.c.h.b16 %v139
    %v519 = vunpack.c.l.b16 %v140
    %v520 = vunpack.c.h.b16 %v140
    %v521 = vunpack.c.l.b16 %v141
    %v522 = vunpack.c.h.b16 %v141
    %v523 = vunpack.c.l.b16 %v142
    %v524 = vunpack.c.h.b16 %v142
    %v525 = vunpack.c.l.b16 %v143
    %v526 = vunpack.c.h.b16 %v143
    %v527 = vunpack.c.l.b16 %v144
    %v528 = vunpack.c.h.b16 %v144
    %v529 = vunpack.c.l.b16 %v145
    %v530 = vunpack.c.h.b16 %v145
    %v531 = vunpack.c.l.b16 %v146
    %v532 = vunpack.c.h.b16 %v146
    %v533 = vunpack.c.l.b16 %v147
    %v534 = vunpack.c.h.b16 %v147
    %v535 = vunpack.c.l.b16 %v148
    %v536 = vunpack.c.h.b16 %v148
    %v537 = vunpack.c.l.b16 %v149
    %v538 = vunpack.c.h.b16 %v149
    %v539 = vunpack.c.l.b16 %v150
    %v540 = vunpack.c.h.b16 %v150
    %v541 = vunpack.c.l.b16 %v151
    %v542 = vunpack.c.h.b16 %v151
    %v543 = vunpack.c.l.b16 %v152
    %v544 = vunpack.c.h.b16 %v152
    %v545 = vunpack.c.l.b16 %v153
    %v546 = vunpack.c.h.b16 %v153
    %v547 = vunpack.c.l.b16 %v154
    %v548 = vunpack.c.h.b16 %v154
    %v549 = vunpack.c.l.b16 %v155
    %v550 = vunpack.c.h.b16 %v155
    %v551 = vunpack.c.l.b16 %v156
    %v552 = vunpack.c.h.b16 %v156
    %v553 = vunpack.c.l.b16 %v157
    %v554 = vunpack.c.h.b16 %v157
    %v555 = vunpack.c.l.b16 %v158
    %v556 = vunpack.c.h.b16 %v158
    %v557 = vunpack.c.l.b16 %v159
    %v558 = vunpack.c.h.b16 %v159
    %v559 = vunpack.c.l.b16 %v160
    %v560 = vunpack.c.h.b16 %v160
    %v561 = vunpack.c.l.b16 %v161
    %v562 = vunpack.c.h.b16 %v161
    %v563 = vunpack.c.l.b16 %v162
    %v564 = vunpack.c.h.b16 %v162
    %v565 = vunpack.c.l.b16 %v163
    %v566 = vunpack.c.h.b16 %v163
    %v567 = vunpack.c.l.b16 %v164
    %v568 = vunpack.c.h.b16 %v164
    %v569 = vunpack.c.l.b16 %v165
    %v570 = vunpack.c.h.b16 %v165
    %v571 = vunpack.c.l.b16 %v166
    %v572 = vunpack.c.h.b16 %v166
    %v573 = vunpack.c.l.b16 %v167
    %v574 = vunpack.c.h.b16 %v167
    %v575 = vunpack.c.l.b16 %v168
    %v576 = vunpack.c.h.b16 %v168
    %v577 = vunpack.c.l.b16 %v169
    %v578 = vunpack.c.h.b16 %v169
    %v579 = vunpack.c.l.b16 %v170
    %v580 = vunpack.c.h.b16 %v170
    %v581 = vunpack.c.l.b16 %v171
    %v582 = vunpack.c.h.b16 %v171
    %v583 = vunpack.c.l.b16 %v172
    %v584 = vunpack.c.h.b16 %v172
    %v585 = vunpack.c.l.b16 %v173
    %v586 = vunpack.c.h.b16 %v173
    %v587 = vunpack.c.l.b16 %v174
    %v588 = vunpack.c.h.b16 %v174
    %v589 = vunpack.c.l.b16 %v175
    %v590 = vunpack.c.h.b16 %v175
    %v591 = vunpack.c.l.b16 %v176
    %v592 = vunpack.c.h.b16 %v176
    %v593 = vunpack.c.l.b16 %v177
    %v594 = vunpack.c.h.b16 %v177
    %v595 = vunpack.c.l.b16 %v178
    %v596 = vunpack.c.h.b16 %v178
    %v597 = vunpack.c.l.b16 %v179
    %v598 = vunpack.c.h.b16 %v179
    %v599 = vunpack.c.l.b16 %v180
    %v600 = vunpack.c.h.b16 %v180
    %v601 = vunpack.c.l.b16 %v181
    %v602 = vunpack.c.h.b16 %v181
    %v603 = vunpack.c.l.b16 %v182
    %v604 = vunpack.c.h.b16 %v182
    %v605 = vunpack.c.l.b16 %v183
    %v606 = vunpack.c.h.b16 %v183
    %v607 = vunpack.c.l.b16 %v184
    %v608 = vunpack.c.h.b16 %v184
    %v609 = vunpack.c.l.b16 %v185
    %v610 = vunpack.c.h.b16 %v185
    %v611 = vunpack.c.l.b16 %v186
    %v612 = vunpack.c.h.b16 %v186
    %v613 = vunpack.c.l.b16 %v187
    %v614 = vunpack.c.h.b16 %v187
    %v615 = vunpack.c.l.b16 %v188
    %v616 = vunpack.c.h.b16 %v188
    %v617 = vunpack.c.l.b16 %v189
    %v618 = vunpack.c.h.b16 %v189
    %v619 = vunpack.c.l.b16 %v190
    %v620 = vunpack.c.h.b16 %v190
    %v621 = vunpack.c.l.b16 %v191
    %v622 = vunpack.c.h.b16 %v191
    %v623 = vunpack.c.l.b16 %v192
    %v624 = vunpack.c.h.b16 %v192
    %v625 = vpack.c.b16 %v385, %v373
    %v626 = vpack.c.b16 %v386, %v374
    %v627 = vpack.c.b16 %v387, %v375
    %v628 = vpack.c.b16 %v388, %v376
    %v629 = vpack.c.b16 %v389, %v377
    %v630 = vpack.c.b16 %v390, %v378
    %v631 = vpack.c.b16 %v391, %v379
    %v632 = vpack.c.b16 %v392, %v380
    %v633 = vpack.c.b16 %v393, %v381
    %v634 = vpack.c.b16 %v394, %v382
    %v635 = vpack.c.b16 %v395, %v383
    %v636 = vpack.c.b16 %v396, %v384
    %v637 = vpack.c.b16 %v409, %v397
    %v638 = vpack.c.b16 %v410, %v398
    %v639 = vpack.c.b16 %v411, %v399
    %v640 = vpack.c.b16 %v412, %v400
    %v641 = vpack.c.b16 %v413, %v401
    %v642 = vpack.c.b16 %v414, %v402
    %v643 = vpack.c.b16 %v415, %v403
    %v644 = vpack.c.b16 %v416, %v404
    %v645 = vpack.c.b16 %v417, %v405
    %v646 = vpack.c.b16 %v418, %v406
    %v647 = vpack.c.b16 %v419, %v407
    %v648 = vpack.c.b16 %v420, %v408
    %v649 = vpack.c.b16 %v433, %v421
    %v650 = vpack.c.b16 %v434, %v422
    %v651 = vpack.c.b16 %v435, %v423
    %v652 = vpack.c.b16 %v436, %v424
    %v653 = vpack.c.b16 %v437, %v425
    %v654 = vpack.c.b16 %v438, %v426
    %v655 = vpack.c.b16 %v439, %v427
    %v656 = vpack.c.b16 %v440, %v428
    %v657 = vpack.c.b16 %v441, %v429
    %v658 = vpack.c.b16 %v442, %v430
    %v659 = vpack.c.b16 %v443, %v431
    %v660 = vpack.c.b16 %v444, %v432
    %v661 = vpack.c.b16 %v457, %v445
    %v662 = vpack.c.b16 %v458, %v446
    %v663 = vpack.c.b16 %v459, %v447
    %v664 = vpack.c.b16 %v460, %v448
    %v665 = vpack.c.b16 %v461, %v449
    %v666 = vpack.c.b16 %v462, %v450
    %v667 = vpack.c.b16 %v463, %v451
    %v668 = vpack.c.b16 %v464, %v452
    %v669 = vpack.c.b16 %v465, %v453
    %v670 = vpack.c.b16 %v466, %v454
    %v671 = vpack.c.b16 %v467, %v455
    %v672 = vpack.c.b16 %v468, %v456
    %v673 = vpack.c.b16 %v481, %v469
    %v674 = vpack.c.b16 %v482, %v470
    %v675 = vpack.c.b16 %v483, %v471
    %v676 = vpack.c.b16 %v484, %v472
    %v677 = vpack.c.b16 %v485, %v473
    %v678 = vpack.c.b16 %v486, %v474
    %v679 = vpack.c.b16 %v487, %v475
    %v680 = vpack.c.b16 %v488, %v476
    %v681 = vpack.c.b16 %v489, %v477
    %v682 = vpack.c.b16 %v490, %v478
    %v683 = vpack.c.b16 %v491, %v479
    %v684 = vpack.c.b16 %v492, %v480
    %v685 = vpack.c.b16 %v505, %v493
    %v686 = vpack.c.b16 %v506, %v494
    %v687 = vpack.c.b16 %v507, %v495
    %v688 = vpack.c.b16 %v508, %v496
    %v689 = vpack.c.b16 %v509, %v497
    %v690 = vpack.c.b16 %v510, %v498
    %v691 = vpack.c.b16 %v511, %v499
    %v692 = vpack.c.b16 %v512, %v500
    %v693 = vpack.c.b16 %v513, %v501
    %v694 = vpack.c.b16 %v514, %v502
    %v695 = vpack.c.b16 %v515, %v503
    %v696 = vpack.c.b16 %v516, %v504
    %v697 = vpack.c.b16 %v529, %v517
    %v698 = vpack.c.b16 %v530, %v518
    %v699 = vpack.c.b16 %v531, %v519
    %v700 = vpack.c.b16 %v532, %v520
    %v701 = vpack.c.b16 %v533, %v521
    %v702 = vpack.c.b16 %v534, %v522
    %v703 = vpack.c.b16 %v535, %v523
    %v704 = vpack.c.b16 %v536, %v524
    %v705 = vpack.c.b16 %v537, %v525
    %v706 = vpack.c.b16 %v538, %v526
    %v707 = vpack.c.b16 %v539, %v527
    %v708 = vpack.c.b16 %v540, %v528
    %v709 = vpack.c.b16 %v553, %v541
    %v710 = vpack.c.b16 %v554, %v542
    %v711 = vpack.c.b16 %v555, %v543
    %v712 = vpack.c.b16 %v556, %v544
    %v713 = vpack.c.b16 %v557, %v545
    %v714 = vpack.c.b16 %v558, %v546
    %v715 = vpack.c.b16 %v559, %v547
    %v716 = vpack.c.b16 %v560, %v548
    %v717 = vpack.c.b16 %v561, %v549
    %v718 = vpack.c.b16 %v562, %v550
    %v719 = vpack.c.b16 %v563, %v551
    %v720 = vpack.c.b16 %v564, %v552
    %v721 = vpack.c.b16 %v577, %v565
    %v722 = vpack.c.b16 %v578, %v566
    %v723 = vpack.c.b16 %v579, %v567
    %v724 = vpack.c.b16 %v580, %v568
    %v725 = vpack.c.b16 %v581, %v569
    %v726 = vpack.c.b16 %v582, %v570
    %v727 = vpack.c.b16 %v583, %v571
    %v728 = vpack.c.b16 %v584, %v572
    %v729 = vpack.c.b16 %v585, %v573
    %v730 = vpack.c.b16 %v586, %v574
    %v731 = vpack.c.b16 %v587, %v575
    %v732 = vpack.c.b16 %v588, %v576
    %v733 = vpack.c.b16 %v601, %v589
    %v734 = vpack.c.b16 %v602, %v590
    %v735 = vpack.c.b16 %v603, %v591
    %v736 = vpack.c.b16 %v604, %v592
    %v737 = vpack.c.b16 %v605, %v593
    %v738 = vpack.c.b16 %v606, %v594
    %v739 = vpack.c.b16 %v607, %v595
    %v740 = vpack.c.b16 %v608, %v596
    %v741 = vpack.c.b16 %v609, %v597
    %v742 = vpack.c.b16 %v610, %v598
    %v743 = vpack.c.b16 %v611, %v599
    %v744 = vpack.c.b16 %v612, %v600
    %v745 = vpack.c.b16 %v613, %v613
    %v746 = vpack.c.b16 %v614, %v614
    %v747 = vpack.c.b16 %v615, %v615
    %v748 = vpack.c.b16 %v616, %v616
    %v749 = vpack.c.b16 %v617, %v617
    %v750 = vpack.c.b16 %v618, %v618
    %v751 = vpack.c.b16 %v619, %v619
    %v752 = vpack.c.b16 %v620, %v620
    %v753 = vpack.c.b16 %v621, %v621
    %v754 = vpack.c.b16 %v622, %v622
    %v755 = vpack.c.b16 %v623, %v623
    %v756 = vpack.c.b16 %v624, %v624
    %vm877 = vcmask 326656
    %v879 = vsel %vm877, %v230, 0
    %v882 = vsel %vm877, %v232, 0
    %v885 = vsel %vm877, %v234, 0
    %v888 = vsel %vm877, %v236, 0
    %v891 = vsel %vm877, %v238, 0
    %v894 = vsel %vm877, %v240, 0
    %vm896 = vcmask 1043456
    %v898 = vsel %vm896, %v745, 0
    %v901 = vsel %vm896, %v746, 0
    %v904 = vsel %vm896, %v747, 0
    %v907 = vsel %vm896, %v748, 0
    %v910 = vsel %vm896, %v749, 0
    %v913 = vsel %vm896, %v750, 0
    %v916 = vsel %vm896, %v751, 0
    %v919 = vsel %vm896, %v752, 0
    %v922 = vsel %vm896, %v753, 0
    %v925 = vsel %vm896, %v754, 0
    %v928 = vsel %vm896, %v755, 0
    %v931 = vsel %vm896, %v756, 0
    %933 = vmatprep.subr.bf16.mxu0 %v626
    %934 = vmatpush1.bf16.msra.mxu0 %v625
    %935 = vmatprep.subr.bf16.mxu0 %v638
    %936 = vmatpush1.bf16.msra.mxu0 %v637
    %937 = vmatprep.subr.bf16.mxu0 %v650
    %938 = vmatpush1.bf16.msra.mxu0 %v649
    %939 = vmatprep.subr.bf16.mxu0 %v662
    %940 = vmatpush1.bf16.msra.mxu0 %v661
    %941 = vmatprep.subr.bf16.mxu0 %v674
    %942 = vmatpush1.bf16.msra.mxu0 %v673
    %943 = vmatprep.subr.bf16.mxu0 %v686
    %944 = vmatpush1.bf16.msra.mxu0 %v685
    %945 = vmatprep.subr.bf16.mxu0 %v698
    %946 = vmatpush1.bf16.msra.mxu0 %v697
    %947 = vmatprep.subr.bf16.mxu0 %v710
    %948 = vmatpush1.bf16.msra.mxu0 %v709
    %949 = vmatprep.subr.bf16.mxu0 %v722
    %950 = vmatpush1.bf16.msra.mxu0 %v721
    %951 = vmatprep.subr.bf16.mxu0 %v734
    %952 = vmatpush1.bf16.msra.mxu0 %v733
    %953 = vmatprep.subr.bf16.mxu0 %v901
    %954 = vmatpush1.bf16.msra.mxu0 %v898
    %955 = vmatprep.subr.bf16.mxu0 0
    %956 = vmatpush1.bf16.msra.mxu0 0
    %957 = vmatprep.subr.bf16.mxu0 0
    %958 = vmatpush1.bf16.msra.mxu0 0
    %959 = vmatprep.subr.bf16.mxu0 0
    %960 = vmatpush1.bf16.msra.mxu0 0
    %961 = vmatprep.subr.bf16.mxu0 0
    %962 = vmatpush1.bf16.msra.mxu0 0
    %963 = vmatprep.subr.bf16.mxu0 0
    %964 = vmatpush1.bf16.msra.mxu0 0
    %965 = vmatprep.mubr.bf16.mxu0 %v879
    %966 = vmatmul.mubr.bf16.gmra.mrb[0].mxu0 %v229
    %v967 = vpop.f32.mrb[0].mxu0
    %v968 = vadd.f32 0.0, %v967
    %v969 = vpop.f32.mrb[0].mxu0
    %v970 = vadd.f32 0.0, %v969
    %v971 = vpop.f32.mrb[0].mxu0
    %v972 = vadd.f32 0.0, %v971
    %v973 = vpop.f32.mrb[0].mxu0
    %v974 = vadd.f32 0.0, %v973
    %975 = vmatprep.mubr.bf16.mxu0 %v882
    %976 = vmatmul.mubr.bf16.gmra.mrb[0].mxu0 %v231
    %v977 = vpop.f32.mrb[0].mxu0
    %v978 = vadd.f32 0.0, %v977
    %v979 = vpop.f32.mrb[0].mxu0
    %v980 = vadd.f32 0.0, %v979
    %v981 = vpop.f32.mrb[0].mxu0
    %v982 = vadd.f32 0.0, %v981
    %v983 = vpop.f32.mrb[0].mxu0
    %v984 = vadd.f32 0.0, %v983
    %985 = vmatprep.mubr.bf16.mxu0 %v885
    %986 = vmatmul.mubr.bf16.gmra.mrb[0].mxu0 %v233
    %v987 = vpop.f32.mrb[0].mxu0
    %v988 = vadd.f32 0.0, %v987
    %v989 = vpop.f32.mrb[0].mxu0
    %v990 = vadd.f32 0.0, %v989
    %v991 = vpop.f32.mrb[0].mxu0
    %v992 = vadd.f32 0.0, %v991
    %v993 = vpop.f32.mrb[0].mxu0
    %v994 = vadd.f32 0.0, %v993
    %995 = vmatprep.mubr.bf16.mxu0 %v888
    %996 = vmatmul.mubr.bf16.gmra.mrb[0].mxu0 %v235
    %v997 = vpop.f32.mrb[0].mxu0
    %v998 = vadd.f32 0.0, %v997
    %v999 = vpop.f32.mrb[0].mxu0
    %v1000 = vadd.f32 0.0, %v999
    %v1001 = vpop.f32.mrb[0].mxu0
    %v1002 = vadd.f32 0.0, %v1001
    %v1003 = vpop.f32.mrb[0].mxu0
    %v1004 = vadd.f32 0.0, %v1003
    %1005 = vmatprep.mubr.bf16.mxu0 %v891
    %1006 = vmatmul.mubr.bf16.gmra.mrb[0].mxu0 %v237
    %v1007 = vpop.f32.mrb[0].mxu0
    %v1008 = vadd.f32 0.0, %v1007
    %v1009 = vpop.f32.mrb[0].mxu0
    %v1010 = vadd.f32 0.0, %v1009
    %v1011 = vpop.f32.mrb[0].mxu0
    %v1012 = vadd.f32 0.0, %v1011
    %v1013 = vpop.f32.mrb[0].mxu0
    %v1014 = vadd.f32 0.0, %v1013
    %1015 = vmatprep.mubr.bf16.mxu0 %v894
    %1016 = vmatmul.mubr.bf16.gmra.mrb[0].mxu0 %v239
    %v1017 = vpop.f32.mrb[0].mxu0
    %v1018 = vadd.f32 0.0, %v1017
    %v1019 = vpop.f32.mrb[0].mxu0
    %v1020 = vadd.f32 0.0, %v1019
    %v1021 = vpop.f32.mrb[0].mxu0
    %v1022 = vadd.f32 0.0, %v1021
    %v1023 = vpop.f32.mrb[0].mxu0
    %v1024 = vadd.f32 0.0, %v1023
    %1025 = vdwg.mxu0
    %1026 = vmatprep.subr.bf16.mxu0 %v628
    %1027 = vmatpush1.bf16.msra.mxu0 %v627
    %1028 = vmatprep.subr.bf16.mxu0 %v640
    %1029 = vmatpush1.bf16.msra.mxu0 %v639
    %1030 = vmatprep.subr.bf16.mxu0 %v652
    %1031 = vmatpush1.bf16.msra.mxu0 %v651
    %1032 = vmatprep.subr.bf16.mxu0 %v664
    %1033 = vmatpush1.bf16.msra.mxu0 %v663
    %1034 = vmatprep.subr.bf16.mxu0 %v676
    %1035 = vmatpush1.bf16.msra.mxu0 %v675
    %1036 = vmatprep.subr.bf16.mxu0 %v688
    %1037 = vmatpush1.bf16.msra.mxu0 %v687
    %1038 = vmatprep.subr.bf16.mxu0 %v700
    %1039 = vmatpush1.bf16.msra.mxu0 %v699
    %1040 = vmatprep.subr.bf16.mxu0 %v712
    %1041 = vmatpush1.bf16.msra.mxu0 %v711
    %1042 = vmatprep.subr.bf16.mxu0 %v724
    %1043 = vmatpush1.bf16.msra.mxu0 %v723
    %1044 = vmatprep.subr.bf16.mxu0 %v736
    %1045 = vmatpush1.bf16.msra.mxu0 %v735
    %1046 = vmatprep.subr.bf16.mxu0 %v907
    %1047 = vmatpush1.bf16.msra.mxu0 %v904
    %1048 = vmatprep.subr.bf16.mxu0 0
    %1049 = vmatpush1.bf16.msra.mxu0 0
    %1050 = vmatprep.subr.bf16.mxu0 0
    %1051 = vmatpush1.bf16.msra.mxu0 0
    %1052 = vmatprep.subr.bf16.mxu0 0
    %1053 = vmatpush1.bf16.msra.mxu0 0
    %1054 = vmatprep.subr.bf16.mxu0 0
    %1055 = vmatpush1.bf16.msra.mxu0 0
    %1056 = vmatprep.subr.bf16.mxu0 0
    %1057 = vmatpush1.bf16.msra.mxu0 0
    %1058 = vmatprep.mubr.bf16.mxu0 %v879
    %1059 = vmatmul.mubr.bf16.gmra.mrb[0].mxu0 %v229
    %v1060 = vpop.f32.mrb[0].mxu0
    %v1061 = vadd.f32 0.0, %v1060
    %v1062 = vpop.f32.mrb[0].mxu0
    %v1063 = vadd.f32 0.0, %v1062
    %v1064 = vpop.f32.mrb[0].mxu0
    %v1065 = vadd.f32 0.0, %v1064
    %v1066 = vpop.f32.mrb[0].mxu0
    %v1067 = vadd.f32 0.0, %v1066
    %1068 = vmatprep.mubr.bf16.mxu0 %v882
    %1069 = vmatmul.mubr.bf16.gmra.mrb[0].mxu0 %v231
    %v1070 = vpop.f32.mrb[0].mxu0
    %v1071 = vadd.f32 0.0, %v1070
    %v1072 = vpop.f32.mrb[0].mxu0
    %v1073 = vadd.f32 0.0, %v1072
    %v1074 = vpop.f32.mrb[0].mxu0
    %v1075 = vadd.f32 0.0, %v1074
    %v1076 = vpop.f32.mrb[0].mxu0
    %v1077 = vadd.f32 0.0, %v1076
    %1078 = vmatprep.mubr.bf16.mxu0 %v885
    %1079 = vmatmul.mubr.bf16.gmra.mrb[0].mxu0 %v233
    %v1080 = vpop.f32.mrb[0].mxu0
    %v1081 = vadd.f32 0.0, %v1080
    %v1082 = vpop.f32.mrb[0].mxu0
    %v1083 = vadd.f32 0.0, %v1082
    %v1084 = vpop.f32.mrb[0].mxu0
    %v1085 = vadd.f32 0.0, %v1084
    %v1086 = vpop.f32.mrb[0].mxu0
    %v1087 = vadd.f32 0.0, %v1086
    %1088 = vmatprep.mubr.bf16.mxu0 %v888
    %1089 = vmatmul.mubr.bf16.gmra.mrb[0].mxu0 %v235
    %v1090 = vpop.f32.mrb[0].mxu0
    %v1091 = vadd.f32 0.0, %v1090
    %v1092 = vpop.f32.mrb[0].mxu0
    %v1093 = vadd.f32 0.0, %v1092
    %v1094 = vpop.f32.mrb[0].mxu0
    %v1095 = vadd.f32 0.0, %v1094
    %v1096 = vpop.f32.mrb[0].mxu0
    %v1097 = vadd.f32 0.0, %v1096
    %1098 = vmatprep.mubr.bf16.mxu0 %v891
    %1099 = vmatmul.mubr.bf16.gmra.mrb[0].mxu0 %v237
    %v1100 = vpop.f32.mrb[0].mxu0
    %v1101 = vadd.f32 0.0, %v1100
    %v1102 = vpop.f32.mrb[0].mxu0
    %v1103 = vadd.f32 0.0, %v1102
    %v1104 = vpop.f32.mrb[0].mxu0
    %v1105 = vadd.f32 0.0, %v1104
    %v1106 = vpop.f32.mrb[0].mxu0
    %v1107 = vadd.f32 0.0, %v1106
    %1108 = vmatprep.mubr.bf16.mxu0 %v894
    %1109 = vmatmul.mubr.bf16.gmra.mrb[0].mxu0 %v239
    %v1110 = vpop.f32.mrb[0].mxu0
    %v1111 = vadd.f32 0.0, %v1110
    %v1112 = vpop.f32.mrb[0].mxu0
    %v1113 = vadd.f32 0.0, %v1112
    %v1114 = vpop.f32.mrb[0].mxu0
    %v1115 = vadd.f32 0.0, %v1114
    %v1116 = vpop.f32.mrb[0].mxu0
    %v1117 = vadd.f32 0.0, %v1116
    %1118 = vdwg.mxu0
    %1119 = vmatprep.subr.bf16.mxu0 %v630
    %1120 = vmatpush1.bf16.msra.mxu0 %v629
    %1121 = vmatprep.subr.bf16.mxu0 %v642
    %1122 = vmatpush1.bf16.msra.mxu0 %v641
    %1123 = vmatprep.subr.bf16.mxu0 %v654
    %1124 = vmatpush1.bf16.msra.mxu0 %v653
    %1125 = vmatprep.subr.bf16.mxu0 %v666
    %1126 = vmatpush1.bf16.msra.mxu0 %v665
    %1127 = vmatprep.subr.bf16.mxu0 %v678
    %1128 = vmatpush1.bf16.msra.mxu0 %v677
    %1129 = vmatprep.subr.bf16.mxu0 %v690
    %1130 = vmatpush1.bf16.msra.mxu0 %v689
    %1131 = vmatprep.subr.bf16.mxu0 %v702
    %1132 = vmatpush1.bf16.msra.mxu0 %v701
    %1133 = vmatprep.subr.bf16.mxu0 %v714
    %1134 = vmatpush1.bf16.msra.mxu0 %v713
    %1135 = vmatprep.subr.bf16.mxu0 %v726
    %1136 = vmatpush1.bf16.msra.mxu0 %v725
    %1137 = vmatprep.subr.bf16.mxu0 %v738
    %1138 = vmatpush1.bf16.msra.mxu0 %v737
    %1139 = vmatprep.subr.bf16.mxu0 %v913
    %1140 = vmatpush1.bf16.msra.mxu0 %v910
    %1141 = vmatprep.subr.bf16.mxu0 0
    %1142 = vmatpush1.bf16.msra.mxu0 0
    %1143 = vmatprep.subr.bf16.mxu0 0
    %1144 = vmatpush1.bf16.msra.mxu0 0
    %1145 = vmatprep.subr.bf16.mxu0 0
    %1146 = vmatpush1.bf16.msra.mxu0 0
    %1147 = vmatprep.subr.bf16.mxu0 0
    %1148 = vmatpush1.bf16.msra.mxu0 0
    %1149 = vmatprep.subr.bf16.mxu0 0
    %1150 = vmatpush1.bf16.msra.mxu0 0
    %1151 = vmatprep.mubr.bf16.mxu0 %v879
    %1152 = vmatmul.mubr.bf16.gmra.mrb[0].mxu0 %v229
    %v1153 = vpop.f32.mrb[0].mxu0
    %v1154 = vadd.f32 0.0, %v1153
    %v1155 = vpop.f32.mrb[0].mxu0
    %v1156 = vadd.f32 0.0, %v1155
    %v1157 = vpop.f32.mrb[0].mxu0
    %v1158 = vadd.f32 0.0, %v1157
    %v1159 = vpop.f32.mrb[0].mxu0
    %v1160 = vadd.f32 0.0, %v1159
    %1161 = vmatprep.mubr.bf16.mxu0 %v882
    %1162 = vmatmul.mubr.bf16.gmra.mrb[0].mxu0 %v231
    %v1163 = vpop.f32.mrb[0].mxu0
    %v1164 = vadd.f32 0.0, %v1163
    %v1165 = vpop.f32.mrb[0].mxu0
    %v1166 = vadd.f32 0.0, %v1165
    %v1167 = vpop.f32.mrb[0].mxu0
    %v1168 = vadd.f32 0.0, %v1167
    %v1169 = vpop.f32.mrb[0].mxu0
    %v1170 = vadd.f32 0.0, %v1169
    %1171 = vmatprep.mubr.bf16.mxu0 %v885
    %1172 = vmatmul.mubr.bf16.gmra.mrb[0].mxu0 %v233
    %v1173 = vpop.f32.mrb[0].mxu0
    %v1174 = vadd.f32 0.0, %v1173
    %v1175 = vpop.f32.mrb[0].mxu0
    %v1176 = vadd.f32 0.0, %v1175
    %v1177 = vpop.f32.mrb[0].mxu0
    %v1178 = vadd.f32 0.0, %v1177
    %v1179 = vpop.f32.mrb[0].mxu0
    %v1180 = vadd.f32 0.0, %v1179
    %1181 = vmatprep.mubr.bf16.mxu0 %v888
    %1182 = vmatmul.mubr.bf16.gmra.mrb[0].mxu0 %v235
    %v1183 = vpop.f32.mrb[0].mxu0
    %v1184 = vadd.f32 0.0, %v1183
    %v1185 = vpop.f32.mrb[0].mxu0
    %v1186 = vadd.f32 0.0, %v1185
    %v1187 = vpop.f32.mrb[0].mxu0
    %v1188 = vadd.f32 0.0, %v1187
    %v1189 = vpop.f32.mrb[0].mxu0
    %v1190 = vadd.f32 0.0, %v1189
    %1191 = vmatprep.mubr.bf16.mxu0 %v891
    %1192 = vmatmul.mubr.bf16.gmra.mrb[0].mxu0 %v237
    %v1193 = vpop.f32.mrb[0].mxu0
    %v1194 = vadd.f32 0.0, %v1193
    %v1195 = vpop.f32.mrb[0].mxu0
    %v1196 = vadd.f32 0.0, %v1195
    %v1197 = vpop.f32.mrb[0].mxu0
    %v1198 = vadd.f32 0.0, %v1197
    %v1199 = vpop.f32.mrb[0].mxu0
    %v1200 = vadd.f32 0.0, %v1199
    %1201 = vmatprep.mubr.bf16.mxu0 %v894
    %1202 = vmatmul.mubr.bf16.gmra.mrb[0].mxu0 %v239
    %v1203 = vpop.f32.mrb[0].mxu0
    %v1204 = vadd.f32 0.0, %v1203
    %v1205 = vpop.f32.mrb[0].mxu0
    %v1206 = vadd.f32 0.0, %v1205
    %v1207 = vpop.f32.mrb[0].mxu0
    %v1208 = vadd.f32 0.0, %v1207
    %v1209 = vpop.f32.mrb[0].mxu0
    %v1210 = vadd.f32 0.0, %v1209
    %1211 = vdwg.mxu0
    %1212 = vmatprep.subr.bf16.mxu0 %v632
    %1213 = vmatpush1.bf16.msra.mxu0 %v631
    %1214 = vmatprep.subr.bf16.mxu0 %v644
    %1215 = vmatpush1.bf16.msra.mxu0 %v643
    %1216 = vmatprep.subr.bf16.mxu0 %v656
    %1217 = vmatpush1.bf16.msra.mxu0 %v655
    %1218 = vmatprep.subr.bf16.mxu0 %v668
    %1219 = vmatpush1.bf16.msra.mxu0 %v667
    %1220 = vmatprep.subr.bf16.mxu0 %v680
    %1221 = vmatpush1.bf16.msra.mxu0 %v679
    %1222 = vmatprep.subr.bf16.mxu0 %v692
    %1223 = vmatpush1.bf16.msra.mxu0 %v691
    %1224 = vmatprep.subr.bf16.mxu0 %v704
    %1225 = vmatpush1.bf16.msra.mxu0 %v703
    %1226 = vmatprep.subr.bf16.mxu0 %v716
    %1227 = vmatpush1.bf16.msra.mxu0 %v715
    %1228 = vmatprep.subr.bf16.mxu0 %v728
    %1229 = vmatpush1.bf16.msra.mxu0 %v727
    %1230 = vmatprep.subr.bf16.mxu0 %v740
    %1231 = vmatpush1.bf16.msra.mxu0 %v739
    %1232 = vmatprep.subr.bf16.mxu0 %v919
    %1233 = vmatpush1.bf16.msra.mxu0 %v916
    %1234 = vmatprep.subr.bf16.mxu0 0
    %1235 = vmatpush1.bf16.msra.mxu0 0
    %1236 = vmatprep.subr.bf16.mxu0 0
    %1237 = vmatpush1.bf16.msra.mxu0 0
    %1238 = vmatprep.subr.bf16.mxu0 0
    %1239 = vmatpush1.bf16.msra.mxu0 0
    %1240 = vmatprep.subr.bf16.mxu0 0
    %1241 = vmatpush1.bf16.msra.mxu0 0
    %1242 = vmatprep.subr.bf16.mxu0 0
    %1243 = vmatpush1.bf16.msra.mxu0 0
    %1244 = vmatprep.mubr.bf16.mxu0 %v879
    %1245 = vmatmul.mubr.bf16.gmra.mrb[0].mxu0 %v229
    %v1246 = vpop.f32.mrb[0].mxu0
    %v1247 = vadd.f32 0.0, %v1246
    %v1248 = vpop.f32.mrb[0].mxu0
    %v1249 = vadd.f32 0.0, %v1248
    %v1250 = vpop.f32.mrb[0].mxu0
    %v1251 = vadd.f32 0.0, %v1250
    %v1252 = vpop.f32.mrb[0].mxu0
    %v1253 = vadd.f32 0.0, %v1252
    %1254 = vmatprep.mubr.bf16.mxu0 %v882
    %1255 = vmatmul.mubr.bf16.gmra.mrb[0].mxu0 %v231
    %v1256 = vpop.f32.mrb[0].mxu0
    %v1257 = vadd.f32 0.0, %v1256
    %v1258 = vpop.f32.mrb[0].mxu0
    %v1259 = vadd.f32 0.0, %v1258
    %v1260 = vpop.f32.mrb[0].mxu0
    %v1261 = vadd.f32 0.0, %v1260
    %v1262 = vpop.f32.mrb[0].mxu0
    %v1263 = vadd.f32 0.0, %v1262
    %1264 = vmatprep.mubr.bf16.mxu0 %v885
    %1265 = vmatmul.mubr.bf16.gmra.mrb[0].mxu0 %v233
    %v1266 = vpop.f32.mrb[0].mxu0
    %v1267 = vadd.f32 0.0, %v1266
    %v1268 = vpop.f32.mrb[0].mxu0
    %v1269 = vadd.f32 0.0, %v1268
    %v1270 = vpop.f32.mrb[0].mxu0
    %v1271 = vadd.f32 0.0, %v1270
    %v1272 = vpop.f32.mrb[0].mxu0
    %v1273 = vadd.f32 0.0, %v1272
    %1274 = vmatprep.mubr.bf16.mxu0 %v888
    %1275 = vmatmul.mubr.bf16.gmra.mrb[0].mxu0 %v235
    %v1276 = vpop.f32.mrb[0].mxu0
    %v1277 = vadd.f32 0.0, %v1276
    %v1278 = vpop.f32.mrb[0].mxu0
    %v1279 = vadd.f32 0.0, %v1278
    %v1280 = vpop.f32.mrb[0].mxu0
    %v1281 = vadd.f32 0.0, %v1280
    %v1282 = vpop.f32.mrb[0].mxu0
    %v1283 = vadd.f32 0.0, %v1282
    %1284 = vmatprep.mubr.bf16.mxu0 %v891
    %1285 = vmatmul.mubr.bf16.gmra.mrb[0].mxu0 %v237
    %v1286 = vpop.f32.mrb[0].mxu0
    %v1287 = vadd.f32 0.0, %v1286
    %v1288 = vpop.f32.mrb[0].mxu0
    %v1289 = vadd.f32 0.0, %v1288
    %v1290 = vpop.f32.mrb[0].mxu0
    %v1291 = vadd.f32 0.0, %v1290
    %v1292 = vpop.f32.mrb[0].mxu0
    %v1293 = vadd.f32 0.0, %v1292
    %1294 = vmatprep.mubr.bf16.mxu0 %v894
    %1295 = vmatmul.mubr.bf16.gmra.mrb[0].mxu0 %v239
    %v1296 = vpop.f32.mrb[0].mxu0
    %v1297 = vadd.f32 0.0, %v1296
    %v1298 = vpop.f32.mrb[0].mxu0
    %v1299 = vadd.f32 0.0, %v1298
    %v1300 = vpop.f32.mrb[0].mxu0
    %v1301 = vadd.f32 0.0, %v1300
    %v1302 = vpop.f32.mrb[0].mxu0
    %v1303 = vadd.f32 0.0, %v1302
    %1304 = vdwg.mxu0
    %1305 = vmatprep.subr.bf16.mxu0 %v634
    %1306 = vmatpush1.bf16.msra.mxu0 %v633
    %1307 = vmatprep.subr.bf16.mxu0 %v646
    %1308 = vmatpush1.bf16.msra.mxu0 %v645
    %1309 = vmatprep.subr.bf16.mxu0 %v658
    %1310 = vmatpush1.bf16.msra.mxu0 %v657
    %1311 = vmatprep.subr.bf16.mxu0 %v670
    %1312 = vmatpush1.bf16.msra.mxu0 %v669
    %1313 = vmatprep.subr.bf16.mxu0 %v682
    %1314 = vmatpush1.bf16.msra.mxu0 %v681
    %1315 = vmatprep.subr.bf16.mxu0 %v694
    %1316 = vmatpush1.bf16.msra.mxu0 %v693
    %1317 = vmatprep.subr.bf16.mxu0 %v706
    %1318 = vmatpush1.bf16.msra.mxu0 %v705
    %1319 = vmatprep.subr.bf16.mxu0 %v718
    %1320 = vmatpush1.bf16.msra.mxu0 %v717
    %1321 = vmatprep.subr.bf16.mxu0 %v730
    %1322 = vmatpush1.bf16.msra.mxu0 %v729
    %1323 = vmatprep.subr.bf16.mxu0 %v742
    %1324 = vmatpush1.bf16.msra.mxu0 %v741
    %1325 = vmatprep.subr.bf16.mxu0 %v925
    %1326 = vmatpush1.bf16.msra.mxu0 %v922
    %1327 = vmatprep.subr.bf16.mxu0 0
    %1328 = vmatpush1.bf16.msra.mxu0 0
    %1329 = vmatprep.subr.bf16.mxu0 0
    %1330 = vmatpush1.bf16.msra.mxu0 0
    %1331 = vmatprep.subr.bf16.mxu0 0
    %1332 = vmatpush1.bf16.msra.mxu0 0
    %1333 = vmatprep.subr.bf16.mxu0 0
    %1334 = vmatpush1.bf16.msra.mxu0 0
    %1335 = vmatprep.subr.bf16.mxu0 0
    %1336 = vmatpush1.bf16.msra.mxu0 0
    %1337 = vmatprep.mubr.bf16.mxu0 %v879
    %1338 = vmatmul.mubr.bf16.gmra.mrb[0].mxu0 %v229
    %v1339 = vpop.f32.mrb[0].mxu0
    %v1340 = vadd.f32 0.0, %v1339
    %v1341 = vpop.f32.mrb[0].mxu0
    %v1342 = vadd.f32 0.0, %v1341
    %v1343 = vpop.f32.mrb[0].mxu0
    %v1344 = vadd.f32 0.0, %v1343
    %v1345 = vpop.f32.mrb[0].mxu0
    %v1346 = vadd.f32 0.0, %v1345
    %1347 = vmatprep.mubr.bf16.mxu0 %v882
    %1348 = vmatmul.mubr.bf16.gmra.mrb[0].mxu0 %v231
    %v1349 = vpop.f32.mrb[0].mxu0
    %v1350 = vadd.f32 0.0, %v1349
    %v1351 = vpop.f32.mrb[0].mxu0
    %v1352 = vadd.f32 0.0, %v1351
    %v1353 = vpop.f32.mrb[0].mxu0
    %v1354 = vadd.f32 0.0, %v1353
    %v1355 = vpop.f32.mrb[0].mxu0
    %v1356 = vadd.f32 0.0, %v1355
    %1357 = vmatprep.mubr.bf16.mxu0 %v885
    %1358 = vmatmul.mubr.bf16.gmra.mrb[0].mxu0 %v233
    %v1359 = vpop.f32.mrb[0].mxu0
    %v1360 = vadd.f32 0.0, %v1359
    %v1361 = vpop.f32.mrb[0].mxu0
    %v1362 = vadd.f32 0.0, %v1361
    %v1363 = vpop.f32.mrb[0].mxu0
    %v1364 = vadd.f32 0.0, %v1363
    %v1365 = vpop.f32.mrb[0].mxu0
    %v1366 = vadd.f32 0.0, %v1365
    %1367 = vmatprep.mubr.bf16.mxu0 %v888
    %1368 = vmatmul.mubr.bf16.gmra.mrb[0].mxu0 %v235
    %v1369 = vpop.f32.mrb[0].mxu0
    %v1370 = vadd.f32 0.0, %v1369
    %v1371 = vpop.f32.mrb[0].mxu0
    %v1372 = vadd.f32 0.0, %v1371
    %v1373 = vpop.f32.mrb[0].mxu0
    %v1374 = vadd.f32 0.0, %v1373
    %v1375 = vpop.f32.mrb[0].mxu0
    %v1376 = vadd.f32 0.0, %v1375
    %1377 = vmatprep.mubr.bf16.mxu0 %v891
    %1378 = vmatmul.mubr.bf16.gmra.mrb[0].mxu0 %v237
    %v1379 = vpop.f32.mrb[0].mxu0
    %v1380 = vadd.f32 0.0, %v1379
    %v1381 = vpop.f32.mrb[0].mxu0
    %v1382 = vadd.f32 0.0, %v1381
    %v1383 = vpop.f32.mrb[0].mxu0
    %v1384 = vadd.f32 0.0, %v1383
    %v1385 = vpop.f32.mrb[0].mxu0
    %v1386 = vadd.f32 0.0, %v1385
    %1387 = vmatprep.mubr.bf16.mxu0 %v894
    %1388 = vmatmul.mubr.bf16.gmra.mrb[0].mxu0 %v239
    %v1389 = vpop.f32.mrb[0].mxu0
    %v1390 = vadd.f32 0.0, %v1389
    %v1391 = vpop.f32.mrb[0].mxu0
    %v1392 = vadd.f32 0.0, %v1391
    %v1393 = vpop.f32.mrb[0].mxu0
    %v1394 = vadd.f32 0.0, %v1393
    %v1395 = vpop.f32.mrb[0].mxu0
    %v1396 = vadd.f32 0.0, %v1395
    %1397 = vdwg.mxu0
    %1398 = vmatprep.subr.bf16.mxu0 %v636
    %1399 = vmatpush1.bf16.msra.mxu0 %v635
    %1400 = vmatprep.subr.bf16.mxu0 %v648
    %1401 = vmatpush1.bf16.msra.mxu0 %v647
    %1402 = vmatprep.subr.bf16.mxu0 %v660
    %1403 = vmatpush1.bf16.msra.mxu0 %v659
    %1404 = vmatprep.subr.bf16.mxu0 %v672
    %1405 = vmatpush1.bf16.msra.mxu0 %v671
    %1406 = vmatprep.subr.bf16.mxu0 %v684
    %1407 = vmatpush1.bf16.msra.mxu0 %v683
    %1408 = vmatprep.subr.bf16.mxu0 %v696
    %1409 = vmatpush1.bf16.msra.mxu0 %v695
    %1410 = vmatprep.subr.bf16.mxu0 %v708
    %1411 = vmatpush1.bf16.msra.mxu0 %v707
    %1412 = vmatprep.subr.bf16.mxu0 %v720
    %1413 = vmatpush1.bf16.msra.mxu0 %v719
    %1414 = vmatprep.subr.bf16.mxu0 %v732
    %1415 = vmatpush1.bf16.msra.mxu0 %v731
    %1416 = vmatprep.subr.bf16.mxu0 %v744
    %1417 = vmatpush1.bf16.msra.mxu0 %v743
    %1418 = vmatprep.subr.bf16.mxu0 %v931
    %1419 = vmatpush1.bf16.msra.mxu0 %v928
    %1420 = vmatprep.subr.bf16.mxu0 0
    %1421 = vmatpush1.bf16.msra.mxu0 0
    %1422 = vmatprep.subr.bf16.mxu0 0
    %1423 = vmatpush1.bf16.msra.mxu0 0
    %1424 = vmatprep.subr.bf16.mxu0 0
    %1425 = vmatpush1.bf16.msra.mxu0 0
    %1426 = vmatprep.subr.bf16.mxu0 0
    %1427 = vmatpush1.bf16.msra.mxu0 0
    %1428 = vmatprep.subr.bf16.mxu0 0
    %1429 = vmatpush1.bf16.msra.mxu0 0
    %1430 = vmatprep.mubr.bf16.mxu0 %v879
    %1431 = vmatmul.mubr.bf16.gmra.mrb[0].mxu0 %v229
    %v1432 = vpop.f32.mrb[0].mxu0
    %v1433 = vadd.f32 0.0, %v1432
    %v1434 = vpop.f32.mrb[0].mxu0
    %v1435 = vadd.f32 0.0, %v1434
    %v1436 = vpop.f32.mrb[0].mxu0
    %v1437 = vadd.f32 0.0, %v1436
    %v1438 = vpop.f32.mrb[0].mxu0
    %v1439 = vadd.f32 0.0, %v1438
    %1440 = vmatprep.mubr.bf16.mxu0 %v882
    %1441 = vmatmul.mubr.bf16.gmra.mrb[0].mxu0 %v231
    %v1442 = vpop.f32.mrb[0].mxu0
    %v1443 = vadd.f32 0.0, %v1442
    %v1444 = vpop.f32.mrb[0].mxu0
    %v1445 = vadd.f32 0.0, %v1444
    %v1446 = vpop.f32.mrb[0].mxu0
    %v1447 = vadd.f32 0.0, %v1446
    %v1448 = vpop.f32.mrb[0].mxu0
    %v1449 = vadd.f32 0.0, %v1448
    %1450 = vmatprep.mubr.bf16.mxu0 %v885
    %1451 = vmatmul.mubr.bf16.gmra.mrb[0].mxu0 %v233
    %v1452 = vpop.f32.mrb[0].mxu0
    %v1453 = vadd.f32 0.0, %v1452
    %v1454 = vpop.f32.mrb[0].mxu0
    %v1455 = vadd.f32 0.0, %v1454
    %v1456 = vpop.f32.mrb[0].mxu0
    %v1457 = vadd.f32 0.0, %v1456
    %v1458 = vpop.f32.mrb[0].mxu0
    %v1459 = vadd.f32 0.0, %v1458
    %1460 = vmatprep.mubr.bf16.mxu0 %v888
    %1461 = vmatmul.mubr.bf16.gmra.mrb[0].mxu0 %v235
    %v1462 = vpop.f32.mrb[0].mxu0
    %v1463 = vadd.f32 0.0, %v1462
    %v1464 = vpop.f32.mrb[0].mxu0
    %v1465 = vadd.f32 0.0, %v1464
    %v1466 = vpop.f32.mrb[0].mxu0
    %v1467 = vadd.f32 0.0, %v1466
    %v1468 = vpop.f32.mrb[0].mxu0
    %v1469 = vadd.f32 0.0, %v1468
    %1470 = vmatprep.mubr.bf16.mxu0 %v891
    %1471 = vmatmul.mubr.bf16.gmra.mrb[0].mxu0 %v237
    %v1472 = vpop.f32.mrb[0].mxu0
    %v1473 = vadd.f32 0.0, %v1472
    %v1474 = vpop.f32.mrb[0].mxu0
    %v1475 = vadd.f32 0.0, %v1474
    %v1476 = vpop.f32.mrb[0].mxu0
    %v1477 = vadd.f32 0.0, %v1476
    %v1478 = vpop.f32.mrb[0].mxu0
    %v1479 = vadd.f32 0.0, %v1478
    %1480 = vmatprep.mubr.bf16.mxu0 %v894
    %1481 = vmatmul.mubr.bf16.gmra.mrb[0].mxu0 %v239
    %v1482 = vpop.f32.mrb[0].mxu0
    %v1483 = vadd.f32 0.0, %v1482
    %v1484 = vpop.f32.mrb[0].mxu0
    %v1485 = vadd.f32 0.0, %v1484
    %v1486 = vpop.f32.mrb[0].mxu0
    %v1487 = vadd.f32 0.0, %v1486
    %v1488 = vpop.f32.mrb[0].mxu0
    %v1489 = vadd.f32 0.0, %v1488
    %1490 = vdwg.mxu0
    %v1491 = vld [vmem:[#allocation4] sm:$0xff]
    %v1492 = vld [vmem:[#allocation4 + $0x8] sm:$0xf]
    %v1495 = vlaneseq
    %v1496 = vshrl.u32 %v1495, 7
    %v1497 = vsub.s32 0, %v1496
    %v1498 = vrot.slane %v1491, %v1497
    %v1499 = vlaneseq
    %v1500 = vshrl.u32 %v1499, 7
    %v1501 = vsub.s32 1, %v1500
    %v1502 = vrot.slane %v1491, %v1501
    %v1503 = vlaneseq
    %v1504 = vshrl.u32 %v1503, 7
    %v1505 = vsub.s32 2, %v1504
    %v1506 = vrot.slane %v1491, %v1505
    %v1507 = vlaneseq
    %v1508 = vshrl.u32 %v1507, 7
    %v1509 = vsub.s32 3, %v1508
    %v1510 = vrot.slane %v1491, %v1509
    %v1511 = vlaneseq
    %v1512 = vshrl.u32 %v1511, 7
    %v1513 = vsub.s32 4, %v1512
    %v1514 = vrot.slane %v1491, %v1513
    %v1515 = vlaneseq
    %v1516 = vshrl.u32 %v1515, 7
    %v1517 = vsub.s32 5, %v1516
    %v1518 = vrot.slane %v1491, %v1517
    %v1519 = vlaneseq
    %v1520 = vshrl.u32 %v1519, 7
    %v1521 = vsub.s32 6, %v1520
    %v1522 = vrot.slane %v1491, %v1521
    %v1523 = vlaneseq
    %v1524 = vshrl.u32 %v1523, 7
    %v1525 = vsub.s32 7, %v1524
    %v1526 = vrot.slane %v1491, %v1525
    %v1527 = vlaneseq
    %v1528 = vshrl.u32 %v1527, 7
    %v1529 = vsub.s32 0, %v1528
    %v1530 = vrot.slane %v1492, %v1529
    %v1531 = vlaneseq
    %v1532 = vshrl.u32 %v1531, 7
    %v1533 = vsub.s32 1, %v1532
    %v1534 = vrot.slane %v1492, %v1533
    %v1535 = vlaneseq
    %v1536 = vshrl.u32 %v1535, 7
    %v1537 = vsub.s32 2, %v1536
    %v1538 = vrot.slane %v1492, %v1537
    %v1539 = vlaneseq
    %v1540 = vshrl.u32 %v1539, 7
    %v1541 = vsub.s32 3, %v1540
    %v1542 = vrot.slane %v1492, %v1541
    %v1555 = vmul.f32 %v968, %v1498
    %v1556 = vmul.f32 %v970, %v1502
    %v1557 = vmul.f32 %v1061, %v1506
    %v1558 = vmul.f32 %v1063, %v1510
    %v1559 = vmul.f32 %v1154, %v1514
    %v1560 = vmul.f32 %v1156, %v1518
    %v1561 = vmul.f32 %v1247, %v1522
    %v1562 = vmul.f32 %v1249, %v1526
    %v1563 = vmul.f32 %v1340, %v1530
    %v1564 = vmul.f32 %v1342, %v1534
    %v1565 = vmul.f32 %v1433, %v1538
    %v1566 = vmul.f32 %v1435, %v1542
    %v1567 = vmul.f32 %v972, %v1498
    %v1568 = vmul.f32 %v974, %v1502
    %v1569 = vmul.f32 %v1065, %v1506
    %v1570 = vmul.f32 %v1067, %v1510
    %v1571 = vmul.f32 %v1158, %v1514
    %v1572 = vmul.f32 %v1160, %v1518
    %v1573 = vmul.f32 %v1251, %v1522
    %v1574 = vmul.f32 %v1253, %v1526
    %v1575 = vmul.f32 %v1344, %v1530
    %v1576 = vmul.f32 %v1346, %v1534
    %v1577 = vmul.f32 %v1437, %v1538
    %v1578 = vmul.f32 %v1439, %v1542
    %v1579 = vmul.f32 %v978, %v1498
    %v1580 = vmul.f32 %v980, %v1502
    %v1581 = vmul.f32 %v1071, %v1506
    %v1582 = vmul.f32 %v1073, %v1510
    %v1583 = vmul.f32 %v1164, %v1514
    %v1584 = vmul.f32 %v1166, %v1518
    %v1585 = vmul.f32 %v1257, %v1522
    %v1586 = vmul.f32 %v1259, %v1526
    %v1587 = vmul.f32 %v1350, %v1530
    %v1588 = vmul.f32 %v1352, %v1534
    %v1589 = vmul.f32 %v1443, %v1538
    %v1590 = vmul.f32 %v1445, %v1542
    %v1591 = vmul.f32 %v982, %v1498
    %v1592 = vmul.f32 %v984, %v1502
    %v1593 = vmul.f32 %v1075, %v1506
    %v1594 = vmul.f32 %v1077, %v1510
    %v1595 = vmul.f32 %v1168, %v1514
    %v1596 = vmul.f32 %v1170, %v1518
    %v1597 = vmul.f32 %v1261, %v1522
    %v1598 = vmul.f32 %v1263, %v1526
    %v1599 = vmul.f32 %v1354, %v1530
    %v1600 = vmul.f32 %v1356, %v1534
    %v1601 = vmul.f32 %v1447, %v1538
    %v1602 = vmul.f32 %v1449, %v1542
    %v1603 = vmul.f32 %v988, %v1498
    %v1604 = vmul.f32 %v990, %v1502
    %v1605 = vmul.f32 %v1081, %v1506
    %v1606 = vmul.f32 %v1083, %v1510
    %v1607 = vmul.f32 %v1174, %v1514
    %v1608 = vmul.f32 %v1176, %v1518
    %v1609 = vmul.f32 %v1267, %v1522
    %v1610 = vmul.f32 %v1269, %v1526
    %v1611 = vmul.f32 %v1360, %v1530
    %v1612 = vmul.f32 %v1362, %v1534
    %v1613 = vmul.f32 %v1453, %v1538
    %v1614 = vmul.f32 %v1455, %v1542
    %v1615 = vmul.f32 %v992, %v1498
    %v1616 = vmul.f32 %v994, %v1502
    %v1617 = vmul.f32 %v1085, %v1506
    %v1618 = vmul.f32 %v1087, %v1510
    %v1619 = vmul.f32 %v1178, %v1514
    %v1620 = vmul.f32 %v1180, %v1518
    %v1621 = vmul.f32 %v1271, %v1522
    %v1622 = vmul.f32 %v1273, %v1526
    %v1623 = vmul.f32 %v1364, %v1530
    %v1624 = vmul.f32 %v1366, %v1534
    %v1625 = vmul.f32 %v1457, %v1538
    %v1626 = vmul.f32 %v1459, %v1542
    %v1627 = vmul.f32 %v998, %v1498
    %v1628 = vmul.f32 %v1000, %v1502
    %v1629 = vmul.f32 %v1091, %v1506
    %v1630 = vmul.f32 %v1093, %v1510
    %v1631 = vmul.f32 %v1184, %v1514
    %v1632 = vmul.f32 %v1186, %v1518
    %v1633 = vmul.f32 %v1277, %v1522
    %v1634 = vmul.f32 %v1279, %v1526
    %v1635 = vmul.f32 %v1370, %v1530
    %v1636 = vmul.f32 %v1372, %v1534
    %v1637 = vmul.f32 %v1463, %v1538
    %v1638 = vmul.f32 %v1465, %v1542
    %v1639 = vmul.f32 %v1002, %v1498
    %v1640 = vmul.f32 %v1004, %v1502
    %v1641 = vmul.f32 %v1095, %v1506
    %v1642 = vmul.f32 %v1097, %v1510
    %v1643 = vmul.f32 %v1188, %v1514
    %v1644 = vmul.f32 %v1190, %v1518
    %v1645 = vmul.f32 %v1281, %v1522
    %v1646 = vmul.f32 %v1283, %v1526
    %v1647 = vmul.f32 %v1374, %v1530
    %v1648 = vmul.f32 %v1376, %v1534
    %v1649 = vmul.f32 %v1467, %v1538
    %v1650 = vmul.f32 %v1469, %v1542
    %v1651 = vmul.f32 %v1008, %v1498
    %v1652 = vmul.f32 %v1010, %v1502
    %v1653 = vmul.f32 %v1101, %v1506
    %v1654 = vmul.f32 %v1103, %v1510
    %v1655 = vmul.f32 %v1194, %v1514
    %v1656 = vmul.f32 %v1196, %v1518
    %v1657 = vmul.f32 %v1287, %v1522
    %v1658 = vmul.f32 %v1289, %v1526
    %v1659 = vmul.f32 %v1380, %v1530
    %v1660 = vmul.f32 %v1382, %v1534
    %v1661 = vmul.f32 %v1473, %v1538
    %v1662 = vmul.f32 %v1475, %v1542
    %v1663 = vmul.f32 %v1012, %v1498
    %v1664 = vmul.f32 %v1014, %v1502
    %v1665 = vmul.f32 %v1105, %v1506
    %v1666 = vmul.f32 %v1107, %v1510
    %v1667 = vmul.f32 %v1198, %v1514
    %v1668 = vmul.f32 %v1200, %v1518
    %v1669 = vmul.f32 %v1291, %v1522
    %v1670 = vmul.f32 %v1293, %v1526
    %v1671 = vmul.f32 %v1384, %v1530
    %v1672 = vmul.f32 %v1386, %v1534
    %v1673 = vmul.f32 %v1477, %v1538
    %v1674 = vmul.f32 %v1479, %v1542
    %v1675 = vmul.f32 %v1018, %v1498
    %v1676 = vmul.f32 %v1020, %v1502
    %v1677 = vmul.f32 %v1111, %v1506
    %v1678 = vmul.f32 %v1113, %v1510
    %v1679 = vmul.f32 %v1204, %v1514
    %v1680 = vmul.f32 %v1206, %v1518
    %v1681 = vmul.f32 %v1297, %v1522
    %v1682 = vmul.f32 %v1299, %v1526
    %v1683 = vmul.f32 %v1390, %v1530
    %v1684 = vmul.f32 %v1392, %v1534
    %v1685 = vmul.f32 %v1483, %v1538
    %v1686 = vmul.f32 %v1485, %v1542
    %v1687 = vmul.f32 %v1022, %v1498
    %v1688 = vmul.f32 %v1024, %v1502
    %v1689 = vmul.f32 %v1115, %v1506
    %v1690 = vmul.f32 %v1117, %v1510
    %v1691 = vmul.f32 %v1208, %v1514
    %v1692 = vmul.f32 %v1210, %v1518
    %v1693 = vmul.f32 %v1301, %v1522
    %v1694 = vmul.f32 %v1303, %v1526
    %v1695 = vmul.f32 %v1394, %v1530
    %v1696 = vmul.f32 %v1396, %v1534
    %v1697 = vmul.f32 %v1487, %v1538
    %v1698 = vmul.f32 %v1489, %v1542
    %v1699 = vld [vmem:[#allocation6] sm:$0xff]
    %v1700 = vld [vmem:[#allocation6 + $0x8] sm:$0xf]
    %v1703 = vlaneseq
    %v1704 = vshrl.u32 %v1703, 7
    %v1705 = vsub.s32 0, %v1704
    %v1706 = vrot.slane %v1699, %v1705
    %v1707 = vlaneseq
    %v1708 = vshrl.u32 %v1707, 7
    %v1709 = vsub.s32 1, %v1708
    %v1710 = vrot.slane %v1699, %v1709
    %v1711 = vlaneseq
    %v1712 = vshrl.u32 %v1711, 7
    %v1713 = vsub.s32 2, %v1712
    %v1714 = vrot.slane %v1699, %v1713
    %v1715 = vlaneseq
    %v1716 = vshrl.u32 %v1715, 7
    %v1717 = vsub.s32 3, %v1716
    %v1718 = vrot.slane %v1699, %v1717
    %v1719 = vlaneseq
    %v1720 = vshrl.u32 %v1719, 7
    %v1721 = vsub.s32 4, %v1720
    %v1722 = vrot.slane %v1699, %v1721
    %v1723 = vlaneseq
    %v1724 = vshrl.u32 %v1723, 7
    %v1725 = vsub.s32 5, %v1724
    %v1726 = vrot.slane %v1699, %v1725
    %v1727 = vlaneseq
    %v1728 = vshrl.u32 %v1727, 7
    %v1729 = vsub.s32 6, %v1728
    %v1730 = vrot.slane %v1699, %v1729
    %v1731 = vlaneseq
    %v1732 = vshrl.u32 %v1731, 7
    %v1733 = vsub.s32 7, %v1732
    %v1734 = vrot.slane %v1699, %v1733
    %v1735 = vlaneseq
    %v1736 = vshrl.u32 %v1735, 7
    %v1737 = vsub.s32 0, %v1736
    %v1738 = vrot.slane %v1700, %v1737
    %v1739 = vlaneseq
    %v1740 = vshrl.u32 %v1739, 7
    %v1741 = vsub.s32 1, %v1740
    %v1742 = vrot.slane %v1700, %v1741
    %v1743 = vlaneseq
    %v1744 = vshrl.u32 %v1743, 7
    %v1745 = vsub.s32 2, %v1744
    %v1746 = vrot.slane %v1700, %v1745
    %v1747 = vlaneseq
    %v1748 = vshrl.u32 %v1747, 7
    %v1749 = vsub.s32 3, %v1748
    %v1750 = vrot.slane %v1700, %v1749
    %v1763 = vadd.f32 %v1555, %v1706
    %v1764 = vadd.f32 %v1556, %v1710
    %v1765 = vadd.f32 %v1557, %v1714
    %v1766 = vadd.f32 %v1558, %v1718
    %v1767 = vadd.f32 %v1559, %v1722
    %v1768 = vadd.f32 %v1560, %v1726
    %v1769 = vadd.f32 %v1561, %v1730
    %v1770 = vadd.f32 %v1562, %v1734
    %v1771 = vadd.f32 %v1563, %v1738
    %v1772 = vadd.f32 %v1564, %v1742
    %v1773 = vadd.f32 %v1565, %v1746
    %v1774 = vadd.f32 %v1566, %v1750
    %v1775 = vadd.f32 %v1567, %v1706
    %v1776 = vadd.f32 %v1568, %v1710
    %v1777 = vadd.f32 %v1569, %v1714
    %v1778 = vadd.f32 %v1570, %v1718
    %v1779 = vadd.f32 %v1571, %v1722
    %v1780 = vadd.f32 %v1572, %v1726
    %v1781 = vadd.f32 %v1573, %v1730
    %v1782 = vadd.f32 %v1574, %v1734
    %v1783 = vadd.f32 %v1575, %v1738
    %v1784 = vadd.f32 %v1576, %v1742
    %v1785 = vadd.f32 %v1577, %v1746
    %v1786 = vadd.f32 %v1578, %v1750
    %v1787 = vadd.f32 %v1579, %v1706
    %v1788 = vadd.f32 %v1580, %v1710
    %v1789 = vadd.f32 %v1581, %v1714
    %v1790 = vadd.f32 %v1582, %v1718
    %v1791 = vadd.f32 %v1583, %v1722
    %v1792 = vadd.f32 %v1584, %v1726
    %v1793 = vadd.f32 %v1585, %v1730
    %v1794 = vadd.f32 %v1586, %v1734
    %v1795 = vadd.f32 %v1587, %v1738
    %v1796 = vadd.f32 %v1588, %v1742
    %v1797 = vadd.f32 %v1589, %v1746
    %v1798 = vadd.f32 %v1590, %v1750
    %v1799 = vadd.f32 %v1591, %v1706
    %v1800 = vadd.f32 %v1592, %v1710
    %v1801 = vadd.f32 %v1593, %v1714
    %v1802 = vadd.f32 %v1594, %v1718
    %v1803 = vadd.f32 %v1595, %v1722
    %v1804 = vadd.f32 %v1596, %v1726
    %v1805 = vadd.f32 %v1597, %v1730
    %v1806 = vadd.f32 %v1598, %v1734
    %v1807 = vadd.f32 %v1599, %v1738
    %v1808 = vadd.f32 %v1600, %v1742
    %v1809 = vadd.f32 %v1601, %v1746
    %v1810 = vadd.f32 %v1602, %v1750
    %v1811 = vadd.f32 %v1603, %v1706
    %v1812 = vadd.f32 %v1604, %v1710
    %v1813 = vadd.f32 %v1605, %v1714
    %v1814 = vadd.f32 %v1606, %v1718
    %v1815 = vadd.f32 %v1607, %v1722
    %v1816 = vadd.f32 %v1608, %v1726
    %v1817 = vadd.f32 %v1609, %v1730
    %v1818 = vadd.f32 %v1610, %v1734
    %v1819 = vadd.f32 %v1611, %v1738
    %v1820 = vadd.f32 %v1612, %v1742
    %v1821 = vadd.f32 %v1613, %v1746
    %v1822 = vadd.f32 %v1614, %v1750
    %v1823 = vadd.f32 %v1615, %v1706
    %v1824 = vadd.f32 %v1616, %v1710
    %v1825 = vadd.f32 %v1617, %v1714
    %v1826 = vadd.f32 %v1618, %v1718
    %v1827 = vadd.f32 %v1619, %v1722
    %v1828 = vadd.f32 %v1620, %v1726
    %v1829 = vadd.f32 %v1621, %v1730
    %v1830 = vadd.f32 %v1622, %v1734
    %v1831 = vadd.f32 %v1623, %v1738
    %v1832 = vadd.f32 %v1624, %v1742
    %v1833 = vadd.f32 %v1625, %v1746
    %v1834 = vadd.f32 %v1626, %v1750
    %v1835 = vadd.f32 %v1627, %v1706
    %v1836 = vadd.f32 %v1628, %v1710
    %v1837 = vadd.f32 %v1629, %v1714
    %v1838 = vadd.f32 %v1630, %v1718
    %v1839 = vadd.f32 %v1631, %v1722
    %v1840 = vadd.f32 %v1632, %v1726
    %v1841 = vadd.f32 %v1633, %v1730
    %v1842 = vadd.f32 %v1634, %v1734
    %v1843 = vadd.f32 %v1635, %v1738
    %v1844 = vadd.f32 %v1636, %v1742
    %v1845 = vadd.f32 %v1637, %v1746
    %v1846 = vadd.f32 %v1638, %v1750
    %v1847 = vadd.f32 %v1639, %v1706
    %v1848 = vadd.f32 %v1640, %v1710
    %v1849 = vadd.f32 %v1641, %v1714
    %v1850 = vadd.f32 %v1642, %v1718
    %v1851 = vadd.f32 %v1643, %v1722
    %v1852 = vadd.f32 %v1644, %v1726
    %v1853 = vadd.f32 %v1645, %v1730
    %v1854 = vadd.f32 %v1646, %v1734
    %v1855 = vadd.f32 %v1647, %v1738
    %v1856 = vadd.f32 %v1648, %v1742
    %v1857 = vadd.f32 %v1649, %v1746
    %v1858 = vadd.f32 %v1650, %v1750
    %v1859 = vadd.f32 %v1651, %v1706
    %v1860 = vadd.f32 %v1652, %v1710
    %v1861 = vadd.f32 %v1653, %v1714
    %v1862 = vadd.f32 %v1654, %v1718
    %v1863 = vadd.f32 %v1655, %v1722
    %v1864 = vadd.f32 %v1656, %v1726
    %v1865 = vadd.f32 %v1657, %v1730
    %v1866 = vadd.f32 %v1658, %v1734
    %v1867 = vadd.f32 %v1659, %v1738
    %v1868 = vadd.f32 %v1660, %v1742
    %v1869 = vadd.f32 %v1661, %v1746
    %v1870 = vadd.f32 %v1662, %v1750
    %v1871 = vadd.f32 %v1663, %v1706
    %v1872 = vadd.f32 %v1664, %v1710
    %v1873 = vadd.f32 %v1665, %v1714
    %v1874 = vadd.f32 %v1666, %v1718
    %v1875 = vadd.f32 %v1667, %v1722
    %v1876 = vadd.f32 %v1668, %v1726
    %v1877 = vadd.f32 %v1669, %v1730
    %v1878 = vadd.f32 %v1670, %v1734
    %v1879 = vadd.f32 %v1671, %v1738
    %v1880 = vadd.f32 %v1672, %v1742
    %v1881 = vadd.f32 %v1673, %v1746
    %v1882 = vadd.f32 %v1674, %v1750
    %v1883 = vadd.f32 %v1675, %v1706
    %v1884 = vadd.f32 %v1676, %v1710
    %v1885 = vadd.f32 %v1677, %v1714
    %v1886 = vadd.f32 %v1678, %v1718
    %v1887 = vadd.f32 %v1679, %v1722
    %v1888 = vadd.f32 %v1680, %v1726
    %v1889 = vadd.f32 %v1681, %v1730
    %v1890 = vadd.f32 %v1682, %v1734
    %v1891 = vadd.f32 %v1683, %v1738
    %v1892 = vadd.f32 %v1684, %v1742
    %v1893 = vadd.f32 %v1685, %v1746
    %v1894 = vadd.f32 %v1686, %v1750
    %v1895 = vadd.f32 %v1687, %v1706
    %v1896 = vadd.f32 %v1688, %v1710
    %v1897 = vadd.f32 %v1689, %v1714
    %v1898 = vadd.f32 %v1690, %v1718
    %v1899 = vadd.f32 %v1691, %v1722
    %v1900 = vadd.f32 %v1692, %v1726
    %v1901 = vadd.f32 %v1693, %v1730
    %v1902 = vadd.f32 %v1694, %v1734
    %v1903 = vadd.f32 %v1695, %v1738
    %v1904 = vadd.f32 %v1696, %v1742
    %v1905 = vadd.f32 %v1697, %v1746
    %v1906 = vadd.f32 %v1698, %v1750
    %vm1907 = vcmp.gt.f32.partialorder %v1763, 0.0
    %vm1908 = vcmp.gt.f32.partialorder %v1764, 0.0
    %vm1909 = vcmp.gt.f32.partialorder %v1765, 0.0
    %vm1910 = vcmp.gt.f32.partialorder %v1766, 0.0
    %vm1911 = vcmp.gt.f32.partialorder %v1767, 0.0
    %vm1912 = vcmp.gt.f32.partialorder %v1768, 0.0
    %vm1913 = vcmp.gt.f32.partialorder %v1769, 0.0
    %vm1914 = vcmp.gt.f32.partialorder %v1770, 0.0
    %vm1915 = vcmp.gt.f32.partialorder %v1771, 0.0
    %vm1916 = vcmp.gt.f32.partialorder %v1772, 0.0
    %vm1917 = vcmp.gt.f32.partialorder %v1773, 0.0
    %vm1918 = vcmp.gt.f32.partialorder %v1774, 0.0
    %vm1919 = vcmp.gt.f32.partialorder %v1775, 0.0
    %vm1920 = vcmp.gt.f32.partialorder %v1776, 0.0
    %vm1921 = vcmp.gt.f32.partialorder %v1777, 0.0
    %vm1922 = vcmp.gt.f32.partialorder %v1778, 0.0
    %vm1923 = vcmp.gt.f32.partialorder %v1779, 0.0
    %vm1924 = vcmp.gt.f32.partialorder %v1780, 0.0
    %vm1925 = vcmp.gt.f32.partialorder %v1781, 0.0
    %vm1926 = vcmp.gt.f32.partialorder %v1782, 0.0
    %vm1927 = vcmp.gt.f32.partialorder %v1783, 0.0
    %vm1928 = vcmp.gt.f32.partialorder %v1784, 0.0
    %vm1929 = vcmp.gt.f32.partialorder %v1785, 0.0
    %vm1930 = vcmp.gt.f32.partialorder %v1786, 0.0
    %vm1931 = vcmp.gt.f32.partialorder %v1787, 0.0
    %vm1932 = vcmp.gt.f32.partialorder %v1788, 0.0
    %vm1933 = vcmp.gt.f32.partialorder %v1789, 0.0
    %vm1934 = vcmp.gt.f32.partialorder %v1790, 0.0
    %vm1935 = vcmp.gt.f32.partialorder %v1791, 0.0
    %vm1936 = vcmp.gt.f32.partialorder %v1792, 0.0
    %vm1937 = vcmp.gt.f32.partialorder %v1793, 0.0
    %vm1938 = vcmp.gt.f32.partialorder %v1794, 0.0
    %vm1939 = vcmp.gt.f32.partialorder %v1795, 0.0
    %vm1940 = vcmp.gt.f32.partialorder %v1796, 0.0
    %vm1941 = vcmp.gt.f32.partialorder %v1797, 0.0
    %vm1942 = vcmp.gt.f32.partialorder %v1798, 0.0
    %vm1943 = vcmp.gt.f32.partialorder %v1799, 0.0
    %vm1944 = vcmp.gt.f32.partialorder %v1800, 0.0
    %vm1945 = vcmp.gt.f32.partialorder %v1801, 0.0
    %vm1946 = vcmp.gt.f32.partialorder %v1802, 0.0
    %vm1947 = vcmp.gt.f32.partialorder %v1803, 0.0
    %vm1948 = vcmp.gt.f32.partialorder %v1804, 0.0
    %vm1949 = vcmp.gt.f32.partialorder %v1805, 0.0
    %vm1950 = vcmp.gt.f32.partialorder %v1806, 0.0
    %vm1951 = vcmp.gt.f32.partialorder %v1807, 0.0
    %vm1952 = vcmp.gt.f32.partialorder %v1808, 0.0
    %vm1953 = vcmp.gt.f32.partialorder %v1809, 0.0
    %vm1954 = vcmp.gt.f32.partialorder %v1810, 0.0
    %vm1955 = vcmp.gt.f32.partialorder %v1811, 0.0
    %vm1956 = vcmp.gt.f32.partialorder %v1812, 0.0
    %vm1957 = vcmp.gt.f32.partialorder %v1813, 0.0
    %vm1958 = vcmp.gt.f32.partialorder %v1814, 0.0
    %vm1959 = vcmp.gt.f32.partialorder %v1815, 0.0
    %vm1960 = vcmp.gt.f32.partialorder %v1816, 0.0
    %vm1961 = vcmp.gt.f32.partialorder %v1817, 0.0
    %vm1962 = vcmp.gt.f32.partialorder %v1818, 0.0
    %vm1963 = vcmp.gt.f32.partialorder %v1819, 0.0
    %vm1964 = vcmp.gt.f32.partialorder %v1820, 0.0
    %vm1965 = vcmp.gt.f32.partialorder %v1821, 0.0
    %vm1966 = vcmp.gt.f32.partialorder %v1822, 0.0
    %vm1967 = vcmp.gt.f32.partialorder %v1823, 0.0
    %vm1968 = vcmp.gt.f32.partialorder %v1824, 0.0
    %vm1969 = vcmp.gt.f32.partialorder %v1825, 0.0
    %vm1970 = vcmp.gt.f32.partialorder %v1826, 0.0
    %vm1971 = vcmp.gt.f32.partialorder %v1827, 0.0
    %vm1972 = vcmp.gt.f32.partialorder %v1828, 0.0
    %vm1973 = vcmp.gt.f32.partialorder %v1829, 0.0
    %vm1974 = vcmp.gt.f32.partialorder %v1830, 0.0
    %vm1975 = vcmp.gt.f32.partialorder %v1831, 0.0
    %vm1976 = vcmp.gt.f32.partialorder %v1832, 0.0
    %vm1977 = vcmp.gt.f32.partialorder %v1833, 0.0
    %vm1978 = vcmp.gt.f32.partialorder %v1834, 0.0
    %vm1979 = vcmp.gt.f32.partialorder %v1835, 0.0
    %vm1980 = vcmp.gt.f32.partialorder %v1836, 0.0
    %vm1981 = vcmp.gt.f32.partialorder %v1837, 0.0
    %vm1982 = vcmp.gt.f32.partialorder %v1838, 0.0
    %vm1983 = vcmp.gt.f32.partialorder %v1839, 0.0
    %vm1984 = vcmp.gt.f32.partialorder %v1840, 0.0
    %vm1985 = vcmp.gt.f32.partialorder %v1841, 0.0
    %vm1986 = vcmp.gt.f32.partialorder %v1842, 0.0
    %vm1987 = vcmp.gt.f32.partialorder %v1843, 0.0
    %vm1988 = vcmp.gt.f32.partialorder %v1844, 0.0
    %vm1989 = vcmp.gt.f32.partialorder %v1845, 0.0
    %vm1990 = vcmp.gt.f32.partialorder %v1846, 0.0
    %vm1991 = vcmp.gt.f32.partialorder %v1847, 0.0
    %vm1992 = vcmp.gt.f32.partialorder %v1848, 0.0
    %vm1993 = vcmp.gt.f32.partialorder %v1849, 0.0
    %vm1994 = vcmp.gt.f32.partialorder %v1850, 0.0
    %vm1995 = vcmp.gt.f32.partialorder %v1851, 0.0
    %vm1996 = vcmp.gt.f32.partialorder %v1852, 0.0
    %vm1997 = vcmp.gt.f32.partialorder %v1853, 0.0
    %vm1998 = vcmp.gt.f32.partialorder %v1854, 0.0
    %vm1999 = vcmp.gt.f32.partialorder %v1855, 0.0
    %vm2000 = vcmp.gt.f32.partialorder %v1856, 0.0
    %vm2001 = vcmp.gt.f32.partialorder %v1857, 0.0
    %vm2002 = vcmp.gt.f32.partialorder %v1858, 0.0
    %vm2003 = vcmp.gt.f32.partialorder %v1859, 0.0
    %vm2004 = vcmp.gt.f32.partialorder %v1860, 0.0
    %vm2005 = vcmp.gt.f32.partialorder %v1861, 0.0
    %vm2006 = vcmp.gt.f32.partialorder %v1862, 0.0
    %vm2007 = vcmp.gt.f32.partialorder %v1863, 0.0
    %vm2008 = vcmp.gt.f32.partialorder %v1864, 0.0
    %vm2009 = vcmp.gt.f32.partialorder %v1865, 0.0
    %vm2010 = vcmp.gt.f32.partialorder %v1866, 0.0
    %vm2011 = vcmp.gt.f32.partialorder %v1867, 0.0
    %vm2012 = vcmp.gt.f32.partialorder %v1868, 0.0
    %vm2013 = vcmp.gt.f32.partialorder %v1869, 0.0
    %vm2014 = vcmp.gt.f32.partialorder %v1870, 0.0
    %vm2015 = vcmp.gt.f32.partialorder %v1871, 0.0
    %vm2016 = vcmp.gt.f32.partialorder %v1872, 0.0
    %vm2017 = vcmp.gt.f32.partialorder %v1873, 0.0
    %vm2018 = vcmp.gt.f32.partialorder %v1874, 0.0
    %vm2019 = vcmp.gt.f32.partialorder %v1875, 0.0
    %vm2020 = vcmp.gt.f32.partialorder %v1876, 0.0
    %vm2021 = vcmp.gt.f32.partialorder %v1877, 0.0
    %vm2022 = vcmp.gt.f32.partialorder %v1878, 0.0
    %vm2023 = vcmp.gt.f32.partialorder %v1879, 0.0
    %vm2024 = vcmp.gt.f32.partialorder %v1880, 0.0
    %vm2025 = vcmp.gt.f32.partialorder %v1881, 0.0
    %vm2026 = vcmp.gt.f32.partialorder %v1882, 0.0
    %vm2027 = vcmp.gt.f32.partialorder %v1883, 0.0
    %vm2028 = vcmp.gt.f32.partialorder %v1884, 0.0
    %vm2029 = vcmp.gt.f32.partialorder %v1885, 0.0
    %vm2030 = vcmp.gt.f32.partialorder %v1886, 0.0
    %vm2031 = vcmp.gt.f32.partialorder %v1887, 0.0
    %vm2032 = vcmp.gt.f32.partialorder %v1888, 0.0
    %vm2033 = vcmp.gt.f32.partialorder %v1889, 0.0
    %vm2034 = vcmp.gt.f32.partialorder %v1890, 0.0
    %vm2035 = vcmp.gt.f32.partialorder %v1891, 0.0
    %vm2036 = vcmp.gt.f32.partialorder %v1892, 0.0
    %vm2037 = vcmp.gt.f32.partialorder %v1893, 0.0
    %vm2038 = vcmp.gt.f32.partialorder %v1894, 0.0
    %vm2039 = vcmp.gt.f32.partialorder %v1895, 0.0
    %vm2040 = vcmp.gt.f32.partialorder %v1896, 0.0
    %vm2041 = vcmp.gt.f32.partialorder %v1897, 0.0
    %vm2042 = vcmp.gt.f32.partialorder %v1898, 0.0
    %vm2043 = vcmp.gt.f32.partialorder %v1899, 0.0
    %vm2044 = vcmp.gt.f32.partialorder %v1900, 0.0
    %vm2045 = vcmp.gt.f32.partialorder %v1901, 0.0
    %vm2046 = vcmp.gt.f32.partialorder %v1902, 0.0
    %vm2047 = vcmp.gt.f32.partialorder %v1903, 0.0
    %vm2048 = vcmp.gt.f32.partialorder %v1904, 0.0
    %vm2049 = vcmp.gt.f32.partialorder %v1905, 0.0
    %vm2050 = vcmp.gt.f32.partialorder %v1906, 0.0
    %v2051 = vmul.f32 %v1763, 0.01
    %v2052 = vmul.f32 %v1764, 0.01
    %v2053 = vmul.f32 %v1765, 0.01
    %v2054 = vmul.f32 %v1766, 0.01
    %v2055 = vmul.f32 %v1767, 0.01
    %v2056 = vmul.f32 %v1768, 0.01
    %v2057 = vmul.f32 %v1769, 0.01
    %v2058 = vmul.f32 %v1770, 0.01
    %v2059 = vmul.f32 %v1771, 0.01
    %v2060 = vmul.f32 %v1772, 0.01
    %v2061 = vmul.f32 %v1773, 0.01
    %v2062 = vmul.f32 %v1774, 0.01
    %v2063 = vmul.f32 %v1775, 0.01
    %v2064 = vmul.f32 %v1776, 0.01
    %v2065 = vmul.f32 %v1777, 0.01
    %v2066 = vmul.f32 %v1778, 0.01
    %v2067 = vmul.f32 %v1779, 0.01
    %v2068 = vmul.f32 %v1780, 0.01
    %v2069 = vmul.f32 %v1781, 0.01
    %v2070 = vmul.f32 %v1782, 0.01
    %v2071 = vmul.f32 %v1783, 0.01
    %v2072 = vmul.f32 %v1784, 0.01
    %v2073 = vmul.f32 %v1785, 0.01
    %v2074 = vmul.f32 %v1786, 0.01
    %v2075 = vmul.f32 %v1787, 0.01
    %v2076 = vmul.f32 %v1788, 0.01
    %v2077 = vmul.f32 %v1789, 0.01
    %v2078 = vmul.f32 %v1790, 0.01
    %v2079 = vmul.f32 %v1791, 0.01
    %v2080 = vmul.f32 %v1792, 0.01
    %v2081 = vmul.f32 %v1793, 0.01
    %v2082 = vmul.f32 %v1794, 0.01
    %v2083 = vmul.f32 %v1795, 0.01
    %v2084 = vmul.f32 %v1796, 0.01
    %v2085 = vmul.f32 %v1797, 0.01
    %v2086 = vmul.f32 %v1798, 0.01
    %v2087 = vmul.f32 %v1799, 0.01
    %v2088 = vmul.f32 %v1800, 0.01
    %v2089 = vmul.f32 %v1801, 0.01
    %v2090 = vmul.f32 %v1802, 0.01
    %v2091 = vmul.f32 %v1803, 0.01
    %v2092 = vmul.f32 %v1804, 0.01
    %v2093 = vmul.f32 %v1805, 0.01
    %v2094 = vmul.f32 %v1806, 0.01
    %v2095 = vmul.f32 %v1807, 0.01
    %v2096 = vmul.f32 %v1808, 0.01
    %v2097 = vmul.f32 %v1809, 0.01
    %v2098 = vmul.f32 %v1810, 0.01
    %v2099 = vmul.f32 %v1811, 0.01
    %v2100 = vmul.f32 %v1812, 0.01
    %v2101 = vmul.f32 %v1813, 0.01
    %v2102 = vmul.f32 %v1814, 0.01
    %v2103 = vmul.f32 %v1815, 0.01
    %v2104 = vmul.f32 %v1816, 0.01
    %v2105 = vmul.f32 %v1817, 0.01
    %v2106 = vmul.f32 %v1818, 0.01
    %v2107 = vmul.f32 %v1819, 0.01
    %v2108 = vmul.f32 %v1820, 0.01
    %v2109 = vmul.f32 %v1821, 0.01
    %v2110 = vmul.f32 %v1822, 0.01
    %v2111 = vmul.f32 %v1823, 0.01
    %v2112 = vmul.f32 %v1824, 0.01
    %v2113 = vmul.f32 %v1825, 0.01
    %v2114 = vmul.f32 %v1826, 0.01
    %v2115 = vmul.f32 %v1827, 0.01
    %v2116 = vmul.f32 %v1828, 0.01
    %v2117 = vmul.f32 %v1829, 0.01
    %v2118 = vmul.f32 %v1830, 0.01
    %v2119 = vmul.f32 %v1831, 0.01
    %v2120 = vmul.f32 %v1832, 0.01
    %v2121 = vmul.f32 %v1833, 0.01
    %v2122 = vmul.f32 %v1834, 0.01
    %v2123 = vmul.f32 %v1835, 0.01
    %v2124 = vmul.f32 %v1836, 0.01
    %v2125 = vmul.f32 %v1837, 0.01
    %v2126 = vmul.f32 %v1838, 0.01
    %v2127 = vmul.f32 %v1839, 0.01
    %v2128 = vmul.f32 %v1840, 0.01
    %v2129 = vmul.f32 %v1841, 0.01
    %v2130 = vmul.f32 %v1842, 0.01
    %v2131 = vmul.f32 %v1843, 0.01
    %v2132 = vmul.f32 %v1844, 0.01
    %v2133 = vmul.f32 %v1845, 0.01
    %v2134 = vmul.f32 %v1846, 0.01
    %v2135 = vmul.f32 %v1847, 0.01
    %v2136 = vmul.f32 %v1848, 0.01
    %v2137 = vmul.f32 %v1849, 0.01
    %v2138 = vmul.f32 %v1850, 0.01
    %v2139 = vmul.f32 %v1851, 0.01
    %v2140 = vmul.f32 %v1852, 0.01
    %v2141 = vmul.f32 %v1853, 0.01
    %v2142 = vmul.f32 %v1854, 0.01
    %v2143 = vmul.f32 %v1855, 0.01
    %v2144 = vmul.f32 %v1856, 0.01
    %v2145 = vmul.f32 %v1857, 0.01
    %v2146 = vmul.f32 %v1858, 0.01
    %v2147 = vmul.f32 %v1859, 0.01
    %v2148 = vmul.f32 %v1860, 0.01
    %v2149 = vmul.f32 %v1861, 0.01
    %v2150 = vmul.f32 %v1862, 0.01
    %v2151 = vmul.f32 %v1863, 0.01
    %v2152 = vmul.f32 %v1864, 0.01
    %v2153 = vmul.f32 %v1865, 0.01
    %v2154 = vmul.f32 %v1866, 0.01
    %v2155 = vmul.f32 %v1867, 0.01
    %v2156 = vmul.f32 %v1868, 0.01
    %v2157 = vmul.f32 %v1869, 0.01
    %v2158 = vmul.f32 %v1870, 0.01
    %v2159 = vmul.f32 %v1871, 0.01
    %v2160 = vmul.f32 %v1872, 0.01
    %v2161 = vmul.f32 %v1873, 0.01
    %v2162 = vmul.f32 %v1874, 0.01
    %v2163 = vmul.f32 %v1875, 0.01
    %v2164 = vmul.f32 %v1876, 0.01
    %v2165 = vmul.f32 %v1877, 0.01
    %v2166 = vmul.f32 %v1878, 0.01
    %v2167 = vmul.f32 %v1879, 0.01
    %v2168 = vmul.f32 %v1880, 0.01
    %v2169 = vmul.f32 %v1881, 0.01
    %v2170 = vmul.f32 %v1882, 0.01
    %v2171 = vmul.f32 %v1883, 0.01
    %v2172 = vmul.f32 %v1884, 0.01
    %v2173 = vmul.f32 %v1885, 0.01
    %v2174 = vmul.f32 %v1886, 0.01
    %v2175 = vmul.f32 %v1887, 0.01
    %v2176 = vmul.f32 %v1888, 0.01
    %v2177 = vmul.f32 %v1889, 0.01
    %v2178 = vmul.f32 %v1890, 0.01
    %v2179 = vmul.f32 %v1891, 0.01
    %v2180 = vmul.f32 %v1892, 0.01
    %v2181 = vmul.f32 %v1893, 0.01
    %v2182 = vmul.f32 %v1894, 0.01
    %v2183 = vmul.f32 %v1895, 0.01
    %v2184 = vmul.f32 %v1896, 0.01
    %v2185 = vmul.f32 %v1897, 0.01
    %v2186 = vmul.f32 %v1898, 0.01
    %v2187 = vmul.f32 %v1899, 0.01
    %v2188 = vmul.f32 %v1900, 0.01
    %v2189 = vmul.f32 %v1901, 0.01
    %v2190 = vmul.f32 %v1902, 0.01
    %v2191 = vmul.f32 %v1903, 0.01
    %v2192 = vmul.f32 %v1904, 0.01
    %v2193 = vmul.f32 %v1905, 0.01
    %v2194 = vmul.f32 %v1906, 0.01
    %v2195 = vsel %vm1907, %v1763, %v2051
    %v2196 = vsel %vm1908, %v1764, %v2052
    %v2197 = vsel %vm1909, %v1765, %v2053
    %v2198 = vsel %vm1910, %v1766, %v2054
    %v2199 = vsel %vm1911, %v1767, %v2055
    %v2200 = vsel %vm1912, %v1768, %v2056
    %v2201 = vsel %vm1913, %v1769, %v2057
    %v2202 = vsel %vm1914, %v1770, %v2058
    %v2203 = vsel %vm1915, %v1771, %v2059
    %v2204 = vsel %vm1916, %v1772, %v2060
    %v2205 = vsel %vm1917, %v1773, %v2061
    %v2206 = vsel %vm1918, %v1774, %v2062
    %v2207 = vsel %vm1919, %v1775, %v2063
    %v2208 = vsel %vm1920, %v1776, %v2064
    %v2209 = vsel %vm1921, %v1777, %v2065
    %v2210 = vsel %vm1922, %v1778, %v2066
    %v2211 = vsel %vm1923, %v1779, %v2067
    %v2212 = vsel %vm1924, %v1780, %v2068
    %v2213 = vsel %vm1925, %v1781, %v2069
    %v2214 = vsel %vm1926, %v1782, %v2070
    %v2215 = vsel %vm1927, %v1783, %v2071
    %v2216 = vsel %vm1928, %v1784, %v2072
    %v2217 = vsel %vm1929, %v1785, %v2073
    %v2218 = vsel %vm1930, %v1786, %v2074
    %v2219 = vsel %vm1931, %v1787, %v2075
    %v2220 = vsel %vm1932, %v1788, %v2076
    %v2221 = vsel %vm1933, %v1789, %v2077
    %v2222 = vsel %vm1934, %v1790, %v2078
    %v2223 = vsel %vm1935, %v1791, %v2079
    %v2224 = vsel %vm1936, %v1792, %v2080
    %v2225 = vsel %vm1937, %v1793, %v2081
    %v2226 = vsel %vm1938, %v1794, %v2082
    %v2227 = vsel %vm1939, %v1795, %v2083
    %v2228 = vsel %vm1940, %v1796, %v2084
    %v2229 = vsel %vm1941, %v1797, %v2085
    %v2230 = vsel %vm1942, %v1798, %v2086
    %v2231 = vsel %vm1943, %v1799, %v2087
    %v2232 = vsel %vm1944, %v1800, %v2088
    %v2233 = vsel %vm1945, %v1801, %v2089
    %v2234 = vsel %vm1946, %v1802, %v2090
    %v2235 = vsel %vm1947, %v1803, %v2091
    %v2236 = vsel %vm1948, %v1804, %v2092
    %v2237 = vsel %vm1949, %v1805, %v2093
    %v2238 = vsel %vm1950, %v1806, %v2094
    %v2239 = vsel %vm1951, %v1807, %v2095
    %v2240 = vsel %vm1952, %v1808, %v2096
    %v2241 = vsel %vm1953, %v1809, %v2097
    %v2242 = vsel %vm1954, %v1810, %v2098
    %v2243 = vsel %vm1955, %v1811, %v2099
    %v2244 = vsel %vm1956, %v1812, %v2100
    %v2245 = vsel %vm1957, %v1813, %v2101
    %v2246 = vsel %vm1958, %v1814, %v2102
    %v2247 = vsel %vm1959, %v1815, %v2103
    %v2248 = vsel %vm1960, %v1816, %v2104
    %v2249 = vsel %vm1961, %v1817, %v2105
    %v2250 = vsel %vm1962, %v1818, %v2106
    %v2251 = vsel %vm1963, %v1819, %v2107
    %v2252 = vsel %vm1964, %v1820, %v2108
    %v2253 = vsel %vm1965, %v1821, %v2109
    %v2254 = vsel %vm1966, %v1822, %v2110
    %v2255 = vsel %vm1967, %v1823, %v2111
    %v2256 = vsel %vm1968, %v1824, %v2112
    %v2257 = vsel %vm1969, %v1825, %v2113
    %v2258 = vsel %vm1970, %v1826, %v2114
    %v2259 = vsel %vm1971, %v1827, %v2115
    %v2260 = vsel %vm1972, %v1828, %v2116
    %v2261 = vsel %vm1973, %v1829, %v2117
    %v2262 = vsel %vm1974, %v1830, %v2118
    %v2263 = vsel %vm1975, %v1831, %v2119
    %v2264 = vsel %vm1976, %v1832, %v2120
    %v2265 = vsel %vm1977, %v1833, %v2121
    %v2266 = vsel %vm1978, %v1834, %v2122
    %v2267 = vsel %vm1979, %v1835, %v2123
    %v2268 = vsel %vm1980, %v1836, %v2124
    %v2269 = vsel %vm1981, %v1837, %v2125
    %v2270 = vsel %vm1982, %v1838, %v2126
    %v2271 = vsel %vm1983, %v1839, %v2127
    %v2272 = vsel %vm1984, %v1840, %v2128
    %v2273 = vsel %vm1985, %v1841, %v2129
    %v2274 = vsel %vm1986, %v1842, %v2130
    %v2275 = vsel %vm1987, %v1843, %v2131
    %v2276 = vsel %vm1988, %v1844, %v2132
    %v2277 = vsel %vm1989, %v1845, %v2133
    %v2278 = vsel %vm1990, %v1846, %v2134
    %v2279 = vsel %vm1991, %v1847, %v2135
    %v2280 = vsel %vm1992, %v1848, %v2136
    %v2281 = vsel %vm1993, %v1849, %v2137
    %v2282 = vsel %vm1994, %v1850, %v2138
    %v2283 = vsel %vm1995, %v1851, %v2139
    %v2284 = vsel %vm1996, %v1852, %v2140
    %v2285 = vsel %vm1997, %v1853, %v2141
    %v2286 = vsel %vm1998, %v1854, %v2142
    %v2287 = vsel %vm1999, %v1855, %v2143
    %v2288 = vsel %vm2000, %v1856, %v2144
    %v2289 = vsel %vm2001, %v1857, %v2145
    %v2290 = vsel %vm2002, %v1858, %v2146
    %v2291 = vsel %vm2003, %v1859, %v2147
    %v2292 = vsel %vm2004, %v1860, %v2148
    %v2293 = vsel %vm2005, %v1861, %v2149
    %v2294 = vsel %vm2006, %v1862, %v2150
    %v2295 = vsel %vm2007, %v1863, %v2151
    %v2296 = vsel %vm2008, %v1864, %v2152
    %v2297 = vsel %vm2009, %v1865, %v2153
    %v2298 = vsel %vm2010, %v1866, %v2154
    %v2299 = vsel %vm2011, %v1867, %v2155
    %v2300 = vsel %vm2012, %v1868, %v2156
    %v2301 = vsel %vm2013, %v1869, %v2157
    %v2302 = vsel %vm2014, %v1870, %v2158
    %v2303 = vsel %vm2015, %v1871, %v2159
    %v2304 = vsel %vm2016, %v1872, %v2160
    %v2305 = vsel %vm2017, %v1873, %v2161
    %v2306 = vsel %vm2018, %v1874, %v2162
    %v2307 = vsel %vm2019, %v1875, %v2163
    %v2308 = vsel %vm2020, %v1876, %v2164
    %v2309 = vsel %vm2021, %v1877, %v2165
    %v2310 = vsel %vm2022, %v1878, %v2166
    %v2311 = vsel %vm2023, %v1879, %v2167
    %v2312 = vsel %vm2024, %v1880, %v2168
    %v2313 = vsel %vm2025, %v1881, %v2169
    %v2314 = vsel %vm2026, %v1882, %v2170
    %v2315 = vsel %vm2027, %v1883, %v2171
    %v2316 = vsel %vm2028, %v1884, %v2172
    %v2317 = vsel %vm2029, %v1885, %v2173
    %v2318 = vsel %vm2030, %v1886, %v2174
    %v2319 = vsel %vm2031, %v1887, %v2175
    %v2320 = vsel %vm2032, %v1888, %v2176
    %v2321 = vsel %vm2033, %v1889, %v2177
    %v2322 = vsel %vm2034, %v1890, %v2178
    %v2323 = vsel %vm2035, %v1891, %v2179
    %v2324 = vsel %vm2036, %v1892, %v2180
    %v2325 = vsel %vm2037, %v1893, %v2181
    %v2326 = vsel %vm2038, %v1894, %v2182
    %v2327 = vsel %vm2039, %v1895, %v2183
    %v2328 = vsel %vm2040, %v1896, %v2184
    %v2329 = vsel %vm2041, %v1897, %v2185
    %v2330 = vsel %vm2042, %v1898, %v2186
    %v2331 = vsel %vm2043, %v1899, %v2187
    %v2332 = vsel %vm2044, %v1900, %v2188
    %v2333 = vsel %vm2045, %v1901, %v2189
    %v2334 = vsel %vm2046, %v1902, %v2190
    %v2335 = vsel %vm2047, %v1903, %v2191
    %v2336 = vsel %vm2048, %v1904, %v2192
    %v2337 = vsel %vm2049, %v1905, %v2193
    %v2338 = vsel %vm2050, %v1906, %v2194
    %v2339 = vmax.f32 %v2195, %v2198
    %v2340 = vmax.f32 %v2196, %v2199
    %v2341 = vmax.f32 %v2197, %v2200
    %v2342 = vmax.f32 %v2207, %v2210
    %v2343 = vmax.f32 %v2208, %v2211
    %v2344 = vmax.f32 %v2209, %v2212
    %v2345 = vmax.f32 %v2219, %v2222
    %v2346 = vmax.f32 %v2220, %v2223
    %v2347 = vmax.f32 %v2221, %v2224
    %v2348 = vmax.f32 %v2231, %v2234
    %v2349 = vmax.f32 %v2232, %v2235
    %v2350 = vmax.f32 %v2233, %v2236
    %v2351 = vmax.f32 %v2243, %v2246
    %v2352 = vmax.f32 %v2244, %v2247
    %v2353 = vmax.f32 %v2245, %v2248
    %v2354 = vmax.f32 %v2255, %v2258
    %v2355 = vmax.f32 %v2256, %v2259
    %v2356 = vmax.f32 %v2257, %v2260
    %v2357 = vmax.f32 %v2267, %v2270
    %v2358 = vmax.f32 %v2268, %v2271
    %v2359 = vmax.f32 %v2269, %v2272
    %v2360 = vmax.f32 %v2279, %v2282
    %v2361 = vmax.f32 %v2280, %v2283
    %v2362 = vmax.f32 %v2281, %v2284
    %v2363 = vmax.f32 %v2291, %v2294
    %v2364 = vmax.f32 %v2292, %v2295
    %v2365 = vmax.f32 %v2293, %v2296
    %v2366 = vmax.f32 %v2303, %v2306
    %v2367 = vmax.f32 %v2304, %v2307
    %v2368 = vmax.f32 %v2305, %v2308
    %v2369 = vmax.f32 %v2315, %v2318
    %v2370 = vmax.f32 %v2316, %v2319
    %v2371 = vmax.f32 %v2317, %v2320
    %v2372 = vmax.f32 %v2327, %v2330
    %v2373 = vmax.f32 %v2328, %v2331
    %v2374 = vmax.f32 %v2329, %v2332
    %v2375 = vmax.f32 %v2201, %v2204
    %v2376 = vmax.f32 %v2202, %v2205
    %v2377 = vmax.f32 %v2203, %v2206
    %v2378 = vmax.f32 %v2213, %v2216
    %v2379 = vmax.f32 %v2214, %v2217
    %v2380 = vmax.f32 %v2215, %v2218
    %v2381 = vmax.f32 %v2225, %v2228
    %v2382 = vmax.f32 %v2226, %v2229
    %v2383 = vmax.f32 %v2227, %v2230
    %v2384 = vmax.f32 %v2237, %v2240
    %v2385 = vmax.f32 %v2238, %v2241
    %v2386 = vmax.f32 %v2239, %v2242
    %v2387 = vmax.f32 %v2249, %v2252
    %v2388 = vmax.f32 %v2250, %v2253
    %v2389 = vmax.f32 %v2251, %v2254
    %v2390 = vmax.f32 %v2261, %v2264
    %v2391 = vmax.f32 %v2262, %v2265
    %v2392 = vmax.f32 %v2263, %v2266
    %v2393 = vmax.f32 %v2273, %v2276
    %v2394 = vmax.f32 %v2274, %v2277
    %v2395 = vmax.f32 %v2275, %v2278
    %v2396 = vmax.f32 %v2285, %v2288
    %v2397 = vmax.f32 %v2286, %v2289
    %v2398 = vmax.f32 %v2287, %v2290
    %v2399 = vmax.f32 %v2297, %v2300
    %v2400 = vmax.f32 %v2298, %v2301
    %v2401 = vmax.f32 %v2299, %v2302
    %v2402 = vmax.f32 %v2309, %v2312
    %v2403 = vmax.f32 %v2310, %v2313
    %v2404 = vmax.f32 %v2311, %v2314
    %v2405 = vmax.f32 %v2321, %v2324
    %v2406 = vmax.f32 %v2322, %v2325
    %v2407 = vmax.f32 %v2323, %v2326
    %v2408 = vmax.f32 %v2333, %v2336
    %v2409 = vmax.f32 %v2334, %v2337
    %v2410 = vmax.f32 %v2335, %v2338
    %v2411 = vmax.f32 %v2339, %v2375
    %v2412 = vmax.f32 %v2340, %v2376
    %v2413 = vmax.f32 %v2341, %v2377
    %v2414 = vmax.f32 %v2342, %v2378
    %v2415 = vmax.f32 %v2343, %v2379
    %v2416 = vmax.f32 %v2344, %v2380
    %v2417 = vmax.f32 %v2345, %v2381
    %v2418 = vmax.f32 %v2346, %v2382
    %v2419 = vmax.f32 %v2347, %v2383
    %v2420 = vmax.f32 %v2348, %v2384
    %v2421 = vmax.f32 %v2349, %v2385
    %v2422 = vmax.f32 %v2350, %v2386
    %v2423 = vmax.f32 %v2351, %v2387
    %v2424 = vmax.f32 %v2352, %v2388
    %v2425 = vmax.f32 %v2353, %v2389
    %v2426 = vmax.f32 %v2354, %v2390
    %v2427 = vmax.f32 %v2355, %v2391
    %v2428 = vmax.f32 %v2356, %v2392
    %v2429 = vmax.f32 %v2357, %v2393
    %v2430 = vmax.f32 %v2358, %v2394
    %v2431 = vmax.f32 %v2359, %v2395
    %v2432 = vmax.f32 %v2360, %v2396
    %v2433 = vmax.f32 %v2361, %v2397
    %v2434 = vmax.f32 %v2362, %v2398
    %v2435 = vmax.f32 %v2363, %v2399
    %v2436 = vmax.f32 %v2364, %v2400
    %v2437 = vmax.f32 %v2365, %v2401
    %v2438 = vmax.f32 %v2366, %v2402
    %v2439 = vmax.f32 %v2367, %v2403
    %v2440 = vmax.f32 %v2368, %v2404
    %v2441 = vmax.f32 %v2369, %v2405
    %v2442 = vmax.f32 %v2370, %v2406
    %v2443 = vmax.f32 %v2371, %v2407
    %v2444 = vmax.f32 %v2372, %v2408
    %v2445 = vmax.f32 %v2373, %v2409
    %v2446 = vmax.f32 %v2374, %v2410
    %v2447 = vpack.c.bf16 %v2414, %v2411
    %v2448 = vpack.c.bf16 %v2415, %v2412
    %v2449 = vpack.c.bf16 %v2416, %v2413
    %v2450 = vpack.c.bf16 %v2420, %v2417
    %v2451 = vpack.c.bf16 %v2421, %v2418
    %v2452 = vpack.c.bf16 %v2422, %v2419
    %v2453 = vpack.c.bf16 %v2426, %v2423
    %v2454 = vpack.c.bf16 %v2427, %v2424
    %v2455 = vpack.c.bf16 %v2428, %v2425
    %v2456 = vpack.c.bf16 %v2432, %v2429
    %v2457 = vpack.c.bf16 %v2433, %v2430
    %v2458 = vpack.c.bf16 %v2434, %v2431
    %v2459 = vpack.c.bf16 %v2438, %v2435
    %v2460 = vpack.c.bf16 %v2439, %v2436
    %v2461 = vpack.c.bf16 %v2440, %v2437
    %v2462 = vpack.c.bf16 %v2444, %v2441
    %v2463 = vpack.c.bf16 %v2445, %v2442
    %v2464 = vpack.c.bf16 %v2446, %v2443
    %v2483 = vunpack.c.l.b16 %v2447
    %v2484 = vunpack.c.l.b16 %v2448
    %v2485 = vunpack.c.l.b16 %v2449
    %v2486 = vunpack.c.h.b16 %v2447
    %v2487 = vunpack.c.h.b16 %v2448
    %v2488 = vunpack.c.h.b16 %v2449
    %v2489 = vunpack.c.l.b16 %v2450
    %v2490 = vunpack.c.l.b16 %v2451
    %v2491 = vunpack.c.l.b16 %v2452
    %v2492 = vunpack.c.h.b16 %v2450
    %v2493 = vunpack.c.h.b16 %v2451
    %v2494 = vunpack.c.h.b16 %v2452
    %v2495 = vunpack.c.l.b16 %v2453
    %v2496 = vunpack.c.l.b16 %v2454
    %v2497 = vunpack.c.l.b16 %v2455
    %v2498 = vunpack.c.h.b16 %v2453
    %v2499 = vunpack.c.h.b16 %v2454
    %v2500 = vunpack.c.h.b16 %v2455
    %v2501 = vunpack.c.l.b16 %v2456
    %v2502 = vunpack.c.l.b16 %v2457
    %v2503 = vunpack.c.l.b16 %v2458
    %v2504 = vunpack.c.h.b16 %v2456
    %v2505 = vunpack.c.h.b16 %v2457
    %v2506 = vunpack.c.h.b16 %v2458
    %v2507 = vunpack.c.l.b16 %v2459
    %v2508 = vunpack.c.l.b16 %v2460
    %v2509 = vunpack.c.l.b16 %v2461
    %v2510 = vunpack.c.h.b16 %v2459
    %v2511 = vunpack.c.h.b16 %v2460
    %v2512 = vunpack.c.h.b16 %v2461
    %v2513 = vunpack.c.l.b16 %v2462
    %v2514 = vunpack.c.l.b16 %v2463
    %v2515 = vunpack.c.l.b16 %v2464
    %v2516 = vunpack.c.h.b16 %v2462
    %v2517 = vunpack.c.h.b16 %v2463
    %v2518 = vunpack.c.h.b16 %v2464
    %v2519 = vpack.c.b16 %v2484, %v2483
    %v2520 = vpack.c.b16 %v2485, %v2485
    %v2521 = vpack.c.b16 %v2487, %v2486
    %v2522 = vpack.c.b16 %v2488, %v2488
    %v2523 = vpack.c.b16 %v2490, %v2489
    %v2524 = vpack.c.b16 %v2491, %v2491
    %v2525 = vpack.c.b16 %v2493, %v2492
    %v2526 = vpack.c.b16 %v2494, %v2494
    %v2527 = vpack.c.b16 %v2496, %v2495
    %v2528 = vpack.c.b16 %v2497, %v2497
    %v2529 = vpack.c.b16 %v2499, %v2498
    %v2530 = vpack.c.b16 %v2500, %v2500
    %v2531 = vpack.c.b16 %v2502, %v2501
    %v2532 = vpack.c.b16 %v2503, %v2503
    %v2533 = vpack.c.b16 %v2505, %v2504
    %v2534 = vpack.c.b16 %v2506, %v2506
    %v2535 = vpack.c.b16 %v2508, %v2507
    %v2536 = vpack.c.b16 %v2509, %v2509
    %v2537 = vpack.c.b16 %v2511, %v2510
    %v2538 = vpack.c.b16 %v2512, %v2512
    %v2539 = vpack.c.b16 %v2514, %v2513
    %v2540 = vpack.c.b16 %v2515, %v2515
    %v2541 = vpack.c.b16 %v2517, %v2516
    %v2542 = vpack.c.b16 %v2518, %v2518
    %2567 = vst [vmem:[%s4] sm:$0xff] %v2519
    %2568 = vst [vmem:[%s4 + $0x8] sm:$0xf] %v2520
    %2569 = vst [vmem:[%s4 + $0xc] sm:$0xff] %v2521
    %2570 = vst [vmem:[%s4 + $0x14] sm:$0xf] %v2522
    %2571 = vst [vmem:[%s4 + $0x18] sm:$0xff] %v2523
    %2572 = vst [vmem:[%s4 + $0x20] sm:$0xf] %v2524
    %2573 = vst [vmem:[%s4 + $0x24] sm:$0xff] %v2525
    %2574 = vst [vmem:[%s4 + $0x2c] sm:$0xf] %v2526
    %2575 = vst [vmem:[%s4 + $0x30] sm:$0xff] %v2527
    %2576 = vst [vmem:[%s4 + $0x38] sm:$0xf] %v2528
    %2577 = vst [vmem:[%s4 + $0x3c] sm:$0xff] %v2529
    %2578 = vst [vmem:[%s4 + $0x44] sm:$0xf] %v2530
    %2579 = vst [vmem:[%s4 + $0x48] sm:$0xff] %v2531
    %2580 = vst [vmem:[%s4 + $0x50] sm:$0xf] %v2532
    %2581 = vst [vmem:[%s4 + $0x54] sm:$0xff] %v2533
    %2582 = vst [vmem:[%s4 + $0x5c] sm:$0xf] %v2534
    %2583 = vst [vmem:[%s4 + $0x60] sm:$0xff] %v2535
    %2584 = vst [vmem:[%s4 + $0x68] sm:$0xf] %v2536
    %2585 = vst [vmem:[%s4 + $0x6c] sm:$0xff] %v2537
    %2586 = vst [vmem:[%s4 + $0x74] sm:$0xf] %v2538
    %2587 = vst [vmem:[%s4 + $0x78] sm:$0xff] %v2539
    %2588 = vst [vmem:[%s4 + $0x80] sm:$0xf] %v2540
    %2589 = vst [vmem:[%s4 + $0x84] sm:$0xff] %v2541
    %2590 = vst [vmem:[%s4 + $0x8c] sm:$0xf] %v2542
    // Predicated region
    $region30: #{net_forward.3} parent=1 // pred_check
      _
    $region31: #{net_forward.3} parent=1 // pred_check_branch
      %2592 = sbr.rel (0) target = $region33
    $region32: #{net_forward.3} parent=1 // pred_region
      _
    $region33: #{net_forward.3} parent=1 // pred_fallthru
      _
    // Predicated region
    $region34: #{net_forward.3} parent=1 // pred_check
      _
    $region35: #{net_forward.3} parent=1 // pred_check_branch
      %2594 = sbr.rel (0) target = $region37
    $region36: #{net_forward.3} parent=1 // pred_region
      _
    $region37: #{net_forward.3} parent=1 // pred_fallthru
      _
    %2595 = vsyncpa [#allocation3], 1
    %2596 = vsyncpa [#allocation5], 1

// kernel: net_forward.5
$region0: #{net_forward.5}
  #allocation0 [shape = 'u32[]', space=smem, size = 0x4, offset = 0x4, fixed_abs, tag = 'smem constant byte address 0x4 - core index']
  #allocation1 [shape = 'u32[144,128]{1,0:T(1,128)}', space=vmem, size = 0x12000, scoped, tag = 'internal scratch']
  %s0 = inlined_call_operand.vmem [shape: bf16[8,1024], index: 0, kind: input, shape index: {}]
  %s1 = inlined_call_operand.vmem [shape: bf16[1024,128], index: 1, kind: input, shape index: {}]
  %s2 = inlined_call_operand.vmem [shape: f32[1,128], index: 2, kind: input, shape index: {}]
  %s3 = inlined_call_operand.vmem [shape: bf16[128,10], index: 3, kind: input, shape index: {}]
  %s4 = inlined_call_operand.vmem [shape: f32[1,10], index: 4, kind: input, shape index: {}]
  %s5 = inlined_call_operand.vmem [shape: f32[8,10], index: 5, kind: output, shape index: {}]
  %s6 = sld [smem:[#allocation0]]
  $region30: #{net_forward.5} parent=0
    _
  %s8 = ssub.s32 1, %s6
  %s9 = scalar_select 0, %s8, %s6
  // Predicated region
  $region2: #{net_forward.5} parent=0 // pred_check
    _
  $region3: #{net_forward.5} parent=0 // pred_check_branch
    %11 = sbr.rel (0) target = $region5
  $region4: #{net_forward.5} parent=0 // pred_region
    _
  $region5: #{net_forward.5} parent=0 // pred_fallthru
    _
  // Predicated region
  $region6: #{net_forward.5} parent=0 // pred_check
    _
  $region7: #{net_forward.5} parent=0 // pred_check_branch
    %13 = sbr.rel (0) target = $region9
  $region8: #{net_forward.5} parent=0 // pred_region
    _
  $region9: #{net_forward.5} parent=0 // pred_fallthru
    _
  // Predicated region
  $region10: #{net_forward.5} parent=0 // pred_check
    _
  $region11: #{net_forward.5} parent=0 // pred_check_branch
    %15 = sbr.rel (0) target = $region13
  $region12: #{net_forward.5} parent=0 // pred_region
    _
  $region13: #{net_forward.5} parent=0 // pred_fallthru
    _
  // Predicated region
  $region14: #{net_forward.5} parent=0 // pred_check
    _
  $region15: #{net_forward.5} parent=0 // pred_check_branch
    %17 = sbr.rel (0) target = $region17
  $region16: #{net_forward.5} parent=0 // pred_region
    _
  $region17: #{net_forward.5} parent=0 // pred_fallthru
    _
  // Predicated region
  $region18: #{net_forward.5} parent=0 // pred_check
    _
  $region19: #{net_forward.5} parent=0 // pred_check_branch
    %19 = sbr.rel (0) target = $region21
  $region20: #{net_forward.5} parent=0 // pred_region
    _
  $region21: #{net_forward.5} parent=0 // pred_fallthru
    _
  %v21 = vld [vmem:[%s0] sm:$0xff]
  %v22 = vld [vmem:[%s0 + $0x8] sm:$0xff]
  %v23 = vld [vmem:[%s0 + $0x10] sm:$0xff]
  %v24 = vld [vmem:[%s0 + $0x18] sm:$0xff]
  %v25 = vld [vmem:[%s1] sm:$0xf]
  %v26 = vld [vmem:[%s1 + $0x4] sm:$0xf]
  %v27 = vld [vmem:[%s1 + $0x8] sm:$0xf]
  %v28 = vld [vmem:[%s1 + $0xc] sm:$0xf]
  %v29 = vld [vmem:[%s1 + $0x10] sm:$0xf]
  %v30 = vld [vmem:[%s1 + $0x14] sm:$0xf]
  %v31 = vld [vmem:[%s1 + $0x18] sm:$0xf]
  %v32 = vld [vmem:[%s1 + $0x1c] sm:$0xf]
  %v33 = vld [vmem:[%s1 + $0x20] sm:$0xf]
  %v34 = vld [vmem:[%s1 + $0x24] sm:$0xf]
  %v35 = vld [vmem:[%s1 + $0x28] sm:$0xf]
  %v36 = vld [vmem:[%s1 + $0x2c] sm:$0xf]
  %v37 = vld [vmem:[%s1 + $0x30] sm:$0xf]
  %v38 = vld [vmem:[%s1 + $0x34] sm:$0xf]
  %v39 = vld [vmem:[%s1 + $0x38] sm:$0xf]
  %v40 = vld [vmem:[%s1 + $0x3c] sm:$0xf]
  %v41 = vld [vmem:[%s1 + $0x40] sm:$0xf]
  %v42 = vld [vmem:[%s1 + $0x44] sm:$0xf]
  %v43 = vld [vmem:[%s1 + $0x48] sm:$0xf]
  %v44 = vld [vmem:[%s1 + $0x4c] sm:$0xf]
  %v45 = vld [vmem:[%s1 + $0x50] sm:$0xf]
  %v46 = vld [vmem:[%s1 + $0x54] sm:$0xf]
  %v47 = vld [vmem:[%s1 + $0x58] sm:$0xf]
  %v48 = vld [vmem:[%s1 + $0x5c] sm:$0xf]
  %v49 = vld [vmem:[%s1 + $0x60] sm:$0xf]
  %v50 = vld [vmem:[%s1 + $0x64] sm:$0xf]
  %v51 = vld [vmem:[%s1 + $0x68] sm:$0xf]
  %v52 = vld [vmem:[%s1 + $0x6c] sm:$0xf]
  %v53 = vld [vmem:[%s1 + $0x70] sm:$0xf]
  %v54 = vld [vmem:[%s1 + $0x74] sm:$0xf]
  %v55 = vld [vmem:[%s1 + $0x78] sm:$0xf]
  %v56 = vld [vmem:[%s1 + $0x7c] sm:$0xf]
  %v57 = vld [vmem:[%s1 + $0x80] sm:$0xf]
  %v58 = vld [vmem:[%s1 + $0x84] sm:$0xf]
  %v59 = vld [vmem:[%s1 + $0x88] sm:$0xf]
  %v60 = vld [vmem:[%s1 + $0x8c] sm:$0xf]
  %v61 = vld [vmem:[%s1 + $0x90] sm:$0xf]
  %v62 = vld [vmem:[%s1 + $0x94] sm:$0xf]
  %v63 = vld [vmem:[%s1 + $0x98] sm:$0xf]
  %v64 = vld [vmem:[%s1 + $0x9c] sm:$0xf]
  %v65 = vld [vmem:[%s1 + $0xa0] sm:$0xf]
  %v66 = vld [vmem:[%s1 + $0xa4] sm:$0xf]
  %v67 = vld [vmem:[%s1 + $0xa8] sm:$0xf]
  %v68 = vld [vmem:[%s1 + $0xac] sm:$0xf]
  %v69 = vld [vmem:[%s1 + $0xb0] sm:$0xf]
  %v70 = vld [vmem:[%s1 + $0xb4] sm:$0xf]
  %v71 = vld [vmem:[%s1 + $0xb8] sm:$0xf]
  %v72 = vld [vmem:[%s1 + $0xbc] sm:$0xf]
  %v73 = vld [vmem:[%s1 + $0xc0] sm:$0xf]
  %v74 = vld [vmem:[%s1 + $0xc4] sm:$0xf]
  %v75 = vld [vmem:[%s1 + $0xc8] sm:$0xf]
  %v76 = vld [vmem:[%s1 + $0xcc] sm:$0xf]
  %v77 = vld [vmem:[%s1 + $0xd0] sm:$0xf]
  %v78 = vld [vmem:[%s1 + $0xd4] sm:$0xf]
  %v79 = vld [vmem:[%s1 + $0xd8] sm:$0xf]
  %v80 = vld [vmem:[%s1 + $0xdc] sm:$0xf]
  %v81 = vld [vmem:[%s1 + $0xe0] sm:$0xf]
  %v82 = vld [vmem:[%s1 + $0xe4] sm:$0xf]
  %v83 = vld [vmem:[%s1 + $0xe8] sm:$0xf]
  %v84 = vld [vmem:[%s1 + $0xec] sm:$0xf]
  %v85 = vld [vmem:[%s1 + $0xf0] sm:$0xf]
  %v86 = vld [vmem:[%s1 + $0xf4] sm:$0xf]
  %v87 = vld [vmem:[%s1 + $0xf8] sm:$0xf]
  %v88 = vld [vmem:[%s1 + $0xfc] sm:$0xf]
  %v89 = vld [vmem:[%s1 + $0x100] sm:$0xf]
  %v90 = vld [vmem:[%s1 + $0x104] sm:$0xf]
  %v91 = vld [vmem:[%s1 + $0x108] sm:$0xf]
  %v92 = vld [vmem:[%s1 + $0x10c] sm:$0xf]
  %v93 = vld [vmem:[%s1 + $0x110] sm:$0xf]
  %v94 = vld [vmem:[%s1 + $0x114] sm:$0xf]
  %v95 = vld [vmem:[%s1 + $0x118] sm:$0xf]
  %v96 = vld [vmem:[%s1 + $0x11c] sm:$0xf]
  %v97 = vld [vmem:[%s1 + $0x120] sm:$0xf]
  %v98 = vld [vmem:[%s1 + $0x124] sm:$0xf]
  %v99 = vld [vmem:[%s1 + $0x128] sm:$0xf]
  %v100 = vld [vmem:[%s1 + $0x12c] sm:$0xf]
  %v101 = vld [vmem:[%s1 + $0x130] sm:$0xf]
  %v102 = vld [vmem:[%s1 + $0x134] sm:$0xf]
  %v103 = vld [vmem:[%s1 + $0x138] sm:$0xf]
  %v104 = vld [vmem:[%s1 + $0x13c] sm:$0xf]
  %v105 = vld [vmem:[%s1 + $0x140] sm:$0xf]
  %v106 = vld [vmem:[%s1 + $0x144] sm:$0xf]
  %v107 = vld [vmem:[%s1 + $0x148] sm:$0xf]
  %v108 = vld [vmem:[%s1 + $0x14c] sm:$0xf]
  %v109 = vld [vmem:[%s1 + $0x150] sm:$0xf]
  %v110 = vld [vmem:[%s1 + $0x154] sm:$0xf]
  %v111 = vld [vmem:[%s1 + $0x158] sm:$0xf]
  %v112 = vld [vmem:[%s1 + $0x15c] sm:$0xf]
  %v113 = vld [vmem:[%s1 + $0x160] sm:$0xf]
  %v114 = vld [vmem:[%s1 + $0x164] sm:$0xf]
  %v115 = vld [vmem:[%s1 + $0x168] sm:$0xf]
  %v116 = vld [vmem:[%s1 + $0x16c] sm:$0xf]
  %v117 = vld [vmem:[%s1 + $0x170] sm:$0xf]
  %v118 = vld [vmem:[%s1 + $0x174] sm:$0xf]
  %v119 = vld [vmem:[%s1 + $0x178] sm:$0xf]
  %v120 = vld [vmem:[%s1 + $0x17c] sm:$0xf]
  %v121 = vld [vmem:[%s1 + $0x180] sm:$0xf]
  %v122 = vld [vmem:[%s1 + $0x184] sm:$0xf]
  %v123 = vld [vmem:[%s1 + $0x188] sm:$0xf]
  %v124 = vld [vmem:[%s1 + $0x18c] sm:$0xf]
  %v125 = vld [vmem:[%s1 + $0x190] sm:$0xf]
  %v126 = vld [vmem:[%s1 + $0x194] sm:$0xf]
  %v127 = vld [vmem:[%s1 + $0x198] sm:$0xf]
  %v128 = vld [vmem:[%s1 + $0x19c] sm:$0xf]
  %v129 = vld [vmem:[%s1 + $0x1a0] sm:$0xf]
  %v130 = vld [vmem:[%s1 + $0x1a4] sm:$0xf]
  %v131 = vld [vmem:[%s1 + $0x1a8] sm:$0xf]
  %v132 = vld [vmem:[%s1 + $0x1ac] sm:$0xf]
  %v133 = vld [vmem:[%s1 + $0x1b0] sm:$0xf]
  %v134 = vld [vmem:[%s1 + $0x1b4] sm:$0xf]
  %v135 = vld [vmem:[%s1 + $0x1b8] sm:$0xf]
  %v136 = vld [vmem:[%s1 + $0x1bc] sm:$0xf]
  %v137 = vld [vmem:[%s1 + $0x1c0] sm:$0xf]
  %v138 = vld [vmem:[%s1 + $0x1c4] sm:$0xf]
  %v139 = vld [vmem:[%s1 + $0x1c8] sm:$0xf]
  %v140 = vld [vmem:[%s1 + $0x1cc] sm:$0xf]
  %v141 = vld [vmem:[%s1 + $0x1d0] sm:$0xf]
  %v142 = vld [vmem:[%s1 + $0x1d4] sm:$0xf]
  %v143 = vld [vmem:[%s1 + $0x1d8] sm:$0xf]
  %v144 = vld [vmem:[%s1 + $0x1dc] sm:$0xf]
  %v145 = vld [vmem:[%s1 + $0x1e0] sm:$0xf]
  %v146 = vld [vmem:[%s1 + $0x1e4] sm:$0xf]
  %v147 = vld [vmem:[%s1 + $0x1e8] sm:$0xf]
  %v148 = vld [vmem:[%s1 + $0x1ec] sm:$0xf]
  %v149 = vld [vmem:[%s1 + $0x1f0] sm:$0xf]
  %v150 = vld [vmem:[%s1 + $0x1f4] sm:$0xf]
  %v151 = vld [vmem:[%s1 + $0x1f8] sm:$0xf]
  %v152 = vld [vmem:[%s1 + $0x1fc] sm:$0xf]
  %v153 = vld [vmem:[%s2] sm:$0x1]
  %v155 = vlaneseq
  %v156 = vshrl.u32 %v155, 7
  %v157 = vsub.s32 0, %v156
  %v158 = vrot.slane %v153, %v157
  %v164 = vunpack.c.l.b16 %v21
  %v165 = vunpack.c.h.b16 %v21
  %v166 = vunpack.c.l.b16 %v22
  %v167 = vunpack.c.h.b16 %v22
  %v168 = vunpack.c.l.b16 %v23
  %v169 = vunpack.c.h.b16 %v23
  %v170 = vunpack.c.l.b16 %v24
  %v171 = vunpack.c.h.b16 %v24
  %v172 = vpack.c.b16 %v164, %v164
  %v173 = vpack.c.b16 %v165, %v165
  %v174 = vpack.c.b16 %v166, %v166
  %v175 = vpack.c.b16 %v167, %v167
  %v176 = vpack.c.b16 %v168, %v168
  %v177 = vpack.c.b16 %v169, %v169
  %v178 = vpack.c.b16 %v170, %v170
  %v179 = vpack.c.b16 %v171, %v171
  %v316 = vunpack.c.l.b16 %v25
  %v317 = vunpack.c.l.b16 %v26
  %v318 = vunpack.c.l.b16 %v27
  %v319 = vunpack.c.l.b16 %v28
  %v320 = vunpack.c.l.b16 %v29
  %v321 = vunpack.c.l.b16 %v30
  %v322 = vunpack.c.l.b16 %v31
  %v323 = vunpack.c.l.b16 %v32
  %v324 = vunpack.c.l.b16 %v33
  %v325 = vunpack.c.l.b16 %v34
  %v326 = vunpack.c.l.b16 %v35
  %v327 = vunpack.c.l.b16 %v36
  %v328 = vunpack.c.l.b16 %v37
  %v329 = vunpack.c.l.b16 %v38
  %v330 = vunpack.c.l.b16 %v39
  %v331 = vunpack.c.l.b16 %v40
  %v332 = vunpack.c.l.b16 %v41
  %v333 = vunpack.c.l.b16 %v42
  %v334 = vunpack.c.l.b16 %v43
  %v335 = vunpack.c.l.b16 %v44
  %v336 = vunpack.c.l.b16 %v45
  %v337 = vunpack.c.l.b16 %v46
  %v338 = vunpack.c.l.b16 %v47
  %v339 = vunpack.c.l.b16 %v48
  %v340 = vunpack.c.l.b16 %v49
  %v341 = vunpack.c.l.b16 %v50
  %v342 = vunpack.c.l.b16 %v51
  %v343 = vunpack.c.l.b16 %v52
  %v344 = vunpack.c.l.b16 %v53
  %v345 = vunpack.c.l.b16 %v54
  %v346 = vunpack.c.l.b16 %v55
  %v347 = vunpack.c.l.b16 %v56
  %v348 = vunpack.c.l.b16 %v57
  %v349 = vunpack.c.l.b16 %v58
  %v350 = vunpack.c.l.b16 %v59
  %v351 = vunpack.c.l.b16 %v60
  %v352 = vunpack.c.l.b16 %v61
  %v353 = vunpack.c.l.b16 %v62
  %v354 = vunpack.c.l.b16 %v63
  %v355 = vunpack.c.l.b16 %v64
  %v356 = vunpack.c.l.b16 %v65
  %v357 = vunpack.c.l.b16 %v66
  %v358 = vunpack.c.l.b16 %v67
  %v359 = vunpack.c.l.b16 %v68
  %v360 = vunpack.c.l.b16 %v69
  %v361 = vunpack.c.l.b16 %v70
  %v362 = vunpack.c.l.b16 %v71
  %v363 = vunpack.c.l.b16 %v72
  %v364 = vunpack.c.l.b16 %v73
  %v365 = vunpack.c.l.b16 %v74
  %v366 = vunpack.c.l.b16 %v75
  %v367 = vunpack.c.l.b16 %v76
  %v368 = vunpack.c.l.b16 %v77
  %v369 = vunpack.c.l.b16 %v78
  %v370 = vunpack.c.l.b16 %v79
  %v371 = vunpack.c.l.b16 %v80
  %v372 = vunpack.c.l.b16 %v81
  %v373 = vunpack.c.l.b16 %v82
  %v374 = vunpack.c.l.b16 %v83
  %v375 = vunpack.c.l.b16 %v84
  %v376 = vunpack.c.l.b16 %v85
  %v377 = vunpack.c.l.b16 %v86
  %v378 = vunpack.c.l.b16 %v87
  %v379 = vunpack.c.l.b16 %v88
  %v380 = vunpack.c.l.b16 %v89
  %v381 = vunpack.c.l.b16 %v90
  %v382 = vunpack.c.l.b16 %v91
  %v383 = vunpack.c.l.b16 %v92
  %v384 = vunpack.c.l.b16 %v93
  %v385 = vunpack.c.l.b16 %v94
  %v386 = vunpack.c.l.b16 %v95
  %v387 = vunpack.c.l.b16 %v96
  %v388 = vunpack.c.l.b16 %v97
  %v389 = vunpack.c.l.b16 %v98
  %v390 = vunpack.c.l.b16 %v99
  %v391 = vunpack.c.l.b16 %v100
  %v392 = vunpack.c.l.b16 %v101
  %v393 = vunpack.c.l.b16 %v102
  %v394 = vunpack.c.l.b16 %v103
  %v395 = vunpack.c.l.b16 %v104
  %v396 = vunpack.c.l.b16 %v105
  %v397 = vunpack.c.l.b16 %v106
  %v398 = vunpack.c.l.b16 %v107
  %v399 = vunpack.c.l.b16 %v108
  %v400 = vunpack.c.l.b16 %v109
  %v401 = vunpack.c.l.b16 %v110
  %v402 = vunpack.c.l.b16 %v111
  %v403 = vunpack.c.l.b16 %v112
  %v404 = vunpack.c.l.b16 %v113
  %v405 = vunpack.c.l.b16 %v114
  %v406 = vunpack.c.l.b16 %v115
  %v407 = vunpack.c.l.b16 %v116
  %v408 = vunpack.c.l.b16 %v117
  %v409 = vunpack.c.l.b16 %v118
  %v410 = vunpack.c.l.b16 %v119
  %v411 = vunpack.c.l.b16 %v120
  %v412 = vunpack.c.l.b16 %v121
  %v413 = vunpack.c.l.b16 %v122
  %v414 = vunpack.c.l.b16 %v123
  %v415 = vunpack.c.l.b16 %v124
  %v416 = vunpack.c.l.b16 %v125
  %v417 = vunpack.c.l.b16 %v126
  %v418 = vunpack.c.l.b16 %v127
  %v419 = vunpack.c.l.b16 %v128
  %v420 = vunpack.c.l.b16 %v129
  %v421 = vunpack.c.l.b16 %v130
  %v422 = vunpack.c.l.b16 %v131
  %v423 = vunpack.c.l.b16 %v132
  %v424 = vunpack.c.l.b16 %v133
  %v425 = vunpack.c.l.b16 %v134
  %v426 = vunpack.c.l.b16 %v135
  %v427 = vunpack.c.l.b16 %v136
  %v428 = vunpack.c.l.b16 %v137
  %v429 = vunpack.c.l.b16 %v138
  %v430 = vunpack.c.l.b16 %v139
  %v431 = vunpack.c.l.b16 %v140
  %v432 = vunpack.c.l.b16 %v141
  %v433 = vunpack.c.l.b16 %v142
  %v434 = vunpack.c.l.b16 %v143
  %v435 = vunpack.c.l.b16 %v144
  %v436 = vunpack.c.l.b16 %v145
  %v437 = vunpack.c.l.b16 %v146
  %v438 = vunpack.c.l.b16 %v147
  %v439 = vunpack.c.l.b16 %v148
  %v440 = vunpack.c.l.b16 %v149
  %v441 = vunpack.c.l.b16 %v150
  %v442 = vunpack.c.l.b16 %v151
  %v443 = vunpack.c.l.b16 %v152
  %v444 = vpack.c.b16 %v317, %v316
  %v445 = vpack.c.b16 %v319, %v318
  %v446 = vpack.c.b16 %v321, %v320
  %v447 = vpack.c.b16 %v323, %v322
  %v448 = vpack.c.b16 %v325, %v324
  %v449 = vpack.c.b16 %v327, %v326
  %v450 = vpack.c.b16 %v329, %v328
  %v451 = vpack.c.b16 %v331, %v330
  %v452 = vpack.c.b16 %v333, %v332
  %v453 = vpack.c.b16 %v335, %v334
  %v454 = vpack.c.b16 %v337, %v336
  %v455 = vpack.c.b16 %v339, %v338
  %v456 = vpack.c.b16 %v341, %v340
  %v457 = vpack.c.b16 %v343, %v342
  %v458 = vpack.c.b16 %v345, %v344
  %v459 = vpack.c.b16 %v347, %v346
  %v460 = vpack.c.b16 %v349, %v348
  %v461 = vpack.c.b16 %v351, %v350
  %v462 = vpack.c.b16 %v353, %v352
  %v463 = vpack.c.b16 %v355, %v354
  %v464 = vpack.c.b16 %v357, %v356
  %v465 = vpack.c.b16 %v359, %v358
  %v466 = vpack.c.b16 %v361, %v360
  %v467 = vpack.c.b16 %v363, %v362
  %v468 = vpack.c.b16 %v365, %v364
  %v469 = vpack.c.b16 %v367, %v366
  %v470 = vpack.c.b16 %v369, %v368
  %v471 = vpack.c.b16 %v371, %v370
  %v472 = vpack.c.b16 %v373, %v372
  %v473 = vpack.c.b16 %v375, %v374
  %v474 = vpack.c.b16 %v377, %v376
  %v475 = vpack.c.b16 %v379, %v378
  %v476 = vpack.c.b16 %v381, %v380
  %v477 = vpack.c.b16 %v383, %v382
  %v478 = vpack.c.b16 %v385, %v384
  %v479 = vpack.c.b16 %v387, %v386
  %v480 = vpack.c.b16 %v389, %v388
  %v481 = vpack.c.b16 %v391, %v390
  %v482 = vpack.c.b16 %v393, %v392
  %v483 = vpack.c.b16 %v395, %v394
  %v484 = vpack.c.b16 %v397, %v396
  %v485 = vpack.c.b16 %v399, %v398
  %v486 = vpack.c.b16 %v401, %v400
  %v487 = vpack.c.b16 %v403, %v402
  %v488 = vpack.c.b16 %v405, %v404
  %v489 = vpack.c.b16 %v407, %v406
  %v490 = vpack.c.b16 %v409, %v408
  %v491 = vpack.c.b16 %v411, %v410
  %v492 = vpack.c.b16 %v413, %v412
  %v493 = vpack.c.b16 %v415, %v414
  %v494 = vpack.c.b16 %v417, %v416
  %v495 = vpack.c.b16 %v419, %v418
  %v496 = vpack.c.b16 %v421, %v420
  %v497 = vpack.c.b16 %v423, %v422
  %v498 = vpack.c.b16 %v425, %v424
  %v499 = vpack.c.b16 %v427, %v426
  %v500 = vpack.c.b16 %v429, %v428
  %v501 = vpack.c.b16 %v431, %v430
  %v502 = vpack.c.b16 %v433, %v432
  %v503 = vpack.c.b16 %v435, %v434
  %v504 = vpack.c.b16 %v437, %v436
  %v505 = vpack.c.b16 %v439, %v438
  %v506 = vpack.c.b16 %v441, %v440
  %v507 = vpack.c.b16 %v443, %v442
  %572 = vmatprep.subr.bf16.mxu0 0
  %573 = vmatpush1.bf16.msra.mxu0 %v444
  %574 = vmatprep.subr.bf16.mxu0 0
  %575 = vmatpush1.bf16.msra.mxu0 %v445
  %576 = vmatprep.subr.bf16.mxu0 0
  %577 = vmatpush1.bf16.msra.mxu0 %v446
  %578 = vmatprep.subr.bf16.mxu0 0
  %579 = vmatpush1.bf16.msra.mxu0 %v447
  %580 = vmatprep.subr.bf16.mxu0 0
  %581 = vmatpush1.bf16.msra.mxu0 %v448
  %582 = vmatprep.subr.bf16.mxu0 0
  %583 = vmatpush1.bf16.msra.mxu0 %v449
  %584 = vmatprep.subr.bf16.mxu0 0
  %585 = vmatpush1.bf16.msra.mxu0 %v450
  %586 = vmatprep.subr.bf16.mxu0 0
  %587 = vmatpush1.bf16.msra.mxu0 %v451
  %588 = vmatprep.subr.bf16.mxu0 0
  %589 = vmatpush1.bf16.msra.mxu0 %v452
  %590 = vmatprep.subr.bf16.mxu0 0
  %591 = vmatpush1.bf16.msra.mxu0 %v453
  %592 = vmatprep.subr.bf16.mxu0 0
  %593 = vmatpush1.bf16.msra.mxu0 %v454
  %594 = vmatprep.subr.bf16.mxu0 0
  %595 = vmatpush1.bf16.msra.mxu0 %v455
  %596 = vmatprep.subr.bf16.mxu0 0
  %597 = vmatpush1.bf16.msra.mxu0 %v456
  %598 = vmatprep.subr.bf16.mxu0 0
  %599 = vmatpush1.bf16.msra.mxu0 %v457
  %600 = vmatprep.subr.bf16.mxu0 0
  %601 = vmatpush1.bf16.msra.mxu0 %v458
  %602 = vmatprep.subr.bf16.mxu0 0
  %603 = vmatpush1.bf16.msra.mxu0 %v459
  %604 = vmatprep.mubr.bf16.mxu0 %v173
  %605 = vmatmul.mubr.bf16.gmra.mrb[0].mxu0 %v172
  %v606 = vpop.f32.mrb[0].mxu0
  %v607 = vadd.f32 %v158, %v606
  %v608 = vpop.f32.mrb[0].mxu0
  %v609 = vpop.f32.mrb[0].mxu0
  %v610 = vpop.f32.mrb[0].mxu0
  %611 = vdwg.mxu0
  %612 = vmatprep.subr.bf16.mxu0 0
  %613 = vmatpush1.bf16.msra.mxu0 %v460
  %614 = vmatprep.subr.bf16.mxu0 0
  %615 = vmatpush1.bf16.msra.mxu0 %v461
  %616 = vmatprep.subr.bf16.mxu0 0
  %617 = vmatpush1.bf16.msra.mxu0 %v462
  %618 = vmatprep.subr.bf16.mxu0 0
  %619 = vmatpush1.bf16.msra.mxu0 %v463
  %620 = vmatprep.subr.bf16.mxu0 0
  %621 = vmatpush1.bf16.msra.mxu0 %v464
  %622 = vmatprep.subr.bf16.mxu0 0
  %623 = vmatpush1.bf16.msra.mxu0 %v465
  %624 = vmatprep.subr.bf16.mxu0 0
  %625 = vmatpush1.bf16.msra.mxu0 %v466
  %626 = vmatprep.subr.bf16.mxu0 0
  %627 = vmatpush1.bf16.msra.mxu0 %v467
  %628 = vmatprep.subr.bf16.mxu0 0
  %629 = vmatpush1.bf16.msra.mxu0 %v468
  %630 = vmatprep.subr.bf16.mxu0 0
  %631 = vmatpush1.bf16.msra.mxu0 %v469
  %632 = vmatprep.subr.bf16.mxu0 0
  %633 = vmatpush1.bf16.msra.mxu0 %v470
  %634 = vmatprep.subr.bf16.mxu0 0
  %635 = vmatpush1.bf16.msra.mxu0 %v471
  %636 = vmatprep.subr.bf16.mxu0 0
  %637 = vmatpush1.bf16.msra.mxu0 %v472
  %638 = vmatprep.subr.bf16.mxu0 0
  %639 = vmatpush1.bf16.msra.mxu0 %v473
  %640 = vmatprep.subr.bf16.mxu0 0
  %641 = vmatpush1.bf16.msra.mxu0 %v474
  %642 = vmatprep.subr.bf16.mxu0 0
  %643 = vmatpush1.bf16.msra.mxu0 %v475
  %644 = vmatprep.mubr.bf16.mxu0 %v175
  %645 = vmatmul.mubr.bf16.gmra.mrb[0].mxu0 %v174
  %v646 = vpop.f32.mrb[0].mxu0
  %v647 = vadd.f32 %v607, %v646
  %v648 = vpop.f32.mrb[0].mxu0
  %v649 = vpop.f32.mrb[0].mxu0
  %v650 = vpop.f32.mrb[0].mxu0
  %651 = vdwg.mxu0
  %652 = vmatprep.subr.bf16.mxu0 0
  %653 = vmatpush1.bf16.msra.mxu0 %v476
  %654 = vmatprep.subr.bf16.mxu0 0
  %655 = vmatpush1.bf16.msra.mxu0 %v477
  %656 = vmatprep.subr.bf16.mxu0 0
  %657 = vmatpush1.bf16.msra.mxu0 %v478
  %658 = vmatprep.subr.bf16.mxu0 0
  %659 = vmatpush1.bf16.msra.mxu0 %v479
  %660 = vmatprep.subr.bf16.mxu0 0
  %661 = vmatpush1.bf16.msra.mxu0 %v480
  %662 = vmatprep.subr.bf16.mxu0 0
  %663 = vmatpush1.bf16.msra.mxu0 %v481
  %664 = vmatprep.subr.bf16.mxu0 0
  %665 = vmatpush1.bf16.msra.mxu0 %v482
  %666 = vmatprep.subr.bf16.mxu0 0
  %667 = vmatpush1.bf16.msra.mxu0 %v483
  %668 = vmatprep.subr.bf16.mxu0 0
  %669 = vmatpush1.bf16.msra.mxu0 %v484
  %670 = vmatprep.subr.bf16.mxu0 0
  %671 = vmatpush1.bf16.msra.mxu0 %v485
  %672 = vmatprep.subr.bf16.mxu0 0
  %673 = vmatpush1.bf16.msra.mxu0 %v486
  %674 = vmatprep.subr.bf16.mxu0 0
  %675 = vmatpush1.bf16.msra.mxu0 %v487
  %676 = vmatprep.subr.bf16.mxu0 0
  %677 = vmatpush1.bf16.msra.mxu0 %v488
  %678 = vmatprep.subr.bf16.mxu0 0
  %679 = vmatpush1.bf16.msra.mxu0 %v489
  %680 = vmatprep.subr.bf16.mxu0 0
  %681 = vmatpush1.bf16.msra.mxu0 %v490
  %682 = vmatprep.subr.bf16.mxu0 0
  %683 = vmatpush1.bf16.msra.mxu0 %v491
  %684 = vmatprep.mubr.bf16.mxu0 %v177
  %685 = vmatmul.mubr.bf16.gmra.mrb[0].mxu0 %v176
  %v686 = vpop.f32.mrb[0].mxu0
  %v687 = vadd.f32 %v647, %v686
  %v688 = vpop.f32.mrb[0].mxu0
  %v689 = vpop.f32.mrb[0].mxu0
  %v690 = vpop.f32.mrb[0].mxu0
  %691 = vdwg.mxu0
  %692 = vmatprep.subr.bf16.mxu0 0
  %693 = vmatpush1.bf16.msra.mxu0 %v492
  %694 = vmatprep.subr.bf16.mxu0 0
  %695 = vmatpush1.bf16.msra.mxu0 %v493
  %696 = vmatprep.subr.bf16.mxu0 0
  %697 = vmatpush1.bf16.msra.mxu0 %v494
  %698 = vmatprep.subr.bf16.mxu0 0
  %699 = vmatpush1.bf16.msra.mxu0 %v495
  %700 = vmatprep.subr.bf16.mxu0 0
  %701 = vmatpush1.bf16.msra.mxu0 %v496
  %702 = vmatprep.subr.bf16.mxu0 0
  %703 = vmatpush1.bf16.msra.mxu0 %v497
  %704 = vmatprep.subr.bf16.mxu0 0
  %705 = vmatpush1.bf16.msra.mxu0 %v498
  %706 = vmatprep.subr.bf16.mxu0 0
  %707 = vmatpush1.bf16.msra.mxu0 %v499
  %708 = vmatprep.subr.bf16.mxu0 0
  %709 = vmatpush1.bf16.msra.mxu0 %v500
  %710 = vmatprep.subr.bf16.mxu0 0
  %711 = vmatpush1.bf16.msra.mxu0 %v501
  %712 = vmatprep.subr.bf16.mxu0 0
  %713 = vmatpush1.bf16.msra.mxu0 %v502
  %714 = vmatprep.subr.bf16.mxu0 0
  %715 = vmatpush1.bf16.msra.mxu0 %v503
  %716 = vmatprep.subr.bf16.mxu0 0
  %717 = vmatpush1.bf16.msra.mxu0 %v504
  %718 = vmatprep.subr.bf16.mxu0 0
  %719 = vmatpush1.bf16.msra.mxu0 %v505
  %720 = vmatprep.subr.bf16.mxu0 0
  %721 = vmatpush1.bf16.msra.mxu0 %v506
  %722 = vmatprep.subr.bf16.mxu0 0
  %723 = vmatpush1.bf16.msra.mxu0 %v507
  %724 = vmatprep.mubr.bf16.mxu0 %v179
  %725 = vmatmul.mubr.bf16.gmra.mrb[0].mxu0 %v178
  %v726 = vpop.f32.mrb[0].mxu0
  %v727 = vadd.f32 %v687, %v726
  %v728 = vpop.f32.mrb[0].mxu0
  %v729 = vpop.f32.mrb[0].mxu0
  %v730 = vpop.f32.mrb[0].mxu0
  %731 = vdwg.mxu0
  %vm732 = vcmp.gt.f32.partialorder %v727, 0.0
  %v733 = vmul.f32 %v727, 0.01
  %v734 = vsel %vm732, %v727, %v733
  %v735 = vpack.c.bf16 %v734, %v734
  %v736 = vld [vmem:[%s3] sm:$0xf]
  %v737 = vld [vmem:[%s3 + $0x4] sm:$0xf]
  %v738 = vld [vmem:[%s3 + $0x8] sm:$0xf]
  %v739 = vld [vmem:[%s3 + $0xc] sm:$0xf]
  %v740 = vld [vmem:[%s3 + $0x10] sm:$0xf]
  %v741 = vld [vmem:[%s3 + $0x14] sm:$0xf]
  %v742 = vld [vmem:[%s3 + $0x18] sm:$0xf]
  %v743 = vld [vmem:[%s3 + $0x1c] sm:$0xf]
  %v744 = vld [vmem:[%s3 + $0x20] sm:$0xf]
  %v745 = vld [vmem:[%s3 + $0x24] sm:$0xf]
  %v746 = vld [vmem:[%s3 + $0x28] sm:$0xf]
  %v747 = vld [vmem:[%s3 + $0x2c] sm:$0xf]
  %v748 = vld [vmem:[%s3 + $0x30] sm:$0xf]
  %v749 = vld [vmem:[%s3 + $0x34] sm:$0xf]
  %v750 = vld [vmem:[%s3 + $0x38] sm:$0xf]
  %v751 = vld [vmem:[%s3 + $0x3c] sm:$0xf]
  %v752 = vld [vmem:[%s4] sm:$0x1]
  %v754 = vlaneseq
  %v755 = vshrl.u32 %v754, 7
  %v756 = vsub.s32 0, %v755
  %v757 = vrot.slane %v752, %v756
  %v775 = vunpack.c.l.b16 %v736
  %v776 = vunpack.c.l.b16 %v737
  %v777 = vunpack.c.l.b16 %v738
  %v778 = vunpack.c.l.b16 %v739
  %v779 = vunpack.c.l.b16 %v740
  %v780 = vunpack.c.l.b16 %v741
  %v781 = vunpack.c.l.b16 %v742
  %v782 = vunpack.c.l.b16 %v743
  %v783 = vunpack.c.l.b16 %v744
  %v784 = vunpack.c.l.b16 %v745
  %v785 = vunpack.c.l.b16 %v746
  %v786 = vunpack.c.l.b16 %v747
  %v787 = vunpack.c.l.b16 %v748
  %v788 = vunpack.c.l.b16 %v749
  %v789 = vunpack.c.l.b16 %v750
  %v790 = vunpack.c.l.b16 %v751
  %v791 = vpack.c.b16 %v776, %v775
  %v792 = vpack.c.b16 %v778, %v777
  %v793 = vpack.c.b16 %v780, %v779
  %v794 = vpack.c.b16 %v782, %v781
  %v795 = vpack.c.b16 %v784, %v783
  %v796 = vpack.c.b16 %v786, %v785
  %v797 = vpack.c.b16 %v788, %v787
  %v798 = vpack.c.b16 %v790, %v789
  %807 = vmatprep.subr.bf16.mxu0 0
  %808 = vmatpush1.bf16.msra.mxu0 %v791
  %809 = vmatprep.subr.bf16.mxu0 0
  %810 = vmatpush1.bf16.msra.mxu0 %v792
  %811 = vmatprep.subr.bf16.mxu0 0
  %812 = vmatpush1.bf16.msra.mxu0 %v793
  %813 = vmatprep.subr.bf16.mxu0 0
  %814 = vmatpush1.bf16.msra.mxu0 %v794
  %815 = vmatprep.subr.bf16.mxu0 0
  %816 = vmatpush1.bf16.msra.mxu0 %v795
  %817 = vmatprep.subr.bf16.mxu0 0
  %818 = vmatpush1.bf16.msra.mxu0 %v796
  %819 = vmatprep.subr.bf16.mxu0 0
  %820 = vmatpush1.bf16.msra.mxu0 %v797
  %821 = vmatprep.subr.bf16.mxu0 0
  %822 = vmatpush1.bf16.msra.mxu0 %v798
  %823 = vmatprep.subr.bf16.mxu0 0
  %824 = vmatpush1.bf16.msra.mxu0 0
  %825 = vmatprep.subr.bf16.mxu0 0
  %826 = vmatpush1.bf16.msra.mxu0 0
  %827 = vmatprep.subr.bf16.mxu0 0
  %828 = vmatpush1.bf16.msra.mxu0 0
  %829 = vmatprep.subr.bf16.mxu0 0
  %830 = vmatpush1.bf16.msra.mxu0 0
  %831 = vmatprep.subr.bf16.mxu0 0
  %832 = vmatpush1.bf16.msra.mxu0 0
  %833 = vmatprep.subr.bf16.mxu0 0
  %834 = vmatpush1.bf16.msra.mxu0 0
  %835 = vmatprep.subr.bf16.mxu0 0
  %836 = vmatpush1.bf16.msra.mxu0 0
  %837 = vmatprep.subr.bf16.mxu0 0
  %838 = vmatpush1.bf16.msra.mxu0 0
  %839 = vmatprep.mubr.bf16.mxu0 0
  %840 = vmatmul.mubr.bf16.gmra.mrb[0].mxu0 %v735
  %v841 = vpop.f32.mrb[0].mxu0
  %v842 = vadd.f32 %v757, %v841
  %v843 = vpop.f32.mrb[0].mxu0
  %v844 = vpop.f32.mrb[0].mxu0
  %v845 = vpop.f32.mrb[0].mxu0
  %846 = vdwg.mxu0
  %vm847 = vcmask 80896
  %v848 = vsel %vm847, %v842, -inf
  %849 = vmax.xlane.f32.xlu0 %v848
  %v850 = vpop.xlane.xlu0 %849
  %v851 = vsub.f32 %v842, %v850
  %v852 = vmul.f32 %v851, 1.442695
  %v853 = vpow.pop %v852
  %v854 = vsel %vm847, %v853, 0.0
  %855 = vadd.xlane.f32.xlu0 %v854
  %v856 = vpop.xlane.xlu0 %855
  %v857 = vlog2.pop %v856
  %v858 = vmul.f32 %v857, 0.6931472
  %v859 = vadd.f32 %v850, %v858
  %v860 = vsub.f32 %v842, %v859
  %861 = vst.msk [vmem:[%s5] sm:$0xff] %vm847, %v860
  // Predicated region
  $region22: #{net_forward.5} parent=0 // pred_check
    _
  $region23: #{net_forward.5} parent=0 // pred_check_branch
    %863 = sbr.rel (0) target = $region25
  $region24: #{net_forward.5} parent=0 // pred_region
    _
  $region25: #{net_forward.5} parent=0 // pred_fallthru
    _
  // Predicated region
  $region26: #{net_forward.5} parent=0 // pred_check
    _
  $region27: #{net_forward.5} parent=0 // pred_check_branch
    %865 = sbr.rel (0) target = $region29
  $region28: #{net_forward.5} parent=0 // pred_region
    _
  $region29: #{net_forward.5} parent=0 // pred_fallthru
    _

// kernel: net_forward.4
$region0: #{net_forward.4}
  #allocation0 [shape = 'u32[]', space=smem, size = 0x4, offset = 0x4, fixed_abs, tag = 'smem constant byte address 0x4 - core index']
  #allocation1 [shape = 'u32[144,128]{1,0:T(1,128)}', space=vmem, size = 0x12000, scoped, tag = 'internal scratch']
  %s0 = inlined_call_operand.vmem [shape: bf16[32,2304], index: 0, kind: input, shape index: {}]
  %s1 = inlined_call_operand.hbm [shape: bf16[2304,1024], index: 1, kind: input, shape index: {}]
  %s2 = inlined_call_operand.hbm [shape: f32[1,1024], index: 2, kind: input, shape index: {}]
  %s3 = inlined_call_operand.hbm [shape: f32[1,1024], index: 3, kind: input, shape index: {}]
  %s4 = inlined_call_operand.vmem [shape: bf16[32,256], index: 4, kind: output, shape index: {}]
  %s5 = sld [smem:[#allocation0]]
  $region38: #{net_forward.4} parent=0
    _
  %s7 = ssub.s32 1, %s5
  %s8 = scalar_select 0, %s7, %s5
  $region1: #{net_forward.4} parent=0
    #allocation2 [shape = 'u8[4718592]{0}', space=vmem, size = 0x480000, scoped, tag = 'input window, operand 1, single buffered']
    #allocation3 [shape = 's32[1]{0}', space=sflag, size = 0x4, scoped, tag = 'scoped memory for net_forward.4']
    #allocation4 [shape = 'u8[4096]{0}', space=vmem, size = 0x1000, scoped, tag = 'input window, operand 2, single buffered']
    #allocation5 [shape = 's32[1]{0}', space=sflag, size = 0x4, scoped, tag = 'scoped memory for net_forward.4']
    #allocation6 [shape = 'u8[4096]{0}', space=vmem, size = 0x1000, scoped, tag = 'input window, operand 3, single buffered']
    %9 = vsyncpa [#allocation3], 0
    %10 = vsyncpa [#allocation5], 0
    // Predicated region
    $region2: #{net_forward.4} parent=1 // pred_check
      _
    $region3: #{net_forward.4} parent=1 // pred_check_branch
      %12 = sbr.rel (0) target = $region5
    $region4: #{net_forward.4} parent=1 // pred_region
      _
    $region5: #{net_forward.4} parent=1 // pred_fallthru
      _
    // Predicated region
    $region6: #{net_forward.4} parent=1 // pred_check
      _
    $region7: #{net_forward.4} parent=1 // pred_check_branch
      %14 = sbr.rel (0) target = $region9
    $region8: #{net_forward.4} parent=1 // pred_region
      %s16 = ssub.s32 147456, 147456
      %17 = vsyncadd [#allocation3], %s16
      %s18 = sshll.u32 [#allocation2], 4
      %s19 = int_to_ptr.vmem [resolvable:$true] %s18
      %24 = dma.hbm_to_vmem [thread:$0]  %s1, 147456, %s19, [#allocation3], 512, 512, 32
    $region9: #{net_forward.4} parent=1 // pred_fallthru
      _
    // Predicated region
    $region10: #{net_forward.4} parent=1 // pred_check
      _
    $region11: #{net_forward.4} parent=1 // pred_check_branch
      %26 = sbr.rel (0) target = $region13
    $region12: #{net_forward.4} parent=1 // pred_region
      %s28 = ssub.s32 128, 128
      %29 = vsyncadd [#allocation5], %s28
      %s31 = sshll.u32 [#allocation4], 4
      %s32 = int_to_ptr.vmem [resolvable:$true] %s31
      %34 = dma.hbm_to_vmem [thread:$0]  %s2, 128, %s32, [#allocation5]
    $region13: #{net_forward.4} parent=1 // pred_fallthru
      _
    // Predicated region
    $region14: #{net_forward.4} parent=1 // pred_check
      _
    $region15: #{net_forward.4} parent=1 // pred_check_branch
      %36 = sbr.rel (0) target = $region17
    $region16: #{net_forward.4} parent=1 // pred_region
      %s38 = ssub.s32 128, 128
      %39 = vsyncadd [#allocation5], %s38
      %s41 = sshll.u32 [#allocation6], 4
      %s42 = int_to_ptr.vmem [resolvable:$true] %s41
      %44 = dma.hbm_to_vmem [thread:$0]  %s3, 128, %s42, [#allocation5]
    $region17: #{net_forward.4} parent=1 // pred_fallthru
      _
    // Predicated region
    $region18: #{net_forward.4} parent=1 // pred_check
      _
    $region19: #{net_forward.4} parent=1 // pred_check_branch
      %46 = sbr.rel (0) target = $region21
    $region20: #{net_forward.4} parent=1 // pred_region
      %47 = dma.done [#allocation3], 147456
    $region21: #{net_forward.4} parent=1 // pred_fallthru
      _
    // Predicated region
    $region22: #{net_forward.4} parent=1 // pred_check
      _
    $region23: #{net_forward.4} parent=1 // pred_check_branch
      %49 = sbr.rel (0) target = $region25
    $region24: #{net_forward.4} parent=1 // pred_region
      %50 = dma.done [#allocation5], 128
    $region25: #{net_forward.4} parent=1 // pred_fallthru
      _
    // Predicated region
    $region26: #{net_forward.4} parent=1 // pred_check
      _
    $region27: #{net_forward.4} parent=1 // pred_check_branch
      %52 = sbr.rel (0) target = $region29
    $region28: #{net_forward.4} parent=1 // pred_region
      %53 = dma.done [#allocation5], 128
    $region29: #{net_forward.4} parent=1 // pred_fallthru
      _
    %v54 = vld [vmem:[%s0] sm:$0xff]
    %v55 = vld [vmem:[%s0 + $0x8] sm:$0xff]
    %v56 = vld [vmem:[%s0 + $0x10] sm:$0xff]
    %v57 = vld [vmem:[%s0 + $0x18] sm:$0xff]
    %v58 = vld [vmem:[%s0 + $0x20] sm:$0xff]
    %v59 = vld [vmem:[%s0 + $0x28] sm:$0xff]
    %v60 = vld [vmem:[%s0 + $0x30] sm:$0xff]
    %v61 = vld [vmem:[%s0 + $0x38] sm:$0xff]
    %v62 = vld [vmem:[%s0 + $0x40] sm:$0xff]
    %v63 = vld [vmem:[%s0 + $0x48] sm:$0xff]
    %v64 = vld [vmem:[%s0 + $0x50] sm:$0xff]
    %v65 = vld [vmem:[%s0 + $0x58] sm:$0xff]
    %v66 = vld [vmem:[%s0 + $0x60] sm:$0xff]
    %v67 = vld [vmem:[%s0 + $0x68] sm:$0xff]
    %v68 = vld [vmem:[%s0 + $0x70] sm:$0xff]
    %v69 = vld [vmem:[%s0 + $0x78] sm:$0xff]
    %v70 = vld [vmem:[%s0 + $0x80] sm:$0xff]
    %v71 = vld [vmem:[%s0 + $0x88] sm:$0xff]
    %v72 = vld [vmem:[%s0 + $0x90] sm:$0xff]
    %v73 = vld [vmem:[%s0 + $0x98] sm:$0xff]
    %v74 = vld [vmem:[%s0 + $0xa0] sm:$0xff]
    %v75 = vld [vmem:[%s0 + $0xa8] sm:$0xff]
    %v76 = vld [vmem:[%s0 + $0xb0] sm:$0xff]
    %v77 = vld [vmem:[%s0 + $0xb8] sm:$0xff]
    %v78 = vld [vmem:[%s0 + $0xc0] sm:$0xff]
    %v79 = vld [vmem:[%s0 + $0xc8] sm:$0xff]
    %v80 = vld [vmem:[%s0 + $0xd0] sm:$0xff]
    %v81 = vld [vmem:[%s0 + $0xd8] sm:$0xff]
    %v82 = vld [vmem:[%s0 + $0xe0] sm:$0xff]
    %v83 = vld [vmem:[%s0 + $0xe8] sm:$0xff]
    %v84 = vld [vmem:[%s0 + $0xf0] sm:$0xff]
    %v85 = vld [vmem:[%s0 + $0xf8] sm:$0xff]
    %v86 = vld [vmem:[%s0 + $0x100] sm:$0xff]
    %v87 = vld [vmem:[%s0 + $0x108] sm:$0xff]
    %v88 = vld [vmem:[%s0 + $0x110] sm:$0xff]
    %v89 = vld [vmem:[%s0 + $0x118] sm:$0xff]
    %v90 = vld [vmem:[#allocation2] sm:$0xff]
    %v91 = vld [vmem:[#allocation2 + $0x8] sm:$0xff]
    %v92 = vld [vmem:[#allocation2 + $0x10] sm:$0xff]
    %v93 = vld [vmem:[#allocation2 + $0x18] sm:$0xff]
    %v94 = vld [vmem:[#allocation2 + $0x20] sm:$0xff]
    %v95 = vld [vmem:[#allocation2 + $0x28] sm:$0xff]
    %v96 = vld [vmem:[#allocation2 + $0x30] sm:$0xff]
    %v97 = vld [vmem:[#allocation2 + $0x38] sm:$0xff]
    %v98 = vld [vmem:[#allocation2 + $0x40] sm:$0xff]
    %v99 = vld [vmem:[#allocation2 + $0x48] sm:$0xff]
    %v100 = vld [vmem:[#allocation2 + $0x50] sm:$0xff]
    %v101 = vld [vmem:[#allocation2 + $0x58] sm:$0xff]
    %v102 = vld [vmem:[#allocation2 + $0x60] sm:$0xff]
    %v103 = vld [vmem:[#allocation2 + $0x68] sm:$0xff]
    %v104 = vld [vmem:[#allocation2 + $0x70] sm:$0xff]
    %v105 = vld [vmem:[#allocation2 + $0x78] sm:$0xff]
    %v106 = vld [vmem:[#allocation2 + $0x80] sm:$0xff]
    %v107 = vld [vmem:[#allocation2 + $0x88] sm:$0xff]
    %v108 = vld [vmem:[#allocation2 + $0x90] sm:$0xff]
    %v109 = vld [vmem:[#allocation2 + $0x98] sm:$0xff]
    %v110 = vld [vmem:[#allocation2 + $0xa0] sm:$0xff]
    %v111 = vld [vmem:[#allocation2 + $0xa8] sm:$0xff]
    %v112 = vld [vmem:[#allocation2 + $0xb0] sm:$0xff]
    %v113 = vld [vmem:[#allocation2 + $0xb8] sm:$0xff]
    %v114 = vld [vmem:[#allocation2 + $0xc0] sm:$0xff]
    %v115 = vld [vmem:[#allocation2 + $0xc8] sm:$0xff]
    %v116 = vld [vmem:[#allocation2 + $0xd0] sm:$0xff]
    %v117 = vld [vmem:[#allocation2 + $0xd8] sm:$0xff]
    %v118 = vld [vmem:[#allocation2 + $0xe0] sm:$0xff]
    %v119 = vld [vmem:[#allocation2 + $0xe8] sm:$0xff]
    %v120 = vld [vmem:[#allocation2 + $0xf0] sm:$0xff]
    %v121 = vld [vmem:[#allocation2 + $0xf8] sm:$0xff]
    %v122 = vld [vmem:[#allocation2 + $0x100] sm:$0xff]
    %v123 = vld [vmem:[#allocation2 + $0x108] sm:$0xff]
    %v124 = vld [vmem:[#allocation2 + $0x110] sm:$0xff]
    %v125 = vld [vmem:[#allocation2 + $0x118] sm:$0xff]
    %v126 = vld [vmem:[#allocation2 + $0x120] sm:$0xff]
    %v127 = vld [vmem:[#allocation2 + $0x128] sm:$0xff]
    %v128 = vld [vmem:[#allocation2 + $0x130] sm:$0xff]
    %v129 = vld [vmem:[#allocation2 + $0x138] sm:$0xff]
    %v130 = vld [vmem:[#allocation2 + $0x140] sm:$0xff]
    %v131 = vld [vmem:[#allocation2 + $0x148] sm:$0xff]
    %v132 = vld [vmem:[#allocation2 + $0x150] sm:$0xff]
    %v133 = vld [vmem:[#allocation2 + $0x158] sm:$0xff]
    %v134 = vld [vmem:[#allocation2 + $0x160] sm:$0xff]
    %v135 = vld [vmem:[#allocation2 + $0x168] sm:$0xff]
    %v136 = vld [vmem:[#allocation2 + $0x170] sm:$0xff]
    %v137 = vld [vmem:[#allocation2 + $0x178] sm:$0xff]
    %v138 = vld [vmem:[#allocation2 + $0x180] sm:$0xff]
    %v139 = vld [vmem:[#allocation2 + $0x188] sm:$0xff]
    %v140 = vld [vmem:[#allocation2 + $0x190] sm:$0xff]
    %v141 = vld [vmem:[#allocation2 + $0x198] sm:$0xff]
    %v142 = vld [vmem:[#allocation2 + $0x1a0] sm:$0xff]
    %v143 = vld [vmem:[#allocation2 + $0x1a8] sm:$0xff]
    %v144 = vld [vmem:[#allocation2 + $0x1b0] sm:$0xff]
    %v145 = vld [vmem:[#allocation2 + $0x1b8] sm:$0xff]
    %v146 = vld [vmem:[#allocation2 + $0x1c0] sm:$0xff]
    %v147 = vld [vmem:[#allocation2 + $0x1c8] sm:$0xff]
    %v148 = vld [vmem:[#allocation2 + $0x1d0] sm:$0xff]
    %v149 = vld [vmem:[#allocation2 + $0x1d8] sm:$0xff]
    %v150 = vld [vmem:[#allocation2 + $0x1e0] sm:$0xff]
    %v151 = vld [vmem:[#allocation2 + $0x1e8] sm:$0xff]
    %v152 = vld [vmem:[#allocation2 + $0x1f0] sm:$0xff]
    %v153 = vld [vmem:[#allocation2 + $0x1f8] sm:$0xff]
    %v154 = vld [vmem:[#allocation2 + $0x200] sm:$0xff]
    %v155 = vld [vmem:[#allocation2 + $0x208] sm:$0xff]
    %v156 = vld [vmem:[#allocation2 + $0x210] sm:$0xff]
    %v157 = vld [vmem:[#allocation2 + $0x218] sm:$0xff]
    %v158 = vld [vmem:[#allocation2 + $0x220] sm:$0xff]
    %v159 = vld [vmem:[#allocation2 + $0x228] sm:$0xff]
    %v160 = vld [vmem:[#allocation2 + $0x230] sm:$0xff]
    %v161 = vld [vmem:[#allocation2 + $0x238] sm:$0xff]
    %v162 = vld [vmem:[#allocation2 + $0x240] sm:$0xff]
    %v163 = vld [vmem:[#allocation2 + $0x248] sm:$0xff]
    %v164 = vld [vmem:[#allocation2 + $0x250] sm:$0xff]
    %v165 = vld [vmem:[#allocation2 + $0x258] sm:$0xff]
    %v166 = vld [vmem:[#allocation2 + $0x260] sm:$0xff]
    %v167 = vld [vmem:[#allocation2 + $0x268] sm:$0xff]
    %v168 = vld [vmem:[#allocation2 + $0x270] sm:$0xff]
    %v169 = vld [vmem:[#allocation2 + $0x278] sm:$0xff]
    %v170 = vld [vmem:[#allocation2 + $0x280] sm:$0xff]
    %v171 = vld [vmem:[#allocation2 + $0x288] sm:$0xff]
    %v172 = vld [vmem:[#allocation2 + $0x290] sm:$0xff]
    %v173 = vld [vmem:[#allocation2 + $0x298] sm:$0xff]
    %v174 = vld [vmem:[#allocation2 + $0x2a0] sm:$0xff]
    %v175 = vld [vmem:[#allocation2 + $0x2a8] sm:$0xff]
    %v176 = vld [vmem:[#allocation2 + $0x2b0] sm:$0xff]
    %v177 = vld [vmem:[#allocation2 + $0x2b8] sm:$0xff]
    %v178 = vld [vmem:[#allocation2 + $0x2c0] sm:$0xff]
    %v179 = vld [vmem:[#allocation2 + $0x2c8] sm:$0xff]
    %v180 = vld [vmem:[#allocation2 + $0x2d0] sm:$0xff]
    %v181 = vld [vmem:[#allocation2 + $0x2d8] sm:$0xff]
    %v182 = vld [vmem:[#allocation2 + $0x2e0] sm:$0xff]
    %v183 = vld [vmem:[#allocation2 + $0x2e8] sm:$0xff]
    %v184 = vld [vmem:[#allocation2 + $0x2f0] sm:$0xff]
    %v185 = vld [vmem:[#allocation2 + $0x2f8] sm:$0xff]
    %v186 = vld [vmem:[#allocation2 + $0x300] sm:$0xff]
    %v187 = vld [vmem:[#allocation2 + $0x308] sm:$0xff]
    %v188 = vld [vmem:[#allocation2 + $0x310] sm:$0xff]
    %v189 = vld [vmem:[#allocation2 + $0x318] sm:$0xff]
    %v190 = vld [vmem:[#allocation2 + $0x320] sm:$0xff]
    %v191 = vld [vmem:[#allocation2 + $0x328] sm:$0xff]
    %v192 = vld [vmem:[#allocation2 + $0x330] sm:$0xff]
    %v193 = vld [vmem:[#allocation2 + $0x338] sm:$0xff]
    %v194 = vld [vmem:[#allocation2 + $0x340] sm:$0xff]
    %v195 = vld [vmem:[#allocation2 + $0x348] sm:$0xff]
    %v196 = vld [vmem:[#allocation2 + $0x350] sm:$0xff]
    %v197 = vld [vmem:[#allocation2 + $0x358] sm:$0xff]
    %v198 = vld [vmem:[#allocation2 + $0x360] sm:$0xff]
    %v199 = vld [vmem:[#allocation2 + $0x368] sm:$0xff]
    %v200 = vld [vmem:[#allocation2 + $0x370] sm:$0xff]
    %v201 = vld [vmem:[#allocation2 + $0x378] sm:$0xff]
    %v202 = vld [vmem:[#allocation2 + $0x380] sm:$0xff]
    %v203 = vld [vmem:[#allocation2 + $0x388] sm:$0xff]
    %v204 = vld [vmem:[#allocation2 + $0x390] sm:$0xff]
    %v205 = vld [vmem:[#allocation2 + $0x398] sm:$0xff]
    %v206 = vld [vmem:[#allocation2 + $0x3a0] sm:$0xff]
    %v207 = vld [vmem:[#allocation2 + $0x3a8] sm:$0xff]
    %v208 = vld [vmem:[#allocation2 + $0x3b0] sm:$0xff]
    %v209 = vld [vmem:[#allocation2 + $0x3b8] sm:$0xff]
    %v210 = vld [vmem:[#allocation2 + $0x3c0] sm:$0xff]
    %v211 = vld [vmem:[#allocation2 + $0x3c8] sm:$0xff]
    %v212 = vld [vmem:[#allocation2 + $0x3d0] sm:$0xff]
    %v213 = vld [vmem:[#allocation2 + $0x3d8] sm:$0xff]
    %v214 = vld [vmem:[#allocation2 + $0x3e0] sm:$0xff]
    %v215 = vld [vmem:[#allocation2 + $0x3e8] sm:$0xff]
    %v216 = vld [vmem:[#allocation2 + $0x3f0] sm:$0xff]
    %v217 = vld [vmem:[#allocation2 + $0x3f8] sm:$0xff]
    %v218 = vld [vmem:[#allocation2 + $0x400] sm:$0xff]
    %v219 = vld [vmem:[#allocation2 + $0x408] sm:$0xff]
    %v220 = vld [vmem:[#allocation2 + $0x410] sm:$0xff]
    %v221 = vld [vmem:[#allocation2 + $0x418] sm:$0xff]
    %v222 = vld [vmem:[#allocation2 + $0x420] sm:$0xff]
    %v223 = vld [vmem:[#allocation2 + $0x428] sm:$0xff]
    %v224 = vld [vmem:[#allocation2 + $0x430] sm:$0xff]
    %v225 = vld [vmem:[#allocation2 + $0x438] sm:$0xff]
    %v226 = vld [vmem:[#allocation2 + $0x440] sm:$0xff]
    %v227 = vld [vmem:[#allocation2 + $0x448] sm:$0xff]
    %v228 = vld [vmem:[#allocation2 + $0x450] sm:$0xff]
    %v229 = vld [vmem:[#allocation2 + $0x458] sm:$0xff]
    %v230 = vld [vmem:[#allocation2 + $0x460] sm:$0xff]
    %v231 = vld [vmem:[#allocation2 + $0x468] sm:$0xff]
    %v232 = vld [vmem:[#allocation2 + $0x470] sm:$0xff]
    %v233 = vld [vmem:[#allocation2 + $0x478] sm:$0xff]
    %v234 = vld [vmem:[#allocation2 + $0x480] sm:$0xff]
    %v235 = vld [vmem:[#allocation2 + $0x488] sm:$0xff]
    %v236 = vld [vmem:[#allocation2 + $0x490] sm:$0xff]
    %v237 = vld [vmem:[#allocation2 + $0x498] sm:$0xff]
    %v238 = vld [vmem:[#allocation2 + $0x4a0] sm:$0xff]
    %v239 = vld [vmem:[#allocation2 + $0x4a8] sm:$0xff]
    %v240 = vld [vmem:[#allocation2 + $0x4b0] sm:$0xff]
    %v241 = vld [vmem:[#allocation2 + $0x4b8] sm:$0xff]
    %v242 = vld [vmem:[#allocation2 + $0x4c0] sm:$0xff]
    %v243 = vld [vmem:[#allocation2 + $0x4c8] sm:$0xff]
    %v244 = vld [vmem:[#allocation2 + $0x4d0] sm:$0xff]
    %v245 = vld [vmem:[#allocation2 + $0x4d8] sm:$0xff]
    %v246 = vld [vmem:[#allocation2 + $0x4e0] sm:$0xff]
    %v247 = vld [vmem:[#allocation2 + $0x4e8] sm:$0xff]
    %v248 = vld [vmem:[#allocation2 + $0x4f0] sm:$0xff]
    %v249 = vld [vmem:[#allocation2 + $0x4f8] sm:$0xff]
    %v250 = vld [vmem:[#allocation2 + $0x500] sm:$0xff]
    %v251 = vld [vmem:[#allocation2 + $0x508] sm:$0xff]
    %v252 = vld [vmem:[#allocation2 + $0x510] sm:$0xff]
    %v253 = vld [vmem:[#allocation2 + $0x518] sm:$0xff]
    %v254 = vld [vmem:[#allocation2 + $0x520] sm:$0xff]
    %v255 = vld [vmem:[#allocation2 + $0x528] sm:$0xff]
    %v256 = vld [vmem:[#allocation2 + $0x530] sm:$0xff]
    %v257 = vld [vmem:[#allocation2 + $0x538] sm:$0xff]
    %v258 = vld [vmem:[#allocation2 + $0x540] sm:$0xff]
    %v259 = vld [vmem:[#allocation2 + $0x548] sm:$0xff]
    %v260 = vld [vmem:[#allocation2 + $0x550] sm:$0xff]
    %v261 = vld [vmem:[#allocation2 + $0x558] sm:$0xff]
    %v262 = vld [vmem:[#allocation2 + $0x560] sm:$0xff]
    %v263 = vld [vmem:[#allocation2 + $0x568] sm:$0xff]
    %v264 = vld [vmem:[#allocation2 + $0x570] sm:$0xff]
    %v265 = vld [vmem:[#allocation2 + $0x578] sm:$0xff]
    %v266 = vld [vmem:[#allocation2 + $0x580] sm:$0xff]
    %v267 = vld [vmem:[#allocation2 + $0x588] sm:$0xff]
    %v268 = vld [vmem:[#allocation2 + $0x590] sm:$0xff]
    %v269 = vld [vmem:[#allocation2 + $0x598] sm:$0xff]
    %v270 = vld [vmem:[#allocation2 + $0x5a0] sm:$0xff]
    %v271 = vld [vmem:[#allocation2 + $0x5a8] sm:$0xff]
    %v272 = vld [vmem:[#allocation2 + $0x5b0] sm:$0xff]
    %v273 = vld [vmem:[#allocation2 + $0x5b8] sm:$0xff]
    %v274 = vld [vmem:[#allocation2 + $0x5c0] sm:$0xff]
    %v275 = vld [vmem:[#allocation2 + $0x5c8] sm:$0xff]
    %v276 = vld [vmem:[#allocation2 + $0x5d0] sm:$0xff]
    %v277 = vld [vmem:[#allocation2 + $0x5d8] sm:$0xff]
    %v278 = vld [vmem:[#allocation2 + $0x5e0] sm:$0xff]
    %v279 = vld [vmem:[#allocation2 + $0x5e8] sm:$0xff]
    %v280 = vld [vmem:[#allocation2 + $0x5f0] sm:$0xff]
    %v281 = vld [vmem:[#allocation2 + $0x5f8] sm:$0xff]
    %v282 = vld [vmem:[#allocation2 + $0x600] sm:$0xff]
    %v283 = vld [vmem:[#allocation2 + $0x608] sm:$0xff]
    %v284 = vld [vmem:[#allocation2 + $0x610] sm:$0xff]
    %v285 = vld [vmem:[#allocation2 + $0x618] sm:$0xff]
    %v286 = vld [vmem:[#allocation2 + $0x620] sm:$0xff]
    %v287 = vld [vmem:[#allocation2 + $0x628] sm:$0xff]
    %v288 = vld [vmem:[#allocation2 + $0x630] sm:$0xff]
    %v289 = vld [vmem:[#allocation2 + $0x638] sm:$0xff]
    %v290 = vld [vmem:[#allocation2 + $0x640] sm:$0xff]
    %v291 = vld [vmem:[#allocation2 + $0x648] sm:$0xff]
    %v292 = vld [vmem:[#allocation2 + $0x650] sm:$0xff]
    %v293 = vld [vmem:[#allocation2 + $0x658] sm:$0xff]
    %v294 = vld [vmem:[#allocation2 + $0x660] sm:$0xff]
    %v295 = vld [vmem:[#allocation2 + $0x668] sm:$0xff]
    %v296 = vld [vmem:[#allocation2 + $0x670] sm:$0xff]
    %v297 = vld [vmem:[#allocation2 + $0x678] sm:$0xff]
    %v298 = vld [vmem:[#allocation2 + $0x680] sm:$0xff]
    %v299 = vld [vmem:[#allocation2 + $0x688] sm:$0xff]
    %v300 = vld [vmem:[#allocation2 + $0x690] sm:$0xff]
    %v301 = vld [vmem:[#allocation2 + $0x698] sm:$0xff]
    %v302 = vld [vmem:[#allocation2 + $0x6a0] sm:$0xff]
    %v303 = vld [vmem:[#allocation2 + $0x6a8] sm:$0xff]
    %v304 = vld [vmem:[#allocation2 + $0x6b0] sm:$0xff]
    %v305 = vld [vmem:[#allocation2 + $0x6b8] sm:$0xff]
    %v306 = vld [vmem:[#allocation2 + $0x6c0] sm:$0xff]
    %v307 = vld [vmem:[#allocation2 + $0x6c8] sm:$0xff]
    %v308 = vld [vmem:[#allocation2 + $0x6d0] sm:$0xff]
    %v309 = vld [vmem:[#allocation2 + $0x6d8] sm:$0xff]
    %v310 = vld [vmem:[#allocation2 + $0x6e0] sm:$0xff]
    %v311 = vld [vmem:[#allocation2 + $0x6e8] sm:$0xff]
    %v312 = vld [vmem:[#allocation2 + $0x6f0] sm:$0xff]
    %v313 = vld [vmem:[#allocation2 + $0x6f8] sm:$0xff]
    %v314 = vld [vmem:[#allocation2 + $0x700] sm:$0xff]
    %v315 = vld [vmem:[#allocation2 + $0x708] sm:$0xff]
    %v316 = vld [vmem:[#allocation2 + $0x710] sm:$0xff]
    %v317 = vld [vmem:[#allocation2 + $0x718] sm:$0xff]
    %v318 = vld [vmem:[#allocation2 + $0x720] sm:$0xff]
    %v319 = vld [vmem:[#allocation2 + $0x728] sm:$0xff]
    %v320 = vld [vmem:[#allocation2 + $0x730] sm:$0xff]
    %v321 = vld [vmem:[#allocation2 + $0x738] sm:$0xff]
    %v322 = vld [vmem:[#allocation2 + $0x740] sm:$0xff]
    %v323 = vld [vmem:[#allocation2 + $0x748] sm:$0xff]
    %v324 = vld [vmem:[#allocation2 + $0x750] sm:$0xff]
    %v325 = vld [vmem:[#allocation2 + $0x758] sm:$0xff]
    %v326 = vld [vmem:[#allocation2 + $0x760] sm:$0xff]
    %v327 = vld [vmem:[#allocation2 + $0x768] sm:$0xff]
    %v328 = vld [vmem:[#allocation2 + $0x770] sm:$0xff]
    %v329 = vld [vmem:[#allocation2 + $0x778] sm:$0xff]
    %v330 = vld [vmem:[#allocation2 + $0x780] sm:$0xff]
    %v331 = vld [vmem:[#allocation2 + $0x788] sm:$0xff]
    %v332 = vld [vmem:[#allocation2 + $0x790] sm:$0xff]
    %v333 = vld [vmem:[#allocation2 + $0x798] sm:$0xff]
    %v334 = vld [vmem:[#allocation2 + $0x7a0] sm:$0xff]
    %v335 = vld [vmem:[#allocation2 + $0x7a8] sm:$0xff]
    %v336 = vld [vmem:[#allocation2 + $0x7b0] sm:$0xff]
    %v337 = vld [vmem:[#allocation2 + $0x7b8] sm:$0xff]
    %v338 = vld [vmem:[#allocation2 + $0x7c0] sm:$0xff]
    %v339 = vld [vmem:[#allocation2 + $0x7c8] sm:$0xff]
    %v340 = vld [vmem:[#allocation2 + $0x7d0] sm:$0xff]
    %v341 = vld [vmem:[#allocation2 + $0x7d8] sm:$0xff]
    %v342 = vld [vmem:[#allocation2 + $0x7e0] sm:$0xff]
    %v343 = vld [vmem:[#allocation2 + $0x7e8] sm:$0xff]
    %v344 = vld [vmem:[#allocation2 + $0x7f0] sm:$0xff]
    %v345 = vld [vmem:[#allocation2 + $0x7f8] sm:$0xff]
    %v346 = vld [vmem:[#allocation2 + $0x800] sm:$0xff]
    %v347 = vld [vmem:[#allocation2 + $0x808] sm:$0xff]
    %v348 = vld [vmem:[#allocation2 + $0x810] sm:$0xff]
    %v349 = vld [vmem:[#allocation2 + $0x818] sm:$0xff]
    %v350 = vld [vmem:[#allocation2 + $0x820] sm:$0xff]
    %v351 = vld [vmem:[#allocation2 + $0x828] sm:$0xff]
    %v352 = vld [vmem:[#allocation2 + $0x830] sm:$0xff]
    %v353 = vld [vmem:[#allocation2 + $0x838] sm:$0xff]
    %v354 = vld [vmem:[#allocation2 + $0x840] sm:$0xff]
    %v355 = vld [vmem:[#allocation2 + $0x848] sm:$0xff]
    %v356 = vld [vmem:[#allocation2 + $0x850] sm:$0xff]
    %v357 = vld [vmem:[#allocation2 + $0x858] sm:$0xff]
    %v358 = vld [vmem:[#allocation2 + $0x860] sm:$0xff]
    %v359 = vld [vmem:[#allocation2 + $0x868] sm:$0xff]
    %v360 = vld [vmem:[#allocation2 + $0x870] sm:$0xff]
    %v361 = vld [vmem:[#allocation2 + $0x878] sm:$0xff]
    %v362 = vld [vmem:[#allocation2 + $0x880] sm:$0xff]
    %v363 = vld [vmem:[#allocation2 + $0x888] sm:$0xff]
    %v364 = vld [vmem:[#allocation2 + $0x890] sm:$0xff]
    %v365 = vld [vmem:[#allocation2 + $0x898] sm:$0xff]
    %v366 = vld [vmem:[#allocation2 + $0x8a0] sm:$0xff]
    %v367 = vld [vmem:[#allocation2 + $0x8a8] sm:$0xff]
    %v368 = vld [vmem:[#allocation2 + $0x8b0] sm:$0xff]
    %v369 = vld [vmem:[#allocation2 + $0x8b8] sm:$0xff]
    %v370 = vld [vmem:[#allocation2 + $0x8c0] sm:$0xff]
    %v371 = vld [vmem:[#allocation2 + $0x8c8] sm:$0xff]
    %v372 = vld [vmem:[#allocation2 + $0x8d0] sm:$0xff]
    %v373 = vld [vmem:[#allocation2 + $0x8d8] sm:$0xff]
    %v374 = vld [vmem:[#allocation2 + $0x8e0] sm:$0xff]
    %v375 = vld [vmem:[#allocation2 + $0x8e8] sm:$0xff]
    %v376 = vld [vmem:[#allocation2 + $0x8f0] sm:$0xff]
    %v377 = vld [vmem:[#allocation2 + $0x8f8] sm:$0xff]
    %v378 = vld [vmem:[#allocation2 + $0x900] sm:$0xff]
    %v379 = vld [vmem:[#allocation2 + $0x908] sm:$0xff]
    %v380 = vld [vmem:[#allocation2 + $0x910] sm:$0xff]
    %v381 = vld [vmem:[#allocation2 + $0x918] sm:$0xff]
    %v382 = vld [vmem:[#allocation2 + $0x920] sm:$0xff]
    %v383 = vld [vmem:[#allocation2 + $0x928] sm:$0xff]
    %v384 = vld [vmem:[#allocation2 + $0x930] sm:$0xff]
    %v385 = vld [vmem:[#allocation2 + $0x938] sm:$0xff]
    %v386 = vld [vmem:[#allocation2 + $0x940] sm:$0xff]
    %v387 = vld [vmem:[#allocation2 + $0x948] sm:$0xff]
    %v388 = vld [vmem:[#allocation2 + $0x950] sm:$0xff]
    %v389 = vld [vmem:[#allocation2 + $0x958] sm:$0xff]
    %v390 = vld [vmem:[#allocation2 + $0x960] sm:$0xff]
    %v391 = vld [vmem:[#allocation2 + $0x968] sm:$0xff]
    %v392 = vld [vmem:[#allocation2 + $0x970] sm:$0xff]
    %v393 = vld [vmem:[#allocation2 + $0x978] sm:$0xff]
    %v394 = vld [vmem:[#allocation2 + $0x980] sm:$0xff]
    %v395 = vld [vmem:[#allocation2 + $0x988] sm:$0xff]
    %v396 = vld [vmem:[#allocation2 + $0x990] sm:$0xff]
    %v397 = vld [vmem:[#allocation2 + $0x998] sm:$0xff]
    %v398 = vld [vmem:[#allocation2 + $0x9a0] sm:$0xff]
    %v399 = vld [vmem:[#allocation2 + $0x9a8] sm:$0xff]
    %v400 = vld [vmem:[#allocation2 + $0x9b0] sm:$0xff]
    %v401 = vld [vmem:[#allocation2 + $0x9b8] sm:$0xff]
    %v402 = vld [vmem:[#allocation2 + $0x9c0] sm:$0xff]
    %v403 = vld [vmem:[#allocation2 + $0x9c8] sm:$0xff]
    %v404 = vld [vmem:[#allocation2 + $0x9d0] sm:$0xff]
    %v405 = vld [vmem:[#allocation2 + $0x9d8] sm:$0xff]
    %v406 = vld [vmem:[#allocation2 + $0x9e0] sm:$0xff]
    %v407 = vld [vmem:[#allocation2 + $0x9e8] sm:$0xff]
    %v408 = vld [vmem:[#allocation2 + $0x9f0] sm:$0xff]
    %v409 = vld [vmem:[#allocation2 + $0x9f8] sm:$0xff]
    %v410 = vld [vmem:[#allocation2 + $0xa00] sm:$0xff]
    %v411 = vld [vmem:[#allocation2 + $0xa08] sm:$0xff]
    %v412 = vld [vmem:[#allocation2 + $0xa10] sm:$0xff]
    %v413 = vld [vmem:[#allocation2 + $0xa18] sm:$0xff]
    %v414 = vld [vmem:[#allocation2 + $0xa20] sm:$0xff]
    %v415 = vld [vmem:[#allocation2 + $0xa28] sm:$0xff]
    %v416 = vld [vmem:[#allocation2 + $0xa30] sm:$0xff]
    %v417 = vld [vmem:[#allocation2 + $0xa38] sm:$0xff]
    %v418 = vld [vmem:[#allocation2 + $0xa40] sm:$0xff]
    %v419 = vld [vmem:[#allocation2 + $0xa48] sm:$0xff]
    %v420 = vld [vmem:[#allocation2 + $0xa50] sm:$0xff]
    %v421 = vld [vmem:[#allocation2 + $0xa58] sm:$0xff]
    %v422 = vld [vmem:[#allocation2 + $0xa60] sm:$0xff]
    %v423 = vld [vmem:[#allocation2 + $0xa68] sm:$0xff]
    %v424 = vld [vmem:[#allocation2 + $0xa70] sm:$0xff]
    %v425 = vld [vmem:[#allocation2 + $0xa78] sm:$0xff]
    %v426 = vld [vmem:[#allocation2 + $0xa80] sm:$0xff]
    %v427 = vld [vmem:[#allocation2 + $0xa88] sm:$0xff]
    %v428 = vld [vmem:[#allocation2 + $0xa90] sm:$0xff]
    %v429 = vld [vmem:[#allocation2 + $0xa98] sm:$0xff]
    %v430 = vld [vmem:[#allocation2 + $0xaa0] sm:$0xff]
    %v431 = vld [vmem:[#allocation2 + $0xaa8] sm:$0xff]
    %v432 = vld [vmem:[#allocation2 + $0xab0] sm:$0xff]
    %v433 = vld [vmem:[#allocation2 + $0xab8] sm:$0xff]
    %v434 = vld [vmem:[#allocation2 + $0xac0] sm:$0xff]
    %v435 = vld [vmem:[#allocation2 + $0xac8] sm:$0xff]
    %v436 = vld [vmem:[#allocation2 + $0xad0] sm:$0xff]
    %v437 = vld [vmem:[#allocation2 + $0xad8] sm:$0xff]
    %v438 = vld [vmem:[#allocation2 + $0xae0] sm:$0xff]
    %v439 = vld [vmem:[#allocation2 + $0xae8] sm:$0xff]
    %v440 = vld [vmem:[#allocation2 + $0xaf0] sm:$0xff]
    %v441 = vld [vmem:[#allocation2 + $0xaf8] sm:$0xff]
    %v442 = vld [vmem:[#allocation2 + $0xb00] sm:$0xff]
    %v443 = vld [vmem:[#allocation2 + $0xb08] sm:$0xff]
    %v444 = vld [vmem:[#allocation2 + $0xb10] sm:$0xff]
    %v445 = vld [vmem:[#allocation2 + $0xb18] sm:$0xff]
    %v446 = vld [vmem:[#allocation2 + $0xb20] sm:$0xff]
    %v447 = vld [vmem:[#allocation2 + $0xb28] sm:$0xff]
    %v448 = vld [vmem:[#allocation2 + $0xb30] sm:$0xff]
    %v449 = vld [vmem:[#allocation2 + $0xb38] sm:$0xff]
    %v450 = vld [vmem:[#allocation2 + $0xb40] sm:$0xff]
    %v451 = vld [vmem:[#allocation2 + $0xb48] sm:$0xff]
    %v452 = vld [vmem:[#allocation2 + $0xb50] sm:$0xff]
    %v453 = vld [vmem:[#allocation2 + $0xb58] sm:$0xff]
    %v454 = vld [vmem:[#allocation2 + $0xb60] sm:$0xff]
    %v455 = vld [vmem:[#allocation2 + $0xb68] sm:$0xff]
    %v456 = vld [vmem:[#allocation2 + $0xb70] sm:$0xff]
    %v457 = vld [vmem:[#allocation2 + $0xb78] sm:$0xff]
    %v458 = vld [vmem:[#allocation2 + $0xb80] sm:$0xff]
    %v459 = vld [vmem:[#allocation2 + $0xb88] sm:$0xff]
    %v460 = vld [vmem:[#allocation2 + $0xb90] sm:$0xff]
    %v461 = vld [vmem:[#allocation2 + $0xb98] sm:$0xff]
    %v462 = vld [vmem:[#allocation2 + $0xba0] sm:$0xff]
    %v463 = vld [vmem:[#allocation2 + $0xba8] sm:$0xff]
    %v464 = vld [vmem:[#allocation2 + $0xbb0] sm:$0xff]
    %v465 = vld [vmem:[#allocation2 + $0xbb8] sm:$0xff]
    %v466 = vld [vmem:[#allocation2 + $0xbc0] sm:$0xff]
    %v467 = vld [vmem:[#allocation2 + $0xbc8] sm:$0xff]
    %v468 = vld [vmem:[#allocation2 + $0xbd0] sm:$0xff]
    %v469 = vld [vmem:[#allocation2 + $0xbd8] sm:$0xff]
    %v470 = vld [vmem:[#allocation2 + $0xbe0] sm:$0xff]
    %v471 = vld [vmem:[#allocation2 + $0xbe8] sm:$0xff]
    %v472 = vld [vmem:[#allocation2 + $0xbf0] sm:$0xff]
    %v473 = vld [vmem:[#allocation2 + $0xbf8] sm:$0xff]
    %v474 = vld [vmem:[#allocation2 + $0xc00] sm:$0xff]
    %v475 = vld [vmem:[#allocation2 + $0xc08] sm:$0xff]
    %v476 = vld [vmem:[#allocation2 + $0xc10] sm:$0xff]
    %v477 = vld [vmem:[#allocation2 + $0xc18] sm:$0xff]
    %v478 = vld [vmem:[#allocation2 + $0xc20] sm:$0xff]
    %v479 = vld [vmem:[#allocation2 + $0xc28] sm:$0xff]
    %v480 = vld [vmem:[#allocation2 + $0xc30] sm:$0xff]
    %v481 = vld [vmem:[#allocation2 + $0xc38] sm:$0xff]
    %v482 = vld [vmem:[#allocation2 + $0xc40] sm:$0xff]
    %v483 = vld [vmem:[#allocation2 + $0xc48] sm:$0xff]
    %v484 = vld [vmem:[#allocation2 + $0xc50] sm:$0xff]
    %v485 = vld [vmem:[#allocation2 + $0xc58] sm:$0xff]
    %v486 = vld [vmem:[#allocation2 + $0xc60] sm:$0xff]
    %v487 = vld [vmem:[#allocation2 + $0xc68] sm:$0xff]
    %v488 = vld [vmem:[#allocation2 + $0xc70] sm:$0xff]
    %v489 = vld [vmem:[#allocation2 + $0xc78] sm:$0xff]
    %v490 = vld [vmem:[#allocation2 + $0xc80] sm:$0xff]
    %v491 = vld [vmem:[#allocation2 + $0xc88] sm:$0xff]
    %v492 = vld [vmem:[#allocation2 + $0xc90] sm:$0xff]
    %v493 = vld [vmem:[#allocation2 + $0xc98] sm:$0xff]
    %v494 = vld [vmem:[#allocation2 + $0xca0] sm:$0xff]
    %v495 = vld [vmem:[#allocation2 + $0xca8] sm:$0xff]
    %v496 = vld [vmem:[#allocation2 + $0xcb0] sm:$0xff]
    %v497 = vld [vmem:[#allocation2 + $0xcb8] sm:$0xff]
    %v498 = vld [vmem:[#allocation2 + $0xcc0] sm:$0xff]
    %v499 = vld [vmem:[#allocation2 + $0xcc8] sm:$0xff]
    %v500 = vld [vmem:[#allocation2 + $0xcd0] sm:$0xff]
    %v501 = vld [vmem:[#allocation2 + $0xcd8] sm:$0xff]
    %v502 = vld [vmem:[#allocation2 + $0xce0] sm:$0xff]
    %v503 = vld [vmem:[#allocation2 + $0xce8] sm:$0xff]
    %v504 = vld [vmem:[#allocation2 + $0xcf0] sm:$0xff]
    %v505 = vld [vmem:[#allocation2 + $0xcf8] sm:$0xff]
    %v506 = vld [vmem:[#allocation2 + $0xd00] sm:$0xff]
    %v507 = vld [vmem:[#allocation2 + $0xd08] sm:$0xff]
    %v508 = vld [vmem:[#allocation2 + $0xd10] sm:$0xff]
    %v509 = vld [vmem:[#allocation2 + $0xd18] sm:$0xff]
    %v510 = vld [vmem:[#allocation2 + $0xd20] sm:$0xff]
    %v511 = vld [vmem:[#allocation2 + $0xd28] sm:$0xff]
    %v512 = vld [vmem:[#allocation2 + $0xd30] sm:$0xff]
    %v513 = vld [vmem:[#allocation2 + $0xd38] sm:$0xff]
    %v514 = vld [vmem:[#allocation2 + $0xd40] sm:$0xff]
    %v515 = vld [vmem:[#allocation2 + $0xd48] sm:$0xff]
    %v516 = vld [vmem:[#allocation2 + $0xd50] sm:$0xff]
    %v517 = vld [vmem:[#allocation2 + $0xd58] sm:$0xff]
    %v518 = vld [vmem:[#allocation2 + $0xd60] sm:$0xff]
    %v519 = vld [vmem:[#allocation2 + $0xd68] sm:$0xff]
    %v520 = vld [vmem:[#allocation2 + $0xd70] sm:$0xff]
    %v521 = vld [vmem:[#allocation2 + $0xd78] sm:$0xff]
    %v522 = vld [vmem:[#allocation2 + $0xd80] sm:$0xff]
    %v523 = vld [vmem:[#allocation2 + $0xd88] sm:$0xff]
    %v524 = vld [vmem:[#allocation2 + $0xd90] sm:$0xff]
    %v525 = vld [vmem:[#allocation2 + $0xd98] sm:$0xff]
    %v526 = vld [vmem:[#allocation2 + $0xda0] sm:$0xff]
    %v527 = vld [vmem:[#allocation2 + $0xda8] sm:$0xff]
    %v528 = vld [vmem:[#allocation2 + $0xdb0] sm:$0xff]
    %v529 = vld [vmem:[#allocation2 + $0xdb8] sm:$0xff]
    %v530 = vld [vmem:[#allocation2 + $0xdc0] sm:$0xff]
    %v531 = vld [vmem:[#allocation2 + $0xdc8] sm:$0xff]
    %v532 = vld [vmem:[#allocation2 + $0xdd0] sm:$0xff]
    %v533 = vld [vmem:[#allocation2 + $0xdd8] sm:$0xff]
    %v534 = vld [vmem:[#allocation2 + $0xde0] sm:$0xff]
    %v535 = vld [vmem:[#allocation2 + $0xde8] sm:$0xff]
    %v536 = vld [vmem:[#allocation2 + $0xdf0] sm:$0xff]
    %v537 = vld [vmem:[#allocation2 + $0xdf8] sm:$0xff]
    %v538 = vld [vmem:[#allocation2 + $0xe00] sm:$0xff]
    %v539 = vld [vmem:[#allocation2 + $0xe08] sm:$0xff]
    %v540 = vld [vmem:[#allocation2 + $0xe10] sm:$0xff]
    %v541 = vld [vmem:[#allocation2 + $0xe18] sm:$0xff]
    %v542 = vld [vmem:[#allocation2 + $0xe20] sm:$0xff]
    %v543 = vld [vmem:[#allocation2 + $0xe28] sm:$0xff]
    %v544 = vld [vmem:[#allocation2 + $0xe30] sm:$0xff]
    %v545 = vld [vmem:[#allocation2 + $0xe38] sm:$0xff]
    %v546 = vld [vmem:[#allocation2 + $0xe40] sm:$0xff]
    %v547 = vld [vmem:[#allocation2 + $0xe48] sm:$0xff]
    %v548 = vld [vmem:[#allocation2 + $0xe50] sm:$0xff]
    %v549 = vld [vmem:[#allocation2 + $0xe58] sm:$0xff]
    %v550 = vld [vmem:[#allocation2 + $0xe60] sm:$0xff]
    %v551 = vld [vmem:[#allocation2 + $0xe68] sm:$0xff]
    %v552 = vld [vmem:[#allocation2 + $0xe70] sm:$0xff]
    %v553 = vld [vmem:[#allocation2 + $0xe78] sm:$0xff]
    %v554 = vld [vmem:[#allocation2 + $0xe80] sm:$0xff]
    %v555 = vld [vmem:[#allocation2 + $0xe88] sm:$0xff]
    %v556 = vld [vmem:[#allocation2 + $0xe90] sm:$0xff]
    %v557 = vld [vmem:[#allocation2 + $0xe98] sm:$0xff]
    %v558 = vld [vmem:[#allocation2 + $0xea0] sm:$0xff]
    %v559 = vld [vmem:[#allocation2 + $0xea8] sm:$0xff]
    %v560 = vld [vmem:[#allocation2 + $0xeb0] sm:$0xff]
    %v561 = vld [vmem:[#allocation2 + $0xeb8] sm:$0xff]
    %v562 = vld [vmem:[#allocation2 + $0xec0] sm:$0xff]
    %v563 = vld [vmem:[#allocation2 + $0xec8] sm:$0xff]
    %v564 = vld [vmem:[#allocation2 + $0xed0] sm:$0xff]
    %v565 = vld [vmem:[#allocation2 + $0xed8] sm:$0xff]
    %v566 = vld [vmem:[#allocation2 + $0xee0] sm:$0xff]
    %v567 = vld [vmem:[#allocation2 + $0xee8] sm:$0xff]
    %v568 = vld [vmem:[#allocation2 + $0xef0] sm:$0xff]
    %v569 = vld [vmem:[#allocation2 + $0xef8] sm:$0xff]
    %v570 = vld [vmem:[#allocation2 + $0xf00] sm:$0xff]
    %v571 = vld [vmem:[#allocation2 + $0xf08] sm:$0xff]
    %v572 = vld [vmem:[#allocation2 + $0xf10] sm:$0xff]
    %v573 = vld [vmem:[#allocation2 + $0xf18] sm:$0xff]
    %v574 = vld [vmem:[#allocation2 + $0xf20] sm:$0xff]
    %v575 = vld [vmem:[#allocation2 + $0xf28] sm:$0xff]
    %v576 = vld [vmem:[#allocation2 + $0xf30] sm:$0xff]
    %v577 = vld [vmem:[#allocation2 + $0xf38] sm:$0xff]
    %v578 = vld [vmem:[#allocation2 + $0xf40] sm:$0xff]
    %v579 = vld [vmem:[#allocation2 + $0xf48] sm:$0xff]
    %v580 = vld [vmem:[#allocation2 + $0xf50] sm:$0xff]
    %v581 = vld [vmem:[#allocation2 + $0xf58] sm:$0xff]
    %v582 = vld [vmem:[#allocation2 + $0xf60] sm:$0xff]
    %v583 = vld [vmem:[#allocation2 + $0xf68] sm:$0xff]
    %v584 = vld [vmem:[#allocation2 + $0xf70] sm:$0xff]
    %v585 = vld [vmem:[#allocation2 + $0xf78] sm:$0xff]
    %v586 = vld [vmem:[#allocation2 + $0xf80] sm:$0xff]
    %v587 = vld [vmem:[#allocation2 + $0xf88] sm:$0xff]
    %v588 = vld [vmem:[#allocation2 + $0xf90] sm:$0xff]
    %v589 = vld [vmem:[#allocation2 + $0xf98] sm:$0xff]
    %v590 = vld [vmem:[#allocation2 + $0xfa0] sm:$0xff]
    %v591 = vld [vmem:[#allocation2 + $0xfa8] sm:$0xff]
    %v592 = vld [vmem:[#allocation2 + $0xfb0] sm:$0xff]
    %v593 = vld [vmem:[#allocation2 + $0xfb8] sm:$0xff]
    %v594 = vld [vmem:[#allocation2 + $0xfc0] sm:$0xff]
    %v595 = vld [vmem:[#allocation2 + $0xfc8] sm:$0xff]
    %v596 = vld [vmem:[#allocation2 + $0xfd0] sm:$0xff]
    %v597 = vld [vmem:[#allocation2 + $0xfd8] sm:$0xff]
    %v598 = vld [vmem:[#allocation2 + $0xfe0] sm:$0xff]
    %v599 = vld [vmem:[#allocation2 + $0xfe8] sm:$0xff]
    %v600 = vld [vmem:[#allocation2 + $0xff0] sm:$0xff]
    %v601 = vld [vmem:[#allocation2 + $0xff8] sm:$0xff]
    %v602 = vld [vmem:[#allocation2 + $0x1000] sm:$0xff]
    %v603 = vld [vmem:[#allocation2 + $0x1008] sm:$0xff]
    %v604 = vld [vmem:[#allocation2 + $0x1010] sm:$0xff]
    %v605 = vld [vmem:[#allocation2 + $0x1018] sm:$0xff]
    %v606 = vld [vmem:[#allocation2 + $0x1020] sm:$0xff]
    %v607 = vld [vmem:[#allocation2 + $0x1028] sm:$0xff]
    %v608 = vld [vmem:[#allocation2 + $0x1030] sm:$0xff]
    %v609 = vld [vmem:[#allocation2 + $0x1038] sm:$0xff]
    %v610 = vld [vmem:[#allocation2 + $0x1040] sm:$0xff]
    %v611 = vld [vmem:[#allocation2 + $0x1048] sm:$0xff]
    %v612 = vld [vmem:[#allocation2 + $0x1050] sm:$0xff]
    %v613 = vld [vmem:[#allocation2 + $0x1058] sm:$0xff]
    %v614 = vld [vmem:[#allocation2 + $0x1060] sm:$0xff]
    %v615 = vld [vmem:[#allocation2 + $0x1068] sm:$0xff]
    %v616 = vld [vmem:[#allocation2 + $0x1070] sm:$0xff]
    %v617 = vld [vmem:[#allocation2 + $0x1078] sm:$0xff]
    %v618 = vld [vmem:[#allocation2 + $0x1080] sm:$0xff]
    %v619 = vld [vmem:[#allocation2 + $0x1088] sm:$0xff]
    %v620 = vld [vmem:[#allocation2 + $0x1090] sm:$0xff]
    %v621 = vld [vmem:[#allocation2 + $0x1098] sm:$0xff]
    %v622 = vld [vmem:[#allocation2 + $0x10a0] sm:$0xff]
    %v623 = vld [vmem:[#allocation2 + $0x10a8] sm:$0xff]
    %v624 = vld [vmem:[#allocation2 + $0x10b0] sm:$0xff]
    %v625 = vld [vmem:[#allocation2 + $0x10b8] sm:$0xff]
    %v626 = vld [vmem:[#allocation2 + $0x10c0] sm:$0xff]
    %v627 = vld [vmem:[#allocation2 + $0x10c8] sm:$0xff]
    %v628 = vld [vmem:[#allocation2 + $0x10d0] sm:$0xff]
    %v629 = vld [vmem:[#allocation2 + $0x10d8] sm:$0xff]
    %v630 = vld [vmem:[#allocation2 + $0x10e0] sm:$0xff]
    %v631 = vld [vmem:[#allocation2 + $0x10e8] sm:$0xff]
    %v632 = vld [vmem:[#allocation2 + $0x10f0] sm:$0xff]
    %v633 = vld [vmem:[#allocation2 + $0x10f8] sm:$0xff]
    %v634 = vld [vmem:[#allocation2 + $0x1100] sm:$0xff]
    %v635 = vld [vmem:[#allocation2 + $0x1108] sm:$0xff]
    %v636 = vld [vmem:[#allocation2 + $0x1110] sm:$0xff]
    %v637 = vld [vmem:[#allocation2 + $0x1118] sm:$0xff]
    %v638 = vld [vmem:[#allocation2 + $0x1120] sm:$0xff]
    %v639 = vld [vmem:[#allocation2 + $0x1128] sm:$0xff]
    %v640 = vld [vmem:[#allocation2 + $0x1130] sm:$0xff]
    %v641 = vld [vmem:[#allocation2 + $0x1138] sm:$0xff]
    %v642 = vld [vmem:[#allocation2 + $0x1140] sm:$0xff]
    %v643 = vld [vmem:[#allocation2 + $0x1148] sm:$0xff]
    %v644 = vld [vmem:[#allocation2 + $0x1150] sm:$0xff]
    %v645 = vld [vmem:[#allocation2 + $0x1158] sm:$0xff]
    %v646 = vld [vmem:[#allocation2 + $0x1160] sm:$0xff]
    %v647 = vld [vmem:[#allocation2 + $0x1168] sm:$0xff]
    %v648 = vld [vmem:[#allocation2 + $0x1170] sm:$0xff]
    %v649 = vld [vmem:[#allocation2 + $0x1178] sm:$0xff]
    %v650 = vld [vmem:[#allocation2 + $0x1180] sm:$0xff]
    %v651 = vld [vmem:[#allocation2 + $0x1188] sm:$0xff]
    %v652 = vld [vmem:[#allocation2 + $0x1190] sm:$0xff]
    %v653 = vld [vmem:[#allocation2 + $0x1198] sm:$0xff]
    %v654 = vld [vmem:[#allocation2 + $0x11a0] sm:$0xff]
    %v655 = vld [vmem:[#allocation2 + $0x11a8] sm:$0xff]
    %v656 = vld [vmem:[#allocation2 + $0x11b0] sm:$0xff]
    %v657 = vld [vmem:[#allocation2 + $0x11b8] sm:$0xff]
    %v658 = vld [vmem:[#allocation2 + $0x11c0] sm:$0xff]
    %v659 = vld [vmem:[#allocation2 + $0x11c8] sm:$0xff]
    %v660 = vld [vmem:[#allocation2 + $0x11d0] sm:$0xff]
    %v661 = vld [vmem:[#allocation2 + $0x11d8] sm:$0xff]
    %v662 = vld [vmem:[#allocation2 + $0x11e0] sm:$0xff]
    %v663 = vld [vmem:[#allocation2 + $0x11e8] sm:$0xff]
    %v664 = vld [vmem:[#allocation2 + $0x11f0] sm:$0xff]
    %v665 = vld [vmem:[#allocation2 + $0x11f8] sm:$0xff]
    %v666 = vld [vmem:[#allocation2 + $0x1200] sm:$0xff]
    %v667 = vld [vmem:[#allocation2 + $0x1208] sm:$0xff]
    %v668 = vld [vmem:[#allocation2 + $0x1210] sm:$0xff]
    %v669 = vld [vmem:[#allocation2 + $0x1218] sm:$0xff]
    %v670 = vld [vmem:[#allocation2 + $0x1220] sm:$0xff]
    %v671 = vld [vmem:[#allocation2 + $0x1228] sm:$0xff]
    %v672 = vld [vmem:[#allocation2 + $0x1230] sm:$0xff]
    %v673 = vld [vmem:[#allocation2 + $0x1238] sm:$0xff]
    %v674 = vld [vmem:[#allocation2 + $0x1240] sm:$0xff]
    %v675 = vld [vmem:[#allocation2 + $0x1248] sm:$0xff]
    %v676 = vld [vmem:[#allocation2 + $0x1250] sm:$0xff]
    %v677 = vld [vmem:[#allocation2 + $0x1258] sm:$0xff]
    %v678 = vld [vmem:[#allocation2 + $0x1260] sm:$0xff]
    %v679 = vld [vmem:[#allocation2 + $0x1268] sm:$0xff]
    %v680 = vld [vmem:[#allocation2 + $0x1270] sm:$0xff]
    %v681 = vld [vmem:[#allocation2 + $0x1278] sm:$0xff]
    %v682 = vld [vmem:[#allocation2 + $0x1280] sm:$0xff]
    %v683 = vld [vmem:[#allocation2 + $0x1288] sm:$0xff]
    %v684 = vld [vmem:[#allocation2 + $0x1290] sm:$0xff]
    %v685 = vld [vmem:[#allocation2 + $0x1298] sm:$0xff]
    %v686 = vld [vmem:[#allocation2 + $0x12a0] sm:$0xff]
    %v687 = vld [vmem:[#allocation2 + $0x12a8] sm:$0xff]
    %v688 = vld [vmem:[#allocation2 + $0x12b0] sm:$0xff]
    %v689 = vld [vmem:[#allocation2 + $0x12b8] sm:$0xff]
    %v690 = vld [vmem:[#allocation2 + $0x12c0] sm:$0xff]
    %v691 = vld [vmem:[#allocation2 + $0x12c8] sm:$0xff]
    %v692 = vld [vmem:[#allocation2 + $0x12d0] sm:$0xff]
    %v693 = vld [vmem:[#allocation2 + $0x12d8] sm:$0xff]
    %v694 = vld [vmem:[#allocation2 + $0x12e0] sm:$0xff]
    %v695 = vld [vmem:[#allocation2 + $0x12e8] sm:$0xff]
    %v696 = vld [vmem:[#allocation2 + $0x12f0] sm:$0xff]
    %v697 = vld [vmem:[#allocation2 + $0x12f8] sm:$0xff]
    %v698 = vld [vmem:[#allocation2 + $0x1300] sm:$0xff]
    %v699 = vld [vmem:[#allocation2 + $0x1308] sm:$0xff]
    %v700 = vld [vmem:[#allocation2 + $0x1310] sm:$0xff]
    %v701 = vld [vmem:[#allocation2 + $0x1318] sm:$0xff]
    %v702 = vld [vmem:[#allocation2 + $0x1320] sm:$0xff]
    %v703 = vld [vmem:[#allocation2 + $0x1328] sm:$0xff]
    %v704 = vld [vmem:[#allocation2 + $0x1330] sm:$0xff]
    %v705 = vld [vmem:[#allocation2 + $0x1338] sm:$0xff]
    %v706 = vld [vmem:[#allocation2 + $0x1340] sm:$0xff]
    %v707 = vld [vmem:[#allocation2 + $0x1348] sm:$0xff]
    %v708 = vld [vmem:[#allocation2 + $0x1350] sm:$0xff]
    %v709 = vld [vmem:[#allocation2 + $0x1358] sm:$0xff]
    %v710 = vld [vmem:[#allocation2 + $0x1360] sm:$0xff]
    %v711 = vld [vmem:[#allocation2 + $0x1368] sm:$0xff]
    %v712 = vld [vmem:[#allocation2 + $0x1370] sm:$0xff]
    %v713 = vld [vmem:[#allocation2 + $0x1378] sm:$0xff]
    %v714 = vld [vmem:[#allocation2 + $0x1380] sm:$0xff]
    %v715 = vld [vmem:[#allocation2 + $0x1388] sm:$0xff]
    %v716 = vld [vmem:[#allocation2 + $0x1390] sm:$0xff]
    %v717 = vld [vmem:[#allocation2 + $0x1398] sm:$0xff]
    %v718 = vld [vmem:[#allocation2 + $0x13a0] sm:$0xff]
    %v719 = vld [vmem:[#allocation2 + $0x13a8] sm:$0xff]
    %v720 = vld [vmem:[#allocation2 + $0x13b0] sm:$0xff]
    %v721 = vld [vmem:[#allocation2 + $0x13b8] sm:$0xff]
    %v722 = vld [vmem:[#allocation2 + $0x13c0] sm:$0xff]
    %v723 = vld [vmem:[#allocation2 + $0x13c8] sm:$0xff]
    %v724 = vld [vmem:[#allocation2 + $0x13d0] sm:$0xff]
    %v725 = vld [vmem:[#allocation2 + $0x13d8] sm:$0xff]
    %v726 = vld [vmem:[#allocation2 + $0x13e0] sm:$0xff]
    %v727 = vld [vmem:[#allocation2 + $0x13e8] sm:$0xff]
    %v728 = vld [vmem:[#allocation2 + $0x13f0] sm:$0xff]
    %v729 = vld [vmem:[#allocation2 + $0x13f8] sm:$0xff]
    %v730 = vld [vmem:[#allocation2 + $0x1400] sm:$0xff]
    %v731 = vld [vmem:[#allocation2 + $0x1408] sm:$0xff]
    %v732 = vld [vmem:[#allocation2 + $0x1410] sm:$0xff]
    %v733 = vld [vmem:[#allocation2 + $0x1418] sm:$0xff]
    %v734 = vld [vmem:[#allocation2 + $0x1420] sm:$0xff]
    %v735 = vld [vmem:[#allocation2 + $0x1428] sm:$0xff]
    %v736 = vld [vmem:[#allocation2 + $0x1430] sm:$0xff]
    %v737 = vld [vmem:[#allocation2 + $0x1438] sm:$0xff]
    %v738 = vld [vmem:[#allocation2 + $0x1440] sm:$0xff]
    %v739 = vld [vmem:[#allocation2 + $0x1448] sm:$0xff]
    %v740 = vld [vmem:[#allocation2 + $0x1450] sm:$0xff]
    %v741 = vld [vmem:[#allocation2 + $0x1458] sm:$0xff]
    %v742 = vld [vmem:[#allocation2 + $0x1460] sm:$0xff]
    %v743 = vld [vmem:[#allocation2 + $0x1468] sm:$0xff]
    %v744 = vld [vmem:[#allocation2 + $0x1470] sm:$0xff]
    %v745 = vld [vmem:[#allocation2 + $0x1478] sm:$0xff]
    %v746 = vld [vmem:[#allocation2 + $0x1480] sm:$0xff]
    %v747 = vld [vmem:[#allocation2 + $0x1488] sm:$0xff]
    %v748 = vld [vmem:[#allocation2 + $0x1490] sm:$0xff]
    %v749 = vld [vmem:[#allocation2 + $0x1498] sm:$0xff]
    %v750 = vld [vmem:[#allocation2 + $0x14a0] sm:$0xff]
    %v751 = vld [vmem:[#allocation2 + $0x14a8] sm:$0xff]
    %v752 = vld [vmem:[#allocation2 + $0x14b0] sm:$0xff]
    %v753 = vld [vmem:[#allocation2 + $0x14b8] sm:$0xff]
    %v754 = vld [vmem:[#allocation2 + $0x14c0] sm:$0xff]
    %v755 = vld [vmem:[#allocation2 + $0x14c8] sm:$0xff]
    %v756 = vld [vmem:[#allocation2 + $0x14d0] sm:$0xff]
    %v757 = vld [vmem:[#allocation2 + $0x14d8] sm:$0xff]
    %v758 = vld [vmem:[#allocation2 + $0x14e0] sm:$0xff]
    %v759 = vld [vmem:[#allocation2 + $0x14e8] sm:$0xff]
    %v760 = vld [vmem:[#allocation2 + $0x14f0] sm:$0xff]
    %v761 = vld [vmem:[#allocation2 + $0x14f8] sm:$0xff]
    %v762 = vld [vmem:[#allocation2 + $0x1500] sm:$0xff]
    %v763 = vld [vmem:[#allocation2 + $0x1508] sm:$0xff]
    %v764 = vld [vmem:[#allocation2 + $0x1510] sm:$0xff]
    %v765 = vld [vmem:[#allocation2 + $0x1518] sm:$0xff]
    %v766 = vld [vmem:[#allocation2 + $0x1520] sm:$0xff]
    %v767 = vld [vmem:[#allocation2 + $0x1528] sm:$0xff]
    %v768 = vld [vmem:[#allocation2 + $0x1530] sm:$0xff]
    %v769 = vld [vmem:[#allocation2 + $0x1538] sm:$0xff]
    %v770 = vld [vmem:[#allocation2 + $0x1540] sm:$0xff]
    %v771 = vld [vmem:[#allocation2 + $0x1548] sm:$0xff]
    %v772 = vld [vmem:[#allocation2 + $0x1550] sm:$0xff]
    %v773 = vld [vmem:[#allocation2 + $0x1558] sm:$0xff]
    %v774 = vld [vmem:[#allocation2 + $0x1560] sm:$0xff]
    %v775 = vld [vmem:[#allocation2 + $0x1568] sm:$0xff]
    %v776 = vld [vmem:[#allocation2 + $0x1570] sm:$0xff]
    %v777 = vld [vmem:[#allocation2 + $0x1578] sm:$0xff]
    %v778 = vld [vmem:[#allocation2 + $0x1580] sm:$0xff]
    %v779 = vld [vmem:[#allocation2 + $0x1588] sm:$0xff]
    %v780 = vld [vmem:[#allocation2 + $0x1590] sm:$0xff]
    %v781 = vld [vmem:[#allocation2 + $0x1598] sm:$0xff]
    %v782 = vld [vmem:[#allocation2 + $0x15a0] sm:$0xff]
    %v783 = vld [vmem:[#allocation2 + $0x15a8] sm:$0xff]
    %v784 = vld [vmem:[#allocation2 + $0x15b0] sm:$0xff]
    %v785 = vld [vmem:[#allocation2 + $0x15b8] sm:$0xff]
    %v786 = vld [vmem:[#allocation2 + $0x15c0] sm:$0xff]
    %v787 = vld [vmem:[#allocation2 + $0x15c8] sm:$0xff]
    %v788 = vld [vmem:[#allocation2 + $0x15d0] sm:$0xff]
    %v789 = vld [vmem:[#allocation2 + $0x15d8] sm:$0xff]
    %v790 = vld [vmem:[#allocation2 + $0x15e0] sm:$0xff]
    %v791 = vld [vmem:[#allocation2 + $0x15e8] sm:$0xff]
    %v792 = vld [vmem:[#allocation2 + $0x15f0] sm:$0xff]
    %v793 = vld [vmem:[#allocation2 + $0x15f8] sm:$0xff]
    %v794 = vld [vmem:[#allocation2 + $0x1600] sm:$0xff]
    %v795 = vld [vmem:[#allocation2 + $0x1608] sm:$0xff]
    %v796 = vld [vmem:[#allocation2 + $0x1610] sm:$0xff]
    %v797 = vld [vmem:[#allocation2 + $0x1618] sm:$0xff]
    %v798 = vld [vmem:[#allocation2 + $0x1620] sm:$0xff]
    %v799 = vld [vmem:[#allocation2 + $0x1628] sm:$0xff]
    %v800 = vld [vmem:[#allocation2 + $0x1630] sm:$0xff]
    %v801 = vld [vmem:[#allocation2 + $0x1638] sm:$0xff]
    %v802 = vld [vmem:[#allocation2 + $0x1640] sm:$0xff]
    %v803 = vld [vmem:[#allocation2 + $0x1648] sm:$0xff]
    %v804 = vld [vmem:[#allocation2 + $0x1650] sm:$0xff]
    %v805 = vld [vmem:[#allocation2 + $0x1658] sm:$0xff]
    %v806 = vld [vmem:[#allocation2 + $0x1660] sm:$0xff]
    %v807 = vld [vmem:[#allocation2 + $0x1668] sm:$0xff]
    %v808 = vld [vmem:[#allocation2 + $0x1670] sm:$0xff]
    %v809 = vld [vmem:[#allocation2 + $0x1678] sm:$0xff]
    %v810 = vld [vmem:[#allocation2 + $0x1680] sm:$0xff]
    %v811 = vld [vmem:[#allocation2 + $0x1688] sm:$0xff]
    %v812 = vld [vmem:[#allocation2 + $0x1690] sm:$0xff]
    %v813 = vld [vmem:[#allocation2 + $0x1698] sm:$0xff]
    %v814 = vld [vmem:[#allocation2 + $0x16a0] sm:$0xff]
    %v815 = vld [vmem:[#allocation2 + $0x16a8] sm:$0xff]
    %v816 = vld [vmem:[#allocation2 + $0x16b0] sm:$0xff]
    %v817 = vld [vmem:[#allocation2 + $0x16b8] sm:$0xff]
    %v818 = vld [vmem:[#allocation2 + $0x16c0] sm:$0xff]
    %v819 = vld [vmem:[#allocation2 + $0x16c8] sm:$0xff]
    %v820 = vld [vmem:[#allocation2 + $0x16d0] sm:$0xff]
    %v821 = vld [vmem:[#allocation2 + $0x16d8] sm:$0xff]
    %v822 = vld [vmem:[#allocation2 + $0x16e0] sm:$0xff]
    %v823 = vld [vmem:[#allocation2 + $0x16e8] sm:$0xff]
    %v824 = vld [vmem:[#allocation2 + $0x16f0] sm:$0xff]
    %v825 = vld [vmem:[#allocation2 + $0x16f8] sm:$0xff]
    %v826 = vld [vmem:[#allocation2 + $0x1700] sm:$0xff]
    %v827 = vld [vmem:[#allocation2 + $0x1708] sm:$0xff]
    %v828 = vld [vmem:[#allocation2 + $0x1710] sm:$0xff]
    %v829 = vld [vmem:[#allocation2 + $0x1718] sm:$0xff]
    %v830 = vld [vmem:[#allocation2 + $0x1720] sm:$0xff]
    %v831 = vld [vmem:[#allocation2 + $0x1728] sm:$0xff]
    %v832 = vld [vmem:[#allocation2 + $0x1730] sm:$0xff]
    %v833 = vld [vmem:[#allocation2 + $0x1738] sm:$0xff]
    %v834 = vld [vmem:[#allocation2 + $0x1740] sm:$0xff]
    %v835 = vld [vmem:[#allocation2 + $0x1748] sm:$0xff]
    %v836 = vld [vmem:[#allocation2 + $0x1750] sm:$0xff]
    %v837 = vld [vmem:[#allocation2 + $0x1758] sm:$0xff]
    %v838 = vld [vmem:[#allocation2 + $0x1760] sm:$0xff]
    %v839 = vld [vmem:[#allocation2 + $0x1768] sm:$0xff]
    %v840 = vld [vmem:[#allocation2 + $0x1770] sm:$0xff]
    %v841 = vld [vmem:[#allocation2 + $0x1778] sm:$0xff]
    %v842 = vld [vmem:[#allocation2 + $0x1780] sm:$0xff]
    %v843 = vld [vmem:[#allocation2 + $0x1788] sm:$0xff]
    %v844 = vld [vmem:[#allocation2 + $0x1790] sm:$0xff]
    %v845 = vld [vmem:[#allocation2 + $0x1798] sm:$0xff]
    %v846 = vld [vmem:[#allocation2 + $0x17a0] sm:$0xff]
    %v847 = vld [vmem:[#allocation2 + $0x17a8] sm:$0xff]
    %v848 = vld [vmem:[#allocation2 + $0x17b0] sm:$0xff]
    %v849 = vld [vmem:[#allocation2 + $0x17b8] sm:$0xff]
    %v850 = vld [vmem:[#allocation2 + $0x17c0] sm:$0xff]
    %v851 = vld [vmem:[#allocation2 + $0x17c8] sm:$0xff]
    %v852 = vld [vmem:[#allocation2 + $0x17d0] sm:$0xff]
    %v853 = vld [vmem:[#allocation2 + $0x17d8] sm:$0xff]
    %v854 = vld [vmem:[#allocation2 + $0x17e0] sm:$0xff]
    %v855 = vld [vmem:[#allocation2 + $0x17e8] sm:$0xff]
    %v856 = vld [vmem:[#allocation2 + $0x17f0] sm:$0xff]
    %v857 = vld [vmem:[#allocation2 + $0x17f8] sm:$0xff]
    %v858 = vld [vmem:[#allocation2 + $0x1800] sm:$0xff]
    %v859 = vld [vmem:[#allocation2 + $0x1808] sm:$0xff]
    %v860 = vld [vmem:[#allocation2 + $0x1810] sm:$0xff]
    %v861 = vld [vmem:[#allocation2 + $0x1818] sm:$0xff]
    %v862 = vld [vmem:[#allocation2 + $0x1820] sm:$0xff]
    %v863 = vld [vmem:[#allocation2 + $0x1828] sm:$0xff]
    %v864 = vld [vmem:[#allocation2 + $0x1830] sm:$0xff]
    %v865 = vld [vmem:[#allocation2 + $0x1838] sm:$0xff]
    %v866 = vld [vmem:[#allocation2 + $0x1840] sm:$0xff]
    %v867 = vld [vmem:[#allocation2 + $0x1848] sm:$0xff]
    %v868 = vld [vmem:[#allocation2 + $0x1850] sm:$0xff]
    %v869 = vld [vmem:[#allocation2 + $0x1858] sm:$0xff]
    %v870 = vld [vmem:[#allocation2 + $0x1860] sm:$0xff]
    %v871 = vld [vmem:[#allocation2 + $0x1868] sm:$0xff]
    %v872 = vld [vmem:[#allocation2 + $0x1870] sm:$0xff]
    %v873 = vld [vmem:[#allocation2 + $0x1878] sm:$0xff]
    %v874 = vld [vmem:[#allocation2 + $0x1880] sm:$0xff]
    %v875 = vld [vmem:[#allocation2 + $0x1888] sm:$0xff]
    %v876 = vld [vmem:[#allocation2 + $0x1890] sm:$0xff]
    %v877 = vld [vmem:[#allocation2 + $0x1898] sm:$0xff]
    %v878 = vld [vmem:[#allocation2 + $0x18a0] sm:$0xff]
    %v879 = vld [vmem:[#allocation2 + $0x18a8] sm:$0xff]
    %v880 = vld [vmem:[#allocation2 + $0x18b0] sm:$0xff]
    %v881 = vld [vmem:[#allocation2 + $0x18b8] sm:$0xff]
    %v882 = vld [vmem:[#allocation2 + $0x18c0] sm:$0xff]
    %v883 = vld [vmem:[#allocation2 + $0x18c8] sm:$0xff]
    %v884 = vld [vmem:[#allocation2 + $0x18d0] sm:$0xff]
    %v885 = vld [vmem:[#allocation2 + $0x18d8] sm:$0xff]
    %v886 = vld [vmem:[#allocation2 + $0x18e0] sm:$0xff]
    %v887 = vld [vmem:[#allocation2 + $0x18e8] sm:$0xff]
    %v888 = vld [vmem:[#allocation2 + $0x18f0] sm:$0xff]
    %v889 = vld [vmem:[#allocation2 + $0x18f8] sm:$0xff]
    %v890 = vld [vmem:[#allocation2 + $0x1900] sm:$0xff]
    %v891 = vld [vmem:[#allocation2 + $0x1908] sm:$0xff]
    %v892 = vld [vmem:[#allocation2 + $0x1910] sm:$0xff]
    %v893 = vld [vmem:[#allocation2 + $0x1918] sm:$0xff]
    %v894 = vld [vmem:[#allocation2 + $0x1920] sm:$0xff]
    %v895 = vld [vmem:[#allocation2 + $0x1928] sm:$0xff]
    %v896 = vld [vmem:[#allocation2 + $0x1930] sm:$0xff]
    %v897 = vld [vmem:[#allocation2 + $0x1938] sm:$0xff]
    %v898 = vld [vmem:[#allocation2 + $0x1940] sm:$0xff]
    %v899 = vld [vmem:[#allocation2 + $0x1948] sm:$0xff]
    %v900 = vld [vmem:[#allocation2 + $0x1950] sm:$0xff]
    %v901 = vld [vmem:[#allocation2 + $0x1958] sm:$0xff]
    %v902 = vld [vmem:[#allocation2 + $0x1960] sm:$0xff]
    %v903 = vld [vmem:[#allocation2 + $0x1968] sm:$0xff]
    %v904 = vld [vmem:[#allocation2 + $0x1970] sm:$0xff]
    %v905 = vld [vmem:[#allocation2 + $0x1978] sm:$0xff]
    %v906 = vld [vmem:[#allocation2 + $0x1980] sm:$0xff]
    %v907 = vld [vmem:[#allocation2 + $0x1988] sm:$0xff]
    %v908 = vld [vmem:[#allocation2 + $0x1990] sm:$0xff]
    %v909 = vld [vmem:[#allocation2 + $0x1998] sm:$0xff]
    %v910 = vld [vmem:[#allocation2 + $0x19a0] sm:$0xff]
    %v911 = vld [vmem:[#allocation2 + $0x19a8] sm:$0xff]
    %v912 = vld [vmem:[#allocation2 + $0x19b0] sm:$0xff]
    %v913 = vld [vmem:[#allocation2 + $0x19b8] sm:$0xff]
    %v914 = vld [vmem:[#allocation2 + $0x19c0] sm:$0xff]
    %v915 = vld [vmem:[#allocation2 + $0x19c8] sm:$0xff]
    %v916 = vld [vmem:[#allocation2 + $0x19d0] sm:$0xff]
    %v917 = vld [vmem:[#allocation2 + $0x19d8] sm:$0xff]
    %v918 = vld [vmem:[#allocation2 + $0x19e0] sm:$0xff]
    %v919 = vld [vmem:[#allocation2 + $0x19e8] sm:$0xff]
    %v920 = vld [vmem:[#allocation2 + $0x19f0] sm:$0xff]
    %v921 = vld [vmem:[#allocation2 + $0x19f8] sm:$0xff]
    %v922 = vld [vmem:[#allocation2 + $0x1a00] sm:$0xff]
    %v923 = vld [vmem:[#allocation2 + $0x1a08] sm:$0xff]
    %v924 = vld [vmem:[#allocation2 + $0x1a10] sm:$0xff]
    %v925 = vld [vmem:[#allocation2 + $0x1a18] sm:$0xff]
    %v926 = vld [vmem:[#allocation2 + $0x1a20] sm:$0xff]
    %v927 = vld [vmem:[#allocation2 + $0x1a28] sm:$0xff]
    %v928 = vld [vmem:[#allocation2 + $0x1a30] sm:$0xff]
    %v929 = vld [vmem:[#allocation2 + $0x1a38] sm:$0xff]
    %v930 = vld [vmem:[#allocation2 + $0x1a40] sm:$0xff]
    %v931 = vld [vmem:[#allocation2 + $0x1a48] sm:$0xff]
    %v932 = vld [vmem:[#allocation2 + $0x1a50] sm:$0xff]
    %v933 = vld [vmem:[#allocation2 + $0x1a58] sm:$0xff]
    %v934 = vld [vmem:[#allocation2 + $0x1a60] sm:$0xff]
    %v935 = vld [vmem:[#allocation2 + $0x1a68] sm:$0xff]
    %v936 = vld [vmem:[#allocation2 + $0x1a70] sm:$0xff]
    %v937 = vld [vmem:[#allocation2 + $0x1a78] sm:$0xff]
    %v938 = vld [vmem:[#allocation2 + $0x1a80] sm:$0xff]
    %v939 = vld [vmem:[#allocation2 + $0x1a88] sm:$0xff]
    %v940 = vld [vmem:[#allocation2 + $0x1a90] sm:$0xff]
    %v941 = vld [vmem:[#allocation2 + $0x1a98] sm:$0xff]
    %v942 = vld [vmem:[#allocation2 + $0x1aa0] sm:$0xff]
    %v943 = vld [vmem:[#allocation2 + $0x1aa8] sm:$0xff]
    %v944 = vld [vmem:[#allocation2 + $0x1ab0] sm:$0xff]
    %v945 = vld [vmem:[#allocation2 + $0x1ab8] sm:$0xff]
    %v946 = vld [vmem:[#allocation2 + $0x1ac0] sm:$0xff]
    %v947 = vld [vmem:[#allocation2 + $0x1ac8] sm:$0xff]
    %v948 = vld [vmem:[#allocation2 + $0x1ad0] sm:$0xff]
    %v949 = vld [vmem:[#allocation2 + $0x1ad8] sm:$0xff]
    %v950 = vld [vmem:[#allocation2 + $0x1ae0] sm:$0xff]
    %v951 = vld [vmem:[#allocation2 + $0x1ae8] sm:$0xff]
    %v952 = vld [vmem:[#allocation2 + $0x1af0] sm:$0xff]
    %v953 = vld [vmem:[#allocation2 + $0x1af8] sm:$0xff]
    %v954 = vld [vmem:[#allocation2 + $0x1b00] sm:$0xff]
    %v955 = vld [vmem:[#allocation2 + $0x1b08] sm:$0xff]
    %v956 = vld [vmem:[#allocation2 + $0x1b10] sm:$0xff]
    %v957 = vld [vmem:[#allocation2 + $0x1b18] sm:$0xff]
    %v958 = vld [vmem:[#allocation2 + $0x1b20] sm:$0xff]
    %v959 = vld [vmem:[#allocation2 + $0x1b28] sm:$0xff]
    %v960 = vld [vmem:[#allocation2 + $0x1b30] sm:$0xff]
    %v961 = vld [vmem:[#allocation2 + $0x1b38] sm:$0xff]
    %v962 = vld [vmem:[#allocation2 + $0x1b40] sm:$0xff]
    %v963 = vld [vmem:[#allocation2 + $0x1b48] sm:$0xff]
    %v964 = vld [vmem:[#allocation2 + $0x1b50] sm:$0xff]
    %v965 = vld [vmem:[#allocation2 + $0x1b58] sm:$0xff]
    %v966 = vld [vmem:[#allocation2 + $0x1b60] sm:$0xff]
    %v967 = vld [vmem:[#allocation2 + $0x1b68] sm:$0xff]
    %v968 = vld [vmem:[#allocation2 + $0x1b70] sm:$0xff]
    %v969 = vld [vmem:[#allocation2 + $0x1b78] sm:$0xff]
    %v970 = vld [vmem:[#allocation2 + $0x1b80] sm:$0xff]
    %v971 = vld [vmem:[#allocation2 + $0x1b88] sm:$0xff]
    %v972 = vld [vmem:[#allocation2 + $0x1b90] sm:$0xff]
    %v973 = vld [vmem:[#allocation2 + $0x1b98] sm:$0xff]
    %v974 = vld [vmem:[#allocation2 + $0x1ba0] sm:$0xff]
    %v975 = vld [vmem:[#allocation2 + $0x1ba8] sm:$0xff]
    %v976 = vld [vmem:[#allocation2 + $0x1bb0] sm:$0xff]
    %v977 = vld [vmem:[#allocation2 + $0x1bb8] sm:$0xff]
    %v978 = vld [vmem:[#allocation2 + $0x1bc0] sm:$0xff]
    %v979 = vld [vmem:[#allocation2 + $0x1bc8] sm:$0xff]
    %v980 = vld [vmem:[#allocation2 + $0x1bd0] sm:$0xff]
    %v981 = vld [vmem:[#allocation2 + $0x1bd8] sm:$0xff]
    %v982 = vld [vmem:[#allocation2 + $0x1be0] sm:$0xff]
    %v983 = vld [vmem:[#allocation2 + $0x1be8] sm:$0xff]
    %v984 = vld [vmem:[#allocation2 + $0x1bf0] sm:$0xff]
    %v985 = vld [vmem:[#allocation2 + $0x1bf8] sm:$0xff]
    %v986 = vld [vmem:[#allocation2 + $0x1c00] sm:$0xff]
    %v987 = vld [vmem:[#allocation2 + $0x1c08] sm:$0xff]
    %v988 = vld [vmem:[#allocation2 + $0x1c10] sm:$0xff]
    %v989 = vld [vmem:[#allocation2 + $0x1c18] sm:$0xff]
    %v990 = vld [vmem:[#allocation2 + $0x1c20] sm:$0xff]
    %v991 = vld [vmem:[#allocation2 + $0x1c28] sm:$0xff]
    %v992 = vld [vmem:[#allocation2 + $0x1c30] sm:$0xff]
    %v993 = vld [vmem:[#allocation2 + $0x1c38] sm:$0xff]
    %v994 = vld [vmem:[#allocation2 + $0x1c40] sm:$0xff]
    %v995 = vld [vmem:[#allocation2 + $0x1c48] sm:$0xff]
    %v996 = vld [vmem:[#allocation2 + $0x1c50] sm:$0xff]
    %v997 = vld [vmem:[#allocation2 + $0x1c58] sm:$0xff]
    %v998 = vld [vmem:[#allocation2 + $0x1c60] sm:$0xff]
    %v999 = vld [vmem:[#allocation2 + $0x1c68] sm:$0xff]
    %v1000 = vld [vmem:[#allocation2 + $0x1c70] sm:$0xff]
    %v1001 = vld [vmem:[#allocation2 + $0x1c78] sm:$0xff]
    %v1002 = vld [vmem:[#allocation2 + $0x1c80] sm:$0xff]
    %v1003 = vld [vmem:[#allocation2 + $0x1c88] sm:$0xff]
    %v1004 = vld [vmem:[#allocation2 + $0x1c90] sm:$0xff]
    %v1005 = vld [vmem:[#allocation2 + $0x1c98] sm:$0xff]
    %v1006 = vld [vmem:[#allocation2 + $0x1ca0] sm:$0xff]
    %v1007 = vld [vmem:[#allocation2 + $0x1ca8] sm:$0xff]
    %v1008 = vld [vmem:[#allocation2 + $0x1cb0] sm:$0xff]
    %v1009 = vld [vmem:[#allocation2 + $0x1cb8] sm:$0xff]
    %v1010 = vld [vmem:[#allocation2 + $0x1cc0] sm:$0xff]
    %v1011 = vld [vmem:[#allocation2 + $0x1cc8] sm:$0xff]
    %v1012 = vld [vmem:[#allocation2 + $0x1cd0] sm:$0xff]
    %v1013 = vld [vmem:[#allocation2 + $0x1cd8] sm:$0xff]
    %v1014 = vld [vmem:[#allocation2 + $0x1ce0] sm:$0xff]
    %v1015 = vld [vmem:[#allocation2 + $0x1ce8] sm:$0xff]
    %v1016 = vld [vmem:[#allocation2 + $0x1cf0] sm:$0xff]
    %v1017 = vld [vmem:[#allocation2 + $0x1cf8] sm:$0xff]
    %v1018 = vld [vmem:[#allocation2 + $0x1d00] sm:$0xff]
    %v1019 = vld [vmem:[#allocation2 + $0x1d08] sm:$0xff]
    %v1020 = vld [vmem:[#allocation2 + $0x1d10] sm:$0xff]
    %v1021 = vld [vmem:[#allocation2 + $0x1d18] sm:$0xff]
    %v1022 = vld [vmem:[#allocation2 + $0x1d20] sm:$0xff]
    %v1023 = vld [vmem:[#allocation2 + $0x1d28] sm:$0xff]
    %v1024 = vld [vmem:[#allocation2 + $0x1d30] sm:$0xff]
    %v1025 = vld [vmem:[#allocation2 + $0x1d38] sm:$0xff]
    %v1026 = vld [vmem:[#allocation2 + $0x1d40] sm:$0xff]
    %v1027 = vld [vmem:[#allocation2 + $0x1d48] sm:$0xff]
    %v1028 = vld [vmem:[#allocation2 + $0x1d50] sm:$0xff]
    %v1029 = vld [vmem:[#allocation2 + $0x1d58] sm:$0xff]
    %v1030 = vld [vmem:[#allocation2 + $0x1d60] sm:$0xff]
    %v1031 = vld [vmem:[#allocation2 + $0x1d68] sm:$0xff]
    %v1032 = vld [vmem:[#allocation2 + $0x1d70] sm:$0xff]
    %v1033 = vld [vmem:[#allocation2 + $0x1d78] sm:$0xff]
    %v1034 = vld [vmem:[#allocation2 + $0x1d80] sm:$0xff]
    %v1035 = vld [vmem:[#allocation2 + $0x1d88] sm:$0xff]
    %v1036 = vld [vmem:[#allocation2 + $0x1d90] sm:$0xff]
    %v1037 = vld [vmem:[#allocation2 + $0x1d98] sm:$0xff]
    %v1038 = vld [vmem:[#allocation2 + $0x1da0] sm:$0xff]
    %v1039 = vld [vmem:[#allocation2 + $0x1da8] sm:$0xff]
    %v1040 = vld [vmem:[#allocation2 + $0x1db0] sm:$0xff]
    %v1041 = vld [vmem:[#allocation2 + $0x1db8] sm:$0xff]
    %v1042 = vld [vmem:[#allocation2 + $0x1dc0] sm:$0xff]
    %v1043 = vld [vmem:[#allocation2 + $0x1dc8] sm:$0xff]
    %v1044 = vld [vmem:[#allocation2 + $0x1dd0] sm:$0xff]
    %v1045 = vld [vmem:[#allocation2 + $0x1dd8] sm:$0xff]
    %v1046 = vld [vmem:[#allocation2 + $0x1de0] sm:$0xff]
    %v1047 = vld [vmem:[#allocation2 + $0x1de8] sm:$0xff]
    %v1048 = vld [vmem:[#allocation2 + $0x1df0] sm:$0xff]
    %v1049 = vld [vmem:[#allocation2 + $0x1df8] sm:$0xff]
    %v1050 = vld [vmem:[#allocation2 + $0x1e00] sm:$0xff]
    %v1051 = vld [vmem:[#allocation2 + $0x1e08] sm:$0xff]
    %v1052 = vld [vmem:[#allocation2 + $0x1e10] sm:$0xff]
    %v1053 = vld [vmem:[#allocation2 + $0x1e18] sm:$0xff]
    %v1054 = vld [vmem:[#allocation2 + $0x1e20] sm:$0xff]
    %v1055 = vld [vmem:[#allocation2 + $0x1e28] sm:$0xff]
    %v1056 = vld [vmem:[#allocation2 + $0x1e30] sm:$0xff]
    %v1057 = vld [vmem:[#allocation2 + $0x1e38] sm:$0xff]
    %v1058 = vld [vmem:[#allocation2 + $0x1e40] sm:$0xff]
    %v1059 = vld [vmem:[#allocation2 + $0x1e48] sm:$0xff]
    %v1060 = vld [vmem:[#allocation2 + $0x1e50] sm:$0xff]
    %v1061 = vld [vmem:[#allocation2 + $0x1e58] sm:$0xff]
    %v1062 = vld [vmem:[#allocation2 + $0x1e60] sm:$0xff]
    %v1063 = vld [vmem:[#allocation2 + $0x1e68] sm:$0xff]
    %v1064 = vld [vmem:[#allocation2 + $0x1e70] sm:$0xff]
    %v1065 = vld [vmem:[#allocation2 + $0x1e78] sm:$0xff]
    %v1066 = vld [vmem:[#allocation2 + $0x1e80] sm:$0xff]
    %v1067 = vld [vmem:[#allocation2 + $0x1e88] sm:$0xff]
    %v1068 = vld [vmem:[#allocation2 + $0x1e90] sm:$0xff]
    %v1069 = vld [vmem:[#allocation2 + $0x1e98] sm:$0xff]
    %v1070 = vld [vmem:[#allocation2 + $0x1ea0] sm:$0xff]
    %v1071 = vld [vmem:[#allocation2 + $0x1ea8] sm:$0xff]
    %v1072 = vld [vmem:[#allocation2 + $0x1eb0] sm:$0xff]
    %v1073 = vld [vmem:[#allocation2 + $0x1eb8] sm:$0xff]
    %v1074 = vld [vmem:[#allocation2 + $0x1ec0] sm:$0xff]
    %v1075 = vld [vmem:[#allocation2 + $0x1ec8] sm:$0xff]
    %v1076 = vld [vmem:[#allocation2 + $0x1ed0] sm:$0xff]
    %v1077 = vld [vmem:[#allocation2 + $0x1ed8] sm:$0xff]
    %v1078 = vld [vmem:[#allocation2 + $0x1ee0] sm:$0xff]
    %v1079 = vld [vmem:[#allocation2 + $0x1ee8] sm:$0xff]
    %v1080 = vld [vmem:[#allocation2 + $0x1ef0] sm:$0xff]
    %v1081 = vld [vmem:[#allocation2 + $0x1ef8] sm:$0xff]
    %v1082 = vld [vmem:[#allocation2 + $0x1f00] sm:$0xff]
    %v1083 = vld [vmem:[#allocation2 + $0x1f08] sm:$0xff]
    %v1084 = vld [vmem:[#allocation2 + $0x1f10] sm:$0xff]
    %v1085 = vld [vmem:[#allocation2 + $0x1f18] sm:$0xff]
    %v1086 = vld [vmem:[#allocation2 + $0x1f20] sm:$0xff]
    %v1087 = vld [vmem:[#allocation2 + $0x1f28] sm:$0xff]
    %v1088 = vld [vmem:[#allocation2 + $0x1f30] sm:$0xff]
    %v1089 = vld [vmem:[#allocation2 + $0x1f38] sm:$0xff]
    %v1090 = vld [vmem:[#allocation2 + $0x1f40] sm:$0xff]
    %v1091 = vld [vmem:[#allocation2 + $0x1f48] sm:$0xff]
    %v1092 = vld [vmem:[#allocation2 + $0x1f50] sm:$0xff]
    %v1093 = vld [vmem:[#allocation2 + $0x1f58] sm:$0xff]
    %v1094 = vld [vmem:[#allocation2 + $0x1f60] sm:$0xff]
    %v1095 = vld [vmem:[#allocation2 + $0x1f68] sm:$0xff]
    %v1096 = vld [vmem:[#allocation2 + $0x1f70] sm:$0xff]
    %v1097 = vld [vmem:[#allocation2 + $0x1f78] sm:$0xff]
    %v1098 = vld [vmem:[#allocation2 + $0x1f80] sm:$0xff]
    %v1099 = vld [vmem:[#allocation2 + $0x1f88] sm:$0xff]
    %v1100 = vld [vmem:[#allocation2 + $0x1f90] sm:$0xff]
    %v1101 = vld [vmem:[#allocation2 + $0x1f98] sm:$0xff]
    %v1102 = vld [vmem:[#allocation2 + $0x1fa0] sm:$0xff]
    %v1103 = vld [vmem:[#allocation2 + $0x1fa8] sm:$0xff]
    %v1104 = vld [vmem:[#allocation2 + $0x1fb0] sm:$0xff]
    %v1105 = vld [vmem:[#allocation2 + $0x1fb8] sm:$0xff]
    %v1106 = vld [vmem:[#allocation2 + $0x1fc0] sm:$0xff]
    %v1107 = vld [vmem:[#allocation2 + $0x1fc8] sm:$0xff]
    %v1108 = vld [vmem:[#allocation2 + $0x1fd0] sm:$0xff]
    %v1109 = vld [vmem:[#allocation2 + $0x1fd8] sm:$0xff]
    %v1110 = vld [vmem:[#allocation2 + $0x1fe0] sm:$0xff]
    %v1111 = vld [vmem:[#allocation2 + $0x1fe8] sm:$0xff]
    %v1112 = vld [vmem:[#allocation2 + $0x1ff0] sm:$0xff]
    %v1113 = vld [vmem:[#allocation2 + $0x1ff8] sm:$0xff]
    %v1114 = vld [vmem:[#allocation2 + $0x2000] sm:$0xff]
    %v1115 = vld [vmem:[#allocation2 + $0x2008] sm:$0xff]
    %v1116 = vld [vmem:[#allocation2 + $0x2010] sm:$0xff]
    %v1117 = vld [vmem:[#allocation2 + $0x2018] sm:$0xff]
    %v1118 = vld [vmem:[#allocation2 + $0x2020] sm:$0xff]
    %v1119 = vld [vmem:[#allocation2 + $0x2028] sm:$0xff]
    %v1120 = vld [vmem:[#allocation2 + $0x2030] sm:$0xff]
    %v1121 = vld [vmem:[#allocation2 + $0x2038] sm:$0xff]
    %v1122 = vld [vmem:[#allocation2 + $0x2040] sm:$0xff]
    %v1123 = vld [vmem:[#allocation2 + $0x2048] sm:$0xff]
    %v1124 = vld [vmem:[#allocation2 + $0x2050] sm:$0xff]
    %v1125 = vld [vmem:[#allocation2 + $0x2058] sm:$0xff]
    %v1126 = vld [vmem:[#allocation2 + $0x2060] sm:$0xff]
    %v1127 = vld [vmem:[#allocation2 + $0x2068] sm:$0xff]
    %v1128 = vld [vmem:[#allocation2 + $0x2070] sm:$0xff]
    %v1129 = vld [vmem:[#allocation2 + $0x2078] sm:$0xff]
    %v1130 = vld [vmem:[#allocation2 + $0x2080] sm:$0xff]
    %v1131 = vld [vmem:[#allocation2 + $0x2088] sm:$0xff]
    %v1132 = vld [vmem:[#allocation2 + $0x2090] sm:$0xff]
    %v1133 = vld [vmem:[#allocation2 + $0x2098] sm:$0xff]
    %v1134 = vld [vmem:[#allocation2 + $0x20a0] sm:$0xff]
    %v1135 = vld [vmem:[#allocation2 + $0x20a8] sm:$0xff]
    %v1136 = vld [vmem:[#allocation2 + $0x20b0] sm:$0xff]
    %v1137 = vld [vmem:[#allocation2 + $0x20b8] sm:$0xff]
    %v1138 = vld [vmem:[#allocation2 + $0x20c0] sm:$0xff]
    %v1139 = vld [vmem:[#allocation2 + $0x20c8] sm:$0xff]
    %v1140 = vld [vmem:[#allocation2 + $0x20d0] sm:$0xff]
    %v1141 = vld [vmem:[#allocation2 + $0x20d8] sm:$0xff]
    %v1142 = vld [vmem:[#allocation2 + $0x20e0] sm:$0xff]
    %v1143 = vld [vmem:[#allocation2 + $0x20e8] sm:$0xff]
    %v1144 = vld [vmem:[#allocation2 + $0x20f0] sm:$0xff]
    %v1145 = vld [vmem:[#allocation2 + $0x20f8] sm:$0xff]
    %v1146 = vld [vmem:[#allocation2 + $0x2100] sm:$0xff]
    %v1147 = vld [vmem:[#allocation2 + $0x2108] sm:$0xff]
    %v1148 = vld [vmem:[#allocation2 + $0x2110] sm:$0xff]
    %v1149 = vld [vmem:[#allocation2 + $0x2118] sm:$0xff]
    %v1150 = vld [vmem:[#allocation2 + $0x2120] sm:$0xff]
    %v1151 = vld [vmem:[#allocation2 + $0x2128] sm:$0xff]
    %v1152 = vld [vmem:[#allocation2 + $0x2130] sm:$0xff]
    %v1153 = vld [vmem:[#allocation2 + $0x2138] sm:$0xff]
    %v1154 = vld [vmem:[#allocation2 + $0x2140] sm:$0xff]
    %v1155 = vld [vmem:[#allocation2 + $0x2148] sm:$0xff]
    %v1156 = vld [vmem:[#allocation2 + $0x2150] sm:$0xff]
    %v1157 = vld [vmem:[#allocation2 + $0x2158] sm:$0xff]
    %v1158 = vld [vmem:[#allocation2 + $0x2160] sm:$0xff]
    %v1159 = vld [vmem:[#allocation2 + $0x2168] sm:$0xff]
    %v1160 = vld [vmem:[#allocation2 + $0x2170] sm:$0xff]
    %v1161 = vld [vmem:[#allocation2 + $0x2178] sm:$0xff]
    %v1162 = vld [vmem:[#allocation2 + $0x2180] sm:$0xff]
    %v1163 = vld [vmem:[#allocation2 + $0x2188] sm:$0xff]
    %v1164 = vld [vmem:[#allocation2 + $0x2190] sm:$0xff]
    %v1165 = vld [vmem:[#allocation2 + $0x2198] sm:$0xff]
    %v1166 = vld [vmem:[#allocation2 + $0x21a0] sm:$0xff]
    %v1167 = vld [vmem:[#allocation2 + $0x21a8] sm:$0xff]
    %v1168 = vld [vmem:[#allocation2 + $0x21b0] sm:$0xff]
    %v1169 = vld [vmem:[#allocation2 + $0x21b8] sm:$0xff]
    %v1170 = vld [vmem:[#allocation2 + $0x21c0] sm:$0xff]
    %v1171 = vld [vmem:[#allocation2 + $0x21c8] sm:$0xff]
    %v1172 = vld [vmem:[#allocation2 + $0x21d0] sm:$0xff]
    %v1173 = vld [vmem:[#allocation2 + $0x21d8] sm:$0xff]
    %v1174 = vld [vmem:[#allocation2 + $0x21e0] sm:$0xff]
    %v1175 = vld [vmem:[#allocation2 + $0x21e8] sm:$0xff]
    %v1176 = vld [vmem:[#allocation2 + $0x21f0] sm:$0xff]
    %v1177 = vld [vmem:[#allocation2 + $0x21f8] sm:$0xff]
    %v1178 = vld [vmem:[#allocation2 + $0x2200] sm:$0xff]
    %v1179 = vld [vmem:[#allocation2 + $0x2208] sm:$0xff]
    %v1180 = vld [vmem:[#allocation2 + $0x2210] sm:$0xff]
    %v1181 = vld [vmem:[#allocation2 + $0x2218] sm:$0xff]
    %v1182 = vld [vmem:[#allocation2 + $0x2220] sm:$0xff]
    %v1183 = vld [vmem:[#allocation2 + $0x2228] sm:$0xff]
    %v1184 = vld [vmem:[#allocation2 + $0x2230] sm:$0xff]
    %v1185 = vld [vmem:[#allocation2 + $0x2238] sm:$0xff]
    %v1186 = vld [vmem:[#allocation2 + $0x2240] sm:$0xff]
    %v1187 = vld [vmem:[#allocation2 + $0x2248] sm:$0xff]
    %v1188 = vld [vmem:[#allocation2 + $0x2250] sm:$0xff]
    %v1189 = vld [vmem:[#allocation2 + $0x2258] sm:$0xff]
    %v1190 = vld [vmem:[#allocation2 + $0x2260] sm:$0xff]
    %v1191 = vld [vmem:[#allocation2 + $0x2268] sm:$0xff]
    %v1192 = vld [vmem:[#allocation2 + $0x2270] sm:$0xff]
    %v1193 = vld [vmem:[#allocation2 + $0x2278] sm:$0xff]
    %v1194 = vld [vmem:[#allocation2 + $0x2280] sm:$0xff]
    %v1195 = vld [vmem:[#allocation2 + $0x2288] sm:$0xff]
    %v1196 = vld [vmem:[#allocation2 + $0x2290] sm:$0xff]
    %v1197 = vld [vmem:[#allocation2 + $0x2298] sm:$0xff]
    %v1198 = vld [vmem:[#allocation2 + $0x22a0] sm:$0xff]
    %v1199 = vld [vmem:[#allocation2 + $0x22a8] sm:$0xff]
    %v1200 = vld [vmem:[#allocation2 + $0x22b0] sm:$0xff]
    %v1201 = vld [vmem:[#allocation2 + $0x22b8] sm:$0xff]
    %v1202 = vld [vmem:[#allocation2 + $0x22c0] sm:$0xff]
    %v1203 = vld [vmem:[#allocation2 + $0x22c8] sm:$0xff]
    %v1204 = vld [vmem:[#allocation2 + $0x22d0] sm:$0xff]
    %v1205 = vld [vmem:[#allocation2 + $0x22d8] sm:$0xff]
    %v1206 = vld [vmem:[#allocation2 + $0x22e0] sm:$0xff]
    %v1207 = vld [vmem:[#allocation2 + $0x22e8] sm:$0xff]
    %v1208 = vld [vmem:[#allocation2 + $0x22f0] sm:$0xff]
    %v1209 = vld [vmem:[#allocation2 + $0x22f8] sm:$0xff]
    %v1210 = vld [vmem:[#allocation2 + $0x2300] sm:$0xff]
    %v1211 = vld [vmem:[#allocation2 + $0x2308] sm:$0xff]
    %v1212 = vld [vmem:[#allocation2 + $0x2310] sm:$0xff]
    %v1213 = vld [vmem:[#allocation2 + $0x2318] sm:$0xff]
    %v1214 = vld [vmem:[#allocation2 + $0x2320] sm:$0xff]
    %v1215 = vld [vmem:[#allocation2 + $0x2328] sm:$0xff]
    %v1216 = vld [vmem:[#allocation2 + $0x2330] sm:$0xff]
    %v1217 = vld [vmem:[#allocation2 + $0x2338] sm:$0xff]
    %v1218 = vld [vmem:[#allocation2 + $0x2340] sm:$0xff]
    %v1219 = vld [vmem:[#allocation2 + $0x2348] sm:$0xff]
    %v1220 = vld [vmem:[#allocation2 + $0x2350] sm:$0xff]
    %v1221 = vld [vmem:[#allocation2 + $0x2358] sm:$0xff]
    %v1222 = vld [vmem:[#allocation2 + $0x2360] sm:$0xff]
    %v1223 = vld [vmem:[#allocation2 + $0x2368] sm:$0xff]
    %v1224 = vld [vmem:[#allocation2 + $0x2370] sm:$0xff]
    %v1225 = vld [vmem:[#allocation2 + $0x2378] sm:$0xff]
    %v1226 = vld [vmem:[#allocation2 + $0x2380] sm:$0xff]
    %v1227 = vld [vmem:[#allocation2 + $0x2388] sm:$0xff]
    %v1228 = vld [vmem:[#allocation2 + $0x2390] sm:$0xff]
    %v1229 = vld [vmem:[#allocation2 + $0x2398] sm:$0xff]
    %v1230 = vld [vmem:[#allocation2 + $0x23a0] sm:$0xff]
    %v1231 = vld [vmem:[#allocation2 + $0x23a8] sm:$0xff]
    %v1232 = vld [vmem:[#allocation2 + $0x23b0] sm:$0xff]
    %v1233 = vld [vmem:[#allocation2 + $0x23b8] sm:$0xff]
    %v1234 = vld [vmem:[#allocation2 + $0x23c0] sm:$0xff]
    %v1235 = vld [vmem:[#allocation2 + $0x23c8] sm:$0xff]
    %v1236 = vld [vmem:[#allocation2 + $0x23d0] sm:$0xff]
    %v1237 = vld [vmem:[#allocation2 + $0x23d8] sm:$0xff]
    %v1238 = vld [vmem:[#allocation2 + $0x23e0] sm:$0xff]
    %v1239 = vld [vmem:[#allocation2 + $0x23e8] sm:$0xff]
    %v1240 = vld [vmem:[#allocation2 + $0x23f0] sm:$0xff]
    %v1241 = vld [vmem:[#allocation2 + $0x23f8] sm:$0xff]
    %v1278 = vunpack.c.l.b16 %v54
    %v1279 = vunpack.c.h.b16 %v54
    %v1280 = vunpack.c.l.b16 %v55
    %v1281 = vunpack.c.h.b16 %v55
    %v1282 = vunpack.c.l.b16 %v56
    %v1283 = vunpack.c.h.b16 %v56
    %v1284 = vunpack.c.l.b16 %v57
    %v1285 = vunpack.c.h.b16 %v57
    %v1286 = vunpack.c.l.b16 %v58
    %v1287 = vunpack.c.h.b16 %v58
    %v1288 = vunpack.c.l.b16 %v59
    %v1289 = vunpack.c.h.b16 %v59
    %v1290 = vunpack.c.l.b16 %v60
    %v1291 = vunpack.c.h.b16 %v60
    %v1292 = vunpack.c.l.b16 %v61
    %v1293 = vunpack.c.h.b16 %v61
    %v1294 = vunpack.c.l.b16 %v62
    %v1295 = vunpack.c.h.b16 %v62
    %v1296 = vunpack.c.l.b16 %v63
    %v1297 = vunpack.c.h.b16 %v63
    %v1298 = vunpack.c.l.b16 %v64
    %v1299 = vunpack.c.h.b16 %v64
    %v1300 = vunpack.c.l.b16 %v65
    %v1301 = vunpack.c.h.b16 %v65
    %v1302 = vunpack.c.l.b16 %v66
    %v1303 = vunpack.c.h.b16 %v66
    %v1304 = vunpack.c.l.b16 %v67
    %v1305 = vunpack.c.h.b16 %v67
    %v1306 = vunpack.c.l.b16 %v68
    %v1307 = vunpack.c.h.b16 %v68
    %v1308 = vunpack.c.l.b16 %v69
    %v1309 = vunpack.c.h.b16 %v69
    %v1310 = vunpack.c.l.b16 %v70
    %v1311 = vunpack.c.h.b16 %v70
    %v1312 = vunpack.c.l.b16 %v71
    %v1313 = vunpack.c.h.b16 %v71
    %v1314 = vunpack.c.l.b16 %v72
    %v1315 = vunpack.c.h.b16 %v72
    %v1316 = vunpack.c.l.b16 %v73
    %v1317 = vunpack.c.h.b16 %v73
    %v1318 = vunpack.c.l.b16 %v74
    %v1319 = vunpack.c.h.b16 %v74
    %v1320 = vunpack.c.l.b16 %v75
    %v1321 = vunpack.c.h.b16 %v75
    %v1322 = vunpack.c.l.b16 %v76
    %v1323 = vunpack.c.h.b16 %v76
    %v1324 = vunpack.c.l.b16 %v77
    %v1325 = vunpack.c.h.b16 %v77
    %v1326 = vunpack.c.l.b16 %v78
    %v1327 = vunpack.c.h.b16 %v78
    %v1328 = vunpack.c.l.b16 %v79
    %v1329 = vunpack.c.h.b16 %v79
    %v1330 = vunpack.c.l.b16 %v80
    %v1331 = vunpack.c.h.b16 %v80
    %v1332 = vunpack.c.l.b16 %v81
    %v1333 = vunpack.c.h.b16 %v81
    %v1334 = vunpack.c.l.b16 %v82
    %v1335 = vunpack.c.h.b16 %v82
    %v1336 = vunpack.c.l.b16 %v83
    %v1337 = vunpack.c.h.b16 %v83
    %v1338 = vunpack.c.l.b16 %v84
    %v1339 = vunpack.c.h.b16 %v84
    %v1340 = vunpack.c.l.b16 %v85
    %v1341 = vunpack.c.h.b16 %v85
    %v1342 = vunpack.c.l.b16 %v86
    %v1343 = vunpack.c.h.b16 %v86
    %v1344 = vunpack.c.l.b16 %v87
    %v1345 = vunpack.c.h.b16 %v87
    %v1346 = vunpack.c.l.b16 %v88
    %v1347 = vunpack.c.h.b16 %v88
    %v1348 = vunpack.c.l.b16 %v89
    %v1349 = vunpack.c.h.b16 %v89
    %v1350 = vpack.c.b16 %v1296, %v1278
    %v1351 = vpack.c.b16 %v1297, %v1279
    %v1352 = vpack.c.b16 %v1298, %v1280
    %v1353 = vpack.c.b16 %v1299, %v1281
    %v1354 = vpack.c.b16 %v1300, %v1282
    %v1355 = vpack.c.b16 %v1301, %v1283
    %v1356 = vpack.c.b16 %v1302, %v1284
    %v1357 = vpack.c.b16 %v1303, %v1285
    %v1358 = vpack.c.b16 %v1304, %v1286
    %v1359 = vpack.c.b16 %v1305, %v1287
    %v1360 = vpack.c.b16 %v1306, %v1288
    %v1361 = vpack.c.b16 %v1307, %v1289
    %v1362 = vpack.c.b16 %v1308, %v1290
    %v1363 = vpack.c.b16 %v1309, %v1291
    %v1364 = vpack.c.b16 %v1310, %v1292
    %v1365 = vpack.c.b16 %v1311, %v1293
    %v1366 = vpack.c.b16 %v1312, %v1294
    %v1367 = vpack.c.b16 %v1313, %v1295
    %v1368 = vpack.c.b16 %v1332, %v1314
    %v1369 = vpack.c.b16 %v1333, %v1315
    %v1370 = vpack.c.b16 %v1334, %v1316
    %v1371 = vpack.c.b16 %v1335, %v1317
    %v1372 = vpack.c.b16 %v1336, %v1318
    %v1373 = vpack.c.b16 %v1337, %v1319
    %v1374 = vpack.c.b16 %v1338, %v1320
    %v1375 = vpack.c.b16 %v1339, %v1321
    %v1376 = vpack.c.b16 %v1340, %v1322
    %v1377 = vpack.c.b16 %v1341, %v1323
    %v1378 = vpack.c.b16 %v1342, %v1324
    %v1379 = vpack.c.b16 %v1343, %v1325
    %v1380 = vpack.c.b16 %v1344, %v1326
    %v1381 = vpack.c.b16 %v1345, %v1327
    %v1382 = vpack.c.b16 %v1346, %v1328
    %v1383 = vpack.c.b16 %v1347, %v1329
    %v1384 = vpack.c.b16 %v1348, %v1330
    %v1385 = vpack.c.b16 %v1349, %v1331
    %v2574 = vunpack.c.l.b16 %v90
    %v2575 = vunpack.c.h.b16 %v90
    %v2576 = vunpack.c.l.b16 %v91
    %v2577 = vunpack.c.h.b16 %v91
    %v2578 = vunpack.c.l.b16 %v92
    %v2579 = vunpack.c.h.b16 %v92
    %v2580 = vunpack.c.l.b16 %v93
    %v2581 = vunpack.c.h.b16 %v93
    %v2582 = vunpack.c.l.b16 %v94
    %v2583 = vunpack.c.h.b16 %v94
    %v2584 = vunpack.c.l.b16 %v95
    %v2585 = vunpack.c.h.b16 %v95
    %v2586 = vunpack.c.l.b16 %v96
    %v2587 = vunpack.c.h.b16 %v96
    %v2588 = vunpack.c.l.b16 %v97
    %v2589 = vunpack.c.h.b16 %v97
    %v2590 = vunpack.c.l.b16 %v98
    %v2591 = vunpack.c.h.b16 %v98
    %v2592 = vunpack.c.l.b16 %v99
    %v2593 = vunpack.c.h.b16 %v99
    %v2594 = vunpack.c.l.b16 %v100
    %v2595 = vunpack.c.h.b16 %v100
    %v2596 = vunpack.c.l.b16 %v101
    %v2597 = vunpack.c.h.b16 %v101
    %v2598 = vunpack.c.l.b16 %v102
    %v2599 = vunpack.c.h.b16 %v102
    %v2600 = vunpack.c.l.b16 %v103
    %v2601 = vunpack.c.h.b16 %v103
    %v2602 = vunpack.c.l.b16 %v104
    %v2603 = vunpack.c.h.b16 %v104
    %v2604 = vunpack.c.l.b16 %v105
    %v2605 = vunpack.c.h.b16 %v105
    %v2606 = vunpack.c.l.b16 %v106
    %v2607 = vunpack.c.h.b16 %v106
    %v2608 = vunpack.c.l.b16 %v107
    %v2609 = vunpack.c.h.b16 %v107
    %v2610 = vunpack.c.l.b16 %v108
    %v2611 = vunpack.c.h.b16 %v108
    %v2612 = vunpack.c.l.b16 %v109
    %v2613 = vunpack.c.h.b16 %v109
    %v2614 = vunpack.c.l.b16 %v110
    %v2615 = vunpack.c.h.b16 %v110
    %v2616 = vunpack.c.l.b16 %v111
    %v2617 = vunpack.c.h.b16 %v111
    %v2618 = vunpack.c.l.b16 %v112
    %v2619 = vunpack.c.h.b16 %v112
    %v2620 = vunpack.c.l.b16 %v113
    %v2621 = vunpack.c.h.b16 %v113
    %v2622 = vunpack.c.l.b16 %v114
    %v2623 = vunpack.c.h.b16 %v114
    %v2624 = vunpack.c.l.b16 %v115
    %v2625 = vunpack.c.h.b16 %v115
    %v2626 = vunpack.c.l.b16 %v116
    %v2627 = vunpack.c.h.b16 %v116
    %v2628 = vunpack.c.l.b16 %v117
    %v2629 = vunpack.c.h.b16 %v117
    %v2630 = vunpack.c.l.b16 %v118
    %v2631 = vunpack.c.h.b16 %v118
    %v2632 = vunpack.c.l.b16 %v119
    %v2633 = vunpack.c.h.b16 %v119
    %v2634 = vunpack.c.l.b16 %v120
    %v2635 = vunpack.c.h.b16 %v120
    %v2636 = vunpack.c.l.b16 %v121
    %v2637 = vunpack.c.h.b16 %v121
    %v2638 = vunpack.c.l.b16 %v122
    %v2639 = vunpack.c.h.b16 %v122
    %v2640 = vunpack.c.l.b16 %v123
    %v2641 = vunpack.c.h.b16 %v123
    %v2642 = vunpack.c.l.b16 %v124
    %v2643 = vunpack.c.h.b16 %v124
    %v2644 = vunpack.c.l.b16 %v125
    %v2645 = vunpack.c.h.b16 %v125
    %v2646 = vunpack.c.l.b16 %v126
    %v2647 = vunpack.c.h.b16 %v126
    %v2648 = vunpack.c.l.b16 %v127
    %v2649 = vunpack.c.h.b16 %v127
    %v2650 = vunpack.c.l.b16 %v128
    %v2651 = vunpack.c.h.b16 %v128
    %v2652 = vunpack.c.l.b16 %v129
    %v2653 = vunpack.c.h.b16 %v129
    %v2654 = vunpack.c.l.b16 %v130
    %v2655 = vunpack.c.h.b16 %v130
    %v2656 = vunpack.c.l.b16 %v131
    %v2657 = vunpack.c.h.b16 %v131
    %v2658 = vunpack.c.l.b16 %v132
    %v2659 = vunpack.c.h.b16 %v132
    %v2660 = vunpack.c.l.b16 %v133
    %v2661 = vunpack.c.h.b16 %v133
    %v2662 = vunpack.c.l.b16 %v134
    %v2663 = vunpack.c.h.b16 %v134
    %v2664 = vunpack.c.l.b16 %v135
    %v2665 = vunpack.c.h.b16 %v135
    %v2666 = vunpack.c.l.b16 %v136
    %v2667 = vunpack.c.h.b16 %v136
    %v2668 = vunpack.c.l.b16 %v137
    %v2669 = vunpack.c.h.b16 %v137
    %v2670 = vunpack.c.l.b16 %v138
    %v2671 = vunpack.c.h.b16 %v138
    %v2672 = vunpack.c.l.b16 %v139
    %v2673 = vunpack.c.h.b16 %v139
    %v2674 = vunpack.c.l.b16 %v140
    %v2675 = vunpack.c.h.b16 %v140
    %v2676 = vunpack.c.l.b16 %v141
    %v2677 = vunpack.c.h.b16 %v141
    %v2678 = vunpack.c.l.b16 %v142
    %v2679 = vunpack.c.h.b16 %v142
    %v2680 = vunpack.c.l.b16 %v143
    %v2681 = vunpack.c.h.b16 %v143
    %v2682 = vunpack.c.l.b16 %v144
    %v2683 = vunpack.c.h.b16 %v144
    %v2684 = vunpack.c.l.b16 %v145
    %v2685 = vunpack.c.h.b16 %v145
    %v2686 = vunpack.c.l.b16 %v146
    %v2687 = vunpack.c.h.b16 %v146
    %v2688 = vunpack.c.l.b16 %v147
    %v2689 = vunpack.c.h.b16 %v147
    %v2690 = vunpack.c.l.b16 %v148
    %v2691 = vunpack.c.h.b16 %v148
    %v2692 = vunpack.c.l.b16 %v149
    %v2693 = vunpack.c.h.b16 %v149
    %v2694 = vunpack.c.l.b16 %v150
    %v2695 = vunpack.c.h.b16 %v150
    %v2696 = vunpack.c.l.b16 %v151
    %v2697 = vunpack.c.h.b16 %v151
    %v2698 = vunpack.c.l.b16 %v152
    %v2699 = vunpack.c.h.b16 %v152
    %v2700 = vunpack.c.l.b16 %v153
    %v2701 = vunpack.c.h.b16 %v153
    %v2702 = vunpack.c.l.b16 %v154
    %v2703 = vunpack.c.h.b16 %v154
    %v2704 = vunpack.c.l.b16 %v155
    %v2705 = vunpack.c.h.b16 %v155
    %v2706 = vunpack.c.l.b16 %v156
    %v2707 = vunpack.c.h.b16 %v156
    %v2708 = vunpack.c.l.b16 %v157
    %v2709 = vunpack.c.h.b16 %v157
    %v2710 = vunpack.c.l.b16 %v158
    %v2711 = vunpack.c.h.b16 %v158
    %v2712 = vunpack.c.l.b16 %v159
    %v2713 = vunpack.c.h.b16 %v159
    %v2714 = vunpack.c.l.b16 %v160
    %v2715 = vunpack.c.h.b16 %v160
    %v2716 = vunpack.c.l.b16 %v161
    %v2717 = vunpack.c.h.b16 %v161
    %v2718 = vunpack.c.l.b16 %v162
    %v2719 = vunpack.c.h.b16 %v162
    %v2720 = vunpack.c.l.b16 %v163
    %v2721 = vunpack.c.h.b16 %v163
    %v2722 = vunpack.c.l.b16 %v164
    %v2723 = vunpack.c.h.b16 %v164
    %v2724 = vunpack.c.l.b16 %v165
    %v2725 = vunpack.c.h.b16 %v165
    %v2726 = vunpack.c.l.b16 %v166
    %v2727 = vunpack.c.h.b16 %v166
    %v2728 = vunpack.c.l.b16 %v167
    %v2729 = vunpack.c.h.b16 %v167
    %v2730 = vunpack.c.l.b16 %v168
    %v2731 = vunpack.c.h.b16 %v168
    %v2732 = vunpack.c.l.b16 %v169
    %v2733 = vunpack.c.h.b16 %v169
    %v2734 = vunpack.c.l.b16 %v170
    %v2735 = vunpack.c.h.b16 %v170
    %v2736 = vunpack.c.l.b16 %v171
    %v2737 = vunpack.c.h.b16 %v171
    %v2738 = vunpack.c.l.b16 %v172
    %v2739 = vunpack.c.h.b16 %v172
    %v2740 = vunpack.c.l.b16 %v173
    %v2741 = vunpack.c.h.b16 %v173
    %v2742 = vunpack.c.l.b16 %v174
    %v2743 = vunpack.c.h.b16 %v174
    %v2744 = vunpack.c.l.b16 %v175
    %v2745 = vunpack.c.h.b16 %v175
    %v2746 = vunpack.c.l.b16 %v176
    %v2747 = vunpack.c.h.b16 %v176
    %v2748 = vunpack.c.l.b16 %v177
    %v2749 = vunpack.c.h.b16 %v177
    %v2750 = vunpack.c.l.b16 %v178
    %v2751 = vunpack.c.h.b16 %v178
    %v2752 = vunpack.c.l.b16 %v179
    %v2753 = vunpack.c.h.b16 %v179
    %v2754 = vunpack.c.l.b16 %v180
    %v2755 = vunpack.c.h.b16 %v180
    %v2756 = vunpack.c.l.b16 %v181
    %v2757 = vunpack.c.h.b16 %v181
    %v2758 = vunpack.c.l.b16 %v182
    %v2759 = vunpack.c.h.b16 %v182
    %v2760 = vunpack.c.l.b16 %v183
    %v2761 = vunpack.c.h.b16 %v183
    %v2762 = vunpack.c.l.b16 %v184
    %v2763 = vunpack.c.h.b16 %v184
    %v2764 = vunpack.c.l.b16 %v185
    %v2765 = vunpack.c.h.b16 %v185
    %v2766 = vunpack.c.l.b16 %v186
    %v2767 = vunpack.c.h.b16 %v186
    %v2768 = vunpack.c.l.b16 %v187
    %v2769 = vunpack.c.h.b16 %v187
    %v2770 = vunpack.c.l.b16 %v188
    %v2771 = vunpack.c.h.b16 %v188
    %v2772 = vunpack.c.l.b16 %v189
    %v2773 = vunpack.c.h.b16 %v189
    %v2774 = vunpack.c.l.b16 %v190
    %v2775 = vunpack.c.h.b16 %v190
    %v2776 = vunpack.c.l.b16 %v191
    %v2777 = vunpack.c.h.b16 %v191
    %v2778 = vunpack.c.l.b16 %v192
    %v2779 = vunpack.c.h.b16 %v192
    %v2780 = vunpack.c.l.b16 %v193
    %v2781 = vunpack.c.h.b16 %v193
    %v2782 = vunpack.c.l.b16 %v194
    %v2783 = vunpack.c.h.b16 %v194
    %v2784 = vunpack.c.l.b16 %v195
    %v2785 = vunpack.c.h.b16 %v195
    %v2786 = vunpack.c.l.b16 %v196
    %v2787 = vunpack.c.h.b16 %v196
    %v2788 = vunpack.c.l.b16 %v197
    %v2789 = vunpack.c.h.b16 %v197
    %v2790 = vunpack.c.l.b16 %v198
    %v2791 = vunpack.c.h.b16 %v198
    %v2792 = vunpack.c.l.b16 %v199
    %v2793 = vunpack.c.h.b16 %v199
    %v2794 = vunpack.c.l.b16 %v200
    %v2795 = vunpack.c.h.b16 %v200
    %v2796 = vunpack.c.l.b16 %v201
    %v2797 = vunpack.c.h.b16 %v201
    %v2798 = vunpack.c.l.b16 %v202
    %v2799 = vunpack.c.h.b16 %v202
    %v2800 = vunpack.c.l.b16 %v203
    %v2801 = vunpack.c.h.b16 %v203
    %v2802 = vunpack.c.l.b16 %v204
    %v2803 = vunpack.c.h.b16 %v204
    %v2804 = vunpack.c.l.b16 %v205
    %v2805 = vunpack.c.h.b16 %v205
    %v2806 = vunpack.c.l.b16 %v206
    %v2807 = vunpack.c.h.b16 %v206
    %v2808 = vunpack.c.l.b16 %v207
    %v2809 = vunpack.c.h.b16 %v207
    %v2810 = vunpack.c.l.b16 %v208
    %v2811 = vunpack.c.h.b16 %v208
    %v2812 = vunpack.c.l.b16 %v209
    %v2813 = vunpack.c.h.b16 %v209
    %v2814 = vunpack.c.l.b16 %v210
    %v2815 = vunpack.c.h.b16 %v210
    %v2816 = vunpack.c.l.b16 %v211
    %v2817 = vunpack.c.h.b16 %v211
    %v2818 = vunpack.c.l.b16 %v212
    %v2819 = vunpack.c.h.b16 %v212
    %v2820 = vunpack.c.l.b16 %v213
    %v2821 = vunpack.c.h.b16 %v213
    %v2822 = vunpack.c.l.b16 %v214
    %v2823 = vunpack.c.h.b16 %v214
    %v2824 = vunpack.c.l.b16 %v215
    %v2825 = vunpack.c.h.b16 %v215
    %v2826 = vunpack.c.l.b16 %v216
    %v2827 = vunpack.c.h.b16 %v216
    %v2828 = vunpack.c.l.b16 %v217
    %v2829 = vunpack.c.h.b16 %v217
    %v2830 = vunpack.c.l.b16 %v218
    %v2831 = vunpack.c.h.b16 %v218
    %v2832 = vunpack.c.l.b16 %v219
    %v2833 = vunpack.c.h.b16 %v219
    %v2834 = vunpack.c.l.b16 %v220
    %v2835 = vunpack.c.h.b16 %v220
    %v2836 = vunpack.c.l.b16 %v221
    %v2837 = vunpack.c.h.b16 %v221
    %v2838 = vunpack.c.l.b16 %v222
    %v2839 = vunpack.c.h.b16 %v222
    %v2840 = vunpack.c.l.b16 %v223
    %v2841 = vunpack.c.h.b16 %v223
    %v2842 = vunpack.c.l.b16 %v224
    %v2843 = vunpack.c.h.b16 %v224
    %v2844 = vunpack.c.l.b16 %v225
    %v2845 = vunpack.c.h.b16 %v225
    %v2846 = vunpack.c.l.b16 %v226
    %v2847 = vunpack.c.h.b16 %v226
    %v2848 = vunpack.c.l.b16 %v227
    %v2849 = vunpack.c.h.b16 %v227
    %v2850 = vunpack.c.l.b16 %v228
    %v2851 = vunpack.c.h.b16 %v228
    %v2852 = vunpack.c.l.b16 %v229
    %v2853 = vunpack.c.h.b16 %v229
    %v2854 = vunpack.c.l.b16 %v230
    %v2855 = vunpack.c.h.b16 %v230
    %v2856 = vunpack.c.l.b16 %v231
    %v2857 = vunpack.c.h.b16 %v231
    %v2858 = vunpack.c.l.b16 %v232
    %v2859 = vunpack.c.h.b16 %v232
    %v2860 = vunpack.c.l.b16 %v233
    %v2861 = vunpack.c.h.b16 %v233
    %v2862 = vunpack.c.l.b16 %v234
    %v2863 = vunpack.c.h.b16 %v234
    %v2864 = vunpack.c.l.b16 %v235
    %v2865 = vunpack.c.h.b16 %v235
    %v2866 = vunpack.c.l.b16 %v236
    %v2867 = vunpack.c.h.b16 %v236
    %v2868 = vunpack.c.l.b16 %v237
    %v2869 = vunpack.c.h.b16 %v237
    %v2870 = vunpack.c.l.b16 %v238
    %v2871 = vunpack.c.h.b16 %v238
    %v2872 = vunpack.c.l.b16 %v239
    %v2873 = vunpack.c.h.b16 %v239
    %v2874 = vunpack.c.l.b16 %v240
    %v2875 = vunpack.c.h.b16 %v240
    %v2876 = vunpack.c.l.b16 %v241
    %v2877 = vunpack.c.h.b16 %v241
    %v2878 = vunpack.c.l.b16 %v242
    %v2879 = vunpack.c.h.b16 %v242
    %v2880 = vunpack.c.l.b16 %v243
    %v2881 = vunpack.c.h.b16 %v243
    %v2882 = vunpack.c.l.b16 %v244
    %v2883 = vunpack.c.h.b16 %v244
    %v2884 = vunpack.c.l.b16 %v245
    %v2885 = vunpack.c.h.b16 %v245
    %v2886 = vunpack.c.l.b16 %v246
    %v2887 = vunpack.c.h.b16 %v246
    %v2888 = vunpack.c.l.b16 %v247
    %v2889 = vunpack.c.h.b16 %v247
    %v2890 = vunpack.c.l.b16 %v248
    %v2891 = vunpack.c.h.b16 %v248
    %v2892 = vunpack.c.l.b16 %v249
    %v2893 = vunpack.c.h.b16 %v249
    %v2894 = vunpack.c.l.b16 %v250
    %v2895 = vunpack.c.h.b16 %v250
    %v2896 = vunpack.c.l.b16 %v251
    %v2897 = vunpack.c.h.b16 %v251
    %v2898 = vunpack.c.l.b16 %v252
    %v2899 = vunpack.c.h.b16 %v252
    %v2900 = vunpack.c.l.b16 %v253
    %v2901 = vunpack.c.h.b16 %v253
    %v2902 = vunpack.c.l.b16 %v254
    %v2903 = vunpack.c.h.b16 %v254
    %v2904 = vunpack.c.l.b16 %v255
    %v2905 = vunpack.c.h.b16 %v255
    %v2906 = vunpack.c.l.b16 %v256
    %v2907 = vunpack.c.h.b16 %v256
    %v2908 = vunpack.c.l.b16 %v257
    %v2909 = vunpack.c.h.b16 %v257
    %v2910 = vunpack.c.l.b16 %v258
    %v2911 = vunpack.c.h.b16 %v258
    %v2912 = vunpack.c.l.b16 %v259
    %v2913 = vunpack.c.h.b16 %v259
    %v2914 = vunpack.c.l.b16 %v260
    %v2915 = vunpack.c.h.b16 %v260
    %v2916 = vunpack.c.l.b16 %v261
    %v2917 = vunpack.c.h.b16 %v261
    %v2918 = vunpack.c.l.b16 %v262
    %v2919 = vunpack.c.h.b16 %v262
    %v2920 = vunpack.c.l.b16 %v263
    %v2921 = vunpack.c.h.b16 %v263
    %v2922 = vunpack.c.l.b16 %v264
    %v2923 = vunpack.c.h.b16 %v264
    %v2924 = vunpack.c.l.b16 %v265
    %v2925 = vunpack.c.h.b16 %v265
    %v2926 = vunpack.c.l.b16 %v266
    %v2927 = vunpack.c.h.b16 %v266
    %v2928 = vunpack.c.l.b16 %v267
    %v2929 = vunpack.c.h.b16 %v267
    %v2930 = vunpack.c.l.b16 %v268
    %v2931 = vunpack.c.h.b16 %v268
    %v2932 = vunpack.c.l.b16 %v269
    %v2933 = vunpack.c.h.b16 %v269
    %v2934 = vunpack.c.l.b16 %v270
    %v2935 = vunpack.c.h.b16 %v270
    %v2936 = vunpack.c.l.b16 %v271
    %v2937 = vunpack.c.h.b16 %v271
    %v2938 = vunpack.c.l.b16 %v272
    %v2939 = vunpack.c.h.b16 %v272
    %v2940 = vunpack.c.l.b16 %v273
    %v2941 = vunpack.c.h.b16 %v273
    %v2942 = vunpack.c.l.b16 %v274
    %v2943 = vunpack.c.h.b16 %v274
    %v2944 = vunpack.c.l.b16 %v275
    %v2945 = vunpack.c.h.b16 %v275
    %v2946 = vunpack.c.l.b16 %v276
    %v2947 = vunpack.c.h.b16 %v276
    %v2948 = vunpack.c.l.b16 %v277
    %v2949 = vunpack.c.h.b16 %v277
    %v2950 = vunpack.c.l.b16 %v278
    %v2951 = vunpack.c.h.b16 %v278
    %v2952 = vunpack.c.l.b16 %v279
    %v2953 = vunpack.c.h.b16 %v279
    %v2954 = vunpack.c.l.b16 %v280
    %v2955 = vunpack.c.h.b16 %v280
    %v2956 = vunpack.c.l.b16 %v281
    %v2957 = vunpack.c.h.b16 %v281
    %v2958 = vunpack.c.l.b16 %v282
    %v2959 = vunpack.c.h.b16 %v282
    %v2960 = vunpack.c.l.b16 %v283
    %v2961 = vunpack.c.h.b16 %v283
    %v2962 = vunpack.c.l.b16 %v284
    %v2963 = vunpack.c.h.b16 %v284
    %v2964 = vunpack.c.l.b16 %v285
    %v2965 = vunpack.c.h.b16 %v285
    %v2966 = vunpack.c.l.b16 %v286
    %v2967 = vunpack.c.h.b16 %v286
    %v2968 = vunpack.c.l.b16 %v287
    %v2969 = vunpack.c.h.b16 %v287
    %v2970 = vunpack.c.l.b16 %v288
    %v2971 = vunpack.c.h.b16 %v288
    %v2972 = vunpack.c.l.b16 %v289
    %v2973 = vunpack.c.h.b16 %v289
    %v2974 = vunpack.c.l.b16 %v290
    %v2975 = vunpack.c.h.b16 %v290
    %v2976 = vunpack.c.l.b16 %v291
    %v2977 = vunpack.c.h.b16 %v291
    %v2978 = vunpack.c.l.b16 %v292
    %v2979 = vunpack.c.h.b16 %v292
    %v2980 = vunpack.c.l.b16 %v293
    %v2981 = vunpack.c.h.b16 %v293
    %v2982 = vunpack.c.l.b16 %v294
    %v2983 = vunpack.c.h.b16 %v294
    %v2984 = vunpack.c.l.b16 %v295
    %v2985 = vunpack.c.h.b16 %v295
    %v2986 = vunpack.c.l.b16 %v296
    %v2987 = vunpack.c.h.b16 %v296
    %v2988 = vunpack.c.l.b16 %v297
    %v2989 = vunpack.c.h.b16 %v297
    %v2990 = vunpack.c.l.b16 %v298
    %v2991 = vunpack.c.h.b16 %v298
    %v2992 = vunpack.c.l.b16 %v299
    %v2993 = vunpack.c.h.b16 %v299
    %v2994 = vunpack.c.l.b16 %v300
    %v2995 = vunpack.c.h.b16 %v300
    %v2996 = vunpack.c.l.b16 %v301
    %v2997 = vunpack.c.h.b16 %v301
    %v2998 = vunpack.c.l.b16 %v302
    %v2999 = vunpack.c.h.b16 %v302
    %v3000 = vunpack.c.l.b16 %v303
    %v3001 = vunpack.c.h.b16 %v303
    %v3002 = vunpack.c.l.b16 %v304
    %v3003 = vunpack.c.h.b16 %v304
    %v3004 = vunpack.c.l.b16 %v305
    %v3005 = vunpack.c.h.b16 %v305
    %v3006 = vunpack.c.l.b16 %v306
    %v3007 = vunpack.c.h.b16 %v306
    %v3008 = vunpack.c.l.b16 %v307
    %v3009 = vunpack.c.h.b16 %v307
    %v3010 = vunpack.c.l.b16 %v308
    %v3011 = vunpack.c.h.b16 %v308
    %v3012 = vunpack.c.l.b16 %v309
    %v3013 = vunpack.c.h.b16 %v309
    %v3014 = vunpack.c.l.b16 %v310
    %v3015 = vunpack.c.h.b16 %v310
    %v3016 = vunpack.c.l.b16 %v311
    %v3017 = vunpack.c.h.b16 %v311
    %v3018 = vunpack.c.l.b16 %v312
    %v3019 = vunpack.c.h.b16 %v312
    %v3020 = vunpack.c.l.b16 %v313
    %v3021 = vunpack.c.h.b16 %v313
    %v3022 = vunpack.c.l.b16 %v314
    %v3023 = vunpack.c.h.b16 %v314
    %v3024 = vunpack.c.l.b16 %v315
    %v3025 = vunpack.c.h.b16 %v315
    %v3026 = vunpack.c.l.b16 %v316
    %v3027 = vunpack.c.h.b16 %v316
    %v3028 = vunpack.c.l.b16 %v317
    %v3029 = vunpack.c.h.b16 %v317
    %v3030 = vunpack.c.l.b16 %v318
    %v3031 = vunpack.c.h.b16 %v318
    %v3032 = vunpack.c.l.b16 %v319
    %v3033 = vunpack.c.h.b16 %v319
    %v3034 = vunpack.c.l.b16 %v320
    %v3035 = vunpack.c.h.b16 %v320
    %v3036 = vunpack.c.l.b16 %v321
    %v3037 = vunpack.c.h.b16 %v321
    %v3038 = vunpack.c.l.b16 %v322
    %v3039 = vunpack.c.h.b16 %v322
    %v3040 = vunpack.c.l.b16 %v323
    %v3041 = vunpack.c.h.b16 %v323
    %v3042 = vunpack.c.l.b16 %v324
    %v3043 = vunpack.c.h.b16 %v324
    %v3044 = vunpack.c.l.b16 %v325
    %v3045 = vunpack.c.h.b16 %v325
    %v3046 = vunpack.c.l.b16 %v326
    %v3047 = vunpack.c.h.b16 %v326
    %v3048 = vunpack.c.l.b16 %v327
    %v3049 = vunpack.c.h.b16 %v327
    %v3050 = vunpack.c.l.b16 %v328
    %v3051 = vunpack.c.h.b16 %v328
    %v3052 = vunpack.c.l.b16 %v329
    %v3053 = vunpack.c.h.b16 %v329
    %v3054 = vunpack.c.l.b16 %v330
    %v3055 = vunpack.c.h.b16 %v330
    %v3056 = vunpack.c.l.b16 %v331
    %v3057 = vunpack.c.h.b16 %v331
    %v3058 = vunpack.c.l.b16 %v332
    %v3059 = vunpack.c.h.b16 %v332
    %v3060 = vunpack.c.l.b16 %v333
    %v3061 = vunpack.c.h.b16 %v333
    %v3062 = vunpack.c.l.b16 %v334
    %v3063 = vunpack.c.h.b16 %v334
    %v3064 = vunpack.c.l.b16 %v335
    %v3065 = vunpack.c.h.b16 %v335
    %v3066 = vunpack.c.l.b16 %v336
    %v3067 = vunpack.c.h.b16 %v336
    %v3068 = vunpack.c.l.b16 %v337
    %v3069 = vunpack.c.h.b16 %v337
    %v3070 = vunpack.c.l.b16 %v338
    %v3071 = vunpack.c.h.b16 %v338
    %v3072 = vunpack.c.l.b16 %v339
    %v3073 = vunpack.c.h.b16 %v339
    %v3074 = vunpack.c.l.b16 %v340
    %v3075 = vunpack.c.h.b16 %v340
    %v3076 = vunpack.c.l.b16 %v341
    %v3077 = vunpack.c.h.b16 %v341
    %v3078 = vunpack.c.l.b16 %v342
    %v3079 = vunpack.c.h.b16 %v342
    %v3080 = vunpack.c.l.b16 %v343
    %v3081 = vunpack.c.h.b16 %v343
    %v3082 = vunpack.c.l.b16 %v344
    %v3083 = vunpack.c.h.b16 %v344
    %v3084 = vunpack.c.l.b16 %v345
    %v3085 = vunpack.c.h.b16 %v345
    %v3086 = vunpack.c.l.b16 %v346
    %v3087 = vunpack.c.h.b16 %v346
    %v3088 = vunpack.c.l.b16 %v347
    %v3089 = vunpack.c.h.b16 %v347
    %v3090 = vunpack.c.l.b16 %v348
    %v3091 = vunpack.c.h.b16 %v348
    %v3092 = vunpack.c.l.b16 %v349
    %v3093 = vunpack.c.h.b16 %v349
    %v3094 = vunpack.c.l.b16 %v350
    %v3095 = vunpack.c.h.b16 %v350
    %v3096 = vunpack.c.l.b16 %v351
    %v3097 = vunpack.c.h.b16 %v351
    %v3098 = vunpack.c.l.b16 %v352
    %v3099 = vunpack.c.h.b16 %v352
    %v3100 = vunpack.c.l.b16 %v353
    %v3101 = vunpack.c.h.b16 %v353
    %v3102 = vunpack.c.l.b16 %v354
    %v3103 = vunpack.c.h.b16 %v354
    %v3104 = vunpack.c.l.b16 %v355
    %v3105 = vunpack.c.h.b16 %v355
    %v3106 = vunpack.c.l.b16 %v356
    %v3107 = vunpack.c.h.b16 %v356
    %v3108 = vunpack.c.l.b16 %v357
    %v3109 = vunpack.c.h.b16 %v357
    %v3110 = vunpack.c.l.b16 %v358
    %v3111 = vunpack.c.h.b16 %v358
    %v3112 = vunpack.c.l.b16 %v359
    %v3113 = vunpack.c.h.b16 %v359
    %v3114 = vunpack.c.l.b16 %v360
    %v3115 = vunpack.c.h.b16 %v360
    %v3116 = vunpack.c.l.b16 %v361
    %v3117 = vunpack.c.h.b16 %v361
    %v3118 = vunpack.c.l.b16 %v362
    %v3119 = vunpack.c.h.b16 %v362
    %v3120 = vunpack.c.l.b16 %v363
    %v3121 = vunpack.c.h.b16 %v363
    %v3122 = vunpack.c.l.b16 %v364
    %v3123 = vunpack.c.h.b16 %v364
    %v3124 = vunpack.c.l.b16 %v365
    %v3125 = vunpack.c.h.b16 %v365
    %v3126 = vunpack.c.l.b16 %v366
    %v3127 = vunpack.c.h.b16 %v366
    %v3128 = vunpack.c.l.b16 %v367
    %v3129 = vunpack.c.h.b16 %v367
    %v3130 = vunpack.c.l.b16 %v368
    %v3131 = vunpack.c.h.b16 %v368
    %v3132 = vunpack.c.l.b16 %v369
    %v3133 = vunpack.c.h.b16 %v369
    %v3134 = vunpack.c.l.b16 %v370
    %v3135 = vunpack.c.h.b16 %v370
    %v3136 = vunpack.c.l.b16 %v371
    %v3137 = vunpack.c.h.b16 %v371
    %v3138 = vunpack.c.l.b16 %v372
    %v3139 = vunpack.c.h.b16 %v372
    %v3140 = vunpack.c.l.b16 %v373
    %v3141 = vunpack.c.h.b16 %v373
    %v3142 = vunpack.c.l.b16 %v374
    %v3143 = vunpack.c.h.b16 %v374
    %v3144 = vunpack.c.l.b16 %v375
    %v3145 = vunpack.c.h.b16 %v375
    %v3146 = vunpack.c.l.b16 %v376
    %v3147 = vunpack.c.h.b16 %v376
    %v3148 = vunpack.c.l.b16 %v377
    %v3149 = vunpack.c.h.b16 %v377
    %v3150 = vunpack.c.l.b16 %v378
    %v3151 = vunpack.c.h.b16 %v378
    %v3152 = vunpack.c.l.b16 %v379
    %v3153 = vunpack.c.h.b16 %v379
    %v3154 = vunpack.c.l.b16 %v380
    %v3155 = vunpack.c.h.b16 %v380
    %v3156 = vunpack.c.l.b16 %v381
    %v3157 = vunpack.c.h.b16 %v381
    %v3158 = vunpack.c.l.b16 %v382
    %v3159 = vunpack.c.h.b16 %v382
    %v3160 = vunpack.c.l.b16 %v383
    %v3161 = vunpack.c.h.b16 %v383
    %v3162 = vunpack.c.l.b16 %v384
    %v3163 = vunpack.c.h.b16 %v384
    %v3164 = vunpack.c.l.b16 %v385
    %v3165 = vunpack.c.h.b16 %v385
    %v3166 = vunpack.c.l.b16 %v386
    %v3167 = vunpack.c.h.b16 %v386
    %v3168 = vunpack.c.l.b16 %v387
    %v3169 = vunpack.c.h.b16 %v387
    %v3170 = vunpack.c.l.b16 %v388
    %v3171 = vunpack.c.h.b16 %v388
    %v3172 = vunpack.c.l.b16 %v389
    %v3173 = vunpack.c.h.b16 %v389
    %v3174 = vunpack.c.l.b16 %v390
    %v3175 = vunpack.c.h.b16 %v390
    %v3176 = vunpack.c.l.b16 %v391
    %v3177 = vunpack.c.h.b16 %v391
    %v3178 = vunpack.c.l.b16 %v392
    %v3179 = vunpack.c.h.b16 %v392
    %v3180 = vunpack.c.l.b16 %v393
    %v3181 = vunpack.c.h.b16 %v393
    %v3182 = vunpack.c.l.b16 %v394
    %v3183 = vunpack.c.h.b16 %v394
    %v3184 = vunpack.c.l.b16 %v395
    %v3185 = vunpack.c.h.b16 %v395
    %v3186 = vunpack.c.l.b16 %v396
    %v3187 = vunpack.c.h.b16 %v396
    %v3188 = vunpack.c.l.b16 %v397
    %v3189 = vunpack.c.h.b16 %v397
    %v3190 = vunpack.c.l.b16 %v398
    %v3191 = vunpack.c.h.b16 %v398
    %v3192 = vunpack.c.l.b16 %v399
    %v3193 = vunpack.c.h.b16 %v399
    %v3194 = vunpack.c.l.b16 %v400
    %v3195 = vunpack.c.h.b16 %v400
    %v3196 = vunpack.c.l.b16 %v401
    %v3197 = vunpack.c.h.b16 %v401
    %v3198 = vunpack.c.l.b16 %v402
    %v3199 = vunpack.c.h.b16 %v402
    %v3200 = vunpack.c.l.b16 %v403
    %v3201 = vunpack.c.h.b16 %v403
    %v3202 = vunpack.c.l.b16 %v404
    %v3203 = vunpack.c.h.b16 %v404
    %v3204 = vunpack.c.l.b16 %v405
    %v3205 = vunpack.c.h.b16 %v405
    %v3206 = vunpack.c.l.b16 %v406
    %v3207 = vunpack.c.h.b16 %v406
    %v3208 = vunpack.c.l.b16 %v407
    %v3209 = vunpack.c.h.b16 %v407
    %v3210 = vunpack.c.l.b16 %v408
    %v3211 = vunpack.c.h.b16 %v408
    %v3212 = vunpack.c.l.b16 %v409
    %v3213 = vunpack.c.h.b16 %v409
    %v3214 = vunpack.c.l.b16 %v410
    %v3215 = vunpack.c.h.b16 %v410
    %v3216 = vunpack.c.l.b16 %v411
    %v3217 = vunpack.c.h.b16 %v411
    %v3218 = vunpack.c.l.b16 %v412
    %v3219 = vunpack.c.h.b16 %v412
    %v3220 = vunpack.c.l.b16 %v413
    %v3221 = vunpack.c.h.b16 %v413
    %v3222 = vunpack.c.l.b16 %v414
    %v3223 = vunpack.c.h.b16 %v414
    %v3224 = vunpack.c.l.b16 %v415
    %v3225 = vunpack.c.h.b16 %v415
    %v3226 = vunpack.c.l.b16 %v416
    %v3227 = vunpack.c.h.b16 %v416
    %v3228 = vunpack.c.l.b16 %v417
    %v3229 = vunpack.c.h.b16 %v417
    %v3230 = vunpack.c.l.b16 %v418
    %v3231 = vunpack.c.h.b16 %v418
    %v3232 = vunpack.c.l.b16 %v419
    %v3233 = vunpack.c.h.b16 %v419
    %v3234 = vunpack.c.l.b16 %v420
    %v3235 = vunpack.c.h.b16 %v420
    %v3236 = vunpack.c.l.b16 %v421
    %v3237 = vunpack.c.h.b16 %v421
    %v3238 = vunpack.c.l.b16 %v422
    %v3239 = vunpack.c.h.b16 %v422
    %v3240 = vunpack.c.l.b16 %v423
    %v3241 = vunpack.c.h.b16 %v423
    %v3242 = vunpack.c.l.b16 %v424
    %v3243 = vunpack.c.h.b16 %v424
    %v3244 = vunpack.c.l.b16 %v425
    %v3245 = vunpack.c.h.b16 %v425
    %v3246 = vunpack.c.l.b16 %v426
    %v3247 = vunpack.c.h.b16 %v426
    %v3248 = vunpack.c.l.b16 %v427
    %v3249 = vunpack.c.h.b16 %v427
    %v3250 = vunpack.c.l.b16 %v428
    %v3251 = vunpack.c.h.b16 %v428
    %v3252 = vunpack.c.l.b16 %v429
    %v3253 = vunpack.c.h.b16 %v429
    %v3254 = vunpack.c.l.b16 %v430
    %v3255 = vunpack.c.h.b16 %v430
    %v3256 = vunpack.c.l.b16 %v431
    %v3257 = vunpack.c.h.b16 %v431
    %v3258 = vunpack.c.l.b16 %v432
    %v3259 = vunpack.c.h.b16 %v432
    %v3260 = vunpack.c.l.b16 %v433
    %v3261 = vunpack.c.h.b16 %v433
    %v3262 = vunpack.c.l.b16 %v434
    %v3263 = vunpack.c.h.b16 %v434
    %v3264 = vunpack.c.l.b16 %v435
    %v3265 = vunpack.c.h.b16 %v435
    %v3266 = vunpack.c.l.b16 %v436
    %v3267 = vunpack.c.h.b16 %v436
    %v3268 = vunpack.c.l.b16 %v437
    %v3269 = vunpack.c.h.b16 %v437
    %v3270 = vunpack.c.l.b16 %v438
    %v3271 = vunpack.c.h.b16 %v438
    %v3272 = vunpack.c.l.b16 %v439
    %v3273 = vunpack.c.h.b16 %v439
    %v3274 = vunpack.c.l.b16 %v440
    %v3275 = vunpack.c.h.b16 %v440
    %v3276 = vunpack.c.l.b16 %v441
    %v3277 = vunpack.c.h.b16 %v441
    %v3278 = vunpack.c.l.b16 %v442
    %v3279 = vunpack.c.h.b16 %v442
    %v3280 = vunpack.c.l.b16 %v443
    %v3281 = vunpack.c.h.b16 %v443
    %v3282 = vunpack.c.l.b16 %v444
    %v3283 = vunpack.c.h.b16 %v444
    %v3284 = vunpack.c.l.b16 %v445
    %v3285 = vunpack.c.h.b16 %v445
    %v3286 = vunpack.c.l.b16 %v446
    %v3287 = vunpack.c.h.b16 %v446
    %v3288 = vunpack.c.l.b16 %v447
    %v3289 = vunpack.c.h.b16 %v447
    %v3290 = vunpack.c.l.b16 %v448
    %v3291 = vunpack.c.h.b16 %v448
    %v3292 = vunpack.c.l.b16 %v449
    %v3293 = vunpack.c.h.b16 %v449
    %v3294 = vunpack.c.l.b16 %v450
    %v3295 = vunpack.c.h.b16 %v450
    %v3296 = vunpack.c.l.b16 %v451
    %v3297 = vunpack.c.h.b16 %v451
    %v3298 = vunpack.c.l.b16 %v452
    %v3299 = vunpack.c.h.b16 %v452
    %v3300 = vunpack.c.l.b16 %v453
    %v3301 = vunpack.c.h.b16 %v453
    %v3302 = vunpack.c.l.b16 %v454
    %v3303 = vunpack.c.h.b16 %v454
    %v3304 = vunpack.c.l.b16 %v455
    %v3305 = vunpack.c.h.b16 %v455
    %v3306 = vunpack.c.l.b16 %v456
    %v3307 = vunpack.c.h.b16 %v456
    %v3308 = vunpack.c.l.b16 %v457
    %v3309 = vunpack.c.h.b16 %v457
    %v3310 = vunpack.c.l.b16 %v458
    %v3311 = vunpack.c.h.b16 %v458
    %v3312 = vunpack.c.l.b16 %v459
    %v3313 = vunpack.c.h.b16 %v459
    %v3314 = vunpack.c.l.b16 %v460
    %v3315 = vunpack.c.h.b16 %v460
    %v3316 = vunpack.c.l.b16 %v461
    %v3317 = vunpack.c.h.b16 %v461
    %v3318 = vunpack.c.l.b16 %v462
    %v3319 = vunpack.c.h.b16 %v462
    %v3320 = vunpack.c.l.b16 %v463
    %v3321 = vunpack.c.h.b16 %v463
    %v3322 = vunpack.c.l.b16 %v464
    %v3323 = vunpack.c.h.b16 %v464
    %v3324 = vunpack.c.l.b16 %v465
    %v3325 = vunpack.c.h.b16 %v465
    %v3326 = vunpack.c.l.b16 %v466
    %v3327 = vunpack.c.h.b16 %v466
    %v3328 = vunpack.c.l.b16 %v467
    %v3329 = vunpack.c.h.b16 %v467
    %v3330 = vunpack.c.l.b16 %v468
    %v3331 = vunpack.c.h.b16 %v468
    %v3332 = vunpack.c.l.b16 %v469
    %v3333 = vunpack.c.h.b16 %v469
    %v3334 = vunpack.c.l.b16 %v470
    %v3335 = vunpack.c.h.b16 %v470
    %v3336 = vunpack.c.l.b16 %v471
    %v3337 = vunpack.c.h.b16 %v471
    %v3338 = vunpack.c.l.b16 %v472
    %v3339 = vunpack.c.h.b16 %v472
    %v3340 = vunpack.c.l.b16 %v473
    %v3341 = vunpack.c.h.b16 %v473
    %v3342 = vunpack.c.l.b16 %v474
    %v3343 = vunpack.c.h.b16 %v474
    %v3344 = vunpack.c.l.b16 %v475
    %v3345 = vunpack.c.h.b16 %v475
    %v3346 = vunpack.c.l.b16 %v476
    %v3347 = vunpack.c.h.b16 %v476
    %v3348 = vunpack.c.l.b16 %v477
    %v3349 = vunpack.c.h.b16 %v477
    %v3350 = vunpack.c.l.b16 %v478
    %v3351 = vunpack.c.h.b16 %v478
    %v3352 = vunpack.c.l.b16 %v479
    %v3353 = vunpack.c.h.b16 %v479
    %v3354 = vunpack.c.l.b16 %v480
    %v3355 = vunpack.c.h.b16 %v480
    %v3356 = vunpack.c.l.b16 %v481
    %v3357 = vunpack.c.h.b16 %v481
    %v3358 = vunpack.c.l.b16 %v482
    %v3359 = vunpack.c.h.b16 %v482
    %v3360 = vunpack.c.l.b16 %v483
    %v3361 = vunpack.c.h.b16 %v483
    %v3362 = vunpack.c.l.b16 %v484
    %v3363 = vunpack.c.h.b16 %v484
    %v3364 = vunpack.c.l.b16 %v485
    %v3365 = vunpack.c.h.b16 %v485
    %v3366 = vunpack.c.l.b16 %v486
    %v3367 = vunpack.c.h.b16 %v486
    %v3368 = vunpack.c.l.b16 %v487
    %v3369 = vunpack.c.h.b16 %v487
    %v3370 = vunpack.c.l.b16 %v488
    %v3371 = vunpack.c.h.b16 %v488
    %v3372 = vunpack.c.l.b16 %v489
    %v3373 = vunpack.c.h.b16 %v489
    %v3374 = vunpack.c.l.b16 %v490
    %v3375 = vunpack.c.h.b16 %v490
    %v3376 = vunpack.c.l.b16 %v491
    %v3377 = vunpack.c.h.b16 %v491
    %v3378 = vunpack.c.l.b16 %v492
    %v3379 = vunpack.c.h.b16 %v492
    %v3380 = vunpack.c.l.b16 %v493
    %v3381 = vunpack.c.h.b16 %v493
    %v3382 = vunpack.c.l.b16 %v494
    %v3383 = vunpack.c.h.b16 %v494
    %v3384 = vunpack.c.l.b16 %v495
    %v3385 = vunpack.c.h.b16 %v495
    %v3386 = vunpack.c.l.b16 %v496
    %v3387 = vunpack.c.h.b16 %v496
    %v3388 = vunpack.c.l.b16 %v497
    %v3389 = vunpack.c.h.b16 %v497
    %v3390 = vunpack.c.l.b16 %v498
    %v3391 = vunpack.c.h.b16 %v498
    %v3392 = vunpack.c.l.b16 %v499
    %v3393 = vunpack.c.h.b16 %v499
    %v3394 = vunpack.c.l.b16 %v500
    %v3395 = vunpack.c.h.b16 %v500
    %v3396 = vunpack.c.l.b16 %v501
    %v3397 = vunpack.c.h.b16 %v501
    %v3398 = vunpack.c.l.b16 %v502
    %v3399 = vunpack.c.h.b16 %v502
    %v3400 = vunpack.c.l.b16 %v503
    %v3401 = vunpack.c.h.b16 %v503
    %v3402 = vunpack.c.l.b16 %v504
    %v3403 = vunpack.c.h.b16 %v504
    %v3404 = vunpack.c.l.b16 %v505
    %v3405 = vunpack.c.h.b16 %v505
    %v3406 = vunpack.c.l.b16 %v506
    %v3407 = vunpack.c.h.b16 %v506
    %v3408 = vunpack.c.l.b16 %v507
    %v3409 = vunpack.c.h.b16 %v507
    %v3410 = vunpack.c.l.b16 %v508
    %v3411 = vunpack.c.h.b16 %v508
    %v3412 = vunpack.c.l.b16 %v509
    %v3413 = vunpack.c.h.b16 %v509
    %v3414 = vunpack.c.l.b16 %v510
    %v3415 = vunpack.c.h.b16 %v510
    %v3416 = vunpack.c.l.b16 %v511
    %v3417 = vunpack.c.h.b16 %v511
    %v3418 = vunpack.c.l.b16 %v512
    %v3419 = vunpack.c.h.b16 %v512
    %v3420 = vunpack.c.l.b16 %v513
    %v3421 = vunpack.c.h.b16 %v513
    %v3422 = vunpack.c.l.b16 %v514
    %v3423 = vunpack.c.h.b16 %v514
    %v3424 = vunpack.c.l.b16 %v515
    %v3425 = vunpack.c.h.b16 %v515
    %v3426 = vunpack.c.l.b16 %v516
    %v3427 = vunpack.c.h.b16 %v516
    %v3428 = vunpack.c.l.b16 %v517
    %v3429 = vunpack.c.h.b16 %v517
    %v3430 = vunpack.c.l.b16 %v518
    %v3431 = vunpack.c.h.b16 %v518
    %v3432 = vunpack.c.l.b16 %v519
    %v3433 = vunpack.c.h.b16 %v519
    %v3434 = vunpack.c.l.b16 %v520
    %v3435 = vunpack.c.h.b16 %v520
    %v3436 = vunpack.c.l.b16 %v521
    %v3437 = vunpack.c.h.b16 %v521
    %v3438 = vunpack.c.l.b16 %v522
    %v3439 = vunpack.c.h.b16 %v522
    %v3440 = vunpack.c.l.b16 %v523
    %v3441 = vunpack.c.h.b16 %v523
    %v3442 = vunpack.c.l.b16 %v524
    %v3443 = vunpack.c.h.b16 %v524
    %v3444 = vunpack.c.l.b16 %v525
    %v3445 = vunpack.c.h.b16 %v525
    %v3446 = vunpack.c.l.b16 %v526
    %v3447 = vunpack.c.h.b16 %v526
    %v3448 = vunpack.c.l.b16 %v527
    %v3449 = vunpack.c.h.b16 %v527
    %v3450 = vunpack.c.l.b16 %v528
    %v3451 = vunpack.c.h.b16 %v528
    %v3452 = vunpack.c.l.b16 %v529
    %v3453 = vunpack.c.h.b16 %v529
    %v3454 = vunpack.c.l.b16 %v530
    %v3455 = vunpack.c.h.b16 %v530
    %v3456 = vunpack.c.l.b16 %v531
    %v3457 = vunpack.c.h.b16 %v531
    %v3458 = vunpack.c.l.b16 %v532
    %v3459 = vunpack.c.h.b16 %v532
    %v3460 = vunpack.c.l.b16 %v533
    %v3461 = vunpack.c.h.b16 %v533
    %v3462 = vunpack.c.l.b16 %v534
    %v3463 = vunpack.c.h.b16 %v534
    %v3464 = vunpack.c.l.b16 %v535
    %v3465 = vunpack.c.h.b16 %v535
    %v3466 = vunpack.c.l.b16 %v536
    %v3467 = vunpack.c.h.b16 %v536
    %v3468 = vunpack.c.l.b16 %v537
    %v3469 = vunpack.c.h.b16 %v537
    %v3470 = vunpack.c.l.b16 %v538
    %v3471 = vunpack.c.h.b16 %v538
    %v3472 = vunpack.c.l.b16 %v539
    %v3473 = vunpack.c.h.b16 %v539
    %v3474 = vunpack.c.l.b16 %v540
    %v3475 = vunpack.c.h.b16 %v540
    %v3476 = vunpack.c.l.b16 %v541
    %v3477 = vunpack.c.h.b16 %v541
    %v3478 = vunpack.c.l.b16 %v542
    %v3479 = vunpack.c.h.b16 %v542
    %v3480 = vunpack.c.l.b16 %v543
    %v3481 = vunpack.c.h.b16 %v543
    %v3482 = vunpack.c.l.b16 %v544
    %v3483 = vunpack.c.h.b16 %v544
    %v3484 = vunpack.c.l.b16 %v545
    %v3485 = vunpack.c.h.b16 %v545
    %v3486 = vunpack.c.l.b16 %v546
    %v3487 = vunpack.c.h.b16 %v546
    %v3488 = vunpack.c.l.b16 %v547
    %v3489 = vunpack.c.h.b16 %v547
    %v3490 = vunpack.c.l.b16 %v548
    %v3491 = vunpack.c.h.b16 %v548
    %v3492 = vunpack.c.l.b16 %v549
    %v3493 = vunpack.c.h.b16 %v549
    %v3494 = vunpack.c.l.b16 %v550
    %v3495 = vunpack.c.h.b16 %v550
    %v3496 = vunpack.c.l.b16 %v551
    %v3497 = vunpack.c.h.b16 %v551
    %v3498 = vunpack.c.l.b16 %v552
    %v3499 = vunpack.c.h.b16 %v552
    %v3500 = vunpack.c.l.b16 %v553
    %v3501 = vunpack.c.h.b16 %v553
    %v3502 = vunpack.c.l.b16 %v554
    %v3503 = vunpack.c.h.b16 %v554
    %v3504 = vunpack.c.l.b16 %v555
    %v3505 = vunpack.c.h.b16 %v555
    %v3506 = vunpack.c.l.b16 %v556
    %v3507 = vunpack.c.h.b16 %v556
    %v3508 = vunpack.c.l.b16 %v557
    %v3509 = vunpack.c.h.b16 %v557
    %v3510 = vunpack.c.l.b16 %v558
    %v3511 = vunpack.c.h.b16 %v558
    %v3512 = vunpack.c.l.b16 %v559
    %v3513 = vunpack.c.h.b16 %v559
    %v3514 = vunpack.c.l.b16 %v560
    %v3515 = vunpack.c.h.b16 %v560
    %v3516 = vunpack.c.l.b16 %v561
    %v3517 = vunpack.c.h.b16 %v561
    %v3518 = vunpack.c.l.b16 %v562
    %v3519 = vunpack.c.h.b16 %v562
    %v3520 = vunpack.c.l.b16 %v563
    %v3521 = vunpack.c.h.b16 %v563
    %v3522 = vunpack.c.l.b16 %v564
    %v3523 = vunpack.c.h.b16 %v564
    %v3524 = vunpack.c.l.b16 %v565
    %v3525 = vunpack.c.h.b16 %v565
    %v3526 = vunpack.c.l.b16 %v566
    %v3527 = vunpack.c.h.b16 %v566
    %v3528 = vunpack.c.l.b16 %v567
    %v3529 = vunpack.c.h.b16 %v567
    %v3530 = vunpack.c.l.b16 %v568
    %v3531 = vunpack.c.h.b16 %v568
    %v3532 = vunpack.c.l.b16 %v569
    %v3533 = vunpack.c.h.b16 %v569
    %v3534 = vunpack.c.l.b16 %v570
    %v3535 = vunpack.c.h.b16 %v570
    %v3536 = vunpack.c.l.b16 %v571
    %v3537 = vunpack.c.h.b16 %v571
    %v3538 = vunpack.c.l.b16 %v572
    %v3539 = vunpack.c.h.b16 %v572
    %v3540 = vunpack.c.l.b16 %v573
    %v3541 = vunpack.c.h.b16 %v573
    %v3542 = vunpack.c.l.b16 %v574
    %v3543 = vunpack.c.h.b16 %v574
    %v3544 = vunpack.c.l.b16 %v575
    %v3545 = vunpack.c.h.b16 %v575
    %v3546 = vunpack.c.l.b16 %v576
    %v3547 = vunpack.c.h.b16 %v576
    %v3548 = vunpack.c.l.b16 %v577
    %v3549 = vunpack.c.h.b16 %v577
    %v3550 = vunpack.c.l.b16 %v578
    %v3551 = vunpack.c.h.b16 %v578
    %v3552 = vunpack.c.l.b16 %v579
    %v3553 = vunpack.c.h.b16 %v579
    %v3554 = vunpack.c.l.b16 %v580
    %v3555 = vunpack.c.h.b16 %v580
    %v3556 = vunpack.c.l.b16 %v581
    %v3557 = vunpack.c.h.b16 %v581
    %v3558 = vunpack.c.l.b16 %v582
    %v3559 = vunpack.c.h.b16 %v582
    %v3560 = vunpack.c.l.b16 %v583
    %v3561 = vunpack.c.h.b16 %v583
    %v3562 = vunpack.c.l.b16 %v584
    %v3563 = vunpack.c.h.b16 %v584
    %v3564 = vunpack.c.l.b16 %v585
    %v3565 = vunpack.c.h.b16 %v585
    %v3566 = vunpack.c.l.b16 %v586
    %v3567 = vunpack.c.h.b16 %v586
    %v3568 = vunpack.c.l.b16 %v587
    %v3569 = vunpack.c.h.b16 %v587
    %v3570 = vunpack.c.l.b16 %v588
    %v3571 = vunpack.c.h.b16 %v588
    %v3572 = vunpack.c.l.b16 %v589
    %v3573 = vunpack.c.h.b16 %v589
    %v3574 = vunpack.c.l.b16 %v590
    %v3575 = vunpack.c.h.b16 %v590
    %v3576 = vunpack.c.l.b16 %v591
    %v3577 = vunpack.c.h.b16 %v591
    %v3578 = vunpack.c.l.b16 %v592
    %v3579 = vunpack.c.h.b16 %v592
    %v3580 = vunpack.c.l.b16 %v593
    %v3581 = vunpack.c.h.b16 %v593
    %v3582 = vunpack.c.l.b16 %v594
    %v3583 = vunpack.c.h.b16 %v594
    %v3584 = vunpack.c.l.b16 %v595
    %v3585 = vunpack.c.h.b16 %v595
    %v3586 = vunpack.c.l.b16 %v596
    %v3587 = vunpack.c.h.b16 %v596
    %v3588 = vunpack.c.l.b16 %v597
    %v3589 = vunpack.c.h.b16 %v597
    %v3590 = vunpack.c.l.b16 %v598
    %v3591 = vunpack.c.h.b16 %v598
    %v3592 = vunpack.c.l.b16 %v599
    %v3593 = vunpack.c.h.b16 %v599
    %v3594 = vunpack.c.l.b16 %v600
    %v3595 = vunpack.c.h.b16 %v600
    %v3596 = vunpack.c.l.b16 %v601
    %v3597 = vunpack.c.h.b16 %v601
    %v3598 = vunpack.c.l.b16 %v602
    %v3599 = vunpack.c.h.b16 %v602
    %v3600 = vunpack.c.l.b16 %v603
    %v3601 = vunpack.c.h.b16 %v603
    %v3602 = vunpack.c.l.b16 %v604
    %v3603 = vunpack.c.h.b16 %v604
    %v3604 = vunpack.c.l.b16 %v605
    %v3605 = vunpack.c.h.b16 %v605
    %v3606 = vunpack.c.l.b16 %v606
    %v3607 = vunpack.c.h.b16 %v606
    %v3608 = vunpack.c.l.b16 %v607
    %v3609 = vunpack.c.h.b16 %v607
    %v3610 = vunpack.c.l.b16 %v608
    %v3611 = vunpack.c.h.b16 %v608
    %v3612 = vunpack.c.l.b16 %v609
    %v3613 = vunpack.c.h.b16 %v609
    %v3614 = vunpack.c.l.b16 %v610
    %v3615 = vunpack.c.h.b16 %v610
    %v3616 = vunpack.c.l.b16 %v611
    %v3617 = vunpack.c.h.b16 %v611
    %v3618 = vunpack.c.l.b16 %v612
    %v3619 = vunpack.c.h.b16 %v612
    %v3620 = vunpack.c.l.b16 %v613
    %v3621 = vunpack.c.h.b16 %v613
    %v3622 = vunpack.c.l.b16 %v614
    %v3623 = vunpack.c.h.b16 %v614
    %v3624 = vunpack.c.l.b16 %v615
    %v3625 = vunpack.c.h.b16 %v615
    %v3626 = vunpack.c.l.b16 %v616
    %v3627 = vunpack.c.h.b16 %v616
    %v3628 = vunpack.c.l.b16 %v617
    %v3629 = vunpack.c.h.b16 %v617
    %v3630 = vunpack.c.l.b16 %v618
    %v3631 = vunpack.c.h.b16 %v618
    %v3632 = vunpack.c.l.b16 %v619
    %v3633 = vunpack.c.h.b16 %v619
    %v3634 = vunpack.c.l.b16 %v620
    %v3635 = vunpack.c.h.b16 %v620
    %v3636 = vunpack.c.l.b16 %v621
    %v3637 = vunpack.c.h.b16 %v621
    %v3638 = vunpack.c.l.b16 %v622
    %v3639 = vunpack.c.h.b16 %v622
    %v3640 = vunpack.c.l.b16 %v623
    %v3641 = vunpack.c.h.b16 %v623
    %v3642 = vunpack.c.l.b16 %v624
    %v3643 = vunpack.c.h.b16 %v624
    %v3644 = vunpack.c.l.b16 %v625
    %v3645 = vunpack.c.h.b16 %v625
    %v3646 = vunpack.c.l.b16 %v626
    %v3647 = vunpack.c.h.b16 %v626
    %v3648 = vunpack.c.l.b16 %v627
    %v3649 = vunpack.c.h.b16 %v627
    %v3650 = vunpack.c.l.b16 %v628
    %v3651 = vunpack.c.h.b16 %v628
    %v3652 = vunpack.c.l.b16 %v629
    %v3653 = vunpack.c.h.b16 %v629
    %v3654 = vunpack.c.l.b16 %v630
    %v3655 = vunpack.c.h.b16 %v630
    %v3656 = vunpack.c.l.b16 %v631
    %v3657 = vunpack.c.h.b16 %v631
    %v3658 = vunpack.c.l.b16 %v632
    %v3659 = vunpack.c.h.b16 %v632
    %v3660 = vunpack.c.l.b16 %v633
    %v3661 = vunpack.c.h.b16 %v633
    %v3662 = vunpack.c.l.b16 %v634
    %v3663 = vunpack.c.h.b16 %v634
    %v3664 = vunpack.c.l.b16 %v635
    %v3665 = vunpack.c.h.b16 %v635
    %v3666 = vunpack.c.l.b16 %v636
    %v3667 = vunpack.c.h.b16 %v636
    %v3668 = vunpack.c.l.b16 %v637
    %v3669 = vunpack.c.h.b16 %v637
    %v3670 = vunpack.c.l.b16 %v638
    %v3671 = vunpack.c.h.b16 %v638
    %v3672 = vunpack.c.l.b16 %v639
    %v3673 = vunpack.c.h.b16 %v639
    %v3674 = vunpack.c.l.b16 %v640
    %v3675 = vunpack.c.h.b16 %v640
    %v3676 = vunpack.c.l.b16 %v641
    %v3677 = vunpack.c.h.b16 %v641
    %v3678 = vunpack.c.l.b16 %v642
    %v3679 = vunpack.c.h.b16 %v642
    %v3680 = vunpack.c.l.b16 %v643
    %v3681 = vunpack.c.h.b16 %v643
    %v3682 = vunpack.c.l.b16 %v644
    %v3683 = vunpack.c.h.b16 %v644
    %v3684 = vunpack.c.l.b16 %v645
    %v3685 = vunpack.c.h.b16 %v645
    %v3686 = vunpack.c.l.b16 %v646
    %v3687 = vunpack.c.h.b16 %v646
    %v3688 = vunpack.c.l.b16 %v647
    %v3689 = vunpack.c.h.b16 %v647
    %v3690 = vunpack.c.l.b16 %v648
    %v3691 = vunpack.c.h.b16 %v648
    %v3692 = vunpack.c.l.b16 %v649
    %v3693 = vunpack.c.h.b16 %v649
    %v3694 = vunpack.c.l.b16 %v650
    %v3695 = vunpack.c.h.b16 %v650
    %v3696 = vunpack.c.l.b16 %v651
    %v3697 = vunpack.c.h.b16 %v651
    %v3698 = vunpack.c.l.b16 %v652
    %v3699 = vunpack.c.h.b16 %v652
    %v3700 = vunpack.c.l.b16 %v653
    %v3701 = vunpack.c.h.b16 %v653
    %v3702 = vunpack.c.l.b16 %v654
    %v3703 = vunpack.c.h.b16 %v654
    %v3704 = vunpack.c.l.b16 %v655
    %v3705 = vunpack.c.h.b16 %v655
    %v3706 = vunpack.c.l.b16 %v656
    %v3707 = vunpack.c.h.b16 %v656
    %v3708 = vunpack.c.l.b16 %v657
    %v3709 = vunpack.c.h.b16 %v657
    %v3710 = vunpack.c.l.b16 %v658
    %v3711 = vunpack.c.h.b16 %v658
    %v3712 = vunpack.c.l.b16 %v659
    %v3713 = vunpack.c.h.b16 %v659
    %v3714 = vunpack.c.l.b16 %v660
    %v3715 = vunpack.c.h.b16 %v660
    %v3716 = vunpack.c.l.b16 %v661
    %v3717 = vunpack.c.h.b16 %v661
    %v3718 = vunpack.c.l.b16 %v662
    %v3719 = vunpack.c.h.b16 %v662
    %v3720 = vunpack.c.l.b16 %v663
    %v3721 = vunpack.c.h.b16 %v663
    %v3722 = vunpack.c.l.b16 %v664
    %v3723 = vunpack.c.h.b16 %v664
    %v3724 = vunpack.c.l.b16 %v665
    %v3725 = vunpack.c.h.b16 %v665
    %v3726 = vunpack.c.l.b16 %v666
    %v3727 = vunpack.c.h.b16 %v666
    %v3728 = vunpack.c.l.b16 %v667
    %v3729 = vunpack.c.h.b16 %v667
    %v3730 = vunpack.c.l.b16 %v668
    %v3731 = vunpack.c.h.b16 %v668
    %v3732 = vunpack.c.l.b16 %v669
    %v3733 = vunpack.c.h.b16 %v669
    %v3734 = vunpack.c.l.b16 %v670
    %v3735 = vunpack.c.h.b16 %v670
    %v3736 = vunpack.c.l.b16 %v671
    %v3737 = vunpack.c.h.b16 %v671
    %v3738 = vunpack.c.l.b16 %v672
    %v3739 = vunpack.c.h.b16 %v672
    %v3740 = vunpack.c.l.b16 %v673
    %v3741 = vunpack.c.h.b16 %v673
    %v3742 = vunpack.c.l.b16 %v674
    %v3743 = vunpack.c.h.b16 %v674
    %v3744 = vunpack.c.l.b16 %v675
    %v3745 = vunpack.c.h.b16 %v675
    %v3746 = vunpack.c.l.b16 %v676
    %v3747 = vunpack.c.h.b16 %v676
    %v3748 = vunpack.c.l.b16 %v677
    %v3749 = vunpack.c.h.b16 %v677
    %v3750 = vunpack.c.l.b16 %v678
    %v3751 = vunpack.c.h.b16 %v678
    %v3752 = vunpack.c.l.b16 %v679
    %v3753 = vunpack.c.h.b16 %v679
    %v3754 = vunpack.c.l.b16 %v680
    %v3755 = vunpack.c.h.b16 %v680
    %v3756 = vunpack.c.l.b16 %v681
    %v3757 = vunpack.c.h.b16 %v681
    %v3758 = vunpack.c.l.b16 %v682
    %v3759 = vunpack.c.h.b16 %v682
    %v3760 = vunpack.c.l.b16 %v683
    %v3761 = vunpack.c.h.b16 %v683
    %v3762 = vunpack.c.l.b16 %v684
    %v3763 = vunpack.c.h.b16 %v684
    %v3764 = vunpack.c.l.b16 %v685
    %v3765 = vunpack.c.h.b16 %v685
    %v3766 = vunpack.c.l.b16 %v686
    %v3767 = vunpack.c.h.b16 %v686
    %v3768 = vunpack.c.l.b16 %v687
    %v3769 = vunpack.c.h.b16 %v687
    %v3770 = vunpack.c.l.b16 %v688
    %v3771 = vunpack.c.h.b16 %v688
    %v3772 = vunpack.c.l.b16 %v689
    %v3773 = vunpack.c.h.b16 %v689
    %v3774 = vunpack.c.l.b16 %v690
    %v3775 = vunpack.c.h.b16 %v690
    %v3776 = vunpack.c.l.b16 %v691
    %v3777 = vunpack.c.h.b16 %v691
    %v3778 = vunpack.c.l.b16 %v692
    %v3779 = vunpack.c.h.b16 %v692
    %v3780 = vunpack.c.l.b16 %v693
    %v3781 = vunpack.c.h.b16 %v693
    %v3782 = vunpack.c.l.b16 %v694
    %v3783 = vunpack.c.h.b16 %v694
    %v3784 = vunpack.c.l.b16 %v695
    %v3785 = vunpack.c.h.b16 %v695
    %v3786 = vunpack.c.l.b16 %v696
    %v3787 = vunpack.c.h.b16 %v696
    %v3788 = vunpack.c.l.b16 %v697
    %v3789 = vunpack.c.h.b16 %v697
    %v3790 = vunpack.c.l.b16 %v698
    %v3791 = vunpack.c.h.b16 %v698
    %v3792 = vunpack.c.l.b16 %v699
    %v3793 = vunpack.c.h.b16 %v699
    %v3794 = vunpack.c.l.b16 %v700
    %v3795 = vunpack.c.h.b16 %v700
    %v3796 = vunpack.c.l.b16 %v701
    %v3797 = vunpack.c.h.b16 %v701
    %v3798 = vunpack.c.l.b16 %v702
    %v3799 = vunpack.c.h.b16 %v702
    %v3800 = vunpack.c.l.b16 %v703
    %v3801 = vunpack.c.h.b16 %v703
    %v3802 = vunpack.c.l.b16 %v704
    %v3803 = vunpack.c.h.b16 %v704
    %v3804 = vunpack.c.l.b16 %v705
    %v3805 = vunpack.c.h.b16 %v705
    %v3806 = vunpack.c.l.b16 %v706
    %v3807 = vunpack.c.h.b16 %v706
    %v3808 = vunpack.c.l.b16 %v707
    %v3809 = vunpack.c.h.b16 %v707
    %v3810 = vunpack.c.l.b16 %v708
    %v3811 = vunpack.c.h.b16 %v708
    %v3812 = vunpack.c.l.b16 %v709
    %v3813 = vunpack.c.h.b16 %v709
    %v3814 = vunpack.c.l.b16 %v710
    %v3815 = vunpack.c.h.b16 %v710
    %v3816 = vunpack.c.l.b16 %v711
    %v3817 = vunpack.c.h.b16 %v711
    %v3818 = vunpack.c.l.b16 %v712
    %v3819 = vunpack.c.h.b16 %v712
    %v3820 = vunpack.c.l.b16 %v713
    %v3821 = vunpack.c.h.b16 %v713
    %v3822 = vunpack.c.l.b16 %v714
    %v3823 = vunpack.c.h.b16 %v714
    %v3824 = vunpack.c.l.b16 %v715
    %v3825 = vunpack.c.h.b16 %v715
    %v3826 = vunpack.c.l.b16 %v716
    %v3827 = vunpack.c.h.b16 %v716
    %v3828 = vunpack.c.l.b16 %v717
    %v3829 = vunpack.c.h.b16 %v717
    %v3830 = vunpack.c.l.b16 %v718
    %v3831 = vunpack.c.h.b16 %v718
    %v3832 = vunpack.c.l.b16 %v719
    %v3833 = vunpack.c.h.b16 %v719
    %v3834 = vunpack.c.l.b16 %v720
    %v3835 = vunpack.c.h.b16 %v720
    %v3836 = vunpack.c.l.b16 %v721
    %v3837 = vunpack.c.h.b16 %v721
    %v3838 = vunpack.c.l.b16 %v722
    %v3839 = vunpack.c.h.b16 %v722
    %v3840 = vunpack.c.l.b16 %v723
    %v3841 = vunpack.c.h.b16 %v723
    %v3842 = vunpack.c.l.b16 %v724
    %v3843 = vunpack.c.h.b16 %v724
    %v3844 = vunpack.c.l.b16 %v725
    %v3845 = vunpack.c.h.b16 %v725
    %v3846 = vunpack.c.l.b16 %v726
    %v3847 = vunpack.c.h.b16 %v726
    %v3848 = vunpack.c.l.b16 %v727
    %v3849 = vunpack.c.h.b16 %v727
    %v3850 = vunpack.c.l.b16 %v728
    %v3851 = vunpack.c.h.b16 %v728
    %v3852 = vunpack.c.l.b16 %v729
    %v3853 = vunpack.c.h.b16 %v729
    %v3854 = vunpack.c.l.b16 %v730
    %v3855 = vunpack.c.h.b16 %v730
    %v3856 = vunpack.c.l.b16 %v731
    %v3857 = vunpack.c.h.b16 %v731
    %v3858 = vunpack.c.l.b16 %v732
    %v3859 = vunpack.c.h.b16 %v732
    %v3860 = vunpack.c.l.b16 %v733
    %v3861 = vunpack.c.h.b16 %v733
    %v3862 = vunpack.c.l.b16 %v734
    %v3863 = vunpack.c.h.b16 %v734
    %v3864 = vunpack.c.l.b16 %v735
    %v3865 = vunpack.c.h.b16 %v735
    %v3866 = vunpack.c.l.b16 %v736
    %v3867 = vunpack.c.h.b16 %v736
    %v3868 = vunpack.c.l.b16 %v737
    %v3869 = vunpack.c.h.b16 %v737
    %v3870 = vunpack.c.l.b16 %v738
    %v3871 = vunpack.c.h.b16 %v738
    %v3872 = vunpack.c.l.b16 %v739
    %v3873 = vunpack.c.h.b16 %v739
    %v3874 = vunpack.c.l.b16 %v740
    %v3875 = vunpack.c.h.b16 %v740
    %v3876 = vunpack.c.l.b16 %v741
    %v3877 = vunpack.c.h.b16 %v741
    %v3878 = vunpack.c.l.b16 %v742
    %v3879 = vunpack.c.h.b16 %v742
    %v3880 = vunpack.c.l.b16 %v743
    %v3881 = vunpack.c.h.b16 %v743
    %v3882 = vunpack.c.l.b16 %v744
    %v3883 = vunpack.c.h.b16 %v744
    %v3884 = vunpack.c.l.b16 %v745
    %v3885 = vunpack.c.h.b16 %v745
    %v3886 = vunpack.c.l.b16 %v746
    %v3887 = vunpack.c.h.b16 %v746
    %v3888 = vunpack.c.l.b16 %v747
    %v3889 = vunpack.c.h.b16 %v747
    %v3890 = vunpack.c.l.b16 %v748
    %v3891 = vunpack.c.h.b16 %v748
    %v3892 = vunpack.c.l.b16 %v749
    %v3893 = vunpack.c.h.b16 %v749
    %v3894 = vunpack.c.l.b16 %v750
    %v3895 = vunpack.c.h.b16 %v750
    %v3896 = vunpack.c.l.b16 %v751
    %v3897 = vunpack.c.h.b16 %v751
    %v3898 = vunpack.c.l.b16 %v752
    %v3899 = vunpack.c.h.b16 %v752
    %v3900 = vunpack.c.l.b16 %v753
    %v3901 = vunpack.c.h.b16 %v753
    %v3902 = vunpack.c.l.b16 %v754
    %v3903 = vunpack.c.h.b16 %v754
    %v3904 = vunpack.c.l.b16 %v755
    %v3905 = vunpack.c.h.b16 %v755
    %v3906 = vunpack.c.l.b16 %v756
    %v3907 = vunpack.c.h.b16 %v756
    %v3908 = vunpack.c.l.b16 %v757
    %v3909 = vunpack.c.h.b16 %v757
    %v3910 = vunpack.c.l.b16 %v758
    %v3911 = vunpack.c.h.b16 %v758
    %v3912 = vunpack.c.l.b16 %v759
    %v3913 = vunpack.c.h.b16 %v759
    %v3914 = vunpack.c.l.b16 %v760
    %v3915 = vunpack.c.h.b16 %v760
    %v3916 = vunpack.c.l.b16 %v761
    %v3917 = vunpack.c.h.b16 %v761
    %v3918 = vunpack.c.l.b16 %v762
    %v3919 = vunpack.c.h.b16 %v762
    %v3920 = vunpack.c.l.b16 %v763
    %v3921 = vunpack.c.h.b16 %v763
    %v3922 = vunpack.c.l.b16 %v764
    %v3923 = vunpack.c.h.b16 %v764
    %v3924 = vunpack.c.l.b16 %v765
    %v3925 = vunpack.c.h.b16 %v765
    %v3926 = vunpack.c.l.b16 %v766
    %v3927 = vunpack.c.h.b16 %v766
    %v3928 = vunpack.c.l.b16 %v767
    %v3929 = vunpack.c.h.b16 %v767
    %v3930 = vunpack.c.l.b16 %v768
    %v3931 = vunpack.c.h.b16 %v768
    %v3932 = vunpack.c.l.b16 %v769
    %v3933 = vunpack.c.h.b16 %v769
    %v3934 = vunpack.c.l.b16 %v770
    %v3935 = vunpack.c.h.b16 %v770
    %v3936 = vunpack.c.l.b16 %v771
    %v3937 = vunpack.c.h.b16 %v771
    %v3938 = vunpack.c.l.b16 %v772
    %v3939 = vunpack.c.h.b16 %v772
    %v3940 = vunpack.c.l.b16 %v773
    %v3941 = vunpack.c.h.b16 %v773
    %v3942 = vunpack.c.l.b16 %v774
    %v3943 = vunpack.c.h.b16 %v774
    %v3944 = vunpack.c.l.b16 %v775
    %v3945 = vunpack.c.h.b16 %v775
    %v3946 = vunpack.c.l.b16 %v776
    %v3947 = vunpack.c.h.b16 %v776
    %v3948 = vunpack.c.l.b16 %v777
    %v3949 = vunpack.c.h.b16 %v777
    %v3950 = vunpack.c.l.b16 %v778
    %v3951 = vunpack.c.h.b16 %v778
    %v3952 = vunpack.c.l.b16 %v779
    %v3953 = vunpack.c.h.b16 %v779
    %v3954 = vunpack.c.l.b16 %v780
    %v3955 = vunpack.c.h.b16 %v780
    %v3956 = vunpack.c.l.b16 %v781
    %v3957 = vunpack.c.h.b16 %v781
    %v3958 = vunpack.c.l.b16 %v782
    %v3959 = vunpack.c.h.b16 %v782
    %v3960 = vunpack.c.l.b16 %v783
    %v3961 = vunpack.c.h.b16 %v783
    %v3962 = vunpack.c.l.b16 %v784
    %v3963 = vunpack.c.h.b16 %v784
    %v3964 = vunpack.c.l.b16 %v785
    %v3965 = vunpack.c.h.b16 %v785
    %v3966 = vunpack.c.l.b16 %v786
    %v3967 = vunpack.c.h.b16 %v786
    %v3968 = vunpack.c.l.b16 %v787
    %v3969 = vunpack.c.h.b16 %v787
    %v3970 = vunpack.c.l.b16 %v788
    %v3971 = vunpack.c.h.b16 %v788
    %v3972 = vunpack.c.l.b16 %v789
    %v3973 = vunpack.c.h.b16 %v789
    %v3974 = vunpack.c.l.b16 %v790
    %v3975 = vunpack.c.h.b16 %v790
    %v3976 = vunpack.c.l.b16 %v791
    %v3977 = vunpack.c.h.b16 %v791
    %v3978 = vunpack.c.l.b16 %v792
    %v3979 = vunpack.c.h.b16 %v792
    %v3980 = vunpack.c.l.b16 %v793
    %v3981 = vunpack.c.h.b16 %v793
    %v3982 = vunpack.c.l.b16 %v794
    %v3983 = vunpack.c.h.b16 %v794
    %v3984 = vunpack.c.l.b16 %v795
    %v3985 = vunpack.c.h.b16 %v795
    %v3986 = vunpack.c.l.b16 %v796
    %v3987 = vunpack.c.h.b16 %v796
    %v3988 = vunpack.c.l.b16 %v797
    %v3989 = vunpack.c.h.b16 %v797
    %v3990 = vunpack.c.l.b16 %v798
    %v3991 = vunpack.c.h.b16 %v798
    %v3992 = vunpack.c.l.b16 %v799
    %v3993 = vunpack.c.h.b16 %v799
    %v3994 = vunpack.c.l.b16 %v800
    %v3995 = vunpack.c.h.b16 %v800
    %v3996 = vunpack.c.l.b16 %v801
    %v3997 = vunpack.c.h.b16 %v801
    %v3998 = vunpack.c.l.b16 %v802
    %v3999 = vunpack.c.h.b16 %v802
    %v4000 = vunpack.c.l.b16 %v803
    %v4001 = vunpack.c.h.b16 %v803
    %v4002 = vunpack.c.l.b16 %v804
    %v4003 = vunpack.c.h.b16 %v804
    %v4004 = vunpack.c.l.b16 %v805
    %v4005 = vunpack.c.h.b16 %v805
    %v4006 = vunpack.c.l.b16 %v806
    %v4007 = vunpack.c.h.b16 %v806
    %v4008 = vunpack.c.l.b16 %v807
    %v4009 = vunpack.c.h.b16 %v807
    %v4010 = vunpack.c.l.b16 %v808
    %v4011 = vunpack.c.h.b16 %v808
    %v4012 = vunpack.c.l.b16 %v809
    %v4013 = vunpack.c.h.b16 %v809
    %v4014 = vunpack.c.l.b16 %v810
    %v4015 = vunpack.c.h.b16 %v810
    %v4016 = vunpack.c.l.b16 %v811
    %v4017 = vunpack.c.h.b16 %v811
    %v4018 = vunpack.c.l.b16 %v812
    %v4019 = vunpack.c.h.b16 %v812
    %v4020 = vunpack.c.l.b16 %v813
    %v4021 = vunpack.c.h.b16 %v813
    %v4022 = vunpack.c.l.b16 %v814
    %v4023 = vunpack.c.h.b16 %v814
    %v4024 = vunpack.c.l.b16 %v815
    %v4025 = vunpack.c.h.b16 %v815
    %v4026 = vunpack.c.l.b16 %v816
    %v4027 = vunpack.c.h.b16 %v816
    %v4028 = vunpack.c.l.b16 %v817
    %v4029 = vunpack.c.h.b16 %v817
    %v4030 = vunpack.c.l.b16 %v818
    %v4031 = vunpack.c.h.b16 %v818
    %v4032 = vunpack.c.l.b16 %v819
    %v4033 = vunpack.c.h.b16 %v819
    %v4034 = vunpack.c.l.b16 %v820
    %v4035 = vunpack.c.h.b16 %v820
    %v4036 = vunpack.c.l.b16 %v821
    %v4037 = vunpack.c.h.b16 %v821
    %v4038 = vunpack.c.l.b16 %v822
    %v4039 = vunpack.c.h.b16 %v822
    %v4040 = vunpack.c.l.b16 %v823
    %v4041 = vunpack.c.h.b16 %v823
    %v4042 = vunpack.c.l.b16 %v824
    %v4043 = vunpack.c.h.b16 %v824
    %v4044 = vunpack.c.l.b16 %v825
    %v4045 = vunpack.c.h.b16 %v825
    %v4046 = vunpack.c.l.b16 %v826
    %v4047 = vunpack.c.h.b16 %v826
    %v4048 = vunpack.c.l.b16 %v827
    %v4049 = vunpack.c.h.b16 %v827
    %v4050 = vunpack.c.l.b16 %v828
    %v4051 = vunpack.c.h.b16 %v828
    %v4052 = vunpack.c.l.b16 %v829
    %v4053 = vunpack.c.h.b16 %v829
    %v4054 = vunpack.c.l.b16 %v830
    %v4055 = vunpack.c.h.b16 %v830
    %v4056 = vunpack.c.l.b16 %v831
    %v4057 = vunpack.c.h.b16 %v831
    %v4058 = vunpack.c.l.b16 %v832
    %v4059 = vunpack.c.h.b16 %v832
    %v4060 = vunpack.c.l.b16 %v833
    %v4061 = vunpack.c.h.b16 %v833
    %v4062 = vunpack.c.l.b16 %v834
    %v4063 = vunpack.c.h.b16 %v834
    %v4064 = vunpack.c.l.b16 %v835
    %v4065 = vunpack.c.h.b16 %v835
    %v4066 = vunpack.c.l.b16 %v836
    %v4067 = vunpack.c.h.b16 %v836
    %v4068 = vunpack.c.l.b16 %v837
    %v4069 = vunpack.c.h.b16 %v837
    %v4070 = vunpack.c.l.b16 %v838
    %v4071 = vunpack.c.h.b16 %v838
    %v4072 = vunpack.c.l.b16 %v839
    %v4073 = vunpack.c.h.b16 %v839
    %v4074 = vunpack.c.l.b16 %v840
    %v4075 = vunpack.c.h.b16 %v840
    %v4076 = vunpack.c.l.b16 %v841
    %v4077 = vunpack.c.h.b16 %v841
    %v4078 = vunpack.c.l.b16 %v842
    %v4079 = vunpack.c.h.b16 %v842
    %v4080 = vunpack.c.l.b16 %v843
    %v4081 = vunpack.c.h.b16 %v843
    %v4082 = vunpack.c.l.b16 %v844
    %v4083 = vunpack.c.h.b16 %v844
    %v4084 = vunpack.c.l.b16 %v845
    %v4085 = vunpack.c.h.b16 %v845
    %v4086 = vunpack.c.l.b16 %v846
    %v4087 = vunpack.c.h.b16 %v846
    %v4088 = vunpack.c.l.b16 %v847
    %v4089 = vunpack.c.h.b16 %v847
    %v4090 = vunpack.c.l.b16 %v848
    %v4091 = vunpack.c.h.b16 %v848
    %v4092 = vunpack.c.l.b16 %v849
    %v4093 = vunpack.c.h.b16 %v849
    %v4094 = vunpack.c.l.b16 %v850
    %v4095 = vunpack.c.h.b16 %v850
    %v4096 = vunpack.c.l.b16 %v851
    %v4097 = vunpack.c.h.b16 %v851
    %v4098 = vunpack.c.l.b16 %v852
    %v4099 = vunpack.c.h.b16 %v852
    %v4100 = vunpack.c.l.b16 %v853
    %v4101 = vunpack.c.h.b16 %v853
    %v4102 = vunpack.c.l.b16 %v854
    %v4103 = vunpack.c.h.b16 %v854
    %v4104 = vunpack.c.l.b16 %v855
    %v4105 = vunpack.c.h.b16 %v855
    %v4106 = vunpack.c.l.b16 %v856
    %v4107 = vunpack.c.h.b16 %v856
    %v4108 = vunpack.c.l.b16 %v857
    %v4109 = vunpack.c.h.b16 %v857
    %v4110 = vunpack.c.l.b16 %v858
    %v4111 = vunpack.c.h.b16 %v858
    %v4112 = vunpack.c.l.b16 %v859
    %v4113 = vunpack.c.h.b16 %v859
    %v4114 = vunpack.c.l.b16 %v860
    %v4115 = vunpack.c.h.b16 %v860
    %v4116 = vunpack.c.l.b16 %v861
    %v4117 = vunpack.c.h.b16 %v861
    %v4118 = vunpack.c.l.b16 %v862
    %v4119 = vunpack.c.h.b16 %v862
    %v4120 = vunpack.c.l.b16 %v863
    %v4121 = vunpack.c.h.b16 %v863
    %v4122 = vunpack.c.l.b16 %v864
    %v4123 = vunpack.c.h.b16 %v864
    %v4124 = vunpack.c.l.b16 %v865
    %v4125 = vunpack.c.h.b16 %v865
    %v4126 = vunpack.c.l.b16 %v866
    %v4127 = vunpack.c.h.b16 %v866
    %v4128 = vunpack.c.l.b16 %v867
    %v4129 = vunpack.c.h.b16 %v867
    %v4130 = vunpack.c.l.b16 %v868
    %v4131 = vunpack.c.h.b16 %v868
    %v4132 = vunpack.c.l.b16 %v869
    %v4133 = vunpack.c.h.b16 %v869
    %v4134 = vunpack.c.l.b16 %v870
    %v4135 = vunpack.c.h.b16 %v870
    %v4136 = vunpack.c.l.b16 %v871
    %v4137 = vunpack.c.h.b16 %v871
    %v4138 = vunpack.c.l.b16 %v872
    %v4139 = vunpack.c.h.b16 %v872
    %v4140 = vunpack.c.l.b16 %v873
    %v4141 = vunpack.c.h.b16 %v873
    %v4142 = vunpack.c.l.b16 %v874
    %v4143 = vunpack.c.h.b16 %v874
    %v4144 = vunpack.c.l.b16 %v875
    %v4145 = vunpack.c.h.b16 %v875
    %v4146 = vunpack.c.l.b16 %v876
    %v4147 = vunpack.c.h.b16 %v876
    %v4148 = vunpack.c.l.b16 %v877
    %v4149 = vunpack.c.h.b16 %v877
    %v4150 = vunpack.c.l.b16 %v878
    %v4151 = vunpack.c.h.b16 %v878
    %v4152 = vunpack.c.l.b16 %v879
    %v4153 = vunpack.c.h.b16 %v879
    %v4154 = vunpack.c.l.b16 %v880
    %v4155 = vunpack.c.h.b16 %v880
    %v4156 = vunpack.c.l.b16 %v881
    %v4157 = vunpack.c.h.b16 %v881
    %v4158 = vunpack.c.l.b16 %v882
    %v4159 = vunpack.c.h.b16 %v882
    %v4160 = vunpack.c.l.b16 %v883
    %v4161 = vunpack.c.h.b16 %v883
    %v4162 = vunpack.c.l.b16 %v884
    %v4163 = vunpack.c.h.b16 %v884
    %v4164 = vunpack.c.l.b16 %v885
    %v4165 = vunpack.c.h.b16 %v885
    %v4166 = vunpack.c.l.b16 %v886
    %v4167 = vunpack.c.h.b16 %v886
    %v4168 = vunpack.c.l.b16 %v887
    %v4169 = vunpack.c.h.b16 %v887
    %v4170 = vunpack.c.l.b16 %v888
    %v4171 = vunpack.c.h.b16 %v888
    %v4172 = vunpack.c.l.b16 %v889
    %v4173 = vunpack.c.h.b16 %v889
    %v4174 = vunpack.c.l.b16 %v890
    %v4175 = vunpack.c.h.b16 %v890
    %v4176 = vunpack.c.l.b16 %v891
    %v4177 = vunpack.c.h.b16 %v891
    %v4178 = vunpack.c.l.b16 %v892
    %v4179 = vunpack.c.h.b16 %v892
    %v4180 = vunpack.c.l.b16 %v893
    %v4181 = vunpack.c.h.b16 %v893
    %v4182 = vunpack.c.l.b16 %v894
    %v4183 = vunpack.c.h.b16 %v894
    %v4184 = vunpack.c.l.b16 %v895
    %v4185 = vunpack.c.h.b16 %v895
    %v4186 = vunpack.c.l.b16 %v896
    %v4187 = vunpack.c.h.b16 %v896
    %v4188 = vunpack.c.l.b16 %v897
    %v4189 = vunpack.c.h.b16 %v897
    %v4190 = vunpack.c.l.b16 %v898
    %v4191 = vunpack.c.h.b16 %v898
    %v4192 = vunpack.c.l.b16 %v899
    %v4193 = vunpack.c.h.b16 %v899
    %v4194 = vunpack.c.l.b16 %v900
    %v4195 = vunpack.c.h.b16 %v900
    %v4196 = vunpack.c.l.b16 %v901
    %v4197 = vunpack.c.h.b16 %v901
    %v4198 = vunpack.c.l.b16 %v902
    %v4199 = vunpack.c.h.b16 %v902
    %v4200 = vunpack.c.l.b16 %v903
    %v4201 = vunpack.c.h.b16 %v903
    %v4202 = vunpack.c.l.b16 %v904
    %v4203 = vunpack.c.h.b16 %v904
    %v4204 = vunpack.c.l.b16 %v905
    %v4205 = vunpack.c.h.b16 %v905
    %v4206 = vunpack.c.l.b16 %v906
    %v4207 = vunpack.c.h.b16 %v906
    %v4208 = vunpack.c.l.b16 %v907
    %v4209 = vunpack.c.h.b16 %v907
    %v4210 = vunpack.c.l.b16 %v908
    %v4211 = vunpack.c.h.b16 %v908
    %v4212 = vunpack.c.l.b16 %v909
    %v4213 = vunpack.c.h.b16 %v909
    %v4214 = vunpack.c.l.b16 %v910
    %v4215 = vunpack.c.h.b16 %v910
    %v4216 = vunpack.c.l.b16 %v911
    %v4217 = vunpack.c.h.b16 %v911
    %v4218 = vunpack.c.l.b16 %v912
    %v4219 = vunpack.c.h.b16 %v912
    %v4220 = vunpack.c.l.b16 %v913
    %v4221 = vunpack.c.h.b16 %v913
    %v4222 = vunpack.c.l.b16 %v914
    %v4223 = vunpack.c.h.b16 %v914
    %v4224 = vunpack.c.l.b16 %v915
    %v4225 = vunpack.c.h.b16 %v915
    %v4226 = vunpack.c.l.b16 %v916
    %v4227 = vunpack.c.h.b16 %v916
    %v4228 = vunpack.c.l.b16 %v917
    %v4229 = vunpack.c.h.b16 %v917
    %v4230 = vunpack.c.l.b16 %v918
    %v4231 = vunpack.c.h.b16 %v918
    %v4232 = vunpack.c.l.b16 %v919
    %v4233 = vunpack.c.h.b16 %v919
    %v4234 = vunpack.c.l.b16 %v920
    %v4235 = vunpack.c.h.b16 %v920
    %v4236 = vunpack.c.l.b16 %v921
    %v4237 = vunpack.c.h.b16 %v921
    %v4238 = vunpack.c.l.b16 %v922
    %v4239 = vunpack.c.h.b16 %v922
    %v4240 = vunpack.c.l.b16 %v923
    %v4241 = vunpack.c.h.b16 %v923
    %v4242 = vunpack.c.l.b16 %v924
    %v4243 = vunpack.c.h.b16 %v924
    %v4244 = vunpack.c.l.b16 %v925
    %v4245 = vunpack.c.h.b16 %v925
    %v4246 = vunpack.c.l.b16 %v926
    %v4247 = vunpack.c.h.b16 %v926
    %v4248 = vunpack.c.l.b16 %v927
    %v4249 = vunpack.c.h.b16 %v927
    %v4250 = vunpack.c.l.b16 %v928
    %v4251 = vunpack.c.h.b16 %v928
    %v4252 = vunpack.c.l.b16 %v929
    %v4253 = vunpack.c.h.b16 %v929
    %v4254 = vunpack.c.l.b16 %v930
    %v4255 = vunpack.c.h.b16 %v930
    %v4256 = vunpack.c.l.b16 %v931
    %v4257 = vunpack.c.h.b16 %v931
    %v4258 = vunpack.c.l.b16 %v932
    %v4259 = vunpack.c.h.b16 %v932
    %v4260 = vunpack.c.l.b16 %v933
    %v4261 = vunpack.c.h.b16 %v933
    %v4262 = vunpack.c.l.b16 %v934
    %v4263 = vunpack.c.h.b16 %v934
    %v4264 = vunpack.c.l.b16 %v935
    %v4265 = vunpack.c.h.b16 %v935
    %v4266 = vunpack.c.l.b16 %v936
    %v4267 = vunpack.c.h.b16 %v936
    %v4268 = vunpack.c.l.b16 %v937
    %v4269 = vunpack.c.h.b16 %v937
    %v4270 = vunpack.c.l.b16 %v938
    %v4271 = vunpack.c.h.b16 %v938
    %v4272 = vunpack.c.l.b16 %v939
    %v4273 = vunpack.c.h.b16 %v939
    %v4274 = vunpack.c.l.b16 %v940
    %v4275 = vunpack.c.h.b16 %v940
    %v4276 = vunpack.c.l.b16 %v941
    %v4277 = vunpack.c.h.b16 %v941
    %v4278 = vunpack.c.l.b16 %v942
    %v4279 = vunpack.c.h.b16 %v942
    %v4280 = vunpack.c.l.b16 %v943
    %v4281 = vunpack.c.h.b16 %v943
    %v4282 = vunpack.c.l.b16 %v944
    %v4283 = vunpack.c.h.b16 %v944
    %v4284 = vunpack.c.l.b16 %v945
    %v4285 = vunpack.c.h.b16 %v945
    %v4286 = vunpack.c.l.b16 %v946
    %v4287 = vunpack.c.h.b16 %v946
    %v4288 = vunpack.c.l.b16 %v947
    %v4289 = vunpack.c.h.b16 %v947
    %v4290 = vunpack.c.l.b16 %v948
    %v4291 = vunpack.c.h.b16 %v948
    %v4292 = vunpack.c.l.b16 %v949
    %v4293 = vunpack.c.h.b16 %v949
    %v4294 = vunpack.c.l.b16 %v950
    %v4295 = vunpack.c.h.b16 %v950
    %v4296 = vunpack.c.l.b16 %v951
    %v4297 = vunpack.c.h.b16 %v951
    %v4298 = vunpack.c.l.b16 %v952
    %v4299 = vunpack.c.h.b16 %v952
    %v4300 = vunpack.c.l.b16 %v953
    %v4301 = vunpack.c.h.b16 %v953
    %v4302 = vunpack.c.l.b16 %v954
    %v4303 = vunpack.c.h.b16 %v954
    %v4304 = vunpack.c.l.b16 %v955
    %v4305 = vunpack.c.h.b16 %v955
    %v4306 = vunpack.c.l.b16 %v956
    %v4307 = vunpack.c.h.b16 %v956
    %v4308 = vunpack.c.l.b16 %v957
    %v4309 = vunpack.c.h.b16 %v957
    %v4310 = vunpack.c.l.b16 %v958
    %v4311 = vunpack.c.h.b16 %v958
    %v4312 = vunpack.c.l.b16 %v959
    %v4313 = vunpack.c.h.b16 %v959
    %v4314 = vunpack.c.l.b16 %v960
    %v4315 = vunpack.c.h.b16 %v960
    %v4316 = vunpack.c.l.b16 %v961
    %v4317 = vunpack.c.h.b16 %v961
    %v4318 = vunpack.c.l.b16 %v962
    %v4319 = vunpack.c.h.b16 %v962
    %v4320 = vunpack.c.l.b16 %v963
    %v4321 = vunpack.c.h.b16 %v963
    %v4322 = vunpack.c.l.b16 %v964
    %v4323 = vunpack.c.h.b16 %v964
    %v4324 = vunpack.c.l.b16 %v965
    %v4325 = vunpack.c.h.b16 %v965
    %v4326 = vunpack.c.l.b16 %v966
    %v4327 = vunpack.c.h.b16 %v966
    %v4328 = vunpack.c.l.b16 %v967
    %v4329 = vunpack.c.h.b16 %v967
    %v4330 = vunpack.c.l.b16 %v968
    %v4331 = vunpack.c.h.b16 %v968
    %v4332 = vunpack.c.l.b16 %v969
    %v4333 = vunpack.c.h.b16 %v969
    %v4334 = vunpack.c.l.b16 %v970
    %v4335 = vunpack.c.h.b16 %v970
    %v4336 = vunpack.c.l.b16 %v971
    %v4337 = vunpack.c.h.b16 %v971
    %v4338 = vunpack.c.l.b16 %v972
    %v4339 = vunpack.c.h.b16 %v972
    %v4340 = vunpack.c.l.b16 %v973
    %v4341 = vunpack.c.h.b16 %v973
    %v4342 = vunpack.c.l.b16 %v974
    %v4343 = vunpack.c.h.b16 %v974
    %v4344 = vunpack.c.l.b16 %v975
    %v4345 = vunpack.c.h.b16 %v975
    %v4346 = vunpack.c.l.b16 %v976
    %v4347 = vunpack.c.h.b16 %v976
    %v4348 = vunpack.c.l.b16 %v977
    %v4349 = vunpack.c.h.b16 %v977
    %v4350 = vunpack.c.l.b16 %v978
    %v4351 = vunpack.c.h.b16 %v978
    %v4352 = vunpack.c.l.b16 %v979
    %v4353 = vunpack.c.h.b16 %v979
    %v4354 = vunpack.c.l.b16 %v980
    %v4355 = vunpack.c.h.b16 %v980
    %v4356 = vunpack.c.l.b16 %v981
    %v4357 = vunpack.c.h.b16 %v981
    %v4358 = vunpack.c.l.b16 %v982
    %v4359 = vunpack.c.h.b16 %v982
    %v4360 = vunpack.c.l.b16 %v983
    %v4361 = vunpack.c.h.b16 %v983
    %v4362 = vunpack.c.l.b16 %v984
    %v4363 = vunpack.c.h.b16 %v984
    %v4364 = vunpack.c.l.b16 %v985
    %v4365 = vunpack.c.h.b16 %v985
    %v4366 = vunpack.c.l.b16 %v986
    %v4367 = vunpack.c.h.b16 %v986
    %v4368 = vunpack.c.l.b16 %v987
    %v4369 = vunpack.c.h.b16 %v987
    %v4370 = vunpack.c.l.b16 %v988
    %v4371 = vunpack.c.h.b16 %v988
    %v4372 = vunpack.c.l.b16 %v989
    %v4373 = vunpack.c.h.b16 %v989
    %v4374 = vunpack.c.l.b16 %v990
    %v4375 = vunpack.c.h.b16 %v990
    %v4376 = vunpack.c.l.b16 %v991
    %v4377 = vunpack.c.h.b16 %v991
    %v4378 = vunpack.c.l.b16 %v992
    %v4379 = vunpack.c.h.b16 %v992
    %v4380 = vunpack.c.l.b16 %v993
    %v4381 = vunpack.c.h.b16 %v993
    %v4382 = vunpack.c.l.b16 %v994
    %v4383 = vunpack.c.h.b16 %v994
    %v4384 = vunpack.c.l.b16 %v995
    %v4385 = vunpack.c.h.b16 %v995
    %v4386 = vunpack.c.l.b16 %v996
    %v4387 = vunpack.c.h.b16 %v996
    %v4388 = vunpack.c.l.b16 %v997
    %v4389 = vunpack.c.h.b16 %v997
    %v4390 = vunpack.c.l.b16 %v998
    %v4391 = vunpack.c.h.b16 %v998
    %v4392 = vunpack.c.l.b16 %v999
    %v4393 = vunpack.c.h.b16 %v999
    %v4394 = vunpack.c.l.b16 %v1000
    %v4395 = vunpack.c.h.b16 %v1000
    %v4396 = vunpack.c.l.b16 %v1001
    %v4397 = vunpack.c.h.b16 %v1001
    %v4398 = vunpack.c.l.b16 %v1002
    %v4399 = vunpack.c.h.b16 %v1002
    %v4400 = vunpack.c.l.b16 %v1003
    %v4401 = vunpack.c.h.b16 %v1003
    %v4402 = vunpack.c.l.b16 %v1004
    %v4403 = vunpack.c.h.b16 %v1004
    %v4404 = vunpack.c.l.b16 %v1005
    %v4405 = vunpack.c.h.b16 %v1005
    %v4406 = vunpack.c.l.b16 %v1006
    %v4407 = vunpack.c.h.b16 %v1006
    %v4408 = vunpack.c.l.b16 %v1007
    %v4409 = vunpack.c.h.b16 %v1007
    %v4410 = vunpack.c.l.b16 %v1008
    %v4411 = vunpack.c.h.b16 %v1008
    %v4412 = vunpack.c.l.b16 %v1009
    %v4413 = vunpack.c.h.b16 %v1009
    %v4414 = vunpack.c.l.b16 %v1010
    %v4415 = vunpack.c.h.b16 %v1010
    %v4416 = vunpack.c.l.b16 %v1011
    %v4417 = vunpack.c.h.b16 %v1011
    %v4418 = vunpack.c.l.b16 %v1012
    %v4419 = vunpack.c.h.b16 %v1012
    %v4420 = vunpack.c.l.b16 %v1013
    %v4421 = vunpack.c.h.b16 %v1013
    %v4422 = vunpack.c.l.b16 %v1014
    %v4423 = vunpack.c.h.b16 %v1014
    %v4424 = vunpack.c.l.b16 %v1015
    %v4425 = vunpack.c.h.b16 %v1015
    %v4426 = vunpack.c.l.b16 %v1016
    %v4427 = vunpack.c.h.b16 %v1016
    %v4428 = vunpack.c.l.b16 %v1017
    %v4429 = vunpack.c.h.b16 %v1017
    %v4430 = vunpack.c.l.b16 %v1018
    %v4431 = vunpack.c.h.b16 %v1018
    %v4432 = vunpack.c.l.b16 %v1019
    %v4433 = vunpack.c.h.b16 %v1019
    %v4434 = vunpack.c.l.b16 %v1020
    %v4435 = vunpack.c.h.b16 %v1020
    %v4436 = vunpack.c.l.b16 %v1021
    %v4437 = vunpack.c.h.b16 %v1021
    %v4438 = vunpack.c.l.b16 %v1022
    %v4439 = vunpack.c.h.b16 %v1022
    %v4440 = vunpack.c.l.b16 %v1023
    %v4441 = vunpack.c.h.b16 %v1023
    %v4442 = vunpack.c.l.b16 %v1024
    %v4443 = vunpack.c.h.b16 %v1024
    %v4444 = vunpack.c.l.b16 %v1025
    %v4445 = vunpack.c.h.b16 %v1025
    %v4446 = vunpack.c.l.b16 %v1026
    %v4447 = vunpack.c.h.b16 %v1026
    %v4448 = vunpack.c.l.b16 %v1027
    %v4449 = vunpack.c.h.b16 %v1027
    %v4450 = vunpack.c.l.b16 %v1028
    %v4451 = vunpack.c.h.b16 %v1028
    %v4452 = vunpack.c.l.b16 %v1029
    %v4453 = vunpack.c.h.b16 %v1029
    %v4454 = vunpack.c.l.b16 %v1030
    %v4455 = vunpack.c.h.b16 %v1030
    %v4456 = vunpack.c.l.b16 %v1031
    %v4457 = vunpack.c.h.b16 %v1031
    %v4458 = vunpack.c.l.b16 %v1032
    %v4459 = vunpack.c.h.b16 %v1032
    %v4460 = vunpack.c.l.b16 %v1033
    %v4461 = vunpack.c.h.b16 %v1033
    %v4462 = vunpack.c.l.b16 %v1034
    %v4463 = vunpack.c.h.b16 %v1034
    %v4464 = vunpack.c.l.b16 %v1035
    %v4465 = vunpack.c.h.b16 %v1035
    %v4466 = vunpack.c.l.b16 %v1036
    %v4467 = vunpack.c.h.b16 %v1036
    %v4468 = vunpack.c.l.b16 %v1037
    %v4469 = vunpack.c.h.b16 %v1037
    %v4470 = vunpack.c.l.b16 %v1038
    %v4471 = vunpack.c.h.b16 %v1038
    %v4472 = vunpack.c.l.b16 %v1039
    %v4473 = vunpack.c.h.b16 %v1039
    %v4474 = vunpack.c.l.b16 %v1040
    %v4475 = vunpack.c.h.b16 %v1040
    %v4476 = vunpack.c.l.b16 %v1041
    %v4477 = vunpack.c.h.b16 %v1041
    %v4478 = vunpack.c.l.b16 %v1042
    %v4479 = vunpack.c.h.b16 %v1042
    %v4480 = vunpack.c.l.b16 %v1043
    %v4481 = vunpack.c.h.b16 %v1043
    %v4482 = vunpack.c.l.b16 %v1044
    %v4483 = vunpack.c.h.b16 %v1044
    %v4484 = vunpack.c.l.b16 %v1045
    %v4485 = vunpack.c.h.b16 %v1045
    %v4486 = vunpack.c.l.b16 %v1046
    %v4487 = vunpack.c.h.b16 %v1046
    %v4488 = vunpack.c.l.b16 %v1047
    %v4489 = vunpack.c.h.b16 %v1047
    %v4490 = vunpack.c.l.b16 %v1048
    %v4491 = vunpack.c.h.b16 %v1048
    %v4492 = vunpack.c.l.b16 %v1049
    %v4493 = vunpack.c.h.b16 %v1049
    %v4494 = vunpack.c.l.b16 %v1050
    %v4495 = vunpack.c.h.b16 %v1050
    %v4496 = vunpack.c.l.b16 %v1051
    %v4497 = vunpack.c.h.b16 %v1051
    %v4498 = vunpack.c.l.b16 %v1052
    %v4499 = vunpack.c.h.b16 %v1052
    %v4500 = vunpack.c.l.b16 %v1053
    %v4501 = vunpack.c.h.b16 %v1053
    %v4502 = vunpack.c.l.b16 %v1054
    %v4503 = vunpack.c.h.b16 %v1054
    %v4504 = vunpack.c.l.b16 %v1055
    %v4505 = vunpack.c.h.b16 %v1055
    %v4506 = vunpack.c.l.b16 %v1056
    %v4507 = vunpack.c.h.b16 %v1056
    %v4508 = vunpack.c.l.b16 %v1057
    %v4509 = vunpack.c.h.b16 %v1057
    %v4510 = vunpack.c.l.b16 %v1058
    %v4511 = vunpack.c.h.b16 %v1058
    %v4512 = vunpack.c.l.b16 %v1059
    %v4513 = vunpack.c.h.b16 %v1059
    %v4514 = vunpack.c.l.b16 %v1060
    %v4515 = vunpack.c.h.b16 %v1060
    %v4516 = vunpack.c.l.b16 %v1061
    %v4517 = vunpack.c.h.b16 %v1061
    %v4518 = vunpack.c.l.b16 %v1062
    %v4519 = vunpack.c.h.b16 %v1062
    %v4520 = vunpack.c.l.b16 %v1063
    %v4521 = vunpack.c.h.b16 %v1063
    %v4522 = vunpack.c.l.b16 %v1064
    %v4523 = vunpack.c.h.b16 %v1064
    %v4524 = vunpack.c.l.b16 %v1065
    %v4525 = vunpack.c.h.b16 %v1065
    %v4526 = vunpack.c.l.b16 %v1066
    %v4527 = vunpack.c.h.b16 %v1066
    %v4528 = vunpack.c.l.b16 %v1067
    %v4529 = vunpack.c.h.b16 %v1067
    %v4530 = vunpack.c.l.b16 %v1068
    %v4531 = vunpack.c.h.b16 %v1068
    %v4532 = vunpack.c.l.b16 %v1069
    %v4533 = vunpack.c.h.b16 %v1069
    %v4534 = vunpack.c.l.b16 %v1070
    %v4535 = vunpack.c.h.b16 %v1070
    %v4536 = vunpack.c.l.b16 %v1071
    %v4537 = vunpack.c.h.b16 %v1071
    %v4538 = vunpack.c.l.b16 %v1072
    %v4539 = vunpack.c.h.b16 %v1072
    %v4540 = vunpack.c.l.b16 %v1073
    %v4541 = vunpack.c.h.b16 %v1073
    %v4542 = vunpack.c.l.b16 %v1074
    %v4543 = vunpack.c.h.b16 %v1074
    %v4544 = vunpack.c.l.b16 %v1075
    %v4545 = vunpack.c.h.b16 %v1075
    %v4546 = vunpack.c.l.b16 %v1076
    %v4547 = vunpack.c.h.b16 %v1076
    %v4548 = vunpack.c.l.b16 %v1077
    %v4549 = vunpack.c.h.b16 %v1077
    %v4550 = vunpack.c.l.b16 %v1078
    %v4551 = vunpack.c.h.b16 %v1078
    %v4552 = vunpack.c.l.b16 %v1079
    %v4553 = vunpack.c.h.b16 %v1079
    %v4554 = vunpack.c.l.b16 %v1080
    %v4555 = vunpack.c.h.b16 %v1080
    %v4556 = vunpack.c.l.b16 %v1081
    %v4557 = vunpack.c.h.b16 %v1081
    %v4558 = vunpack.c.l.b16 %v1082
    %v4559 = vunpack.c.h.b16 %v1082
    %v4560 = vunpack.c.l.b16 %v1083
    %v4561 = vunpack.c.h.b16 %v1083
    %v4562 = vunpack.c.l.b16 %v1084
    %v4563 = vunpack.c.h.b16 %v1084
    %v4564 = vunpack.c.l.b16 %v1085
    %v4565 = vunpack.c.h.b16 %v1085
    %v4566 = vunpack.c.l.b16 %v1086
    %v4567 = vunpack.c.h.b16 %v1086
    %v4568 = vunpack.c.l.b16 %v1087
    %v4569 = vunpack.c.h.b16 %v1087
    %v4570 = vunpack.c.l.b16 %v1088
    %v4571 = vunpack.c.h.b16 %v1088
    %v4572 = vunpack.c.l.b16 %v1089
    %v4573 = vunpack.c.h.b16 %v1089
    %v4574 = vunpack.c.l.b16 %v1090
    %v4575 = vunpack.c.h.b16 %v1090
    %v4576 = vunpack.c.l.b16 %v1091
    %v4577 = vunpack.c.h.b16 %v1091
    %v4578 = vunpack.c.l.b16 %v1092
    %v4579 = vunpack.c.h.b16 %v1092
    %v4580 = vunpack.c.l.b16 %v1093
    %v4581 = vunpack.c.h.b16 %v1093
    %v4582 = vunpack.c.l.b16 %v1094
    %v4583 = vunpack.c.h.b16 %v1094
    %v4584 = vunpack.c.l.b16 %v1095
    %v4585 = vunpack.c.h.b16 %v1095
    %v4586 = vunpack.c.l.b16 %v1096
    %v4587 = vunpack.c.h.b16 %v1096
    %v4588 = vunpack.c.l.b16 %v1097
    %v4589 = vunpack.c.h.b16 %v1097
    %v4590 = vunpack.c.l.b16 %v1098
    %v4591 = vunpack.c.h.b16 %v1098
    %v4592 = vunpack.c.l.b16 %v1099
    %v4593 = vunpack.c.h.b16 %v1099
    %v4594 = vunpack.c.l.b16 %v1100
    %v4595 = vunpack.c.h.b16 %v1100
    %v4596 = vunpack.c.l.b16 %v1101
    %v4597 = vunpack.c.h.b16 %v1101
    %v4598 = vunpack.c.l.b16 %v1102
    %v4599 = vunpack.c.h.b16 %v1102
    %v4600 = vunpack.c.l.b16 %v1103
    %v4601 = vunpack.c.h.b16 %v1103
    %v4602 = vunpack.c.l.b16 %v1104
    %v4603 = vunpack.c.h.b16 %v1104
    %v4604 = vunpack.c.l.b16 %v1105
    %v4605 = vunpack.c.h.b16 %v1105
    %v4606 = vunpack.c.l.b16 %v1106
    %v4607 = vunpack.c.h.b16 %v1106
    %v4608 = vunpack.c.l.b16 %v1107
    %v4609 = vunpack.c.h.b16 %v1107
    %v4610 = vunpack.c.l.b16 %v1108
    %v4611 = vunpack.c.h.b16 %v1108
    %v4612 = vunpack.c.l.b16 %v1109
    %v4613 = vunpack.c.h.b16 %v1109
    %v4614 = vunpack.c.l.b16 %v1110
    %v4615 = vunpack.c.h.b16 %v1110
    %v4616 = vunpack.c.l.b16 %v1111
    %v4617 = vunpack.c.h.b16 %v1111
    %v4618 = vunpack.c.l.b16 %v1112
    %v4619 = vunpack.c.h.b16 %v1112
    %v4620 = vunpack.c.l.b16 %v1113
    %v4621 = vunpack.c.h.b16 %v1113
    %v4622 = vunpack.c.l.b16 %v1114
    %v4623 = vunpack.c.h.b16 %v1114
    %v4624 = vunpack.c.l.b16 %v1115
    %v4625 = vunpack.c.h.b16 %v1115
    %v4626 = vunpack.c.l.b16 %v1116
    %v4627 = vunpack.c.h.b16 %v1116
    %v4628 = vunpack.c.l.b16 %v1117
    %v4629 = vunpack.c.h.b16 %v1117
    %v4630 = vunpack.c.l.b16 %v1118
    %v4631 = vunpack.c.h.b16 %v1118
    %v4632 = vunpack.c.l.b16 %v1119
    %v4633 = vunpack.c.h.b16 %v1119
    %v4634 = vunpack.c.l.b16 %v1120
    %v4635 = vunpack.c.h.b16 %v1120
    %v4636 = vunpack.c.l.b16 %v1121
    %v4637 = vunpack.c.h.b16 %v1121
    %v4638 = vunpack.c.l.b16 %v1122
    %v4639 = vunpack.c.h.b16 %v1122
    %v4640 = vunpack.c.l.b16 %v1123
    %v4641 = vunpack.c.h.b16 %v1123
    %v4642 = vunpack.c.l.b16 %v1124
    %v4643 = vunpack.c.h.b16 %v1124
    %v4644 = vunpack.c.l.b16 %v1125
    %v4645 = vunpack.c.h.b16 %v1125
    %v4646 = vunpack.c.l.b16 %v1126
    %v4647 = vunpack.c.h.b16 %v1126
    %v4648 = vunpack.c.l.b16 %v1127
    %v4649 = vunpack.c.h.b16 %v1127
    %v4650 = vunpack.c.l.b16 %v1128
    %v4651 = vunpack.c.h.b16 %v1128
    %v4652 = vunpack.c.l.b16 %v1129
    %v4653 = vunpack.c.h.b16 %v1129
    %v4654 = vunpack.c.l.b16 %v1130
    %v4655 = vunpack.c.h.b16 %v1130
    %v4656 = vunpack.c.l.b16 %v1131
    %v4657 = vunpack.c.h.b16 %v1131
    %v4658 = vunpack.c.l.b16 %v1132
    %v4659 = vunpack.c.h.b16 %v1132
    %v4660 = vunpack.c.l.b16 %v1133
    %v4661 = vunpack.c.h.b16 %v1133
    %v4662 = vunpack.c.l.b16 %v1134
    %v4663 = vunpack.c.h.b16 %v1134
    %v4664 = vunpack.c.l.b16 %v1135
    %v4665 = vunpack.c.h.b16 %v1135
    %v4666 = vunpack.c.l.b16 %v1136
    %v4667 = vunpack.c.h.b16 %v1136
    %v4668 = vunpack.c.l.b16 %v1137
    %v4669 = vunpack.c.h.b16 %v1137
    %v4670 = vunpack.c.l.b16 %v1138
    %v4671 = vunpack.c.h.b16 %v1138
    %v4672 = vunpack.c.l.b16 %v1139
    %v4673 = vunpack.c.h.b16 %v1139
    %v4674 = vunpack.c.l.b16 %v1140
    %v4675 = vunpack.c.h.b16 %v1140
    %v4676 = vunpack.c.l.b16 %v1141
    %v4677 = vunpack.c.h.b16 %v1141
    %v4678 = vunpack.c.l.b16 %v1142
    %v4679 = vunpack.c.h.b16 %v1142
    %v4680 = vunpack.c.l.b16 %v1143
    %v4681 = vunpack.c.h.b16 %v1143
    %v4682 = vunpack.c.l.b16 %v1144
    %v4683 = vunpack.c.h.b16 %v1144
    %v4684 = vunpack.c.l.b16 %v1145
    %v4685 = vunpack.c.h.b16 %v1145
    %v4686 = vunpack.c.l.b16 %v1146
    %v4687 = vunpack.c.h.b16 %v1146
    %v4688 = vunpack.c.l.b16 %v1147
    %v4689 = vunpack.c.h.b16 %v1147
    %v4690 = vunpack.c.l.b16 %v1148
    %v4691 = vunpack.c.h.b16 %v1148
    %v4692 = vunpack.c.l.b16 %v1149
    %v4693 = vunpack.c.h.b16 %v1149
    %v4694 = vunpack.c.l.b16 %v1150
    %v4695 = vunpack.c.h.b16 %v1150
    %v4696 = vunpack.c.l.b16 %v1151
    %v4697 = vunpack.c.h.b16 %v1151
    %v4698 = vunpack.c.l.b16 %v1152
    %v4699 = vunpack.c.h.b16 %v1152
    %v4700 = vunpack.c.l.b16 %v1153
    %v4701 = vunpack.c.h.b16 %v1153
    %v4702 = vunpack.c.l.b16 %v1154
    %v4703 = vunpack.c.h.b16 %v1154
    %v4704 = vunpack.c.l.b16 %v1155
    %v4705 = vunpack.c.h.b16 %v1155
    %v4706 = vunpack.c.l.b16 %v1156
    %v4707 = vunpack.c.h.b16 %v1156
    %v4708 = vunpack.c.l.b16 %v1157
    %v4709 = vunpack.c.h.b16 %v1157
    %v4710 = vunpack.c.l.b16 %v1158
    %v4711 = vunpack.c.h.b16 %v1158
    %v4712 = vunpack.c.l.b16 %v1159
    %v4713 = vunpack.c.h.b16 %v1159
    %v4714 = vunpack.c.l.b16 %v1160
    %v4715 = vunpack.c.h.b16 %v1160
    %v4716 = vunpack.c.l.b16 %v1161
    %v4717 = vunpack.c.h.b16 %v1161
    %v4718 = vunpack.c.l.b16 %v1162
    %v4719 = vunpack.c.h.b16 %v1162
    %v4720 = vunpack.c.l.b16 %v1163
    %v4721 = vunpack.c.h.b16 %v1163
    %v4722 = vunpack.c.l.b16 %v1164
    %v4723 = vunpack.c.h.b16 %v1164
    %v4724 = vunpack.c.l.b16 %v1165
    %v4725 = vunpack.c.h.b16 %v1165
    %v4726 = vunpack.c.l.b16 %v1166
    %v4727 = vunpack.c.h.b16 %v1166
    %v4728 = vunpack.c.l.b16 %v1167
    %v4729 = vunpack.c.h.b16 %v1167
    %v4730 = vunpack.c.l.b16 %v1168
    %v4731 = vunpack.c.h.b16 %v1168
    %v4732 = vunpack.c.l.b16 %v1169
    %v4733 = vunpack.c.h.b16 %v1169
    %v4734 = vunpack.c.l.b16 %v1170
    %v4735 = vunpack.c.h.b16 %v1170
    %v4736 = vunpack.c.l.b16 %v1171
    %v4737 = vunpack.c.h.b16 %v1171
    %v4738 = vunpack.c.l.b16 %v1172
    %v4739 = vunpack.c.h.b16 %v1172
    %v4740 = vunpack.c.l.b16 %v1173
    %v4741 = vunpack.c.h.b16 %v1173
    %v4742 = vunpack.c.l.b16 %v1174
    %v4743 = vunpack.c.h.b16 %v1174
    %v4744 = vunpack.c.l.b16 %v1175
    %v4745 = vunpack.c.h.b16 %v1175
    %v4746 = vunpack.c.l.b16 %v1176
    %v4747 = vunpack.c.h.b16 %v1176
    %v4748 = vunpack.c.l.b16 %v1177
    %v4749 = vunpack.c.h.b16 %v1177
    %v4750 = vunpack.c.l.b16 %v1178
    %v4751 = vunpack.c.h.b16 %v1178
    %v4752 = vunpack.c.l.b16 %v1179
    %v4753 = vunpack.c.h.b16 %v1179
    %v4754 = vunpack.c.l.b16 %v1180
    %v4755 = vunpack.c.h.b16 %v1180
    %v4756 = vunpack.c.l.b16 %v1181
    %v4757 = vunpack.c.h.b16 %v1181
    %v4758 = vunpack.c.l.b16 %v1182
    %v4759 = vunpack.c.h.b16 %v1182
    %v4760 = vunpack.c.l.b16 %v1183
    %v4761 = vunpack.c.h.b16 %v1183
    %v4762 = vunpack.c.l.b16 %v1184
    %v4763 = vunpack.c.h.b16 %v1184
    %v4764 = vunpack.c.l.b16 %v1185
    %v4765 = vunpack.c.h.b16 %v1185
    %v4766 = vunpack.c.l.b16 %v1186
    %v4767 = vunpack.c.h.b16 %v1186
    %v4768 = vunpack.c.l.b16 %v1187
    %v4769 = vunpack.c.h.b16 %v1187
    %v4770 = vunpack.c.l.b16 %v1188
    %v4771 = vunpack.c.h.b16 %v1188
    %v4772 = vunpack.c.l.b16 %v1189
    %v4773 = vunpack.c.h.b16 %v1189
    %v4774 = vunpack.c.l.b16 %v1190
    %v4775 = vunpack.c.h.b16 %v1190
    %v4776 = vunpack.c.l.b16 %v1191
    %v4777 = vunpack.c.h.b16 %v1191
    %v4778 = vunpack.c.l.b16 %v1192
    %v4779 = vunpack.c.h.b16 %v1192
    %v4780 = vunpack.c.l.b16 %v1193
    %v4781 = vunpack.c.h.b16 %v1193
    %v4782 = vunpack.c.l.b16 %v1194
    %v4783 = vunpack.c.h.b16 %v1194
    %v4784 = vunpack.c.l.b16 %v1195
    %v4785 = vunpack.c.h.b16 %v1195
    %v4786 = vunpack.c.l.b16 %v1196
    %v4787 = vunpack.c.h.b16 %v1196
    %v4788 = vunpack.c.l.b16 %v1197
    %v4789 = vunpack.c.h.b16 %v1197
    %v4790 = vunpack.c.l.b16 %v1198
    %v4791 = vunpack.c.h.b16 %v1198
    %v4792 = vunpack.c.l.b16 %v1199
    %v4793 = vunpack.c.h.b16 %v1199
    %v4794 = vunpack.c.l.b16 %v1200
    %v4795 = vunpack.c.h.b16 %v1200
    %v4796 = vunpack.c.l.b16 %v1201
    %v4797 = vunpack.c.h.b16 %v1201
    %v4798 = vunpack.c.l.b16 %v1202
    %v4799 = vunpack.c.h.b16 %v1202
    %v4800 = vunpack.c.l.b16 %v1203
    %v4801 = vunpack.c.h.b16 %v1203
    %v4802 = vunpack.c.l.b16 %v1204
    %v4803 = vunpack.c.h.b16 %v1204
    %v4804 = vunpack.c.l.b16 %v1205
    %v4805 = vunpack.c.h.b16 %v1205
    %v4806 = vunpack.c.l.b16 %v1206
    %v4807 = vunpack.c.h.b16 %v1206
    %v4808 = vunpack.c.l.b16 %v1207
    %v4809 = vunpack.c.h.b16 %v1207
    %v4810 = vunpack.c.l.b16 %v1208
    %v4811 = vunpack.c.h.b16 %v1208
    %v4812 = vunpack.c.l.b16 %v1209
    %v4813 = vunpack.c.h.b16 %v1209
    %v4814 = vunpack.c.l.b16 %v1210
    %v4815 = vunpack.c.h.b16 %v1210
    %v4816 = vunpack.c.l.b16 %v1211
    %v4817 = vunpack.c.h.b16 %v1211
    %v4818 = vunpack.c.l.b16 %v1212
    %v4819 = vunpack.c.h.b16 %v1212
    %v4820 = vunpack.c.l.b16 %v1213
    %v4821 = vunpack.c.h.b16 %v1213
    %v4822 = vunpack.c.l.b16 %v1214
    %v4823 = vunpack.c.h.b16 %v1214
    %v4824 = vunpack.c.l.b16 %v1215
    %v4825 = vunpack.c.h.b16 %v1215
    %v4826 = vunpack.c.l.b16 %v1216
    %v4827 = vunpack.c.h.b16 %v1216
    %v4828 = vunpack.c.l.b16 %v1217
    %v4829 = vunpack.c.h.b16 %v1217
    %v4830 = vunpack.c.l.b16 %v1218
    %v4831 = vunpack.c.h.b16 %v1218
    %v4832 = vunpack.c.l.b16 %v1219
    %v4833 = vunpack.c.h.b16 %v1219
    %v4834 = vunpack.c.l.b16 %v1220
    %v4835 = vunpack.c.h.b16 %v1220
    %v4836 = vunpack.c.l.b16 %v1221
    %v4837 = vunpack.c.h.b16 %v1221
    %v4838 = vunpack.c.l.b16 %v1222
    %v4839 = vunpack.c.h.b16 %v1222
    %v4840 = vunpack.c.l.b16 %v1223
    %v4841 = vunpack.c.h.b16 %v1223
    %v4842 = vunpack.c.l.b16 %v1224
    %v4843 = vunpack.c.h.b16 %v1224
    %v4844 = vunpack.c.l.b16 %v1225
    %v4845 = vunpack.c.h.b16 %v1225
    %v4846 = vunpack.c.l.b16 %v1226
    %v4847 = vunpack.c.h.b16 %v1226
    %v4848 = vunpack.c.l.b16 %v1227
    %v4849 = vunpack.c.h.b16 %v1227
    %v4850 = vunpack.c.l.b16 %v1228
    %v4851 = vunpack.c.h.b16 %v1228
    %v4852 = vunpack.c.l.b16 %v1229
    %v4853 = vunpack.c.h.b16 %v1229
    %v4854 = vunpack.c.l.b16 %v1230
    %v4855 = vunpack.c.h.b16 %v1230
    %v4856 = vunpack.c.l.b16 %v1231
    %v4857 = vunpack.c.h.b16 %v1231
    %v4858 = vunpack.c.l.b16 %v1232
    %v4859 = vunpack.c.h.b16 %v1232
    %v4860 = vunpack.c.l.b16 %v1233
    %v4861 = vunpack.c.h.b16 %v1233
    %v4862 = vunpack.c.l.b16 %v1234
    %v4863 = vunpack.c.h.b16 %v1234
    %v4864 = vunpack.c.l.b16 %v1235
    %v4865 = vunpack.c.h.b16 %v1235
    %v4866 = vunpack.c.l.b16 %v1236
    %v4867 = vunpack.c.h.b16 %v1236
    %v4868 = vunpack.c.l.b16 %v1237
    %v4869 = vunpack.c.h.b16 %v1237
    %v4870 = vunpack.c.l.b16 %v1238
    %v4871 = vunpack.c.h.b16 %v1238
    %v4872 = vunpack.c.l.b16 %v1239
    %v4873 = vunpack.c.h.b16 %v1239
    %v4874 = vunpack.c.l.b16 %v1240
    %v4875 = vunpack.c.h.b16 %v1240
    %v4876 = vunpack.c.l.b16 %v1241
    %v4877 = vunpack.c.h.b16 %v1241
    %v4878 = vpack.c.b16 %v2582, %v2574
    %v4879 = vpack.c.b16 %v2583, %v2575
    %v4880 = vpack.c.b16 %v2584, %v2576
    %v4881 = vpack.c.b16 %v2585, %v2577
    %v4882 = vpack.c.b16 %v2586, %v2578
    %v4883 = vpack.c.b16 %v2587, %v2579
    %v4884 = vpack.c.b16 %v2588, %v2580
    %v4885 = vpack.c.b16 %v2589, %v2581
    %v4886 = vpack.c.b16 %v2598, %v2590
    %v4887 = vpack.c.b16 %v2599, %v2591
    %v4888 = vpack.c.b16 %v2600, %v2592
    %v4889 = vpack.c.b16 %v2601, %v2593
    %v4890 = vpack.c.b16 %v2602, %v2594
    %v4891 = vpack.c.b16 %v2603, %v2595
    %v4892 = vpack.c.b16 %v2604, %v2596
    %v4893 = vpack.c.b16 %v2605, %v2597
    %v4894 = vpack.c.b16 %v2614, %v2606
    %v4895 = vpack.c.b16 %v2615, %v2607
    %v4896 = vpack.c.b16 %v2616, %v2608
    %v4897 = vpack.c.b16 %v2617, %v2609
    %v4898 = vpack.c.b16 %v2618, %v2610
    %v4899 = vpack.c.b16 %v2619, %v2611
    %v4900 = vpack.c.b16 %v2620, %v2612
    %v4901 = vpack.c.b16 %v2621, %v2613
    %v4902 = vpack.c.b16 %v2630, %v2622
    %v4903 = vpack.c.b16 %v2631, %v2623
    %v4904 = vpack.c.b16 %v2632, %v2624
    %v4905 = vpack.c.b16 %v2633, %v2625
    %v4906 = vpack.c.b16 %v2634, %v2626
    %v4907 = vpack.c.b16 %v2635, %v2627
    %v4908 = vpack.c.b16 %v2636, %v2628
    %v4909 = vpack.c.b16 %v2637, %v2629
    %v4910 = vpack.c.b16 %v2646, %v2638
    %v4911 = vpack.c.b16 %v2647, %v2639
    %v4912 = vpack.c.b16 %v2648, %v2640
    %v4913 = vpack.c.b16 %v2649, %v2641
    %v4914 = vpack.c.b16 %v2650, %v2642
    %v4915 = vpack.c.b16 %v2651, %v2643
    %v4916 = vpack.c.b16 %v2652, %v2644
    %v4917 = vpack.c.b16 %v2653, %v2645
    %v4918 = vpack.c.b16 %v2662, %v2654
    %v4919 = vpack.c.b16 %v2663, %v2655
    %v4920 = vpack.c.b16 %v2664, %v2656
    %v4921 = vpack.c.b16 %v2665, %v2657
    %v4922 = vpack.c.b16 %v2666, %v2658
    %v4923 = vpack.c.b16 %v2667, %v2659
    %v4924 = vpack.c.b16 %v2668, %v2660
    %v4925 = vpack.c.b16 %v2669, %v2661
    %v4926 = vpack.c.b16 %v2678, %v2670
    %v4927 = vpack.c.b16 %v2679, %v2671
    %v4928 = vpack.c.b16 %v2680, %v2672
    %v4929 = vpack.c.b16 %v2681, %v2673
    %v4930 = vpack.c.b16 %v2682, %v2674
    %v4931 = vpack.c.b16 %v2683, %v2675
    %v4932 = vpack.c.b16 %v2684, %v2676
    %v4933 = vpack.c.b16 %v2685, %v2677
    %v4934 = vpack.c.b16 %v2694, %v2686
    %v4935 = vpack.c.b16 %v2695, %v2687
    %v4936 = vpack.c.b16 %v2696, %v2688
    %v4937 = vpack.c.b16 %v2697, %v2689
    %v4938 = vpack.c.b16 %v2698, %v2690
    %v4939 = vpack.c.b16 %v2699, %v2691
    %v4940 = vpack.c.b16 %v2700, %v2692
    %v4941 = vpack.c.b16 %v2701, %v2693
    %v4942 = vpack.c.b16 %v2710, %v2702
    %v4943 = vpack.c.b16 %v2711, %v2703
    %v4944 = vpack.c.b16 %v2712, %v2704
    %v4945 = vpack.c.b16 %v2713, %v2705
    %v4946 = vpack.c.b16 %v2714, %v2706
    %v4947 = vpack.c.b16 %v2715, %v2707
    %v4948 = vpack.c.b16 %v2716, %v2708
    %v4949 = vpack.c.b16 %v2717, %v2709
    %v4950 = vpack.c.b16 %v2726, %v2718
    %v4951 = vpack.c.b16 %v2727, %v2719
    %v4952 = vpack.c.b16 %v2728, %v2720
    %v4953 = vpack.c.b16 %v2729, %v2721
    %v4954 = vpack.c.b16 %v2730, %v2722
    %v4955 = vpack.c.b16 %v2731, %v2723
    %v4956 = vpack.c.b16 %v2732, %v2724
    %v4957 = vpack.c.b16 %v2733, %v2725
    %v4958 = vpack.c.b16 %v2742, %v2734
    %v4959 = vpack.c.b16 %v2743, %v2735
    %v4960 = vpack.c.b16 %v2744, %v2736
    %v4961 = vpack.c.b16 %v2745, %v2737
    %v4962 = vpack.c.b16 %v2746, %v2738
    %v4963 = vpack.c.b16 %v2747, %v2739
    %v4964 = vpack.c.b16 %v2748, %v2740
    %v4965 = vpack.c.b16 %v2749, %v2741
    %v4966 = vpack.c.b16 %v2758, %v2750
    %v4967 = vpack.c.b16 %v2759, %v2751
    %v4968 = vpack.c.b16 %v2760, %v2752
    %v4969 = vpack.c.b16 %v2761, %v2753
    %v4970 = vpack.c.b16 %v2762, %v2754
    %v4971 = vpack.c.b16 %v2763, %v2755
    %v4972 = vpack.c.b16 %v2764, %v2756
    %v4973 = vpack.c.b16 %v2765, %v2757
    %v4974 = vpack.c.b16 %v2774, %v2766
    %v4975 = vpack.c.b16 %v2775, %v2767
    %v4976 = vpack.c.b16 %v2776, %v2768
    %v4977 = vpack.c.b16 %v2777, %v2769
    %v4978 = vpack.c.b16 %v2778, %v2770
    %v4979 = vpack.c.b16 %v2779, %v2771
    %v4980 = vpack.c.b16 %v2780, %v2772
    %v4981 = vpack.c.b16 %v2781, %v2773
    %v4982 = vpack.c.b16 %v2790, %v2782
    %v4983 = vpack.c.b16 %v2791, %v2783
    %v4984 = vpack.c.b16 %v2792, %v2784
    %v4985 = vpack.c.b16 %v2793, %v2785
    %v4986 = vpack.c.b16 %v2794, %v2786
    %v4987 = vpack.c.b16 %v2795, %v2787
    %v4988 = vpack.c.b16 %v2796, %v2788
    %v4989 = vpack.c.b16 %v2797, %v2789
    %v4990 = vpack.c.b16 %v2806, %v2798
    %v4991 = vpack.c.b16 %v2807, %v2799
    %v4992 = vpack.c.b16 %v2808, %v2800
    %v4993 = vpack.c.b16 %v2809, %v2801
    %v4994 = vpack.c.b16 %v2810, %v2802
    %v4995 = vpack.c.b16 %v2811, %v2803
    %v4996 = vpack.c.b16 %v2812, %v2804
    %v4997 = vpack.c.b16 %v2813, %v2805
    %v4998 = vpack.c.b16 %v2822, %v2814
    %v4999 = vpack.c.b16 %v2823, %v2815
    %v5000 = vpack.c.b16 %v2824, %v2816
    %v5001 = vpack.c.b16 %v2825, %v2817
    %v5002 = vpack.c.b16 %v2826, %v2818
    %v5003 = vpack.c.b16 %v2827, %v2819
    %v5004 = vpack.c.b16 %v2828, %v2820
    %v5005 = vpack.c.b16 %v2829, %v2821
    %v5006 = vpack.c.b16 %v2838, %v2830
    %v5007 = vpack.c.b16 %v2839, %v2831
    %v5008 = vpack.c.b16 %v2840, %v2832
    %v5009 = vpack.c.b16 %v2841, %v2833
    %v5010 = vpack.c.b16 %v2842, %v2834
    %v5011 = vpack.c.b16 %v2843, %v2835
    %v5012 = vpack.c.b16 %v2844, %v2836
    %v5013 = vpack.c.b16 %v2845, %v2837
    %v5014 = vpack.c.b16 %v2854, %v2846
    %v5015 = vpack.c.b16 %v2855, %v2847
    %v5016 = vpack.c.b16 %v2856, %v2848
    %v5017 = vpack.c.b16 %v2857, %v2849
    %v5018 = vpack.c.b16 %v2858, %v2850
    %v5019 = vpack.c.b16 %v2859, %v2851
    %v5020 = vpack.c.b16 %v2860, %v2852
    %v5021 = vpack.c.b16 %v2861, %v2853
    %v5022 = vpack.c.b16 %v2870, %v2862
    %v5023 = vpack.c.b16 %v2871, %v2863
    %v5024 = vpack.c.b16 %v2872, %v2864
    %v5025 = vpack.c.b16 %v2873, %v2865
    %v5026 = vpack.c.b16 %v2874, %v2866
    %v5027 = vpack.c.b16 %v2875, %v2867
    %v5028 = vpack.c.b16 %v2876, %v2868
    %v5029 = vpack.c.b16 %v2877, %v2869
    %v5030 = vpack.c.b16 %v2886, %v2878
    %v5031 = vpack.c.b16 %v2887, %v2879
    %v5032 = vpack.c.b16 %v2888, %v2880
    %v5033 = vpack.c.b16 %v2889, %v2881
    %v5034 = vpack.c.b16 %v2890, %v2882
    %v5035 = vpack.c.b16 %v2891, %v2883
    %v5036 = vpack.c.b16 %v2892, %v2884
    %v5037 = vpack.c.b16 %v2893, %v2885
    %v5038 = vpack.c.b16 %v2902, %v2894
    %v5039 = vpack.c.b16 %v2903, %v2895
    %v5040 = vpack.c.b16 %v2904, %v2896
    %v5041 = vpack.c.b16 %v2905, %v2897
    %v5042 = vpack.c.b16 %v2906, %v2898
    %v5043 = vpack.c.b16 %v2907, %v2899
    %v5044 = vpack.c.b16 %v2908, %v2900
    %v5045 = vpack.c.b16 %v2909, %v2901
    %v5046 = vpack.c.b16 %v2918, %v2910
    %v5047 = vpack.c.b16 %v2919, %v2911
    %v5048 = vpack.c.b16 %v2920, %v2912
    %v5049 = vpack.c.b16 %v2921, %v2913
    %v5050 = vpack.c.b16 %v2922, %v2914
    %v5051 = vpack.c.b16 %v2923, %v2915
    %v5052 = vpack.c.b16 %v2924, %v2916
    %v5053 = vpack.c.b16 %v2925, %v2917
    %v5054 = vpack.c.b16 %v2934, %v2926
    %v5055 = vpack.c.b16 %v2935, %v2927
    %v5056 = vpack.c.b16 %v2936, %v2928
    %v5057 = vpack.c.b16 %v2937, %v2929
    %v5058 = vpack.c.b16 %v2938, %v2930
    %v5059 = vpack.c.b16 %v2939, %v2931
    %v5060 = vpack.c.b16 %v2940, %v2932
    %v5061 = vpack.c.b16 %v2941, %v2933
    %v5062 = vpack.c.b16 %v2950, %v2942
    %v5063 = vpack.c.b16 %v2951, %v2943
    %v5064 = vpack.c.b16 %v2952, %v2944
    %v5065 = vpack.c.b16 %v2953, %v2945
    %v5066 = vpack.c.b16 %v2954, %v2946
    %v5067 = vpack.c.b16 %v2955, %v2947
    %v5068 = vpack.c.b16 %v2956, %v2948
    %v5069 = vpack.c.b16 %v2957, %v2949
    %v5070 = vpack.c.b16 %v2966, %v2958
    %v5071 = vpack.c.b16 %v2967, %v2959
    %v5072 = vpack.c.b16 %v2968, %v2960
    %v5073 = vpack.c.b16 %v2969, %v2961
    %v5074 = vpack.c.b16 %v2970, %v2962
    %v5075 = vpack.c.b16 %v2971, %v2963
    %v5076 = vpack.c.b16 %v2972, %v2964
    %v5077 = vpack.c.b16 %v2973, %v2965
    %v5078 = vpack.c.b16 %v2982, %v2974
    %v5079 = vpack.c.b16 %v2983, %v2975
    %v5080 = vpack.c.b16 %v2984, %v2976
    %v5081 = vpack.c.b16 %v2985, %v2977
    %v5082 = vpack.c.b16 %v2986, %v2978
    %v5083 = vpack.c.b16 %v2987, %v2979
    %v5084 = vpack.c.b16 %v2988, %v2980
    %v5085 = vpack.c.b16 %v2989, %v2981
    %v5086 = vpack.c.b16 %v2998, %v2990
    %v5087 = vpack.c.b16 %v2999, %v2991
    %v5088 = vpack.c.b16 %v3000, %v2992
    %v5089 = vpack.c.b16 %v3001, %v2993
    %v5090 = vpack.c.b16 %v3002, %v2994
    %v5091 = vpack.c.b16 %v3003, %v2995
    %v5092 = vpack.c.b16 %v3004, %v2996
    %v5093 = vpack.c.b16 %v3005, %v2997
    %v5094 = vpack.c.b16 %v3014, %v3006
    %v5095 = vpack.c.b16 %v3015, %v3007
    %v5096 = vpack.c.b16 %v3016, %v3008
    %v5097 = vpack.c.b16 %v3017, %v3009
    %v5098 = vpack.c.b16 %v3018, %v3010
    %v5099 = vpack.c.b16 %v3019, %v3011
    %v5100 = vpack.c.b16 %v3020, %v3012
    %v5101 = vpack.c.b16 %v3021, %v3013
    %v5102 = vpack.c.b16 %v3030, %v3022
    %v5103 = vpack.c.b16 %v3031, %v3023
    %v5104 = vpack.c.b16 %v3032, %v3024
    %v5105 = vpack.c.b16 %v3033, %v3025
    %v5106 = vpack.c.b16 %v3034, %v3026
    %v5107 = vpack.c.b16 %v3035, %v3027
    %v5108 = vpack.c.b16 %v3036, %v3028
    %v5109 = vpack.c.b16 %v3037, %v3029
    %v5110 = vpack.c.b16 %v3046, %v3038
    %v5111 = vpack.c.b16 %v3047, %v3039
    %v5112 = vpack.c.b16 %v3048, %v3040
    %v5113 = vpack.c.b16 %v3049, %v3041
    %v5114 = vpack.c.b16 %v3050, %v3042
    %v5115 = vpack.c.b16 %v3051, %v3043
    %v5116 = vpack.c.b16 %v3052, %v3044
    %v5117 = vpack.c.b16 %v3053, %v3045
    %v5118 = vpack.c.b16 %v3062, %v3054
    %v5119 = vpack.c.b16 %v3063, %v3055
    %v5120 = vpack.c.b16 %v3064, %v3056
    %v5121 = vpack.c.b16 %v3065, %v3057
    %v5122 = vpack.c.b16 %v3066, %v3058
    %v5123 = vpack.c.b16 %v3067, %v3059
    %v5124 = vpack.c.b16 %v3068, %v3060
    %v5125 = vpack.c.b16 %v3069, %v3061
    %v5126 = vpack.c.b16 %v3078, %v3070
    %v5127 = vpack.c.b16 %v3079, %v3071
    %v5128 = vpack.c.b16 %v3080, %v3072
    %v5129 = vpack.c.b16 %v3081, %v3073
    %v5130 = vpack.c.b16 %v3082, %v3074
    %v5131 = vpack.c.b16 %v3083, %v3075
    %v5132 = vpack.c.b16 %v3084, %v3076
    %v5133 = vpack.c.b16 %v3085, %v3077
    %v5134 = vpack.c.b16 %v3094, %v3086
    %v5135 = vpack.c.b16 %v3095, %v3087
    %v5136 = vpack.c.b16 %v3096, %v3088
    %v5137 = vpack.c.b16 %v3097, %v3089
    %v5138 = vpack.c.b16 %v3098, %v3090
    %v5139 = vpack.c.b16 %v3099, %v3091
    %v5140 = vpack.c.b16 %v3100, %v3092
    %v5141 = vpack.c.b16 %v3101, %v3093
    %v5142 = vpack.c.b16 %v3110, %v3102
    %v5143 = vpack.c.b16 %v3111, %v3103
    %v5144 = vpack.c.b16 %v3112, %v3104
    %v5145 = vpack.c.b16 %v3113, %v3105
    %v5146 = vpack.c.b16 %v3114, %v3106
    %v5147 = vpack.c.b16 %v3115, %v3107
    %v5148 = vpack.c.b16 %v3116, %v3108
    %v5149 = vpack.c.b16 %v3117, %v3109
    %v5150 = vpack.c.b16 %v3126, %v3118
    %v5151 = vpack.c.b16 %v3127, %v3119
    %v5152 = vpack.c.b16 %v3128, %v3120
    %v5153 = vpack.c.b16 %v3129, %v3121
    %v5154 = vpack.c.b16 %v3130, %v3122
    %v5155 = vpack.c.b16 %v3131, %v3123
    %v5156 = vpack.c.b16 %v3132, %v3124
    %v5157 = vpack.c.b16 %v3133, %v3125
    %v5158 = vpack.c.b16 %v3142, %v3134
    %v5159 = vpack.c.b16 %v3143, %v3135
    %v5160 = vpack.c.b16 %v3144, %v3136
    %v5161 = vpack.c.b16 %v3145, %v3137
    %v5162 = vpack.c.b16 %v3146, %v3138
    %v5163 = vpack.c.b16 %v3147, %v3139
    %v5164 = vpack.c.b16 %v3148, %v3140
    %v5165 = vpack.c.b16 %v3149, %v3141
    %v5166 = vpack.c.b16 %v3158, %v3150
    %v5167 = vpack.c.b16 %v3159, %v3151
    %v5168 = vpack.c.b16 %v3160, %v3152
    %v5169 = vpack.c.b16 %v3161, %v3153
    %v5170 = vpack.c.b16 %v3162, %v3154
    %v5171 = vpack.c.b16 %v3163, %v3155
    %v5172 = vpack.c.b16 %v3164, %v3156
    %v5173 = vpack.c.b16 %v3165, %v3157
    %v5174 = vpack.c.b16 %v3174, %v3166
    %v5175 = vpack.c.b16 %v3175, %v3167
    %v5176 = vpack.c.b16 %v3176, %v3168
    %v5177 = vpack.c.b16 %v3177, %v3169
    %v5178 = vpack.c.b16 %v3178, %v3170
    %v5179 = vpack.c.b16 %v3179, %v3171
    %v5180 = vpack.c.b16 %v3180, %v3172
    %v5181 = vpack.c.b16 %v3181, %v3173
    %v5182 = vpack.c.b16 %v3190, %v3182
    %v5183 = vpack.c.b16 %v3191, %v3183
    %v5184 = vpack.c.b16 %v3192, %v3184
    %v5185 = vpack.c.b16 %v3193, %v3185
    %v5186 = vpack.c.b16 %v3194, %v3186
    %v5187 = vpack.c.b16 %v3195, %v3187
    %v5188 = vpack.c.b16 %v3196, %v3188
    %v5189 = vpack.c.b16 %v3197, %v3189
    %v5190 = vpack.c.b16 %v3206, %v3198
    %v5191 = vpack.c.b16 %v3207, %v3199
    %v5192 = vpack.c.b16 %v3208, %v3200
    %v5193 = vpack.c.b16 %v3209, %v3201
    %v5194 = vpack.c.b16 %v3210, %v3202
    %v5195 = vpack.c.b16 %v3211, %v3203
    %v5196 = vpack.c.b16 %v3212, %v3204
    %v5197 = vpack.c.b16 %v3213, %v3205
    %v5198 = vpack.c.b16 %v3222, %v3214
    %v5199 = vpack.c.b16 %v3223, %v3215
    %v5200 = vpack.c.b16 %v3224, %v3216
    %v5201 = vpack.c.b16 %v3225, %v3217
    %v5202 = vpack.c.b16 %v3226, %v3218
    %v5203 = vpack.c.b16 %v3227, %v3219
    %v5204 = vpack.c.b16 %v3228, %v3220
    %v5205 = vpack.c.b16 %v3229, %v3221
    %v5206 = vpack.c.b16 %v3238, %v3230
    %v5207 = vpack.c.b16 %v3239, %v3231
    %v5208 = vpack.c.b16 %v3240, %v3232
    %v5209 = vpack.c.b16 %v3241, %v3233
    %v5210 = vpack.c.b16 %v3242, %v3234
    %v5211 = vpack.c.b16 %v3243, %v3235
    %v5212 = vpack.c.b16 %v3244, %v3236
    %v5213 = vpack.c.b16 %v3245, %v3237
    %v5214 = vpack.c.b16 %v3254, %v3246
    %v5215 = vpack.c.b16 %v3255, %v3247
    %v5216 = vpack.c.b16 %v3256, %v3248
    %v5217 = vpack.c.b16 %v3257, %v3249
    %v5218 = vpack.c.b16 %v3258, %v3250
    %v5219 = vpack.c.b16 %v3259, %v3251
    %v5220 = vpack.c.b16 %v3260, %v3252
    %v5221 = vpack.c.b16 %v3261, %v3253
    %v5222 = vpack.c.b16 %v3270, %v3262
    %v5223 = vpack.c.b16 %v3271, %v3263
    %v5224 = vpack.c.b16 %v3272, %v3264
    %v5225 = vpack.c.b16 %v3273, %v3265
    %v5226 = vpack.c.b16 %v3274, %v3266
    %v5227 = vpack.c.b16 %v3275, %v3267
    %v5228 = vpack.c.b16 %v3276, %v3268
    %v5229 = vpack.c.b16 %v3277, %v3269
    %v5230 = vpack.c.b16 %v3286, %v3278
    %v5231 = vpack.c.b16 %v3287, %v3279
    %v5232 = vpack.c.b16 %v3288, %v3280
    %v5233 = vpack.c.b16 %v3289, %v3281
    %v5234 = vpack.c.b16 %v3290, %v3282
    %v5235 = vpack.c.b16 %v3291, %v3283
    %v5236 = vpack.c.b16 %v3292, %v3284
    %v5237 = vpack.c.b16 %v3293, %v3285
    %v5238 = vpack.c.b16 %v3302, %v3294
    %v5239 = vpack.c.b16 %v3303, %v3295
    %v5240 = vpack.c.b16 %v3304, %v3296
    %v5241 = vpack.c.b16 %v3305, %v3297
    %v5242 = vpack.c.b16 %v3306, %v3298
    %v5243 = vpack.c.b16 %v3307, %v3299
    %v5244 = vpack.c.b16 %v3308, %v3300
    %v5245 = vpack.c.b16 %v3309, %v3301
    %v5246 = vpack.c.b16 %v3318, %v3310
    %v5247 = vpack.c.b16 %v3319, %v3311
    %v5248 = vpack.c.b16 %v3320, %v3312
    %v5249 = vpack.c.b16 %v3321, %v3313
    %v5250 = vpack.c.b16 %v3322, %v3314
    %v5251 = vpack.c.b16 %v3323, %v3315
    %v5252 = vpack.c.b16 %v3324, %v3316
    %v5253 = vpack.c.b16 %v3325, %v3317
    %v5254 = vpack.c.b16 %v3334, %v3326
    %v5255 = vpack.c.b16 %v3335, %v3327
    %v5256 = vpack.c.b16 %v3336, %v3328
    %v5257 = vpack.c.b16 %v3337, %v3329
    %v5258 = vpack.c.b16 %v3338, %v3330
    %v5259 = vpack.c.b16 %v3339, %v3331
    %v5260 = vpack.c.b16 %v3340, %v3332
    %v5261 = vpack.c.b16 %v3341, %v3333
    %v5262 = vpack.c.b16 %v3350, %v3342
    %v5263 = vpack.c.b16 %v3351, %v3343
    %v5264 = vpack.c.b16 %v3352, %v3344
    %v5265 = vpack.c.b16 %v3353, %v3345
    %v5266 = vpack.c.b16 %v3354, %v3346
    %v5267 = vpack.c.b16 %v3355, %v3347
    %v5268 = vpack.c.b16 %v3356, %v3348
    %v5269 = vpack.c.b16 %v3357, %v3349
    %v5270 = vpack.c.b16 %v3366, %v3358
    %v5271 = vpack.c.b16 %v3367, %v3359
    %v5272 = vpack.c.b16 %v3368, %v3360
    %v5273 = vpack.c.b16 %v3369, %v3361
    %v5274 = vpack.c.b16 %v3370, %v3362
    %v5275 = vpack.c.b16 %v3371, %v3363
    %v5276 = vpack.c.b16 %v3372, %v3364
    %v5277 = vpack.c.b16 %v3373, %v3365
    %v5278 = vpack.c.b16 %v3382, %v3374
    %v5279 = vpack.c.b16 %v3383, %v3375
    %v5280 = vpack.c.b16 %v3384, %v3376
    %v5281 = vpack.c.b16 %v3385, %v3377
    %v5282 = vpack.c.b16 %v3386, %v3378
    %v5283 = vpack.c.b16 %v3387, %v3379
    %v5284 = vpack.c.b16 %v3388, %v3380
    %v5285 = vpack.c.b16 %v3389, %v3381
    %v5286 = vpack.c.b16 %v3398, %v3390
    %v5287 = vpack.c.b16 %v3399, %v3391
    %v5288 = vpack.c.b16 %v3400, %v3392
    %v5289 = vpack.c.b16 %v3401, %v3393
    %v5290 = vpack.c.b16 %v3402, %v3394
    %v5291 = vpack.c.b16 %v3403, %v3395
    %v5292 = vpack.c.b16 %v3404, %v3396
    %v5293 = vpack.c.b16 %v3405, %v3397
    %v5294 = vpack.c.b16 %v3414, %v3406
    %v5295 = vpack.c.b16 %v3415, %v3407
    %v5296 = vpack.c.b16 %v3416, %v3408
    %v5297 = vpack.c.b16 %v3417, %v3409
    %v5298 = vpack.c.b16 %v3418, %v3410
    %v5299 = vpack.c.b16 %v3419, %v3411
    %v5300 = vpack.c.b16 %v3420, %v3412
    %v5301 = vpack.c.b16 %v3421, %v3413
    %v5302 = vpack.c.b16 %v3430, %v3422
    %v5303 = vpack.c.b16 %v3431, %v3423
    %v5304 = vpack.c.b16 %v3432, %v3424
    %v5305 = vpack.c.b16 %v3433, %v3425
    %v5306 = vpack.c.b16 %v3434, %v3426
    %v5307 = vpack.c.b16 %v3435, %v3427
    %v5308 = vpack.c.b16 %v3436, %v3428
    %v5309 = vpack.c.b16 %v3437, %v3429
    %v5310 = vpack.c.b16 %v3446, %v3438
    %v5311 = vpack.c.b16 %v3447, %v3439
    %v5312 = vpack.c.b16 %v3448, %v3440
    %v5313 = vpack.c.b16 %v3449, %v3441
    %v5314 = vpack.c.b16 %v3450, %v3442
    %v5315 = vpack.c.b16 %v3451, %v3443
    %v5316 = vpack.c.b16 %v3452, %v3444
    %v5317 = vpack.c.b16 %v3453, %v3445
    %v5318 = vpack.c.b16 %v3462, %v3454
    %v5319 = vpack.c.b16 %v3463, %v3455
    %v5320 = vpack.c.b16 %v3464, %v3456
    %v5321 = vpack.c.b16 %v3465, %v3457
    %v5322 = vpack.c.b16 %v3466, %v3458
    %v5323 = vpack.c.b16 %v3467, %v3459
    %v5324 = vpack.c.b16 %v3468, %v3460
    %v5325 = vpack.c.b16 %v3469, %v3461
    %v5326 = vpack.c.b16 %v3478, %v3470
    %v5327 = vpack.c.b16 %v3479, %v3471
    %v5328 = vpack.c.b16 %v3480, %v3472
    %v5329 = vpack.c.b16 %v3481, %v3473
    %v5330 = vpack.c.b16 %v3482, %v3474
    %v5331 = vpack.c.b16 %v3483, %v3475
    %v5332 = vpack.c.b16 %v3484, %v3476
    %v5333 = vpack.c.b16 %v3485, %v3477
    %v5334 = vpack.c.b16 %v3494, %v3486
    %v5335 = vpack.c.b16 %v3495, %v3487
    %v5336 = vpack.c.b16 %v3496, %v3488
    %v5337 = vpack.c.b16 %v3497, %v3489
    %v5338 = vpack.c.b16 %v3498, %v3490
    %v5339 = vpack.c.b16 %v3499, %v3491
    %v5340 = vpack.c.b16 %v3500, %v3492
    %v5341 = vpack.c.b16 %v3501, %v3493
    %v5342 = vpack.c.b16 %v3510, %v3502
    %v5343 = vpack.c.b16 %v3511, %v3503
    %v5344 = vpack.c.b16 %v3512, %v3504
    %v5345 = vpack.c.b16 %v3513, %v3505
    %v5346 = vpack.c.b16 %v3514, %v3506
    %v5347 = vpack.c.b16 %v3515, %v3507
    %v5348 = vpack.c.b16 %v3516, %v3508
    %v5349 = vpack.c.b16 %v3517, %v3509
    %v5350 = vpack.c.b16 %v3526, %v3518
    %v5351 = vpack.c.b16 %v3527, %v3519
    %v5352 = vpack.c.b16 %v3528, %v3520
    %v5353 = vpack.c.b16 %v3529, %v3521
    %v5354 = vpack.c.b16 %v3530, %v3522
    %v5355 = vpack.c.b16 %v3531, %v3523
    %v5356 = vpack.c.b16 %v3532, %v3524
    %v5357 = vpack.c.b16 %v3533, %v3525
    %v5358 = vpack.c.b16 %v3542, %v3534
    %v5359 = vpack.c.b16 %v3543, %v3535
    %v5360 = vpack.c.b16 %v3544, %v3536
    %v5361 = vpack.c.b16 %v3545, %v3537
    %v5362 = vpack.c.b16 %v3546, %v3538
    %v5363 = vpack.c.b16 %v3547, %v3539
    %v5364 = vpack.c.b16 %v3548, %v3540
    %v5365 = vpack.c.b16 %v3549, %v3541
    %v5366 = vpack.c.b16 %v3558, %v3550
    %v5367 = vpack.c.b16 %v3559, %v3551
    %v5368 = vpack.c.b16 %v3560, %v3552
    %v5369 = vpack.c.b16 %v3561, %v3553
    %v5370 = vpack.c.b16 %v3562, %v3554
    %v5371 = vpack.c.b16 %v3563, %v3555
    %v5372 = vpack.c.b16 %v3564, %v3556
    %v5373 = vpack.c.b16 %v3565, %v3557
    %v5374 = vpack.c.b16 %v3574, %v3566
    %v5375 = vpack.c.b16 %v3575, %v3567
    %v5376 = vpack.c.b16 %v3576, %v3568
    %v5377 = vpack.c.b16 %v3577, %v3569
    %v5378 = vpack.c.b16 %v3578, %v3570
    %v5379 = vpack.c.b16 %v3579, %v3571
    %v5380 = vpack.c.b16 %v3580, %v3572
    %v5381 = vpack.c.b16 %v3581, %v3573
    %v5382 = vpack.c.b16 %v3590, %v3582
    %v5383 = vpack.c.b16 %v3591, %v3583
    %v5384 = vpack.c.b16 %v3592, %v3584
    %v5385 = vpack.c.b16 %v3593, %v3585
    %v5386 = vpack.c.b16 %v3594, %v3586
    %v5387 = vpack.c.b16 %v3595, %v3587
    %v5388 = vpack.c.b16 %v3596, %v3588
    %v5389 = vpack.c.b16 %v3597, %v3589
    %v5390 = vpack.c.b16 %v3606, %v3598
    %v5391 = vpack.c.b16 %v3607, %v3599
    %v5392 = vpack.c.b16 %v3608, %v3600
    %v5393 = vpack.c.b16 %v3609, %v3601
    %v5394 = vpack.c.b16 %v3610, %v3602
    %v5395 = vpack.c.b16 %v3611, %v3603
    %v5396 = vpack.c.b16 %v3612, %v3604
    %v5397 = vpack.c.b16 %v3613, %v3605
    %v5398 = vpack.c.b16 %v3622, %v3614
    %v5399 = vpack.c.b16 %v3623, %v3615
    %v5400 = vpack.c.b16 %v3624, %v3616
    %v5401 = vpack.c.b16 %v3625, %v3617
    %v5402 = vpack.c.b16 %v3626, %v3618
    %v5403 = vpack.c.b16 %v3627, %v3619
    %v5404 = vpack.c.b16 %v3628, %v3620
    %v5405 = vpack.c.b16 %v3629, %v3621
    %v5406 = vpack.c.b16 %v3638, %v3630
    %v5407 = vpack.c.b16 %v3639, %v3631
    %v5408 = vpack.c.b16 %v3640, %v3632
    %v5409 = vpack.c.b16 %v3641, %v3633
    %v5410 = vpack.c.b16 %v3642, %v3634
    %v5411 = vpack.c.b16 %v3643, %v3635
    %v5412 = vpack.c.b16 %v3644, %v3636
    %v5413 = vpack.c.b16 %v3645, %v3637
    %v5414 = vpack.c.b16 %v3654, %v3646
    %v5415 = vpack.c.b16 %v3655, %v3647
    %v5416 = vpack.c.b16 %v3656, %v3648
    %v5417 = vpack.c.b16 %v3657, %v3649
    %v5418 = vpack.c.b16 %v3658, %v3650
    %v5419 = vpack.c.b16 %v3659, %v3651
    %v5420 = vpack.c.b16 %v3660, %v3652
    %v5421 = vpack.c.b16 %v3661, %v3653
    %v5422 = vpack.c.b16 %v3670, %v3662
    %v5423 = vpack.c.b16 %v3671, %v3663
    %v5424 = vpack.c.b16 %v3672, %v3664
    %v5425 = vpack.c.b16 %v3673, %v3665
    %v5426 = vpack.c.b16 %v3674, %v3666
    %v5427 = vpack.c.b16 %v3675, %v3667
    %v5428 = vpack.c.b16 %v3676, %v3668
    %v5429 = vpack.c.b16 %v3677, %v3669
    %v5430 = vpack.c.b16 %v3686, %v3678
    %v5431 = vpack.c.b16 %v3687, %v3679
    %v5432 = vpack.c.b16 %v3688, %v3680
    %v5433 = vpack.c.b16 %v3689, %v3681
    %v5434 = vpack.c.b16 %v3690, %v3682
    %v5435 = vpack.c.b16 %v3691, %v3683
    %v5436 = vpack.c.b16 %v3692, %v3684
    %v5437 = vpack.c.b16 %v3693, %v3685
    %v5438 = vpack.c.b16 %v3702, %v3694
    %v5439 = vpack.c.b16 %v3703, %v3695
    %v5440 = vpack.c.b16 %v3704, %v3696
    %v5441 = vpack.c.b16 %v3705, %v3697
    %v5442 = vpack.c.b16 %v3706, %v3698
    %v5443 = vpack.c.b16 %v3707, %v3699
    %v5444 = vpack.c.b16 %v3708, %v3700
    %v5445 = vpack.c.b16 %v3709, %v3701
    %v5446 = vpack.c.b16 %v3718, %v3710
    %v5447 = vpack.c.b16 %v3719, %v3711
    %v5448 = vpack.c.b16 %v3720, %v3712
    %v5449 = vpack.c.b16 %v3721, %v3713
    %v5450 = vpack.c.b16 %v3722, %v3714
    %v5451 = vpack.c.b16 %v3723, %v3715
    %v5452 = vpack.c.b16 %v3724, %v3716
    %v5453 = vpack.c.b16 %v3725, %v3717
    %v5454 = vpack.c.b16 %v3734, %v3726
    %v5455 = vpack.c.b16 %v3735, %v3727
    %v5456 = vpack.c.b16 %v3736, %v3728
    %v5457 = vpack.c.b16 %v3737, %v3729
    %v5458 = vpack.c.b16 %v3738, %v3730
    %v5459 = vpack.c.b16 %v3739, %v3731
    %v5460 = vpack.c.b16 %v3740, %v3732
    %v5461 = vpack.c.b16 %v3741, %v3733
    %v5462 = vpack.c.b16 %v3750, %v3742
    %v5463 = vpack.c.b16 %v3751, %v3743
    %v5464 = vpack.c.b16 %v3752, %v3744
    %v5465 = vpack.c.b16 %v3753, %v3745
    %v5466 = vpack.c.b16 %v3754, %v3746
    %v5467 = vpack.c.b16 %v3755, %v3747
    %v5468 = vpack.c.b16 %v3756, %v3748
    %v5469 = vpack.c.b16 %v3757, %v3749
    %v5470 = vpack.c.b16 %v3766, %v3758
    %v5471 = vpack.c.b16 %v3767, %v3759
    %v5472 = vpack.c.b16 %v3768, %v3760
    %v5473 = vpack.c.b16 %v3769, %v3761
    %v5474 = vpack.c.b16 %v3770, %v3762
    %v5475 = vpack.c.b16 %v3771, %v3763
    %v5476 = vpack.c.b16 %v3772, %v3764
    %v5477 = vpack.c.b16 %v3773, %v3765
    %v5478 = vpack.c.b16 %v3782, %v3774
    %v5479 = vpack.c.b16 %v3783, %v3775
    %v5480 = vpack.c.b16 %v3784, %v3776
    %v5481 = vpack.c.b16 %v3785, %v3777
    %v5482 = vpack.c.b16 %v3786, %v3778
    %v5483 = vpack.c.b16 %v3787, %v3779
    %v5484 = vpack.c.b16 %v3788, %v3780
    %v5485 = vpack.c.b16 %v3789, %v3781
    %v5486 = vpack.c.b16 %v3798, %v3790
    %v5487 = vpack.c.b16 %v3799, %v3791
    %v5488 = vpack.c.b16 %v3800, %v3792
    %v5489 = vpack.c.b16 %v3801, %v3793
    %v5490 = vpack.c.b16 %v3802, %v3794
    %v5491 = vpack.c.b16 %v3803, %v3795
    %v5492 = vpack.c.b16 %v3804, %v3796
    %v5493 = vpack.c.b16 %v3805, %v3797
    %v5494 = vpack.c.b16 %v3814, %v3806
    %v5495 = vpack.c.b16 %v3815, %v3807
    %v5496 = vpack.c.b16 %v3816, %v3808
    %v5497 = vpack.c.b16 %v3817, %v3809
    %v5498 = vpack.c.b16 %v3818, %v3810
    %v5499 = vpack.c.b16 %v3819, %v3811
    %v5500 = vpack.c.b16 %v3820, %v3812
    %v5501 = vpack.c.b16 %v3821, %v3813
    %v5502 = vpack.c.b16 %v3830, %v3822
    %v5503 = vpack.c.b16 %v3831, %v3823
    %v5504 = vpack.c.b16 %v3832, %v3824
    %v5505 = vpack.c.b16 %v3833, %v3825
    %v5506 = vpack.c.b16 %v3834, %v3826
    %v5507 = vpack.c.b16 %v3835, %v3827
    %v5508 = vpack.c.b16 %v3836, %v3828
    %v5509 = vpack.c.b16 %v3837, %v3829
    %v5510 = vpack.c.b16 %v3846, %v3838
    %v5511 = vpack.c.b16 %v3847, %v3839
    %v5512 = vpack.c.b16 %v3848, %v3840
    %v5513 = vpack.c.b16 %v3849, %v3841
    %v5514 = vpack.c.b16 %v3850, %v3842
    %v5515 = vpack.c.b16 %v3851, %v3843
    %v5516 = vpack.c.b16 %v3852, %v3844
    %v5517 = vpack.c.b16 %v3853, %v3845
    %v5518 = vpack.c.b16 %v3862, %v3854
    %v5519 = vpack.c.b16 %v3863, %v3855
    %v5520 = vpack.c.b16 %v3864, %v3856
    %v5521 = vpack.c.b16 %v3865, %v3857
    %v5522 = vpack.c.b16 %v3866, %v3858
    %v5523 = vpack.c.b16 %v3867, %v3859
    %v5524 = vpack.c.b16 %v3868, %v3860
    %v5525 = vpack.c.b16 %v3869, %v3861
    %v5526 = vpack.c.b16 %v3878, %v3870
    %v5527 = vpack.c.b16 %v3879, %v3871
    %v5528 = vpack.c.b16 %v3880, %v3872
    %v5529 = vpack.c.b16 %v3881, %v3873
    %v5530 = vpack.c.b16 %v3882, %v3874
    %v5531 = vpack.c.b16 %v3883, %v3875
    %v5532 = vpack.c.b16 %v3884, %v3876
    %v5533 = vpack.c.b16 %v3885, %v3877
    %v5534 = vpack.c.b16 %v3894, %v3886
    %v5535 = vpack.c.b16 %v3895, %v3887
    %v5536 = vpack.c.b16 %v3896, %v3888
    %v5537 = vpack.c.b16 %v3897, %v3889
    %v5538 = vpack.c.b16 %v3898, %v3890
    %v5539 = vpack.c.b16 %v3899, %v3891
    %v5540 = vpack.c.b16 %v3900, %v3892
    %v5541 = vpack.c.b16 %v3901, %v3893
    %v5542 = vpack.c.b16 %v3910, %v3902
    %v5543 = vpack.c.b16 %v3911, %v3903
    %v5544 = vpack.c.b16 %v3912, %v3904
    %v5545 = vpack.c.b16 %v3913, %v3905
    %v5546 = vpack.c.b16 %v3914, %v3906
    %v5547 = vpack.c.b16 %v3915, %v3907
    %v5548 = vpack.c.b16 %v3916, %v3908
    %v5549 = vpack.c.b16 %v3917, %v3909
    %v5550 = vpack.c.b16 %v3926, %v3918
    %v5551 = vpack.c.b16 %v3927, %v3919
    %v5552 = vpack.c.b16 %v3928, %v3920
    %v5553 = vpack.c.b16 %v3929, %v3921
    %v5554 = vpack.c.b16 %v3930, %v3922
    %v5555 = vpack.c.b16 %v3931, %v3923
    %v5556 = vpack.c.b16 %v3932, %v3924
    %v5557 = vpack.c.b16 %v3933, %v3925
    %v5558 = vpack.c.b16 %v3942, %v3934
    %v5559 = vpack.c.b16 %v3943, %v3935
    %v5560 = vpack.c.b16 %v3944, %v3936
    %v5561 = vpack.c.b16 %v3945, %v3937
    %v5562 = vpack.c.b16 %v3946, %v3938
    %v5563 = vpack.c.b16 %v3947, %v3939
    %v5564 = vpack.c.b16 %v3948, %v3940
    %v5565 = vpack.c.b16 %v3949, %v3941
    %v5566 = vpack.c.b16 %v3958, %v3950
    %v5567 = vpack.c.b16 %v3959, %v3951
    %v5568 = vpack.c.b16 %v3960, %v3952
    %v5569 = vpack.c.b16 %v3961, %v3953
    %v5570 = vpack.c.b16 %v3962, %v3954
    %v5571 = vpack.c.b16 %v3963, %v3955
    %v5572 = vpack.c.b16 %v3964, %v3956
    %v5573 = vpack.c.b16 %v3965, %v3957
    %v5574 = vpack.c.b16 %v3974, %v3966
    %v5575 = vpack.c.b16 %v3975, %v3967
    %v5576 = vpack.c.b16 %v3976, %v3968
    %v5577 = vpack.c.b16 %v3977, %v3969
    %v5578 = vpack.c.b16 %v3978, %v3970
    %v5579 = vpack.c.b16 %v3979, %v3971
    %v5580 = vpack.c.b16 %v3980, %v3972
    %v5581 = vpack.c.b16 %v3981, %v3973
    %v5582 = vpack.c.b16 %v3990, %v3982
    %v5583 = vpack.c.b16 %v3991, %v3983
    %v5584 = vpack.c.b16 %v3992, %v3984
    %v5585 = vpack.c.b16 %v3993, %v3985
    %v5586 = vpack.c.b16 %v3994, %v3986
    %v5587 = vpack.c.b16 %v3995, %v3987
    %v5588 = vpack.c.b16 %v3996, %v3988
    %v5589 = vpack.c.b16 %v3997, %v3989
    %v5590 = vpack.c.b16 %v4006, %v3998
    %v5591 = vpack.c.b16 %v4007, %v3999
    %v5592 = vpack.c.b16 %v4008, %v4000
    %v5593 = vpack.c.b16 %v4009, %v4001
    %v5594 = vpack.c.b16 %v4010, %v4002
    %v5595 = vpack.c.b16 %v4011, %v4003
    %v5596 = vpack.c.b16 %v4012, %v4004
    %v5597 = vpack.c.b16 %v4013, %v4005
    %v5598 = vpack.c.b16 %v4022, %v4014
    %v5599 = vpack.c.b16 %v4023, %v4015
    %v5600 = vpack.c.b16 %v4024, %v4016
    %v5601 = vpack.c.b16 %v4025, %v4017
    %v5602 = vpack.c.b16 %v4026, %v4018
    %v5603 = vpack.c.b16 %v4027, %v4019
    %v5604 = vpack.c.b16 %v4028, %v4020
    %v5605 = vpack.c.b16 %v4029, %v4021
    %v5606 = vpack.c.b16 %v4038, %v4030
    %v5607 = vpack.c.b16 %v4039, %v4031
    %v5608 = vpack.c.b16 %v4040, %v4032
    %v5609 = vpack.c.b16 %v4041, %v4033
    %v5610 = vpack.c.b16 %v4042, %v4034
    %v5611 = vpack.c.b16 %v4043, %v4035
    %v5612 = vpack.c.b16 %v4044, %v4036
    %v5613 = vpack.c.b16 %v4045, %v4037
    %v5614 = vpack.c.b16 %v4054, %v4046
    %v5615 = vpack.c.b16 %v4055, %v4047
    %v5616 = vpack.c.b16 %v4056, %v4048
    %v5617 = vpack.c.b16 %v4057, %v4049
    %v5618 = vpack.c.b16 %v4058, %v4050
    %v5619 = vpack.c.b16 %v4059, %v4051
    %v5620 = vpack.c.b16 %v4060, %v4052
    %v5621 = vpack.c.b16 %v4061, %v4053
    %v5622 = vpack.c.b16 %v4070, %v4062
    %v5623 = vpack.c.b16 %v4071, %v4063
    %v5624 = vpack.c.b16 %v4072, %v4064
    %v5625 = vpack.c.b16 %v4073, %v4065
    %v5626 = vpack.c.b16 %v4074, %v4066
    %v5627 = vpack.c.b16 %v4075, %v4067
    %v5628 = vpack.c.b16 %v4076, %v4068
    %v5629 = vpack.c.b16 %v4077, %v4069
    %v5630 = vpack.c.b16 %v4086, %v4078
    %v5631 = vpack.c.b16 %v4087, %v4079
    %v5632 = vpack.c.b16 %v4088, %v4080
    %v5633 = vpack.c.b16 %v4089, %v4081
    %v5634 = vpack.c.b16 %v4090, %v4082
    %v5635 = vpack.c.b16 %v4091, %v4083
    %v5636 = vpack.c.b16 %v4092, %v4084
    %v5637 = vpack.c.b16 %v4093, %v4085
    %v5638 = vpack.c.b16 %v4102, %v4094
    %v5639 = vpack.c.b16 %v4103, %v4095
    %v5640 = vpack.c.b16 %v4104, %v4096
    %v5641 = vpack.c.b16 %v4105, %v4097
    %v5642 = vpack.c.b16 %v4106, %v4098
    %v5643 = vpack.c.b16 %v4107, %v4099
    %v5644 = vpack.c.b16 %v4108, %v4100
    %v5645 = vpack.c.b16 %v4109, %v4101
    %v5646 = vpack.c.b16 %v4118, %v4110
    %v5647 = vpack.c.b16 %v4119, %v4111
    %v5648 = vpack.c.b16 %v4120, %v4112
    %v5649 = vpack.c.b16 %v4121, %v4113
    %v5650 = vpack.c.b16 %v4122, %v4114
    %v5651 = vpack.c.b16 %v4123, %v4115
    %v5652 = vpack.c.b16 %v4124, %v4116
    %v5653 = vpack.c.b16 %v4125, %v4117
    %v5654 = vpack.c.b16 %v4134, %v4126
    %v5655 = vpack.c.b16 %v4135, %v4127
    %v5656 = vpack.c.b16 %v4136, %v4128
    %v5657 = vpack.c.b16 %v4137, %v4129
    %v5658 = vpack.c.b16 %v4138, %v4130
    %v5659 = vpack.c.b16 %v4139, %v4131
    %v5660 = vpack.c.b16 %v4140, %v4132
    %v5661 = vpack.c.b16 %v4141, %v4133
    %v5662 = vpack.c.b16 %v4150, %v4142
    %v5663 = vpack.c.b16 %v4151, %v4143
    %v5664 = vpack.c.b16 %v4152, %v4144
    %v5665 = vpack.c.b16 %v4153, %v4145
    %v5666 = vpack.c.b16 %v4154, %v4146
    %v5667 = vpack.c.b16 %v4155, %v4147
    %v5668 = vpack.c.b16 %v4156, %v4148
    %v5669 = vpack.c.b16 %v4157, %v4149
    %v5670 = vpack.c.b16 %v4166, %v4158
    %v5671 = vpack.c.b16 %v4167, %v4159
    %v5672 = vpack.c.b16 %v4168, %v4160
    %v5673 = vpack.c.b16 %v4169, %v4161
    %v5674 = vpack.c.b16 %v4170, %v4162
    %v5675 = vpack.c.b16 %v4171, %v4163
    %v5676 = vpack.c.b16 %v4172, %v4164
    %v5677 = vpack.c.b16 %v4173, %v4165
    %v5678 = vpack.c.b16 %v4182, %v4174
    %v5679 = vpack.c.b16 %v4183, %v4175
    %v5680 = vpack.c.b16 %v4184, %v4176
    %v5681 = vpack.c.b16 %v4185, %v4177
    %v5682 = vpack.c.b16 %v4186, %v4178
    %v5683 = vpack.c.b16 %v4187, %v4179
    %v5684 = vpack.c.b16 %v4188, %v4180
    %v5685 = vpack.c.b16 %v4189, %v4181
    %v5686 = vpack.c.b16 %v4198, %v4190
    %v5687 = vpack.c.b16 %v4199, %v4191
    %v5688 = vpack.c.b16 %v4200, %v4192
    %v5689 = vpack.c.b16 %v4201, %v4193
    %v5690 = vpack.c.b16 %v4202, %v4194
    %v5691 = vpack.c.b16 %v4203, %v4195
    %v5692 = vpack.c.b16 %v4204, %v4196
    %v5693 = vpack.c.b16 %v4205, %v4197
    %v5694 = vpack.c.b16 %v4214, %v4206
    %v5695 = vpack.c.b16 %v4215, %v4207
    %v5696 = vpack.c.b16 %v4216, %v4208
    %v5697 = vpack.c.b16 %v4217, %v4209
    %v5698 = vpack.c.b16 %v4218, %v4210
    %v5699 = vpack.c.b16 %v4219, %v4211
    %v5700 = vpack.c.b16 %v4220, %v4212
    %v5701 = vpack.c.b16 %v4221, %v4213
    %v5702 = vpack.c.b16 %v4230, %v4222
    %v5703 = vpack.c.b16 %v4231, %v4223
    %v5704 = vpack.c.b16 %v4232, %v4224
    %v5705 = vpack.c.b16 %v4233, %v4225
    %v5706 = vpack.c.b16 %v4234, %v4226
    %v5707 = vpack.c.b16 %v4235, %v4227
    %v5708 = vpack.c.b16 %v4236, %v4228
    %v5709 = vpack.c.b16 %v4237, %v4229
    %v5710 = vpack.c.b16 %v4246, %v4238
    %v5711 = vpack.c.b16 %v4247, %v4239
    %v5712 = vpack.c.b16 %v4248, %v4240
    %v5713 = vpack.c.b16 %v4249, %v4241
    %v5714 = vpack.c.b16 %v4250, %v4242
    %v5715 = vpack.c.b16 %v4251, %v4243
    %v5716 = vpack.c.b16 %v4252, %v4244
    %v5717 = vpack.c.b16 %v4253, %v4245
    %v5718 = vpack.c.b16 %v4262, %v4254
    %v5719 = vpack.c.b16 %v4263, %v4255
    %v5720 = vpack.c.b16 %v4264, %v4256
    %v5721 = vpack.c.b16 %v4265, %v4257
    %v5722 = vpack.c.b16 %v4266, %v4258
    %v5723 = vpack.c.b16 %v4267, %v4259
    %v5724 = vpack.c.b16 %v4268, %v4260
    %v5725 = vpack.c.b16 %v4269, %v4261
    %v5726 = vpack.c.b16 %v4278, %v4270
    %v5727 = vpack.c.b16 %v4279, %v4271
    %v5728 = vpack.c.b16 %v4280, %v4272
    %v5729 = vpack.c.b16 %v4281, %v4273
    %v5730 = vpack.c.b16 %v4282, %v4274
    %v5731 = vpack.c.b16 %v4283, %v4275
    %v5732 = vpack.c.b16 %v4284, %v4276
    %v5733 = vpack.c.b16 %v4285, %v4277
    %v5734 = vpack.c.b16 %v4294, %v4286
    %v5735 = vpack.c.b16 %v4295, %v4287
    %v5736 = vpack.c.b16 %v4296, %v4288
    %v5737 = vpack.c.b16 %v4297, %v4289
    %v5738 = vpack.c.b16 %v4298, %v4290
    %v5739 = vpack.c.b16 %v4299, %v4291
    %v5740 = vpack.c.b16 %v4300, %v4292
    %v5741 = vpack.c.b16 %v4301, %v4293
    %v5742 = vpack.c.b16 %v4310, %v4302
    %v5743 = vpack.c.b16 %v4311, %v4303
    %v5744 = vpack.c.b16 %v4312, %v4304
    %v5745 = vpack.c.b16 %v4313, %v4305
    %v5746 = vpack.c.b16 %v4314, %v4306
    %v5747 = vpack.c.b16 %v4315, %v4307
    %v5748 = vpack.c.b16 %v4316, %v4308
    %v5749 = vpack.c.b16 %v4317, %v4309
    %v5750 = vpack.c.b16 %v4326, %v4318
    %v5751 = vpack.c.b16 %v4327, %v4319
    %v5752 = vpack.c.b16 %v4328, %v4320
    %v5753 = vpack.c.b16 %v4329, %v4321
    %v5754 = vpack.c.b16 %v4330, %v4322
    %v5755 = vpack.c.b16 %v4331, %v4323
    %v5756 = vpack.c.b16 %v4332, %v4324
    %v5757 = vpack.c.b16 %v4333, %v4325
    %v5758 = vpack.c.b16 %v4342, %v4334
    %v5759 = vpack.c.b16 %v4343, %v4335
    %v5760 = vpack.c.b16 %v4344, %v4336
    %v5761 = vpack.c.b16 %v4345, %v4337
    %v5762 = vpack.c.b16 %v4346, %v4338
    %v5763 = vpack.c.b16 %v4347, %v4339
    %v5764 = vpack.c.b16 %v4348, %v4340
    %v5765 = vpack.c.b16 %v4349, %v4341
    %v5766 = vpack.c.b16 %v4358, %v4350
    %v5767 = vpack.c.b16 %v4359, %v4351
    %v5768 = vpack.c.b16 %v4360, %v4352
    %v5769 = vpack.c.b16 %v4361, %v4353
    %v5770 = vpack.c.b16 %v4362, %v4354
    %v5771 = vpack.c.b16 %v4363, %v4355
    %v5772 = vpack.c.b16 %v4364, %v4356
    %v5773 = vpack.c.b16 %v4365, %v4357
    %v5774 = vpack.c.b16 %v4374, %v4366
    %v5775 = vpack.c.b16 %v4375, %v4367
    %v5776 = vpack.c.b16 %v4376, %v4368
    %v5777 = vpack.c.b16 %v4377, %v4369
    %v5778 = vpack.c.b16 %v4378, %v4370
    %v5779 = vpack.c.b16 %v4379, %v4371
    %v5780 = vpack.c.b16 %v4380, %v4372
    %v5781 = vpack.c.b16 %v4381, %v4373
    %v5782 = vpack.c.b16 %v4390, %v4382
    %v5783 = vpack.c.b16 %v4391, %v4383
    %v5784 = vpack.c.b16 %v4392, %v4384
    %v5785 = vpack.c.b16 %v4393, %v4385
    %v5786 = vpack.c.b16 %v4394, %v4386
    %v5787 = vpack.c.b16 %v4395, %v4387
    %v5788 = vpack.c.b16 %v4396, %v4388
    %v5789 = vpack.c.b16 %v4397, %v4389
    %v5790 = vpack.c.b16 %v4406, %v4398
    %v5791 = vpack.c.b16 %v4407, %v4399
    %v5792 = vpack.c.b16 %v4408, %v4400
    %v5793 = vpack.c.b16 %v4409, %v4401
    %v5794 = vpack.c.b16 %v4410, %v4402
    %v5795 = vpack.c.b16 %v4411, %v4403
    %v5796 = vpack.c.b16 %v4412, %v4404
    %v5797 = vpack.c.b16 %v4413, %v4405
    %v5798 = vpack.c.b16 %v4422, %v4414
    %v5799 = vpack.c.b16 %v4423, %v4415
    %v5800 = vpack.c.b16 %v4424, %v4416
    %v5801 = vpack.c.b16 %v4425, %v4417
    %v5802 = vpack.c.b16 %v4426, %v4418
    %v5803 = vpack.c.b16 %v4427, %v4419
    %v5804 = vpack.c.b16 %v4428, %v4420
    %v5805 = vpack.c.b16 %v4429, %v4421
    %v5806 = vpack.c.b16 %v4438, %v4430
    %v5807 = vpack.c.b16 %v4439, %v4431
    %v5808 = vpack.c.b16 %v4440, %v4432
    %v5809 = vpack.c.b16 %v4441, %v4433
    %v5810 = vpack.c.b16 %v4442, %v4434
    %v5811 = vpack.c.b16 %v4443, %v4435
    %v5812 = vpack.c.b16 %v4444, %v4436
    %v5813 = vpack.c.b16 %v4445, %v4437
    %v5814 = vpack.c.b16 %v4454, %v4446
    %v5815 = vpack.c.b16 %v4455, %v4447
    %v5816 = vpack.c.b16 %v4456, %v4448
    %v5817 = vpack.c.b16 %v4457, %v4449
    %v5818 = vpack.c.b16 %v4458, %v4450
    %v5819 = vpack.c.b16 %v4459, %v4451
    %v5820 = vpack.c.b16 %v4460, %v4452
    %v5821 = vpack.c.b16 %v4461, %v4453
    %v5822 = vpack.c.b16 %v4470, %v4462
    %v5823 = vpack.c.b16 %v4471, %v4463
    %v5824 = vpack.c.b16 %v4472, %v4464
    %v5825 = vpack.c.b16 %v4473, %v4465
    %v5826 = vpack.c.b16 %v4474, %v4466
    %v5827 = vpack.c.b16 %v4475, %v4467
    %v5828 = vpack.c.b16 %v4476, %v4468
    %v5829 = vpack.c.b16 %v4477, %v4469
    %v5830 = vpack.c.b16 %v4486, %v4478
    %v5831 = vpack.c.b16 %v4487, %v4479
    %v5832 = vpack.c.b16 %v4488, %v4480
    %v5833 = vpack.c.b16 %v4489, %v4481
    %v5834 = vpack.c.b16 %v4490, %v4482
    %v5835 = vpack.c.b16 %v4491, %v4483
    %v5836 = vpack.c.b16 %v4492, %v4484
    %v5837 = vpack.c.b16 %v4493, %v4485
    %v5838 = vpack.c.b16 %v4502, %v4494
    %v5839 = vpack.c.b16 %v4503, %v4495
    %v5840 = vpack.c.b16 %v4504, %v4496
    %v5841 = vpack.c.b16 %v4505, %v4497
    %v5842 = vpack.c.b16 %v4506, %v4498
    %v5843 = vpack.c.b16 %v4507, %v4499
    %v5844 = vpack.c.b16 %v4508, %v4500
    %v5845 = vpack.c.b16 %v4509, %v4501
    %v5846 = vpack.c.b16 %v4518, %v4510
    %v5847 = vpack.c.b16 %v4519, %v4511
    %v5848 = vpack.c.b16 %v4520, %v4512
    %v5849 = vpack.c.b16 %v4521, %v4513
    %v5850 = vpack.c.b16 %v4522, %v4514
    %v5851 = vpack.c.b16 %v4523, %v4515
    %v5852 = vpack.c.b16 %v4524, %v4516
    %v5853 = vpack.c.b16 %v4525, %v4517
    %v5854 = vpack.c.b16 %v4534, %v4526
    %v5855 = vpack.c.b16 %v4535, %v4527
    %v5856 = vpack.c.b16 %v4536, %v4528
    %v5857 = vpack.c.b16 %v4537, %v4529
    %v5858 = vpack.c.b16 %v4538, %v4530
    %v5859 = vpack.c.b16 %v4539, %v4531
    %v5860 = vpack.c.b16 %v4540, %v4532
    %v5861 = vpack.c.b16 %v4541, %v4533
    %v5862 = vpack.c.b16 %v4550, %v4542
    %v5863 = vpack.c.b16 %v4551, %v4543
    %v5864 = vpack.c.b16 %v4552, %v4544
    %v5865 = vpack.c.b16 %v4553, %v4545
    %v5866 = vpack.c.b16 %v4554, %v4546
    %v5867 = vpack.c.b16 %v4555, %v4547
    %v5868 = vpack.c.b16 %v4556, %v4548
    %v5869 = vpack.c.b16 %v4557, %v4549
    %v5870 = vpack.c.b16 %v4566, %v4558
    %v5871 = vpack.c.b16 %v4567, %v4559
    %v5872 = vpack.c.b16 %v4568, %v4560
    %v5873 = vpack.c.b16 %v4569, %v4561
    %v5874 = vpack.c.b16 %v4570, %v4562
    %v5875 = vpack.c.b16 %v4571, %v4563
    %v5876 = vpack.c.b16 %v4572, %v4564
    %v5877 = vpack.c.b16 %v4573, %v4565
    %v5878 = vpack.c.b16 %v4582, %v4574
    %v5879 = vpack.c.b16 %v4583, %v4575
    %v5880 = vpack.c.b16 %v4584, %v4576
    %v5881 = vpack.c.b16 %v4585, %v4577
    %v5882 = vpack.c.b16 %v4586, %v4578
    %v5883 = vpack.c.b16 %v4587, %v4579
    %v5884 = vpack.c.b16 %v4588, %v4580
    %v5885 = vpack.c.b16 %v4589, %v4581
    %v5886 = vpack.c.b16 %v4598, %v4590
    %v5887 = vpack.c.b16 %v4599, %v4591
    %v5888 = vpack.c.b16 %v4600, %v4592
    %v5889 = vpack.c.b16 %v4601, %v4593
    %v5890 = vpack.c.b16 %v4602, %v4594
    %v5891 = vpack.c.b16 %v4603, %v4595
    %v5892 = vpack.c.b16 %v4604, %v4596
    %v5893 = vpack.c.b16 %v4605, %v4597
    %v5894 = vpack.c.b16 %v4614, %v4606
    %v5895 = vpack.c.b16 %v4615, %v4607
    %v5896 = vpack.c.b16 %v4616, %v4608
    %v5897 = vpack.c.b16 %v4617, %v4609
    %v5898 = vpack.c.b16 %v4618, %v4610
    %v5899 = vpack.c.b16 %v4619, %v4611
    %v5900 = vpack.c.b16 %v4620, %v4612
    %v5901 = vpack.c.b16 %v4621, %v4613
    %v5902 = vpack.c.b16 %v4630, %v4622
    %v5903 = vpack.c.b16 %v4631, %v4623
    %v5904 = vpack.c.b16 %v4632, %v4624
    %v5905 = vpack.c.b16 %v4633, %v4625
    %v5906 = vpack.c.b16 %v4634, %v4626
    %v5907 = vpack.c.b16 %v4635, %v4627
    %v5908 = vpack.c.b16 %v4636, %v4628
    %v5909 = vpack.c.b16 %v4637, %v4629
    %v5910 = vpack.c.b16 %v4646, %v4638
    %v5911 = vpack.c.b16 %v4647, %v4639
    %v5912 = vpack.c.b16 %v4648, %v4640
    %v5913 = vpack.c.b16 %v4649, %v4641
    %v5914 = vpack.c.b16 %v4650, %v4642
    %v5915 = vpack.c.b16 %v4651, %v4643
    %v5916 = vpack.c.b16 %v4652, %v4644
    %v5917 = vpack.c.b16 %v4653, %v4645
    %v5918 = vpack.c.b16 %v4662, %v4654
    %v5919 = vpack.c.b16 %v4663, %v4655
    %v5920 = vpack.c.b16 %v4664, %v4656
    %v5921 = vpack.c.b16 %v4665, %v4657
    %v5922 = vpack.c.b16 %v4666, %v4658
    %v5923 = vpack.c.b16 %v4667, %v4659
    %v5924 = vpack.c.b16 %v4668, %v4660
    %v5925 = vpack.c.b16 %v4669, %v4661
    %v5926 = vpack.c.b16 %v4678, %v4670
    %v5927 = vpack.c.b16 %v4679, %v4671
    %v5928 = vpack.c.b16 %v4680, %v4672
    %v5929 = vpack.c.b16 %v4681, %v4673
    %v5930 = vpack.c.b16 %v4682, %v4674
    %v5931 = vpack.c.b16 %v4683, %v4675
    %v5932 = vpack.c.b16 %v4684, %v4676
    %v5933 = vpack.c.b16 %v4685, %v4677
    %v5934 = vpack.c.b16 %v4694, %v4686
    %v5935 = vpack.c.b16 %v4695, %v4687
    %v5936 = vpack.c.b16 %v4696, %v4688
    %v5937 = vpack.c.b16 %v4697, %v4689
    %v5938 = vpack.c.b16 %v4698, %v4690
    %v5939 = vpack.c.b16 %v4699, %v4691
    %v5940 = vpack.c.b16 %v4700, %v4692
    %v5941 = vpack.c.b16 %v4701, %v4693
    %v5942 = vpack.c.b16 %v4710, %v4702
    %v5943 = vpack.c.b16 %v4711, %v4703
    %v5944 = vpack.c.b16 %v4712, %v4704
    %v5945 = vpack.c.b16 %v4713, %v4705
    %v5946 = vpack.c.b16 %v4714, %v4706
    %v5947 = vpack.c.b16 %v4715, %v4707
    %v5948 = vpack.c.b16 %v4716, %v4708
    %v5949 = vpack.c.b16 %v4717, %v4709
    %v5950 = vpack.c.b16 %v4726, %v4718
    %v5951 = vpack.c.b16 %v4727, %v4719
    %v5952 = vpack.c.b16 %v4728, %v4720
    %v5953 = vpack.c.b16 %v4729, %v4721
    %v5954 = vpack.c.b16 %v4730, %v4722
    %v5955 = vpack.c.b16 %v4731, %v4723
    %v5956 = vpack.c.b16 %v4732, %v4724
    %v5957 = vpack.c.b16 %v4733, %v4725
    %v5958 = vpack.c.b16 %v4742, %v4734
    %v5959 = vpack.c.b16 %v4743, %v4735
    %v5960 = vpack.c.b16 %v4744, %v4736
    %v5961 = vpack.c.b16 %v4745, %v4737
    %v5962 = vpack.c.b16 %v4746, %v4738
    %v5963 = vpack.c.b16 %v4747, %v4739
    %v5964 = vpack.c.b16 %v4748, %v4740
    %v5965 = vpack.c.b16 %v4749, %v4741
    %v5966 = vpack.c.b16 %v4758, %v4750
    %v5967 = vpack.c.b16 %v4759, %v4751
    %v5968 = vpack.c.b16 %v4760, %v4752
    %v5969 = vpack.c.b16 %v4761, %v4753
    %v5970 = vpack.c.b16 %v4762, %v4754
    %v5971 = vpack.c.b16 %v4763, %v4755
    %v5972 = vpack.c.b16 %v4764, %v4756
    %v5973 = vpack.c.b16 %v4765, %v4757
    %v5974 = vpack.c.b16 %v4774, %v4766
    %v5975 = vpack.c.b16 %v4775, %v4767
    %v5976 = vpack.c.b16 %v4776, %v4768
    %v5977 = vpack.c.b16 %v4777, %v4769
    %v5978 = vpack.c.b16 %v4778, %v4770
    %v5979 = vpack.c.b16 %v4779, %v4771
    %v5980 = vpack.c.b16 %v4780, %v4772
    %v5981 = vpack.c.b16 %v4781, %v4773
    %v5982 = vpack.c.b16 %v4790, %v4782
    %v5983 = vpack.c.b16 %v4791, %v4783
    %v5984 = vpack.c.b16 %v4792, %v4784
    %v5985 = vpack.c.b16 %v4793, %v4785
    %v5986 = vpack.c.b16 %v4794, %v4786
    %v5987 = vpack.c.b16 %v4795, %v4787
    %v5988 = vpack.c.b16 %v4796, %v4788
    %v5989 = vpack.c.b16 %v4797, %v4789
    %v5990 = vpack.c.b16 %v4806, %v4798
    %v5991 = vpack.c.b16 %v4807, %v4799
    %v5992 = vpack.c.b16 %v4808, %v4800
    %v5993 = vpack.c.b16 %v4809, %v4801
    %v5994 = vpack.c.b16 %v4810, %v4802
    %v5995 = vpack.c.b16 %v4811, %v4803
    %v5996 = vpack.c.b16 %v4812, %v4804
    %v5997 = vpack.c.b16 %v4813, %v4805
    %v5998 = vpack.c.b16 %v4822, %v4814
    %v5999 = vpack.c.b16 %v4823, %v4815
    %v6000 = vpack.c.b16 %v4824, %v4816
    %v6001 = vpack.c.b16 %v4825, %v4817
    %v6002 = vpack.c.b16 %v4826, %v4818
    %v6003 = vpack.c.b16 %v4827, %v4819
    %v6004 = vpack.c.b16 %v4828, %v4820
    %v6005 = vpack.c.b16 %v4829, %v4821
    %v6006 = vpack.c.b16 %v4838, %v4830
    %v6007 = vpack.c.b16 %v4839, %v4831
    %v6008 = vpack.c.b16 %v4840, %v4832
    %v6009 = vpack.c.b16 %v4841, %v4833
    %v6010 = vpack.c.b16 %v4842, %v4834
    %v6011 = vpack.c.b16 %v4843, %v4835
    %v6012 = vpack.c.b16 %v4844, %v4836
    %v6013 = vpack.c.b16 %v4845, %v4837
    %v6014 = vpack.c.b16 %v4854, %v4846
    %v6015 = vpack.c.b16 %v4855, %v4847
    %v6016 = vpack.c.b16 %v4856, %v4848
    %v6017 = vpack.c.b16 %v4857, %v4849
    %v6018 = vpack.c.b16 %v4858, %v4850
    %v6019 = vpack.c.b16 %v4859, %v4851
    %v6020 = vpack.c.b16 %v4860, %v4852
    %v6021 = vpack.c.b16 %v4861, %v4853
    %v6022 = vpack.c.b16 %v4870, %v4862
    %v6023 = vpack.c.b16 %v4871, %v4863
    %v6024 = vpack.c.b16 %v4872, %v4864
    %v6025 = vpack.c.b16 %v4873, %v4865
    %v6026 = vpack.c.b16 %v4874, %v4866
    %v6027 = vpack.c.b16 %v4875, %v4867
    %v6028 = vpack.c.b16 %v4876, %v4868
    %v6029 = vpack.c.b16 %v4877, %v4869
    %7182 = vmatprep.subr.bf16.mxu0 %v4879
    %7183 = vmatpush1.bf16.msra.mxu0 %v4878
    %7184 = vmatprep.subr.bf16.mxu0 %v4887
    %7185 = vmatpush1.bf16.msra.mxu0 %v4886
    %7186 = vmatprep.subr.bf16.mxu0 %v4895
    %7187 = vmatpush1.bf16.msra.mxu0 %v4894
    %7188 = vmatprep.subr.bf16.mxu0 %v4903
    %7189 = vmatpush1.bf16.msra.mxu0 %v4902
    %7190 = vmatprep.subr.bf16.mxu0 %v4911
    %7191 = vmatpush1.bf16.msra.mxu0 %v4910
    %7192 = vmatprep.subr.bf16.mxu0 %v4919
    %7193 = vmatpush1.bf16.msra.mxu0 %v4918
    %7194 = vmatprep.subr.bf16.mxu0 %v4927
    %7195 = vmatpush1.bf16.msra.mxu0 %v4926
    %7196 = vmatprep.subr.bf16.mxu0 %v4935
    %7197 = vmatpush1.bf16.msra.mxu0 %v4934
    %7198 = vmatprep.subr.bf16.mxu0 %v4943
    %7199 = vmatpush1.bf16.msra.mxu0 %v4942
    %7200 = vmatprep.subr.bf16.mxu0 %v4951
    %7201 = vmatpush1.bf16.msra.mxu0 %v4950
    %7202 = vmatprep.subr.bf16.mxu0 %v4959
    %7203 = vmatpush1.bf16.msra.mxu0 %v4958
    %7204 = vmatprep.subr.bf16.mxu0 %v4967
    %7205 = vmatpush1.bf16.msra.mxu0 %v4966
    %7206 = vmatprep.subr.bf16.mxu0 %v4975
    %7207 = vmatpush1.bf16.msra.mxu0 %v4974
    %7208 = vmatprep.subr.bf16.mxu0 %v4983
    %7209 = vmatpush1.bf16.msra.mxu0 %v4982
    %7210 = vmatprep.subr.bf16.mxu0 %v4991
    %7211 = vmatpush1.bf16.msra.mxu0 %v4990
    %7212 = vmatprep.subr.bf16.mxu0 %v4999
    %7213 = vmatpush1.bf16.msra.mxu0 %v4998
    %7214 = vmatprep.mubr.bf16.mxu0 %v1351
    %7215 = vmatmul.mubr.bf16.gmra.mrb[0].mxu0 %v1350
    %v7216 = vpop.f32.mrb[0].mxu0
    %v7217 = vadd.f32 0.0, %v7216
    %v7218 = vpop.f32.mrb[0].mxu0
    %v7219 = vadd.f32 0.0, %v7218
    %v7220 = vpop.f32.mrb[0].mxu0
    %v7221 = vadd.f32 0.0, %v7220
    %v7222 = vpop.f32.mrb[0].mxu0
    %v7223 = vadd.f32 0.0, %v7222
    %7224 = vmatprep.mubr.bf16.mxu0 %v1369
    %7225 = vmatmul.mubr.bf16.gmra.mrb[0].mxu0 %v1368
    %v7226 = vpop.f32.mrb[0].mxu0
    %v7227 = vadd.f32 0.0, %v7226
    %v7228 = vpop.f32.mrb[0].mxu0
    %v7229 = vadd.f32 0.0, %v7228
    %v7230 = vpop.f32.mrb[0].mxu0
    %v7231 = vadd.f32 0.0, %v7230
    %v7232 = vpop.f32.mrb[0].mxu0
    %v7233 = vadd.f32 0.0, %v7232
    %7234 = vdwg.mxu0
    %7235 = vmatprep.subr.bf16.mxu0 %v5007
    %7236 = vmatpush1.bf16.msra.mxu0 %v5006
    %7237 = vmatprep.subr.bf16.mxu0 %v5015
    %7238 = vmatpush1.bf16.msra.mxu0 %v5014
    %7239 = vmatprep.subr.bf16.mxu0 %v5023
    %7240 = vmatpush1.bf16.msra.mxu0 %v5022
    %7241 = vmatprep.subr.bf16.mxu0 %v5031
    %7242 = vmatpush1.bf16.msra.mxu0 %v5030
    %7243 = vmatprep.subr.bf16.mxu0 %v5039
    %7244 = vmatpush1.bf16.msra.mxu0 %v5038
    %7245 = vmatprep.subr.bf16.mxu0 %v5047
    %7246 = vmatpush1.bf16.msra.mxu0 %v5046
    %7247 = vmatprep.subr.bf16.mxu0 %v5055
    %7248 = vmatpush1.bf16.msra.mxu0 %v5054
    %7249 = vmatprep.subr.bf16.mxu0 %v5063
    %7250 = vmatpush1.bf16.msra.mxu0 %v5062
    %7251 = vmatprep.subr.bf16.mxu0 %v5071
    %7252 = vmatpush1.bf16.msra.mxu0 %v5070
    %7253 = vmatprep.subr.bf16.mxu0 %v5079
    %7254 = vmatpush1.bf16.msra.mxu0 %v5078
    %7255 = vmatprep.subr.bf16.mxu0 %v5087
    %7256 = vmatpush1.bf16.msra.mxu0 %v5086
    %7257 = vmatprep.subr.bf16.mxu0 %v5095
    %7258 = vmatpush1.bf16.msra.mxu0 %v5094
    %7259 = vmatprep.subr.bf16.mxu0 %v5103
    %7260 = vmatpush1.bf16.msra.mxu0 %v5102
    %7261 = vmatprep.subr.bf16.mxu0 %v5111
    %7262 = vmatpush1.bf16.msra.mxu0 %v5110
    %7263 = vmatprep.subr.bf16.mxu0 %v5119
    %7264 = vmatpush1.bf16.msra.mxu0 %v5118
    %7265 = vmatprep.subr.bf16.mxu0 %v5127
    %7266 = vmatpush1.bf16.msra.mxu0 %v5126
    %7267 = vmatprep.mubr.bf16.mxu0 %v1353
    %7268 = vmatmul.mubr.bf16.gmra.mrb[0].mxu0 %v1352
    %v7269 = vpop.f32.mrb[0].mxu0
    %v7270 = vadd.f32 %v7217, %v7269
    %v7271 = vpop.f32.mrb[0].mxu0
    %v7272 = vadd.f32 %v7219, %v7271
    %v7273 = vpop.f32.mrb[0].mxu0
    %v7274 = vadd.f32 %v7221, %v7273
    %v7275 = vpop.f32.mrb[0].mxu0
    %v7276 = vadd.f32 %v7223, %v7275
    %7277 = vmatprep.mubr.bf16.mxu0 %v1371
    %7278 = vmatmul.mubr.bf16.gmra.mrb[0].mxu0 %v1370
    %v7279 = vpop.f32.mrb[0].mxu0
    %v7280 = vadd.f32 %v7227, %v7279
    %v7281 = vpop.f32.mrb[0].mxu0
    %v7282 = vadd.f32 %v7229, %v7281
    %v7283 = vpop.f32.mrb[0].mxu0
    %v7284 = vadd.f32 %v7231, %v7283
    %v7285 = vpop.f32.mrb[0].mxu0
    %v7286 = vadd.f32 %v7233, %v7285
    %7287 = vdwg.mxu0
    %7288 = vmatprep.subr.bf16.mxu0 %v5135
    %7289 = vmatpush1.bf16.msra.mxu0 %v5134
    %7290 = vmatprep.subr.bf16.mxu0 %v5143
    %7291 = vmatpush1.bf16.msra.mxu0 %v5142
    %7292 = vmatprep.subr.bf16.mxu0 %v5151
    %7293 = vmatpush1.bf16.msra.mxu0 %v5150
    %7294 = vmatprep.subr.bf16.mxu0 %v5159
    %7295 = vmatpush1.bf16.msra.mxu0 %v5158
    %7296 = vmatprep.subr.bf16.mxu0 %v5167
    %7297 = vmatpush1.bf16.msra.mxu0 %v5166
    %7298 = vmatprep.subr.bf16.mxu0 %v5175
    %7299 = vmatpush1.bf16.msra.mxu0 %v5174
    %7300 = vmatprep.subr.bf16.mxu0 %v5183
    %7301 = vmatpush1.bf16.msra.mxu0 %v5182
    %7302 = vmatprep.subr.bf16.mxu0 %v5191
    %7303 = vmatpush1.bf16.msra.mxu0 %v5190
    %7304 = vmatprep.subr.bf16.mxu0 %v5199
    %7305 = vmatpush1.bf16.msra.mxu0 %v5198
    %7306 = vmatprep.subr.bf16.mxu0 %v5207
    %7307 = vmatpush1.bf16.msra.mxu0 %v5206
    %7308 = vmatprep.subr.bf16.mxu0 %v5215
    %7309 = vmatpush1.bf16.msra.mxu0 %v5214
    %7310 = vmatprep.subr.bf16.mxu0 %v5223
    %7311 = vmatpush1.bf16.msra.mxu0 %v5222
    %7312 = vmatprep.subr.bf16.mxu0 %v5231
    %7313 = vmatpush1.bf16.msra.mxu0 %v5230
    %7314 = vmatprep.subr.bf16.mxu0 %v5239
    %7315 = vmatpush1.bf16.msra.mxu0 %v5238
    %7316 = vmatprep.subr.bf16.mxu0 %v5247
    %7317 = vmatpush1.bf16.msra.mxu0 %v5246
    %7318 = vmatprep.subr.bf16.mxu0 %v5255
    %7319 = vmatpush1.bf16.msra.mxu0 %v5254
    %7320 = vmatprep.mubr.bf16.mxu0 %v1355
    %7321 = vmatmul.mubr.bf16.gmra.mrb[0].mxu0 %v1354
    %v7322 = vpop.f32.mrb[0].mxu0
    %v7323 = vadd.f32 %v7270, %v7322
    %v7324 = vpop.f32.mrb[0].mxu0
    %v7325 = vadd.f32 %v7272, %v7324
    %v7326 = vpop.f32.mrb[0].mxu0
    %v7327 = vadd.f32 %v7274, %v7326
    %v7328 = vpop.f32.mrb[0].mxu0
    %v7329 = vadd.f32 %v7276, %v7328
    %7330 = vmatprep.mubr.bf16.mxu0 %v1373
    %7331 = vmatmul.mubr.bf16.gmra.mrb[0].mxu0 %v1372
    %v7332 = vpop.f32.mrb[0].mxu0
    %v7333 = vadd.f32 %v7280, %v7332
    %v7334 = vpop.f32.mrb[0].mxu0
    %v7335 = vadd.f32 %v7282, %v7334
    %v7336 = vpop.f32.mrb[0].mxu0
    %v7337 = vadd.f32 %v7284, %v7336
    %v7338 = vpop.f32.mrb[0].mxu0
    %v7339 = vadd.f32 %v7286, %v7338
    %7340 = vdwg.mxu0
    %7341 = vmatprep.subr.bf16.mxu0 %v5263
    %7342 = vmatpush1.bf16.msra.mxu0 %v5262
    %7343 = vmatprep.subr.bf16.mxu0 %v5271
    %7344 = vmatpush1.bf16.msra.mxu0 %v5270
    %7345 = vmatprep.subr.bf16.mxu0 %v5279
    %7346 = vmatpush1.bf16.msra.mxu0 %v5278
    %7347 = vmatprep.subr.bf16.mxu0 %v5287
    %7348 = vmatpush1.bf16.msra.mxu0 %v5286
    %7349 = vmatprep.subr.bf16.mxu0 %v5295
    %7350 = vmatpush1.bf16.msra.mxu0 %v5294
    %7351 = vmatprep.subr.bf16.mxu0 %v5303
    %7352 = vmatpush1.bf16.msra.mxu0 %v5302
    %7353 = vmatprep.subr.bf16.mxu0 %v5311
    %7354 = vmatpush1.bf16.msra.mxu0 %v5310
    %7355 = vmatprep.subr.bf16.mxu0 %v5319
    %7356 = vmatpush1.bf16.msra.mxu0 %v5318
    %7357 = vmatprep.subr.bf16.mxu0 %v5327
    %7358 = vmatpush1.bf16.msra.mxu0 %v5326
    %7359 = vmatprep.subr.bf16.mxu0 %v5335
    %7360 = vmatpush1.bf16.msra.mxu0 %v5334
    %7361 = vmatprep.subr.bf16.mxu0 %v5343
    %7362 = vmatpush1.bf16.msra.mxu0 %v5342
    %7363 = vmatprep.subr.bf16.mxu0 %v5351
    %7364 = vmatpush1.bf16.msra.mxu0 %v5350
    %7365 = vmatprep.subr.bf16.mxu0 %v5359
    %7366 = vmatpush1.bf16.msra.mxu0 %v5358
    %7367 = vmatprep.subr.bf16.mxu0 %v5367
    %7368 = vmatpush1.bf16.msra.mxu0 %v5366
    %7369 = vmatprep.subr.bf16.mxu0 %v5375
    %7370 = vmatpush1.bf16.msra.mxu0 %v5374
    %7371 = vmatprep.subr.bf16.mxu0 %v5383
    %7372 = vmatpush1.bf16.msra.mxu0 %v5382
    %7373 = vmatprep.mubr.bf16.mxu0 %v1357
    %7374 = vmatmul.mubr.bf16.gmra.mrb[0].mxu0 %v1356
    %v7375 = vpop.f32.mrb[0].mxu0
    %v7376 = vadd.f32 %v7323, %v7375
    %v7377 = vpop.f32.mrb[0].mxu0
    %v7378 = vadd.f32 %v7325, %v7377
    %v7379 = vpop.f32.mrb[0].mxu0
    %v7380 = vadd.f32 %v7327, %v7379
    %v7381 = vpop.f32.mrb[0].mxu0
    %v7382 = vadd.f32 %v7329, %v7381
    %7383 = vmatprep.mubr.bf16.mxu0 %v1375
    %7384 = vmatmul.mubr.bf16.gmra.mrb[0].mxu0 %v1374
    %v7385 = vpop.f32.mrb[0].mxu0
    %v7386 = vadd.f32 %v7333, %v7385
    %v7387 = vpop.f32.mrb[0].mxu0
    %v7388 = vadd.f32 %v7335, %v7387
    %v7389 = vpop.f32.mrb[0].mxu0
    %v7390 = vadd.f32 %v7337, %v7389
    %v7391 = vpop.f32.mrb[0].mxu0
    %v7392 = vadd.f32 %v7339, %v7391
    %7393 = vdwg.mxu0
    %7394 = vmatprep.subr.bf16.mxu0 %v5391
    %7395 = vmatpush1.bf16.msra.mxu0 %v5390
    %7396 = vmatprep.subr.bf16.mxu0 %v5399
    %7397 = vmatpush1.bf16.msra.mxu0 %v5398
    %7398 = vmatprep.subr.bf16.mxu0 %v5407
    %7399 = vmatpush1.bf16.msra.mxu0 %v5406
    %7400 = vmatprep.subr.bf16.mxu0 %v5415
    %7401 = vmatpush1.bf16.msra.mxu0 %v5414
    %7402 = vmatprep.subr.bf16.mxu0 %v5423
    %7403 = vmatpush1.bf16.msra.mxu0 %v5422
    %7404 = vmatprep.subr.bf16.mxu0 %v5431
    %7405 = vmatpush1.bf16.msra.mxu0 %v5430
    %7406 = vmatprep.subr.bf16.mxu0 %v5439
    %7407 = vmatpush1.bf16.msra.mxu0 %v5438
    %7408 = vmatprep.subr.bf16.mxu0 %v5447
    %7409 = vmatpush1.bf16.msra.mxu0 %v5446
    %7410 = vmatprep.subr.bf16.mxu0 %v5455
    %7411 = vmatpush1.bf16.msra.mxu0 %v5454
    %7412 = vmatprep.subr.bf16.mxu0 %v5463
    %7413 = vmatpush1.bf16.msra.mxu0 %v5462
    %7414 = vmatprep.subr.bf16.mxu0 %v5471
    %7415 = vmatpush1.bf16.msra.mxu0 %v5470
    %7416 = vmatprep.subr.bf16.mxu0 %v5479
    %7417 = vmatpush1.bf16.msra.mxu0 %v5478
    %7418 = vmatprep.subr.bf16.mxu0 %v5487
    %7419 = vmatpush1.bf16.msra.mxu0 %v5486
    %7420 = vmatprep.subr.bf16.mxu0 %v5495
    %7421 = vmatpush1.bf16.msra.mxu0 %v5494
    %7422 = vmatprep.subr.bf16.mxu0 %v5503
    %7423 = vmatpush1.bf16.msra.mxu0 %v5502
    %7424 = vmatprep.subr.bf16.mxu0 %v5511
    %7425 = vmatpush1.bf16.msra.mxu0 %v5510
    %7426 = vmatprep.mubr.bf16.mxu0 %v1359
    %7427 = vmatmul.mubr.bf16.gmra.mrb[0].mxu0 %v1358
    %v7428 = vpop.f32.mrb[0].mxu0
    %v7429 = vadd.f32 %v7376, %v7428
    %v7430 = vpop.f32.mrb[0].mxu0
    %v7431 = vadd.f32 %v7378, %v7430
    %v7432 = vpop.f32.mrb[0].mxu0
    %v7433 = vadd.f32 %v7380, %v7432
    %v7434 = vpop.f32.mrb[0].mxu0
    %v7435 = vadd.f32 %v7382, %v7434
    %7436 = vmatprep.mubr.bf16.mxu0 %v1377
    %7437 = vmatmul.mubr.bf16.gmra.mrb[0].mxu0 %v1376
    %v7438 = vpop.f32.mrb[0].mxu0
    %v7439 = vadd.f32 %v7386, %v7438
    %v7440 = vpop.f32.mrb[0].mxu0
    %v7441 = vadd.f32 %v7388, %v7440
    %v7442 = vpop.f32.mrb[0].mxu0
    %v7443 = vadd.f32 %v7390, %v7442
    %v7444 = vpop.f32.mrb[0].mxu0
    %v7445 = vadd.f32 %v7392, %v7444
    %7446 = vdwg.mxu0
    %7447 = vmatprep.subr.bf16.mxu0 %v5519
    %7448 = vmatpush1.bf16.msra.mxu0 %v5518
    %7449 = vmatprep.subr.bf16.mxu0 %v5527
    %7450 = vmatpush1.bf16.msra.mxu0 %v5526
    %7451 = vmatprep.subr.bf16.mxu0 %v5535
    %7452 = vmatpush1.bf16.msra.mxu0 %v5534
    %7453 = vmatprep.subr.bf16.mxu0 %v5543
    %7454 = vmatpush1.bf16.msra.mxu0 %v5542
    %7455 = vmatprep.subr.bf16.mxu0 %v5551
    %7456 = vmatpush1.bf16.msra.mxu0 %v5550
    %7457 = vmatprep.subr.bf16.mxu0 %v5559
    %7458 = vmatpush1.bf16.msra.mxu0 %v5558
    %7459 = vmatprep.subr.bf16.mxu0 %v5567
    %7460 = vmatpush1.bf16.msra.mxu0 %v5566
    %7461 = vmatprep.subr.bf16.mxu0 %v5575
    %7462 = vmatpush1.bf16.msra.mxu0 %v5574
    %7463 = vmatprep.subr.bf16.mxu0 %v5583
    %7464 = vmatpush1.bf16.msra.mxu0 %v5582
    %7465 = vmatprep.subr.bf16.mxu0 %v5591
    %7466 = vmatpush1.bf16.msra.mxu0 %v5590
    %7467 = vmatprep.subr.bf16.mxu0 %v5599
    %7468 = vmatpush1.bf16.msra.mxu0 %v5598
    %7469 = vmatprep.subr.bf16.mxu0 %v5607
    %7470 = vmatpush1.bf16.msra.mxu0 %v5606
    %7471 = vmatprep.subr.bf16.mxu0 %v5615
    %7472 = vmatpush1.bf16.msra.mxu0 %v5614
    %7473 = vmatprep.subr.bf16.mxu0 %v5623
    %7474 = vmatpush1.bf16.msra.mxu0 %v5622
    %7475 = vmatprep.subr.bf16.mxu0 %v5631
    %7476 = vmatpush1.bf16.msra.mxu0 %v5630
    %7477 = vmatprep.subr.bf16.mxu0 %v5639
    %7478 = vmatpush1.bf16.msra.mxu0 %v5638
    %7479 = vmatprep.mubr.bf16.mxu0 %v1361
    %7480 = vmatmul.mubr.bf16.gmra.mrb[0].mxu0 %v1360
    %v7481 = vpop.f32.mrb[0].mxu0
    %v7482 = vadd.f32 %v7429, %v7481
    %v7483 = vpop.f32.mrb[0].mxu0
    %v7484 = vadd.f32 %v7431, %v7483
    %v7485 = vpop.f32.mrb[0].mxu0
    %v7486 = vadd.f32 %v7433, %v7485
    %v7487 = vpop.f32.mrb[0].mxu0
    %v7488 = vadd.f32 %v7435, %v7487
    %7489 = vmatprep.mubr.bf16.mxu0 %v1379
    %7490 = vmatmul.mubr.bf16.gmra.mrb[0].mxu0 %v1378
    %v7491 = vpop.f32.mrb[0].mxu0
    %v7492 = vadd.f32 %v7439, %v7491
    %v7493 = vpop.f32.mrb[0].mxu0
    %v7494 = vadd.f32 %v7441, %v7493
    %v7495 = vpop.f32.mrb[0].mxu0
    %v7496 = vadd.f32 %v7443, %v7495
    %v7497 = vpop.f32.mrb[0].mxu0
    %v7498 = vadd.f32 %v7445, %v7497
    %7499 = vdwg.mxu0
    %7500 = vmatprep.subr.bf16.mxu0 %v5647
    %7501 = vmatpush1.bf16.msra.mxu0 %v5646
    %7502 = vmatprep.subr.bf16.mxu0 %v5655
    %7503 = vmatpush1.bf16.msra.mxu0 %v5654
    %7504 = vmatprep.subr.bf16.mxu0 %v5663
    %7505 = vmatpush1.bf16.msra.mxu0 %v5662
    %7506 = vmatprep.subr.bf16.mxu0 %v5671
    %7507 = vmatpush1.bf16.msra.mxu0 %v5670
    %7508 = vmatprep.subr.bf16.mxu0 %v5679
    %7509 = vmatpush1.bf16.msra.mxu0 %v5678
    %7510 = vmatprep.subr.bf16.mxu0 %v5687
    %7511 = vmatpush1.bf16.msra.mxu0 %v5686
    %7512 = vmatprep.subr.bf16.mxu0 %v5695
    %7513 = vmatpush1.bf16.msra.mxu0 %v5694
    %7514 = vmatprep.subr.bf16.mxu0 %v5703
    %7515 = vmatpush1.bf16.msra.mxu0 %v5702
    %7516 = vmatprep.subr.bf16.mxu0 %v5711
    %7517 = vmatpush1.bf16.msra.mxu0 %v5710
    %7518 = vmatprep.subr.bf16.mxu0 %v5719
    %7519 = vmatpush1.bf16.msra.mxu0 %v5718
    %7520 = vmatprep.subr.bf16.mxu0 %v5727
    %7521 = vmatpush1.bf16.msra.mxu0 %v5726
    %7522 = vmatprep.subr.bf16.mxu0 %v5735
    %7523 = vmatpush1.bf16.msra.mxu0 %v5734
    %7524 = vmatprep.subr.bf16.mxu0 %v5743
    %7525 = vmatpush1.bf16.msra.mxu0 %v5742
    %7526 = vmatprep.subr.bf16.mxu0 %v5751
    %7527 = vmatpush1.bf16.msra.mxu0 %v5750
    %7528 = vmatprep.subr.bf16.mxu0 %v5759
    %7529 = vmatpush1.bf16.msra.mxu0 %v5758
    %7530 = vmatprep.subr.bf16.mxu0 %v5767
    %7531 = vmatpush1.bf16.msra.mxu0 %v5766
    %7532 = vmatprep.mubr.bf16.mxu0 %v1363
    %7533 = vmatmul.mubr.bf16.gmra.mrb[0].mxu0 %v1362
    %v7534 = vpop.f32.mrb[0].mxu0
    %v7535 = vadd.f32 %v7482, %v7534
    %v7536 = vpop.f32.mrb[0].mxu0
    %v7537 = vadd.f32 %v7484, %v7536
    %v7538 = vpop.f32.mrb[0].mxu0
    %v7539 = vadd.f32 %v7486, %v7538
    %v7540 = vpop.f32.mrb[0].mxu0
    %v7541 = vadd.f32 %v7488, %v7540
    %7542 = vmatprep.mubr.bf16.mxu0 %v1381
    %7543 = vmatmul.mubr.bf16.gmra.mrb[0].mxu0 %v1380
    %v7544 = vpop.f32.mrb[0].mxu0
    %v7545 = vadd.f32 %v7492, %v7544
    %v7546 = vpop.f32.mrb[0].mxu0
    %v7547 = vadd.f32 %v7494, %v7546
    %v7548 = vpop.f32.mrb[0].mxu0
    %v7549 = vadd.f32 %v7496, %v7548
    %v7550 = vpop.f32.mrb[0].mxu0
    %v7551 = vadd.f32 %v7498, %v7550
    %7552 = vdwg.mxu0
    %7553 = vmatprep.subr.bf16.mxu0 %v5775
    %7554 = vmatpush1.bf16.msra.mxu0 %v5774
    %7555 = vmatprep.subr.bf16.mxu0 %v5783
    %7556 = vmatpush1.bf16.msra.mxu0 %v5782
    %7557 = vmatprep.subr.bf16.mxu0 %v5791
    %7558 = vmatpush1.bf16.msra.mxu0 %v5790
    %7559 = vmatprep.subr.bf16.mxu0 %v5799
    %7560 = vmatpush1.bf16.msra.mxu0 %v5798
    %7561 = vmatprep.subr.bf16.mxu0 %v5807
    %7562 = vmatpush1.bf16.msra.mxu0 %v5806
    %7563 = vmatprep.subr.bf16.mxu0 %v5815
    %7564 = vmatpush1.bf16.msra.mxu0 %v5814
    %7565 = vmatprep.subr.bf16.mxu0 %v5823
    %7566 = vmatpush1.bf16.msra.mxu0 %v5822
    %7567 = vmatprep.subr.bf16.mxu0 %v5831
    %7568 = vmatpush1.bf16.msra.mxu0 %v5830
    %7569 = vmatprep.subr.bf16.mxu0 %v5839
    %7570 = vmatpush1.bf16.msra.mxu0 %v5838
    %7571 = vmatprep.subr.bf16.mxu0 %v5847
    %7572 = vmatpush1.bf16.msra.mxu0 %v5846
    %7573 = vmatprep.subr.bf16.mxu0 %v5855
    %7574 = vmatpush1.bf16.msra.mxu0 %v5854
    %7575 = vmatprep.subr.bf16.mxu0 %v5863
    %7576 = vmatpush1.bf16.msra.mxu0 %v5862
    %7577 = vmatprep.subr.bf16.mxu0 %v5871
    %7578 = vmatpush1.bf16.msra.mxu0 %v5870
    %7579 = vmatprep.subr.bf16.mxu0 %v5879
    %7580 = vmatpush1.bf16.msra.mxu0 %v5878
    %7581 = vmatprep.subr.bf16.mxu0 %v5887
    %7582 = vmatpush1.bf16.msra.mxu0 %v5886
    %7583 = vmatprep.subr.bf16.mxu0 %v5895
    %7584 = vmatpush1.bf16.msra.mxu0 %v5894
    %7585 = vmatprep.mubr.bf16.mxu0 %v1365
    %7586 = vmatmul.mubr.bf16.gmra.mrb[0].mxu0 %v1364
    %v7587 = vpop.f32.mrb[0].mxu0
    %v7588 = vadd.f32 %v7535, %v7587
    %v7589 = vpop.f32.mrb[0].mxu0
    %v7590 = vadd.f32 %v7537, %v7589
    %v7591 = vpop.f32.mrb[0].mxu0
    %v7592 = vadd.f32 %v7539, %v7591
    %v7593 = vpop.f32.mrb[0].mxu0
    %v7594 = vadd.f32 %v7541, %v7593
    %7595 = vmatprep.mubr.bf16.mxu0 %v1383
    %7596 = vmatmul.mubr.bf16.gmra.mrb[0].mxu0 %v1382
    %v7597 = vpop.f32.mrb[0].mxu0
    %v7598 = vadd.f32 %v7545, %v7597
    %v7599 = vpop.f32.mrb[0].mxu0
    %v7600 = vadd.f32 %v7547, %v7599
    %v7601 = vpop.f32.mrb[0].mxu0
    %v7602 = vadd.f32 %v7549, %v7601
    %v7603 = vpop.f32.mrb[0].mxu0
    %v7604 = vadd.f32 %v7551, %v7603
    %7605 = vdwg.mxu0
    %7606 = vmatprep.subr.bf16.mxu0 %v5903
    %7607 = vmatpush1.bf16.msra.mxu0 %v5902
    %7608 = vmatprep.subr.bf16.mxu0 %v5911
    %7609 = vmatpush1.bf16.msra.mxu0 %v5910
    %7610 = vmatprep.subr.bf16.mxu0 %v5919
    %7611 = vmatpush1.bf16.msra.mxu0 %v5918
    %7612 = vmatprep.subr.bf16.mxu0 %v5927
    %7613 = vmatpush1.bf16.msra.mxu0 %v5926
    %7614 = vmatprep.subr.bf16.mxu0 %v5935
    %7615 = vmatpush1.bf16.msra.mxu0 %v5934
    %7616 = vmatprep.subr.bf16.mxu0 %v5943
    %7617 = vmatpush1.bf16.msra.mxu0 %v5942
    %7618 = vmatprep.subr.bf16.mxu0 %v5951
    %7619 = vmatpush1.bf16.msra.mxu0 %v5950
    %7620 = vmatprep.subr.bf16.mxu0 %v5959
    %7621 = vmatpush1.bf16.msra.mxu0 %v5958
    %7622 = vmatprep.subr.bf16.mxu0 %v5967
    %7623 = vmatpush1.bf16.msra.mxu0 %v5966
    %7624 = vmatprep.subr.bf16.mxu0 %v5975
    %7625 = vmatpush1.bf16.msra.mxu0 %v5974
    %7626 = vmatprep.subr.bf16.mxu0 %v5983
    %7627 = vmatpush1.bf16.msra.mxu0 %v5982
    %7628 = vmatprep.subr.bf16.mxu0 %v5991
    %7629 = vmatpush1.bf16.msra.mxu0 %v5990
    %7630 = vmatprep.subr.bf16.mxu0 %v5999
    %7631 = vmatpush1.bf16.msra.mxu0 %v5998
    %7632 = vmatprep.subr.bf16.mxu0 %v6007
    %7633 = vmatpush1.bf16.msra.mxu0 %v6006
    %7634 = vmatprep.subr.bf16.mxu0 %v6015
    %7635 = vmatpush1.bf16.msra.mxu0 %v6014
    %7636 = vmatprep.subr.bf16.mxu0 %v6023
    %7637 = vmatpush1.bf16.msra.mxu0 %v6022
    %7638 = vmatprep.mubr.bf16.mxu0 %v1367
    %7639 = vmatmul.mubr.bf16.gmra.mrb[0].mxu0 %v1366
    %v7640 = vpop.f32.mrb[0].mxu0
    %v7641 = vadd.f32 %v7588, %v7640
    %v7642 = vpop.f32.mrb[0].mxu0
    %v7643 = vadd.f32 %v7590, %v7642
    %v7644 = vpop.f32.mrb[0].mxu0
    %v7645 = vadd.f32 %v7592, %v7644
    %v7646 = vpop.f32.mrb[0].mxu0
    %v7647 = vadd.f32 %v7594, %v7646
    %7648 = vmatprep.mubr.bf16.mxu0 %v1385
    %7649 = vmatmul.mubr.bf16.gmra.mrb[0].mxu0 %v1384
    %v7650 = vpop.f32.mrb[0].mxu0
    %v7651 = vadd.f32 %v7598, %v7650
    %v7652 = vpop.f32.mrb[0].mxu0
    %v7653 = vadd.f32 %v7600, %v7652
    %v7654 = vpop.f32.mrb[0].mxu0
    %v7655 = vadd.f32 %v7602, %v7654
    %v7656 = vpop.f32.mrb[0].mxu0
    %v7657 = vadd.f32 %v7604, %v7656
    %7658 = vdwg.mxu0
    %7659 = vmatprep.subr.bf16.mxu0 %v4881
    %7660 = vmatpush1.bf16.msra.mxu0 %v4880
    %7661 = vmatprep.subr.bf16.mxu0 %v4889
    %7662 = vmatpush1.bf16.msra.mxu0 %v4888
    %7663 = vmatprep.subr.bf16.mxu0 %v4897
    %7664 = vmatpush1.bf16.msra.mxu0 %v4896
    %7665 = vmatprep.subr.bf16.mxu0 %v4905
    %7666 = vmatpush1.bf16.msra.mxu0 %v4904
    %7667 = vmatprep.subr.bf16.mxu0 %v4913
    %7668 = vmatpush1.bf16.msra.mxu0 %v4912
    %7669 = vmatprep.subr.bf16.mxu0 %v4921
    %7670 = vmatpush1.bf16.msra.mxu0 %v4920
    %7671 = vmatprep.subr.bf16.mxu0 %v4929
    %7672 = vmatpush1.bf16.msra.mxu0 %v4928
    %7673 = vmatprep.subr.bf16.mxu0 %v4937
    %7674 = vmatpush1.bf16.msra.mxu0 %v4936
    %7675 = vmatprep.subr.bf16.mxu0 %v4945
    %7676 = vmatpush1.bf16.msra.mxu0 %v4944
    %7677 = vmatprep.subr.bf16.mxu0 %v4953
    %7678 = vmatpush1.bf16.msra.mxu0 %v4952
    %7679 = vmatprep.subr.bf16.mxu0 %v4961
    %7680 = vmatpush1.bf16.msra.mxu0 %v4960
    %7681 = vmatprep.subr.bf16.mxu0 %v4969
    %7682 = vmatpush1.bf16.msra.mxu0 %v4968
    %7683 = vmatprep.subr.bf16.mxu0 %v4977
    %7684 = vmatpush1.bf16.msra.mxu0 %v4976
    %7685 = vmatprep.subr.bf16.mxu0 %v4985
    %7686 = vmatpush1.bf16.msra.mxu0 %v4984
    %7687 = vmatprep.subr.bf16.mxu0 %v4993
    %7688 = vmatpush1.bf16.msra.mxu0 %v4992
    %7689 = vmatprep.subr.bf16.mxu0 %v5001
    %7690 = vmatpush1.bf16.msra.mxu0 %v5000
    %7691 = vmatprep.mubr.bf16.mxu0 %v1351
    %7692 = vmatmul.mubr.bf16.gmra.mrb[0].mxu0 %v1350
    %v7693 = vpop.f32.mrb[0].mxu0
    %v7694 = vadd.f32 0.0, %v7693
    %v7695 = vpop.f32.mrb[0].mxu0
    %v7696 = vadd.f32 0.0, %v7695
    %v7697 = vpop.f32.mrb[0].mxu0
    %v7698 = vadd.f32 0.0, %v7697
    %v7699 = vpop.f32.mrb[0].mxu0
    %v7700 = vadd.f32 0.0, %v7699
    %7701 = vmatprep.mubr.bf16.mxu0 %v1369
    %7702 = vmatmul.mubr.bf16.gmra.mrb[0].mxu0 %v1368
    %v7703 = vpop.f32.mrb[0].mxu0
    %v7704 = vadd.f32 0.0, %v7703
    %v7705 = vpop.f32.mrb[0].mxu0
    %v7706 = vadd.f32 0.0, %v7705
    %v7707 = vpop.f32.mrb[0].mxu0
    %v7708 = vadd.f32 0.0, %v7707
    %v7709 = vpop.f32.mrb[0].mxu0
    %v7710 = vadd.f32 0.0, %v7709
    %7711 = vdwg.mxu0
    %7712 = vmatprep.subr.bf16.mxu0 %v5009
    %7713 = vmatpush1.bf16.msra.mxu0 %v5008
    %7714 = vmatprep.subr.bf16.mxu0 %v5017
    %7715 = vmatpush1.bf16.msra.mxu0 %v5016
    %7716 = vmatprep.subr.bf16.mxu0 %v5025
    %7717 = vmatpush1.bf16.msra.mxu0 %v5024
    %7718 = vmatprep.subr.bf16.mxu0 %v5033
    %7719 = vmatpush1.bf16.msra.mxu0 %v5032
    %7720 = vmatprep.subr.bf16.mxu0 %v5041
    %7721 = vmatpush1.bf16.msra.mxu0 %v5040
    %7722 = vmatprep.subr.bf16.mxu0 %v5049
    %7723 = vmatpush1.bf16.msra.mxu0 %v5048
    %7724 = vmatprep.subr.bf16.mxu0 %v5057
    %7725 = vmatpush1.bf16.msra.mxu0 %v5056
    %7726 = vmatprep.subr.bf16.mxu0 %v5065
    %7727 = vmatpush1.bf16.msra.mxu0 %v5064
    %7728 = vmatprep.subr.bf16.mxu0 %v5073
    %7729 = vmatpush1.bf16.msra.mxu0 %v5072
    %7730 = vmatprep.subr.bf16.mxu0 %v5081
    %7731 = vmatpush1.bf16.msra.mxu0 %v5080
    %7732 = vmatprep.subr.bf16.mxu0 %v5089
    %7733 = vmatpush1.bf16.msra.mxu0 %v5088
    %7734 = vmatprep.subr.bf16.mxu0 %v5097
    %7735 = vmatpush1.bf16.msra.mxu0 %v5096
    %7736 = vmatprep.subr.bf16.mxu0 %v5105
    %7737 = vmatpush1.bf16.msra.mxu0 %v5104
    %7738 = vmatprep.subr.bf16.mxu0 %v5113
    %7739 = vmatpush1.bf16.msra.mxu0 %v5112
    %7740 = vmatprep.subr.bf16.mxu0 %v5121
    %7741 = vmatpush1.bf16.msra.mxu0 %v5120
    %7742 = vmatprep.subr.bf16.mxu0 %v5129
    %7743 = vmatpush1.bf16.msra.mxu0 %v5128
    %7744 = vmatprep.mubr.bf16.mxu0 %v1353
    %7745 = vmatmul.mubr.bf16.gmra.mrb[0].mxu0 %v1352
    %v7746 = vpop.f32.mrb[0].mxu0
    %v7747 = vadd.f32 %v7694, %v7746
    %v7748 = vpop.f32.mrb[0].mxu0
    %v7749 = vadd.f32 %v7696, %v7748
    %v7750 = vpop.f32.mrb[0].mxu0
    %v7751 = vadd.f32 %v7698, %v7750
    %v7752 = vpop.f32.mrb[0].mxu0
    %v7753 = vadd.f32 %v7700, %v7752
    %7754 = vmatprep.mubr.bf16.mxu0 %v1371
    %7755 = vmatmul.mubr.bf16.gmra.mrb[0].mxu0 %v1370
    %v7756 = vpop.f32.mrb[0].mxu0
    %v7757 = vadd.f32 %v7704, %v7756
    %v7758 = vpop.f32.mrb[0].mxu0
    %v7759 = vadd.f32 %v7706, %v7758
    %v7760 = vpop.f32.mrb[0].mxu0
    %v7761 = vadd.f32 %v7708, %v7760
    %v7762 = vpop.f32.mrb[0].mxu0
    %v7763 = vadd.f32 %v7710, %v7762
    %7764 = vdwg.mxu0
    %7765 = vmatprep.subr.bf16.mxu0 %v5137
    %7766 = vmatpush1.bf16.msra.mxu0 %v5136
    %7767 = vmatprep.subr.bf16.mxu0 %v5145
    %7768 = vmatpush1.bf16.msra.mxu0 %v5144
    %7769 = vmatprep.subr.bf16.mxu0 %v5153
    %7770 = vmatpush1.bf16.msra.mxu0 %v5152
    %7771 = vmatprep.subr.bf16.mxu0 %v5161
    %7772 = vmatpush1.bf16.msra.mxu0 %v5160
    %7773 = vmatprep.subr.bf16.mxu0 %v5169
    %7774 = vmatpush1.bf16.msra.mxu0 %v5168
    %7775 = vmatprep.subr.bf16.mxu0 %v5177
    %7776 = vmatpush1.bf16.msra.mxu0 %v5176
    %7777 = vmatprep.subr.bf16.mxu0 %v5185
    %7778 = vmatpush1.bf16.msra.mxu0 %v5184
    %7779 = vmatprep.subr.bf16.mxu0 %v5193
    %7780 = vmatpush1.bf16.msra.mxu0 %v5192
    %7781 = vmatprep.subr.bf16.mxu0 %v5201
    %7782 = vmatpush1.bf16.msra.mxu0 %v5200
    %7783 = vmatprep.subr.bf16.mxu0 %v5209
    %7784 = vmatpush1.bf16.msra.mxu0 %v5208
    %7785 = vmatprep.subr.bf16.mxu0 %v5217
    %7786 = vmatpush1.bf16.msra.mxu0 %v5216
    %7787 = vmatprep.subr.bf16.mxu0 %v5225
    %7788 = vmatpush1.bf16.msra.mxu0 %v5224
    %7789 = vmatprep.subr.bf16.mxu0 %v5233
    %7790 = vmatpush1.bf16.msra.mxu0 %v5232
    %7791 = vmatprep.subr.bf16.mxu0 %v5241
    %7792 = vmatpush1.bf16.msra.mxu0 %v5240
    %7793 = vmatprep.subr.bf16.mxu0 %v5249
    %7794 = vmatpush1.bf16.msra.mxu0 %v5248
    %7795 = vmatprep.subr.bf16.mxu0 %v5257
    %7796 = vmatpush1.bf16.msra.mxu0 %v5256
    %7797 = vmatprep.mubr.bf16.mxu0 %v1355
    %7798 = vmatmul.mubr.bf16.gmra.mrb[0].mxu0 %v1354
    %v7799 = vpop.f32.mrb[0].mxu0
    %v7800 = vadd.f32 %v7747, %v7799
    %v7801 = vpop.f32.mrb[0].mxu0
    %v7802 = vadd.f32 %v7749, %v7801
    %v7803 = vpop.f32.mrb[0].mxu0
    %v7804 = vadd.f32 %v7751, %v7803
    %v7805 = vpop.f32.mrb[0].mxu0
    %v7806 = vadd.f32 %v7753, %v7805
    %7807 = vmatprep.mubr.bf16.mxu0 %v1373
    %7808 = vmatmul.mubr.bf16.gmra.mrb[0].mxu0 %v1372
    %v7809 = vpop.f32.mrb[0].mxu0
    %v7810 = vadd.f32 %v7757, %v7809
    %v7811 = vpop.f32.mrb[0].mxu0
    %v7812 = vadd.f32 %v7759, %v7811
    %v7813 = vpop.f32.mrb[0].mxu0
    %v7814 = vadd.f32 %v7761, %v7813
    %v7815 = vpop.f32.mrb[0].mxu0
    %v7816 = vadd.f32 %v7763, %v7815
    %7817 = vdwg.mxu0
    %7818 = vmatprep.subr.bf16.mxu0 %v5265
    %7819 = vmatpush1.bf16.msra.mxu0 %v5264
    %7820 = vmatprep.subr.bf16.mxu0 %v5273
    %7821 = vmatpush1.bf16.msra.mxu0 %v5272
    %7822 = vmatprep.subr.bf16.mxu0 %v5281
    %7823 = vmatpush1.bf16.msra.mxu0 %v5280
    %7824 = vmatprep.subr.bf16.mxu0 %v5289
    %7825 = vmatpush1.bf16.msra.mxu0 %v5288
    %7826 = vmatprep.subr.bf16.mxu0 %v5297
    %7827 = vmatpush1.bf16.msra.mxu0 %v5296
    %7828 = vmatprep.subr.bf16.mxu0 %v5305
    %7829 = vmatpush1.bf16.msra.mxu0 %v5304
    %7830 = vmatprep.subr.bf16.mxu0 %v5313
    %7831 = vmatpush1.bf16.msra.mxu0 %v5312
    %7832 = vmatprep.subr.bf16.mxu0 %v5321
    %7833 = vmatpush1.bf16.msra.mxu0 %v5320
    %7834 = vmatprep.subr.bf16.mxu0 %v5329
    %7835 = vmatpush1.bf16.msra.mxu0 %v5328
    %7836 = vmatprep.subr.bf16.mxu0 %v5337
    %7837 = vmatpush1.bf16.msra.mxu0 %v5336
    %7838 = vmatprep.subr.bf16.mxu0 %v5345
    %7839 = vmatpush1.bf16.msra.mxu0 %v5344
    %7840 = vmatprep.subr.bf16.mxu0 %v5353
    %7841 = vmatpush1.bf16.msra.mxu0 %v5352
    %7842 = vmatprep.subr.bf16.mxu0 %v5361
    %7843 = vmatpush1.bf16.msra.mxu0 %v5360
    %7844 = vmatprep.subr.bf16.mxu0 %v5369
    %7845 = vmatpush1.bf16.msra.mxu0 %v5368
    %7846 = vmatprep.subr.bf16.mxu0 %v5377
    %7847 = vmatpush1.bf16.msra.mxu0 %v5376
    %7848 = vmatprep.subr.bf16.mxu0 %v5385
    %7849 = vmatpush1.bf16.msra.mxu0 %v5384
    %7850 = vmatprep.mubr.bf16.mxu0 %v1357
    %7851 = vmatmul.mubr.bf16.gmra.mrb[0].mxu0 %v1356
    %v7852 = vpop.f32.mrb[0].mxu0
    %v7853 = vadd.f32 %v7800, %v7852
    %v7854 = vpop.f32.mrb[0].mxu0
    %v7855 = vadd.f32 %v7802, %v7854
    %v7856 = vpop.f32.mrb[0].mxu0
    %v7857 = vadd.f32 %v7804, %v7856
    %v7858 = vpop.f32.mrb[0].mxu0
    %v7859 = vadd.f32 %v7806, %v7858
    %7860 = vmatprep.mubr.bf16.mxu0 %v1375
    %7861 = vmatmul.mubr.bf16.gmra.mrb[0].mxu0 %v1374
    %v7862 = vpop.f32.mrb[0].mxu0
    %v7863 = vadd.f32 %v7810, %v7862
    %v7864 = vpop.f32.mrb[0].mxu0
    %v7865 = vadd.f32 %v7812, %v7864
    %v7866 = vpop.f32.mrb[0].mxu0
    %v7867 = vadd.f32 %v7814, %v7866
    %v7868 = vpop.f32.mrb[0].mxu0
    %v7869 = vadd.f32 %v7816, %v7868
    %7870 = vdwg.mxu0
    %7871 = vmatprep.subr.bf16.mxu0 %v5393
    %7872 = vmatpush1.bf16.msra.mxu0 %v5392
    %7873 = vmatprep.subr.bf16.mxu0 %v5401
    %7874 = vmatpush1.bf16.msra.mxu0 %v5400
    %7875 = vmatprep.subr.bf16.mxu0 %v5409
    %7876 = vmatpush1.bf16.msra.mxu0 %v5408
    %7877 = vmatprep.subr.bf16.mxu0 %v5417
    %7878 = vmatpush1.bf16.msra.mxu0 %v5416
    %7879 = vmatprep.subr.bf16.mxu0 %v5425
    %7880 = vmatpush1.bf16.msra.mxu0 %v5424
    %7881 = vmatprep.subr.bf16.mxu0 %v5433
    %7882 = vmatpush1.bf16.msra.mxu0 %v5432
    %7883 = vmatprep.subr.bf16.mxu0 %v5441
    %7884 = vmatpush1.bf16.msra.mxu0 %v5440
    %7885 = vmatprep.subr.bf16.mxu0 %v5449
    %7886 = vmatpush1.bf16.msra.mxu0 %v5448
    %7887 = vmatprep.subr.bf16.mxu0 %v5457
    %7888 = vmatpush1.bf16.msra.mxu0 %v5456
    %7889 = vmatprep.subr.bf16.mxu0 %v5465
    %7890 = vmatpush1.bf16.msra.mxu0 %v5464
    %7891 = vmatprep.subr.bf16.mxu0 %v5473
    %7892 = vmatpush1.bf16.msra.mxu0 %v5472
    %7893 = vmatprep.subr.bf16.mxu0 %v5481
    %7894 = vmatpush1.bf16.msra.mxu0 %v5480
    %7895 = vmatprep.subr.bf16.mxu0 %v5489
    %7896 = vmatpush1.bf16.msra.mxu0 %v5488
    %7897 = vmatprep.subr.bf16.mxu0 %v5497
    %7898 = vmatpush1.bf16.msra.mxu0 %v5496
    %7899 = vmatprep.subr.bf16.mxu0 %v5505
    %7900 = vmatpush1.bf16.msra.mxu0 %v5504
    %7901 = vmatprep.subr.bf16.mxu0 %v5513
    %7902 = vmatpush1.bf16.msra.mxu0 %v5512
    %7903 = vmatprep.mubr.bf16.mxu0 %v1359
    %7904 = vmatmul.mubr.bf16.gmra.mrb[0].mxu0 %v1358
    %v7905 = vpop.f32.mrb[0].mxu0
    %v7906 = vadd.f32 %v7853, %v7905
    %v7907 = vpop.f32.mrb[0].mxu0
    %v7908 = vadd.f32 %v7855, %v7907
    %v7909 = vpop.f32.mrb[0].mxu0
    %v7910 = vadd.f32 %v7857, %v7909
    %v7911 = vpop.f32.mrb[0].mxu0
    %v7912 = vadd.f32 %v7859, %v7911
    %7913 = vmatprep.mubr.bf16.mxu0 %v1377
    %7914 = vmatmul.mubr.bf16.gmra.mrb[0].mxu0 %v1376
    %v7915 = vpop.f32.mrb[0].mxu0
    %v7916 = vadd.f32 %v7863, %v7915
    %v7917 = vpop.f32.mrb[0].mxu0
    %v7918 = vadd.f32 %v7865, %v7917
    %v7919 = vpop.f32.mrb[0].mxu0
    %v7920 = vadd.f32 %v7867, %v7919
    %v7921 = vpop.f32.mrb[0].mxu0
    %v7922 = vadd.f32 %v7869, %v7921
    %7923 = vdwg.mxu0
    %7924 = vmatprep.subr.bf16.mxu0 %v5521
    %7925 = vmatpush1.bf16.msra.mxu0 %v5520
    %7926 = vmatprep.subr.bf16.mxu0 %v5529
    %7927 = vmatpush1.bf16.msra.mxu0 %v5528
    %7928 = vmatprep.subr.bf16.mxu0 %v5537
    %7929 = vmatpush1.bf16.msra.mxu0 %v5536
    %7930 = vmatprep.subr.bf16.mxu0 %v5545
    %7931 = vmatpush1.bf16.msra.mxu0 %v5544
    %7932 = vmatprep.subr.bf16.mxu0 %v5553
    %7933 = vmatpush1.bf16.msra.mxu0 %v5552
    %7934 = vmatprep.subr.bf16.mxu0 %v5561
    %7935 = vmatpush1.bf16.msra.mxu0 %v5560
    %7936 = vmatprep.subr.bf16.mxu0 %v5569
    %7937 = vmatpush1.bf16.msra.mxu0 %v5568
    %7938 = vmatprep.subr.bf16.mxu0 %v5577
    %7939 = vmatpush1.bf16.msra.mxu0 %v5576
    %7940 = vmatprep.subr.bf16.mxu0 %v5585
    %7941 = vmatpush1.bf16.msra.mxu0 %v5584
    %7942 = vmatprep.subr.bf16.mxu0 %v5593
    %7943 = vmatpush1.bf16.msra.mxu0 %v5592
    %7944 = vmatprep.subr.bf16.mxu0 %v5601
    %7945 = vmatpush1.bf16.msra.mxu0 %v5600
    %7946 = vmatprep.subr.bf16.mxu0 %v5609
    %7947 = vmatpush1.bf16.msra.mxu0 %v5608
    %7948 = vmatprep.subr.bf16.mxu0 %v5617
    %7949 = vmatpush1.bf16.msra.mxu0 %v5616
    %7950 = vmatprep.subr.bf16.mxu0 %v5625
    %7951 = vmatpush1.bf16.msra.mxu0 %v5624
    %7952 = vmatprep.subr.bf16.mxu0 %v5633
    %7953 = vmatpush1.bf16.msra.mxu0 %v5632
    %7954 = vmatprep.subr.bf16.mxu0 %v5641
    %7955 = vmatpush1.bf16.msra.mxu0 %v5640
    %7956 = vmatprep.mubr.bf16.mxu0 %v1361
    %7957 = vmatmul.mubr.bf16.gmra.mrb[0].mxu0 %v1360
    %v7958 = vpop.f32.mrb[0].mxu0
    %v7959 = vadd.f32 %v7906, %v7958
    %v7960 = vpop.f32.mrb[0].mxu0
    %v7961 = vadd.f32 %v7908, %v7960
    %v7962 = vpop.f32.mrb[0].mxu0
    %v7963 = vadd.f32 %v7910, %v7962
    %v7964 = vpop.f32.mrb[0].mxu0
    %v7965 = vadd.f32 %v7912, %v7964
    %7966 = vmatprep.mubr.bf16.mxu0 %v1379
    %7967 = vmatmul.mubr.bf16.gmra.mrb[0].mxu0 %v1378
    %v7968 = vpop.f32.mrb[0].mxu0
    %v7969 = vadd.f32 %v7916, %v7968
    %v7970 = vpop.f32.mrb[0].mxu0
    %v7971 = vadd.f32 %v7918, %v7970
    %v7972 = vpop.f32.mrb[0].mxu0
    %v7973 = vadd.f32 %v7920, %v7972
    %v7974 = vpop.f32.mrb[0].mxu0
    %v7975 = vadd.f32 %v7922, %v7974
    %7976 = vdwg.mxu0
    %7977 = vmatprep.subr.bf16.mxu0 %v5649
    %7978 = vmatpush1.bf16.msra.mxu0 %v5648
    %7979 = vmatprep.subr.bf16.mxu0 %v5657
    %7980 = vmatpush1.bf16.msra.mxu0 %v5656
    %7981 = vmatprep.subr.bf16.mxu0 %v5665
    %7982 = vmatpush1.bf16.msra.mxu0 %v5664
    %7983 = vmatprep.subr.bf16.mxu0 %v5673
    %7984 = vmatpush1.bf16.msra.mxu0 %v5672
    %7985 = vmatprep.subr.bf16.mxu0 %v5681
    %7986 = vmatpush1.bf16.msra.mxu0 %v5680
    %7987 = vmatprep.subr.bf16.mxu0 %v5689
    %7988 = vmatpush1.bf16.msra.mxu0 %v5688
    %7989 = vmatprep.subr.bf16.mxu0 %v5697
    %7990 = vmatpush1.bf16.msra.mxu0 %v5696
    %7991 = vmatprep.subr.bf16.mxu0 %v5705
    %7992 = vmatpush1.bf16.msra.mxu0 %v5704
    %7993 = vmatprep.subr.bf16.mxu0 %v5713
    %7994 = vmatpush1.bf16.msra.mxu0 %v5712
    %7995 = vmatprep.subr.bf16.mxu0 %v5721
    %7996 = vmatpush1.bf16.msra.mxu0 %v5720
    %7997 = vmatprep.subr.bf16.mxu0 %v5729
    %7998 = vmatpush1.bf16.msra.mxu0 %v5728
    %7999 = vmatprep.subr.bf16.mxu0 %v5737
    %8000 = vmatpush1.bf16.msra.mxu0 %v5736
    %8001 = vmatprep.subr.bf16.mxu0 %v5745
    %8002 = vmatpush1.bf16.msra.mxu0 %v5744
    %8003 = vmatprep.subr.bf16.mxu0 %v5753
    %8004 = vmatpush1.bf16.msra.mxu0 %v5752
    %8005 = vmatprep.subr.bf16.mxu0 %v5761
    %8006 = vmatpush1.bf16.msra.mxu0 %v5760
    %8007 = vmatprep.subr.bf16.mxu0 %v5769
    %8008 = vmatpush1.bf16.msra.mxu0 %v5768
    %8009 = vmatprep.mubr.bf16.mxu0 %v1363
    %8010 = vmatmul.mubr.bf16.gmra.mrb[0].mxu0 %v1362
    %v8011 = vpop.f32.mrb[0].mxu0
    %v8012 = vadd.f32 %v7959, %v8011
    %v8013 = vpop.f32.mrb[0].mxu0
    %v8014 = vadd.f32 %v7961, %v8013
    %v8015 = vpop.f32.mrb[0].mxu0
    %v8016 = vadd.f32 %v7963, %v8015
    %v8017 = vpop.f32.mrb[0].mxu0
    %v8018 = vadd.f32 %v7965, %v8017
    %8019 = vmatprep.mubr.bf16.mxu0 %v1381
    %8020 = vmatmul.mubr.bf16.gmra.mrb[0].mxu0 %v1380
    %v8021 = vpop.f32.mrb[0].mxu0
    %v8022 = vadd.f32 %v7969, %v8021
    %v8023 = vpop.f32.mrb[0].mxu0
    %v8024 = vadd.f32 %v7971, %v8023
    %v8025 = vpop.f32.mrb[0].mxu0
    %v8026 = vadd.f32 %v7973, %v8025
    %v8027 = vpop.f32.mrb[0].mxu0
    %v8028 = vadd.f32 %v7975, %v8027
    %8029 = vdwg.mxu0
    %8030 = vmatprep.subr.bf16.mxu0 %v5777
    %8031 = vmatpush1.bf16.msra.mxu0 %v5776
    %8032 = vmatprep.subr.bf16.mxu0 %v5785
    %8033 = vmatpush1.bf16.msra.mxu0 %v5784
    %8034 = vmatprep.subr.bf16.mxu0 %v5793
    %8035 = vmatpush1.bf16.msra.mxu0 %v5792
    %8036 = vmatprep.subr.bf16.mxu0 %v5801
    %8037 = vmatpush1.bf16.msra.mxu0 %v5800
    %8038 = vmatprep.subr.bf16.mxu0 %v5809
    %8039 = vmatpush1.bf16.msra.mxu0 %v5808
    %8040 = vmatprep.subr.bf16.mxu0 %v5817
    %8041 = vmatpush1.bf16.msra.mxu0 %v5816
    %8042 = vmatprep.subr.bf16.mxu0 %v5825
    %8043 = vmatpush1.bf16.msra.mxu0 %v5824
    %8044 = vmatprep.subr.bf16.mxu0 %v5833
    %8045 = vmatpush1.bf16.msra.mxu0 %v5832
    %8046 = vmatprep.subr.bf16.mxu0 %v5841
    %8047 = vmatpush1.bf16.msra.mxu0 %v5840
    %8048 = vmatprep.subr.bf16.mxu0 %v5849
    %8049 = vmatpush1.bf16.msra.mxu0 %v5848
    %8050 = vmatprep.subr.bf16.mxu0 %v5857
    %8051 = vmatpush1.bf16.msra.mxu0 %v5856
    %8052 = vmatprep.subr.bf16.mxu0 %v5865
    %8053 = vmatpush1.bf16.msra.mxu0 %v5864
    %8054 = vmatprep.subr.bf16.mxu0 %v5873
    %8055 = vmatpush1.bf16.msra.mxu0 %v5872
    %8056 = vmatprep.subr.bf16.mxu0 %v5881
    %8057 = vmatpush1.bf16.msra.mxu0 %v5880
    %8058 = vmatprep.subr.bf16.mxu0 %v5889
    %8059 = vmatpush1.bf16.msra.mxu0 %v5888
    %8060 = vmatprep.subr.bf16.mxu0 %v5897
    %8061 = vmatpush1.bf16.msra.mxu0 %v5896
    %8062 = vmatprep.mubr.bf16.mxu0 %v1365
    %8063 = vmatmul.mubr.bf16.gmra.mrb[0].mxu0 %v1364
    %v8064 = vpop.f32.mrb[0].mxu0
    %v8065 = vadd.f32 %v8012, %v8064
    %v8066 = vpop.f32.mrb[0].mxu0
    %v8067 = vadd.f32 %v8014, %v8066
    %v8068 = vpop.f32.mrb[0].mxu0
    %v8069 = vadd.f32 %v8016, %v8068
    %v8070 = vpop.f32.mrb[0].mxu0
    %v8071 = vadd.f32 %v8018, %v8070
    %8072 = vmatprep.mubr.bf16.mxu0 %v1383
    %8073 = vmatmul.mubr.bf16.gmra.mrb[0].mxu0 %v1382
    %v8074 = vpop.f32.mrb[0].mxu0
    %v8075 = vadd.f32 %v8022, %v8074
    %v8076 = vpop.f32.mrb[0].mxu0
    %v8077 = vadd.f32 %v8024, %v8076
    %v8078 = vpop.f32.mrb[0].mxu0
    %v8079 = vadd.f32 %v8026, %v8078
    %v8080 = vpop.f32.mrb[0].mxu0
    %v8081 = vadd.f32 %v8028, %v8080
    %8082 = vdwg.mxu0
    %8083 = vmatprep.subr.bf16.mxu0 %v5905
    %8084 = vmatpush1.bf16.msra.mxu0 %v5904
    %8085 = vmatprep.subr.bf16.mxu0 %v5913
    %8086 = vmatpush1.bf16.msra.mxu0 %v5912
    %8087 = vmatprep.subr.bf16.mxu0 %v5921
    %8088 = vmatpush1.bf16.msra.mxu0 %v5920
    %8089 = vmatprep.subr.bf16.mxu0 %v5929
    %8090 = vmatpush1.bf16.msra.mxu0 %v5928
    %8091 = vmatprep.subr.bf16.mxu0 %v5937
    %8092 = vmatpush1.bf16.msra.mxu0 %v5936
    %8093 = vmatprep.subr.bf16.mxu0 %v5945
    %8094 = vmatpush1.bf16.msra.mxu0 %v5944
    %8095 = vmatprep.subr.bf16.mxu0 %v5953
    %8096 = vmatpush1.bf16.msra.mxu0 %v5952
    %8097 = vmatprep.subr.bf16.mxu0 %v5961
    %8098 = vmatpush1.bf16.msra.mxu0 %v5960
    %8099 = vmatprep.subr.bf16.mxu0 %v5969
    %8100 = vmatpush1.bf16.msra.mxu0 %v5968
    %8101 = vmatprep.subr.bf16.mxu0 %v5977
    %8102 = vmatpush1.bf16.msra.mxu0 %v5976
    %8103 = vmatprep.subr.bf16.mxu0 %v5985
    %8104 = vmatpush1.bf16.msra.mxu0 %v5984
    %8105 = vmatprep.subr.bf16.mxu0 %v5993
    %8106 = vmatpush1.bf16.msra.mxu0 %v5992
    %8107 = vmatprep.subr.bf16.mxu0 %v6001
    %8108 = vmatpush1.bf16.msra.mxu0 %v6000
    %8109 = vmatprep.subr.bf16.mxu0 %v6009
    %8110 = vmatpush1.bf16.msra.mxu0 %v6008
    %8111 = vmatprep.subr.bf16.mxu0 %v6017
    %8112 = vmatpush1.bf16.msra.mxu0 %v6016
    %8113 = vmatprep.subr.bf16.mxu0 %v6025
    %8114 = vmatpush1.bf16.msra.mxu0 %v6024
    %8115 = vmatprep.mubr.bf16.mxu0 %v1367
    %8116 = vmatmul.mubr.bf16.gmra.mrb[0].mxu0 %v1366
    %v8117 = vpop.f32.mrb[0].mxu0
    %v8118 = vadd.f32 %v8065, %v8117
    %v8119 = vpop.f32.mrb[0].mxu0
    %v8120 = vadd.f32 %v8067, %v8119
    %v8121 = vpop.f32.mrb[0].mxu0
    %v8122 = vadd.f32 %v8069, %v8121
    %v8123 = vpop.f32.mrb[0].mxu0
    %v8124 = vadd.f32 %v8071, %v8123
    %8125 = vmatprep.mubr.bf16.mxu0 %v1385
    %8126 = vmatmul.mubr.bf16.gmra.mrb[0].mxu0 %v1384
    %v8127 = vpop.f32.mrb[0].mxu0
    %v8128 = vadd.f32 %v8075, %v8127
    %v8129 = vpop.f32.mrb[0].mxu0
    %v8130 = vadd.f32 %v8077, %v8129
    %v8131 = vpop.f32.mrb[0].mxu0
    %v8132 = vadd.f32 %v8079, %v8131
    %v8133 = vpop.f32.mrb[0].mxu0
    %v8134 = vadd.f32 %v8081, %v8133
    %8135 = vdwg.mxu0
    %8136 = vmatprep.subr.bf16.mxu0 %v4883
    %8137 = vmatpush1.bf16.msra.mxu0 %v4882
    %8138 = vmatprep.subr.bf16.mxu0 %v4891
    %8139 = vmatpush1.bf16.msra.mxu0 %v4890
    %8140 = vmatprep.subr.bf16.mxu0 %v4899
    %8141 = vmatpush1.bf16.msra.mxu0 %v4898
    %8142 = vmatprep.subr.bf16.mxu0 %v4907
    %8143 = vmatpush1.bf16.msra.mxu0 %v4906
    %8144 = vmatprep.subr.bf16.mxu0 %v4915
    %8145 = vmatpush1.bf16.msra.mxu0 %v4914
    %8146 = vmatprep.subr.bf16.mxu0 %v4923
    %8147 = vmatpush1.bf16.msra.mxu0 %v4922
    %8148 = vmatprep.subr.bf16.mxu0 %v4931
    %8149 = vmatpush1.bf16.msra.mxu0 %v4930
    %8150 = vmatprep.subr.bf16.mxu0 %v4939
    %8151 = vmatpush1.bf16.msra.mxu0 %v4938
    %8152 = vmatprep.subr.bf16.mxu0 %v4947
    %8153 = vmatpush1.bf16.msra.mxu0 %v4946
    %8154 = vmatprep.subr.bf16.mxu0 %v4955
    %8155 = vmatpush1.bf16.msra.mxu0 %v4954
    %8156 = vmatprep.subr.bf16.mxu0 %v4963
    %8157 = vmatpush1.bf16.msra.mxu0 %v4962
    %8158 = vmatprep.subr.bf16.mxu0 %v4971
    %8159 = vmatpush1.bf16.msra.mxu0 %v4970
    %8160 = vmatprep.subr.bf16.mxu0 %v4979
    %8161 = vmatpush1.bf16.msra.mxu0 %v4978
    %8162 = vmatprep.subr.bf16.mxu0 %v4987
    %8163 = vmatpush1.bf16.msra.mxu0 %v4986
    %8164 = vmatprep.subr.bf16.mxu0 %v4995
    %8165 = vmatpush1.bf16.msra.mxu0 %v4994
    %8166 = vmatprep.subr.bf16.mxu0 %v5003
    %8167 = vmatpush1.bf16.msra.mxu0 %v5002
    %8168 = vmatprep.mubr.bf16.mxu0 %v1351
    %8169 = vmatmul.mubr.bf16.gmra.mrb[0].mxu0 %v1350
    %v8170 = vpop.f32.mrb[0].mxu0
    %v8171 = vadd.f32 0.0, %v8170
    %v8172 = vpop.f32.mrb[0].mxu0
    %v8173 = vadd.f32 0.0, %v8172
    %v8174 = vpop.f32.mrb[0].mxu0
    %v8175 = vadd.f32 0.0, %v8174
    %v8176 = vpop.f32.mrb[0].mxu0
    %v8177 = vadd.f32 0.0, %v8176
    %8178 = vmatprep.mubr.bf16.mxu0 %v1369
    %8179 = vmatmul.mubr.bf16.gmra.mrb[0].mxu0 %v1368
    %v8180 = vpop.f32.mrb[0].mxu0
    %v8181 = vadd.f32 0.0, %v8180
    %v8182 = vpop.f32.mrb[0].mxu0
    %v8183 = vadd.f32 0.0, %v8182
    %v8184 = vpop.f32.mrb[0].mxu0
    %v8185 = vadd.f32 0.0, %v8184
    %v8186 = vpop.f32.mrb[0].mxu0
    %v8187 = vadd.f32 0.0, %v8186
    %8188 = vdwg.mxu0
    %8189 = vmatprep.subr.bf16.mxu0 %v5011
    %8190 = vmatpush1.bf16.msra.mxu0 %v5010
    %8191 = vmatprep.subr.bf16.mxu0 %v5019
    %8192 = vmatpush1.bf16.msra.mxu0 %v5018
    %8193 = vmatprep.subr.bf16.mxu0 %v5027
    %8194 = vmatpush1.bf16.msra.mxu0 %v5026
    %8195 = vmatprep.subr.bf16.mxu0 %v5035
    %8196 = vmatpush1.bf16.msra.mxu0 %v5034
    %8197 = vmatprep.subr.bf16.mxu0 %v5043
    %8198 = vmatpush1.bf16.msra.mxu0 %v5042
    %8199 = vmatprep.subr.bf16.mxu0 %v5051
    %8200 = vmatpush1.bf16.msra.mxu0 %v5050
    %8201 = vmatprep.subr.bf16.mxu0 %v5059
    %8202 = vmatpush1.bf16.msra.mxu0 %v5058
    %8203 = vmatprep.subr.bf16.mxu0 %v5067
    %8204 = vmatpush1.bf16.msra.mxu0 %v5066
    %8205 = vmatprep.subr.bf16.mxu0 %v5075
    %8206 = vmatpush1.bf16.msra.mxu0 %v5074
    %8207 = vmatprep.subr.bf16.mxu0 %v5083
    %8208 = vmatpush1.bf16.msra.mxu0 %v5082
    %8209 = vmatprep.subr.bf16.mxu0 %v5091
    %8210 = vmatpush1.bf16.msra.mxu0 %v5090
    %8211 = vmatprep.subr.bf16.mxu0 %v5099
    %8212 = vmatpush1.bf16.msra.mxu0 %v5098
    %8213 = vmatprep.subr.bf16.mxu0 %v5107
    %8214 = vmatpush1.bf16.msra.mxu0 %v5106
    %8215 = vmatprep.subr.bf16.mxu0 %v5115
    %8216 = vmatpush1.bf16.msra.mxu0 %v5114
    %8217 = vmatprep.subr.bf16.mxu0 %v5123
    %8218 = vmatpush1.bf16.msra.mxu0 %v5122
    %8219 = vmatprep.subr.bf16.mxu0 %v5131
    %8220 = vmatpush1.bf16.msra.mxu0 %v5130
    %8221 = vmatprep.mubr.bf16.mxu0 %v1353
    %8222 = vmatmul.mubr.bf16.gmra.mrb[0].mxu0 %v1352
    %v8223 = vpop.f32.mrb[0].mxu0
    %v8224 = vadd.f32 %v8171, %v8223
    %v8225 = vpop.f32.mrb[0].mxu0
    %v8226 = vadd.f32 %v8173, %v8225
    %v8227 = vpop.f32.mrb[0].mxu0
    %v8228 = vadd.f32 %v8175, %v8227
    %v8229 = vpop.f32.mrb[0].mxu0
    %v8230 = vadd.f32 %v8177, %v8229
    %8231 = vmatprep.mubr.bf16.mxu0 %v1371
    %8232 = vmatmul.mubr.bf16.gmra.mrb[0].mxu0 %v1370
    %v8233 = vpop.f32.mrb[0].mxu0
    %v8234 = vadd.f32 %v8181, %v8233
    %v8235 = vpop.f32.mrb[0].mxu0
    %v8236 = vadd.f32 %v8183, %v8235
    %v8237 = vpop.f32.mrb[0].mxu0
    %v8238 = vadd.f32 %v8185, %v8237
    %v8239 = vpop.f32.mrb[0].mxu0
    %v8240 = vadd.f32 %v8187, %v8239
    %8241 = vdwg.mxu0
    %8242 = vmatprep.subr.bf16.mxu0 %v5139
    %8243 = vmatpush1.bf16.msra.mxu0 %v5138
    %8244 = vmatprep.subr.bf16.mxu0 %v5147
    %8245 = vmatpush1.bf16.msra.mxu0 %v5146
    %8246 = vmatprep.subr.bf16.mxu0 %v5155
    %8247 = vmatpush1.bf16.msra.mxu0 %v5154
    %8248 = vmatprep.subr.bf16.mxu0 %v5163
    %8249 = vmatpush1.bf16.msra.mxu0 %v5162
    %8250 = vmatprep.subr.bf16.mxu0 %v5171
    %8251 = vmatpush1.bf16.msra.mxu0 %v5170
    %8252 = vmatprep.subr.bf16.mxu0 %v5179
    %8253 = vmatpush1.bf16.msra.mxu0 %v5178
    %8254 = vmatprep.subr.bf16.mxu0 %v5187
    %8255 = vmatpush1.bf16.msra.mxu0 %v5186
    %8256 = vmatprep.subr.bf16.mxu0 %v5195
    %8257 = vmatpush1.bf16.msra.mxu0 %v5194
    %8258 = vmatprep.subr.bf16.mxu0 %v5203
    %8259 = vmatpush1.bf16.msra.mxu0 %v5202
    %8260 = vmatprep.subr.bf16.mxu0 %v5211
    %8261 = vmatpush1.bf16.msra.mxu0 %v5210
    %8262 = vmatprep.subr.bf16.mxu0 %v5219
    %8263 = vmatpush1.bf16.msra.mxu0 %v5218
    %8264 = vmatprep.subr.bf16.mxu0 %v5227
    %8265 = vmatpush1.bf16.msra.mxu0 %v5226
    %8266 = vmatprep.subr.bf16.mxu0 %v5235
    %8267 = vmatpush1.bf16.msra.mxu0 %v5234
    %8268 = vmatprep.subr.bf16.mxu0 %v5243
    %8269 = vmatpush1.bf16.msra.mxu0 %v5242
    %8270 = vmatprep.subr.bf16.mxu0 %v5251
    %8271 = vmatpush1.bf16.msra.mxu0 %v5250
    %8272 = vmatprep.subr.bf16.mxu0 %v5259
    %8273 = vmatpush1.bf16.msra.mxu0 %v5258
    %8274 = vmatprep.mubr.bf16.mxu0 %v1355
    %8275 = vmatmul.mubr.bf16.gmra.mrb[0].mxu0 %v1354
    %v8276 = vpop.f32.mrb[0].mxu0
    %v8277 = vadd.f32 %v8224, %v8276
    %v8278 = vpop.f32.mrb[0].mxu0
    %v8279 = vadd.f32 %v8226, %v8278
    %v8280 = vpop.f32.mrb[0].mxu0
    %v8281 = vadd.f32 %v8228, %v8280
    %v8282 = vpop.f32.mrb[0].mxu0
    %v8283 = vadd.f32 %v8230, %v8282
    %8284 = vmatprep.mubr.bf16.mxu0 %v1373
    %8285 = vmatmul.mubr.bf16.gmra.mrb[0].mxu0 %v1372
    %v8286 = vpop.f32.mrb[0].mxu0
    %v8287 = vadd.f32 %v8234, %v8286
    %v8288 = vpop.f32.mrb[0].mxu0
    %v8289 = vadd.f32 %v8236, %v8288
    %v8290 = vpop.f32.mrb[0].mxu0
    %v8291 = vadd.f32 %v8238, %v8290
    %v8292 = vpop.f32.mrb[0].mxu0
    %v8293 = vadd.f32 %v8240, %v8292
    %8294 = vdwg.mxu0
    %8295 = vmatprep.subr.bf16.mxu0 %v5267
    %8296 = vmatpush1.bf16.msra.mxu0 %v5266
    %8297 = vmatprep.subr.bf16.mxu0 %v5275
    %8298 = vmatpush1.bf16.msra.mxu0 %v5274
    %8299 = vmatprep.subr.bf16.mxu0 %v5283
    %8300 = vmatpush1.bf16.msra.mxu0 %v5282
    %8301 = vmatprep.subr.bf16.mxu0 %v5291
    %8302 = vmatpush1.bf16.msra.mxu0 %v5290
    %8303 = vmatprep.subr.bf16.mxu0 %v5299
    %8304 = vmatpush1.bf16.msra.mxu0 %v5298
    %8305 = vmatprep.subr.bf16.mxu0 %v5307
    %8306 = vmatpush1.bf16.msra.mxu0 %v5306
    %8307 = vmatprep.subr.bf16.mxu0 %v5315
    %8308 = vmatpush1.bf16.msra.mxu0 %v5314
    %8309 = vmatprep.subr.bf16.mxu0 %v5323
    %8310 = vmatpush1.bf16.msra.mxu0 %v5322
    %8311 = vmatprep.subr.bf16.mxu0 %v5331
    %8312 = vmatpush1.bf16.msra.mxu0 %v5330
    %8313 = vmatprep.subr.bf16.mxu0 %v5339
    %8314 = vmatpush1.bf16.msra.mxu0 %v5338
    %8315 = vmatprep.subr.bf16.mxu0 %v5347
    %8316 = vmatpush1.bf16.msra.mxu0 %v5346
    %8317 = vmatprep.subr.bf16.mxu0 %v5355
    %8318 = vmatpush1.bf16.msra.mxu0 %v5354
    %8319 = vmatprep.subr.bf16.mxu0 %v5363
    %8320 = vmatpush1.bf16.msra.mxu0 %v5362
    %8321 = vmatprep.subr.bf16.mxu0 %v5371
    %8322 = vmatpush1.bf16.msra.mxu0 %v5370
    %8323 = vmatprep.subr.bf16.mxu0 %v5379
    %8324 = vmatpush1.bf16.msra.mxu0 %v5378
    %8325 = vmatprep.subr.bf16.mxu0 %v5387
    %8326 = vmatpush1.bf16.msra.mxu0 %v5386
    %8327 = vmatprep.mubr.bf16.mxu0 %v1357
    %8328 = vmatmul.mubr.bf16.gmra.mrb[0].mxu0 %v1356
    %v8329 = vpop.f32.mrb[0].mxu0
    %v8330 = vadd.f32 %v8277, %v8329
    %v8331 = vpop.f32.mrb[0].mxu0
    %v8332 = vadd.f32 %v8279, %v8331
    %v8333 = vpop.f32.mrb[0].mxu0
    %v8334 = vadd.f32 %v8281, %v8333
    %v8335 = vpop.f32.mrb[0].mxu0
    %v8336 = vadd.f32 %v8283, %v8335
    %8337 = vmatprep.mubr.bf16.mxu0 %v1375
    %8338 = vmatmul.mubr.bf16.gmra.mrb[0].mxu0 %v1374
    %v8339 = vpop.f32.mrb[0].mxu0
    %v8340 = vadd.f32 %v8287, %v8339
    %v8341 = vpop.f32.mrb[0].mxu0
    %v8342 = vadd.f32 %v8289, %v8341
    %v8343 = vpop.f32.mrb[0].mxu0
    %v8344 = vadd.f32 %v8291, %v8343
    %v8345 = vpop.f32.mrb[0].mxu0
    %v8346 = vadd.f32 %v8293, %v8345
    %8347 = vdwg.mxu0
    %8348 = vmatprep.subr.bf16.mxu0 %v5395
    %8349 = vmatpush1.bf16.msra.mxu0 %v5394
    %8350 = vmatprep.subr.bf16.mxu0 %v5403
    %8351 = vmatpush1.bf16.msra.mxu0 %v5402
    %8352 = vmatprep.subr.bf16.mxu0 %v5411
    %8353 = vmatpush1.bf16.msra.mxu0 %v5410
    %8354 = vmatprep.subr.bf16.mxu0 %v5419
    %8355 = vmatpush1.bf16.msra.mxu0 %v5418
    %8356 = vmatprep.subr.bf16.mxu0 %v5427
    %8357 = vmatpush1.bf16.msra.mxu0 %v5426
    %8358 = vmatprep.subr.bf16.mxu0 %v5435
    %8359 = vmatpush1.bf16.msra.mxu0 %v5434
    %8360 = vmatprep.subr.bf16.mxu0 %v5443
    %8361 = vmatpush1.bf16.msra.mxu0 %v5442
    %8362 = vmatprep.subr.bf16.mxu0 %v5451
    %8363 = vmatpush1.bf16.msra.mxu0 %v5450
    %8364 = vmatprep.subr.bf16.mxu0 %v5459
    %8365 = vmatpush1.bf16.msra.mxu0 %v5458
    %8366 = vmatprep.subr.bf16.mxu0 %v5467
    %8367 = vmatpush1.bf16.msra.mxu0 %v5466
    %8368 = vmatprep.subr.bf16.mxu0 %v5475
    %8369 = vmatpush1.bf16.msra.mxu0 %v5474
    %8370 = vmatprep.subr.bf16.mxu0 %v5483
    %8371 = vmatpush1.bf16.msra.mxu0 %v5482
    %8372 = vmatprep.subr.bf16.mxu0 %v5491
    %8373 = vmatpush1.bf16.msra.mxu0 %v5490
    %8374 = vmatprep.subr.bf16.mxu0 %v5499
    %8375 = vmatpush1.bf16.msra.mxu0 %v5498
    %8376 = vmatprep.subr.bf16.mxu0 %v5507
    %8377 = vmatpush1.bf16.msra.mxu0 %v5506
    %8378 = vmatprep.subr.bf16.mxu0 %v5515
    %8379 = vmatpush1.bf16.msra.mxu0 %v5514
    %8380 = vmatprep.mubr.bf16.mxu0 %v1359
    %8381 = vmatmul.mubr.bf16.gmra.mrb[0].mxu0 %v1358
    %v8382 = vpop.f32.mrb[0].mxu0
    %v8383 = vadd.f32 %v8330, %v8382
    %v8384 = vpop.f32.mrb[0].mxu0
    %v8385 = vadd.f32 %v8332, %v8384
    %v8386 = vpop.f32.mrb[0].mxu0
    %v8387 = vadd.f32 %v8334, %v8386
    %v8388 = vpop.f32.mrb[0].mxu0
    %v8389 = vadd.f32 %v8336, %v8388
    %8390 = vmatprep.mubr.bf16.mxu0 %v1377
    %8391 = vmatmul.mubr.bf16.gmra.mrb[0].mxu0 %v1376
    %v8392 = vpop.f32.mrb[0].mxu0
    %v8393 = vadd.f32 %v8340, %v8392
    %v8394 = vpop.f32.mrb[0].mxu0
    %v8395 = vadd.f32 %v8342, %v8394
    %v8396 = vpop.f32.mrb[0].mxu0
    %v8397 = vadd.f32 %v8344, %v8396
    %v8398 = vpop.f32.mrb[0].mxu0
    %v8399 = vadd.f32 %v8346, %v8398
    %8400 = vdwg.mxu0
    %8401 = vmatprep.subr.bf16.mxu0 %v5523
    %8402 = vmatpush1.bf16.msra.mxu0 %v5522
    %8403 = vmatprep.subr.bf16.mxu0 %v5531
    %8404 = vmatpush1.bf16.msra.mxu0 %v5530
    %8405 = vmatprep.subr.bf16.mxu0 %v5539
    %8406 = vmatpush1.bf16.msra.mxu0 %v5538
    %8407 = vmatprep.subr.bf16.mxu0 %v5547
    %8408 = vmatpush1.bf16.msra.mxu0 %v5546
    %8409 = vmatprep.subr.bf16.mxu0 %v5555
    %8410 = vmatpush1.bf16.msra.mxu0 %v5554
    %8411 = vmatprep.subr.bf16.mxu0 %v5563
    %8412 = vmatpush1.bf16.msra.mxu0 %v5562
    %8413 = vmatprep.subr.bf16.mxu0 %v5571
    %8414 = vmatpush1.bf16.msra.mxu0 %v5570
    %8415 = vmatprep.subr.bf16.mxu0 %v5579
    %8416 = vmatpush1.bf16.msra.mxu0 %v5578
    %8417 = vmatprep.subr.bf16.mxu0 %v5587
    %8418 = vmatpush1.bf16.msra.mxu0 %v5586
    %8419 = vmatprep.subr.bf16.mxu0 %v5595
    %8420 = vmatpush1.bf16.msra.mxu0 %v5594
    %8421 = vmatprep.subr.bf16.mxu0 %v5603
    %8422 = vmatpush1.bf16.msra.mxu0 %v5602
    %8423 = vmatprep.subr.bf16.mxu0 %v5611
    %8424 = vmatpush1.bf16.msra.mxu0 %v5610
    %8425 = vmatprep.subr.bf16.mxu0 %v5619
    %8426 = vmatpush1.bf16.msra.mxu0 %v5618
    %8427 = vmatprep.subr.bf16.mxu0 %v5627
    %8428 = vmatpush1.bf16.msra.mxu0 %v5626
    %8429 = vmatprep.subr.bf16.mxu0 %v5635
    %8430 = vmatpush1.bf16.msra.mxu0 %v5634
    %8431 = vmatprep.subr.bf16.mxu0 %v5643
    %8432 = vmatpush1.bf16.msra.mxu0 %v5642
    %8433 = vmatprep.mubr.bf16.mxu0 %v1361
    %8434 = vmatmul.mubr.bf16.gmra.mrb[0].mxu0 %v1360
    %v8435 = vpop.f32.mrb[0].mxu0
    %v8436 = vadd.f32 %v8383, %v8435
    %v8437 = vpop.f32.mrb[0].mxu0
    %v8438 = vadd.f32 %v8385, %v8437
    %v8439 = vpop.f32.mrb[0].mxu0
    %v8440 = vadd.f32 %v8387, %v8439
    %v8441 = vpop.f32.mrb[0].mxu0
    %v8442 = vadd.f32 %v8389, %v8441
    %8443 = vmatprep.mubr.bf16.mxu0 %v1379
    %8444 = vmatmul.mubr.bf16.gmra.mrb[0].mxu0 %v1378
    %v8445 = vpop.f32.mrb[0].mxu0
    %v8446 = vadd.f32 %v8393, %v8445
    %v8447 = vpop.f32.mrb[0].mxu0
    %v8448 = vadd.f32 %v8395, %v8447
    %v8449 = vpop.f32.mrb[0].mxu0
    %v8450 = vadd.f32 %v8397, %v8449
    %v8451 = vpop.f32.mrb[0].mxu0
    %v8452 = vadd.f32 %v8399, %v8451
    %8453 = vdwg.mxu0
    %8454 = vmatprep.subr.bf16.mxu0 %v5651
    %8455 = vmatpush1.bf16.msra.mxu0 %v5650
    %8456 = vmatprep.subr.bf16.mxu0 %v5659
    %8457 = vmatpush1.bf16.msra.mxu0 %v5658
    %8458 = vmatprep.subr.bf16.mxu0 %v5667
    %8459 = vmatpush1.bf16.msra.mxu0 %v5666
    %8460 = vmatprep.subr.bf16.mxu0 %v5675
    %8461 = vmatpush1.bf16.msra.mxu0 %v5674
    %8462 = vmatprep.subr.bf16.mxu0 %v5683
    %8463 = vmatpush1.bf16.msra.mxu0 %v5682
    %8464 = vmatprep.subr.bf16.mxu0 %v5691
    %8465 = vmatpush1.bf16.msra.mxu0 %v5690
    %8466 = vmatprep.subr.bf16.mxu0 %v5699
    %8467 = vmatpush1.bf16.msra.mxu0 %v5698
    %8468 = vmatprep.subr.bf16.mxu0 %v5707
    %8469 = vmatpush1.bf16.msra.mxu0 %v5706
    %8470 = vmatprep.subr.bf16.mxu0 %v5715
    %8471 = vmatpush1.bf16.msra.mxu0 %v5714
    %8472 = vmatprep.subr.bf16.mxu0 %v5723
    %8473 = vmatpush1.bf16.msra.mxu0 %v5722
    %8474 = vmatprep.subr.bf16.mxu0 %v5731
    %8475 = vmatpush1.bf16.msra.mxu0 %v5730
    %8476 = vmatprep.subr.bf16.mxu0 %v5739
    %8477 = vmatpush1.bf16.msra.mxu0 %v5738
    %8478 = vmatprep.subr.bf16.mxu0 %v5747
    %8479 = vmatpush1.bf16.msra.mxu0 %v5746
    %8480 = vmatprep.subr.bf16.mxu0 %v5755
    %8481 = vmatpush1.bf16.msra.mxu0 %v5754
    %8482 = vmatprep.subr.bf16.mxu0 %v5763
    %8483 = vmatpush1.bf16.msra.mxu0 %v5762
    %8484 = vmatprep.subr.bf16.mxu0 %v5771
    %8485 = vmatpush1.bf16.msra.mxu0 %v5770
    %8486 = vmatprep.mubr.bf16.mxu0 %v1363
    %8487 = vmatmul.mubr.bf16.gmra.mrb[0].mxu0 %v1362
    %v8488 = vpop.f32.mrb[0].mxu0
    %v8489 = vadd.f32 %v8436, %v8488
    %v8490 = vpop.f32.mrb[0].mxu0
    %v8491 = vadd.f32 %v8438, %v8490
    %v8492 = vpop.f32.mrb[0].mxu0
    %v8493 = vadd.f32 %v8440, %v8492
    %v8494 = vpop.f32.mrb[0].mxu0
    %v8495 = vadd.f32 %v8442, %v8494
    %8496 = vmatprep.mubr.bf16.mxu0 %v1381
    %8497 = vmatmul.mubr.bf16.gmra.mrb[0].mxu0 %v1380
    %v8498 = vpop.f32.mrb[0].mxu0
    %v8499 = vadd.f32 %v8446, %v8498
    %v8500 = vpop.f32.mrb[0].mxu0
    %v8501 = vadd.f32 %v8448, %v8500
    %v8502 = vpop.f32.mrb[0].mxu0
    %v8503 = vadd.f32 %v8450, %v8502
    %v8504 = vpop.f32.mrb[0].mxu0
    %v8505 = vadd.f32 %v8452, %v8504
    %8506 = vdwg.mxu0
    %8507 = vmatprep.subr.bf16.mxu0 %v5779
    %8508 = vmatpush1.bf16.msra.mxu0 %v5778
    %8509 = vmatprep.subr.bf16.mxu0 %v5787
    %8510 = vmatpush1.bf16.msra.mxu0 %v5786
    %8511 = vmatprep.subr.bf16.mxu0 %v5795
    %8512 = vmatpush1.bf16.msra.mxu0 %v5794
    %8513 = vmatprep.subr.bf16.mxu0 %v5803
    %8514 = vmatpush1.bf16.msra.mxu0 %v5802
    %8515 = vmatprep.subr.bf16.mxu0 %v5811
    %8516 = vmatpush1.bf16.msra.mxu0 %v5810
    %8517 = vmatprep.subr.bf16.mxu0 %v5819
    %8518 = vmatpush1.bf16.msra.mxu0 %v5818
    %8519 = vmatprep.subr.bf16.mxu0 %v5827
    %8520 = vmatpush1.bf16.msra.mxu0 %v5826
    %8521 = vmatprep.subr.bf16.mxu0 %v5835
    %8522 = vmatpush1.bf16.msra.mxu0 %v5834
    %8523 = vmatprep.subr.bf16.mxu0 %v5843
    %8524 = vmatpush1.bf16.msra.mxu0 %v5842
    %8525 = vmatprep.subr.bf16.mxu0 %v5851
    %8526 = vmatpush1.bf16.msra.mxu0 %v5850
    %8527 = vmatprep.subr.bf16.mxu0 %v5859
    %8528 = vmatpush1.bf16.msra.mxu0 %v5858
    %8529 = vmatprep.subr.bf16.mxu0 %v5867
    %8530 = vmatpush1.bf16.msra.mxu0 %v5866
    %8531 = vmatprep.subr.bf16.mxu0 %v5875
    %8532 = vmatpush1.bf16.msra.mxu0 %v5874
    %8533 = vmatprep.subr.bf16.mxu0 %v5883
    %8534 = vmatpush1.bf16.msra.mxu0 %v5882
    %8535 = vmatprep.subr.bf16.mxu0 %v5891
    %8536 = vmatpush1.bf16.msra.mxu0 %v5890
    %8537 = vmatprep.subr.bf16.mxu0 %v5899
    %8538 = vmatpush1.bf16.msra.mxu0 %v5898
    %8539 = vmatprep.mubr.bf16.mxu0 %v1365
    %8540 = vmatmul.mubr.bf16.gmra.mrb[0].mxu0 %v1364
    %v8541 = vpop.f32.mrb[0].mxu0
    %v8542 = vadd.f32 %v8489, %v8541
    %v8543 = vpop.f32.mrb[0].mxu0
    %v8544 = vadd.f32 %v8491, %v8543
    %v8545 = vpop.f32.mrb[0].mxu0
    %v8546 = vadd.f32 %v8493, %v8545
    %v8547 = vpop.f32.mrb[0].mxu0
    %v8548 = vadd.f32 %v8495, %v8547
    %8549 = vmatprep.mubr.bf16.mxu0 %v1383
    %8550 = vmatmul.mubr.bf16.gmra.mrb[0].mxu0 %v1382
    %v8551 = vpop.f32.mrb[0].mxu0
    %v8552 = vadd.f32 %v8499, %v8551
    %v8553 = vpop.f32.mrb[0].mxu0
    %v8554 = vadd.f32 %v8501, %v8553
    %v8555 = vpop.f32.mrb[0].mxu0
    %v8556 = vadd.f32 %v8503, %v8555
    %v8557 = vpop.f32.mrb[0].mxu0
    %v8558 = vadd.f32 %v8505, %v8557
    %8559 = vdwg.mxu0
    %8560 = vmatprep.subr.bf16.mxu0 %v5907
    %8561 = vmatpush1.bf16.msra.mxu0 %v5906
    %8562 = vmatprep.subr.bf16.mxu0 %v5915
    %8563 = vmatpush1.bf16.msra.mxu0 %v5914
    %8564 = vmatprep.subr.bf16.mxu0 %v5923
    %8565 = vmatpush1.bf16.msra.mxu0 %v5922
    %8566 = vmatprep.subr.bf16.mxu0 %v5931
    %8567 = vmatpush1.bf16.msra.mxu0 %v5930
    %8568 = vmatprep.subr.bf16.mxu0 %v5939
    %8569 = vmatpush1.bf16.msra.mxu0 %v5938
    %8570 = vmatprep.subr.bf16.mxu0 %v5947
    %8571 = vmatpush1.bf16.msra.mxu0 %v5946
    %8572 = vmatprep.subr.bf16.mxu0 %v5955
    %8573 = vmatpush1.bf16.msra.mxu0 %v5954
    %8574 = vmatprep.subr.bf16.mxu0 %v5963
    %8575 = vmatpush1.bf16.msra.mxu0 %v5962
    %8576 = vmatprep.subr.bf16.mxu0 %v5971
    %8577 = vmatpush1.bf16.msra.mxu0 %v5970
    %8578 = vmatprep.subr.bf16.mxu0 %v5979
    %8579 = vmatpush1.bf16.msra.mxu0 %v5978
    %8580 = vmatprep.subr.bf16.mxu0 %v5987
    %8581 = vmatpush1.bf16.msra.mxu0 %v5986
    %8582 = vmatprep.subr.bf16.mxu0 %v5995
    %8583 = vmatpush1.bf16.msra.mxu0 %v5994
    %8584 = vmatprep.subr.bf16.mxu0 %v6003
    %8585 = vmatpush1.bf16.msra.mxu0 %v6002
    %8586 = vmatprep.subr.bf16.mxu0 %v6011
    %8587 = vmatpush1.bf16.msra.mxu0 %v6010
    %8588 = vmatprep.subr.bf16.mxu0 %v6019
    %8589 = vmatpush1.bf16.msra.mxu0 %v6018
    %8590 = vmatprep.subr.bf16.mxu0 %v6027
    %8591 = vmatpush1.bf16.msra.mxu0 %v6026
    %8592 = vmatprep.mubr.bf16.mxu0 %v1367
    %8593 = vmatmul.mubr.bf16.gmra.mrb[0].mxu0 %v1366
    %v8594 = vpop.f32.mrb[0].mxu0
    %v8595 = vadd.f32 %v8542, %v8594
    %v8596 = vpop.f32.mrb[0].mxu0
    %v8597 = vadd.f32 %v8544, %v8596
    %v8598 = vpop.f32.mrb[0].mxu0
    %v8599 = vadd.f32 %v8546, %v8598
    %v8600 = vpop.f32.mrb[0].mxu0
    %v8601 = vadd.f32 %v8548, %v8600
    %8602 = vmatprep.mubr.bf16.mxu0 %v1385
    %8603 = vmatmul.mubr.bf16.gmra.mrb[0].mxu0 %v1384
    %v8604 = vpop.f32.mrb[0].mxu0
    %v8605 = vadd.f32 %v8552, %v8604
    %v8606 = vpop.f32.mrb[0].mxu0
    %v8607 = vadd.f32 %v8554, %v8606
    %v8608 = vpop.f32.mrb[0].mxu0
    %v8609 = vadd.f32 %v8556, %v8608
    %v8610 = vpop.f32.mrb[0].mxu0
    %v8611 = vadd.f32 %v8558, %v8610
    %8612 = vdwg.mxu0
    %8613 = vmatprep.subr.bf16.mxu0 %v4885
    %8614 = vmatpush1.bf16.msra.mxu0 %v4884
    %8615 = vmatprep.subr.bf16.mxu0 %v4893
    %8616 = vmatpush1.bf16.msra.mxu0 %v4892
    %8617 = vmatprep.subr.bf16.mxu0 %v4901
    %8618 = vmatpush1.bf16.msra.mxu0 %v4900
    %8619 = vmatprep.subr.bf16.mxu0 %v4909
    %8620 = vmatpush1.bf16.msra.mxu0 %v4908
    %8621 = vmatprep.subr.bf16.mxu0 %v4917
    %8622 = vmatpush1.bf16.msra.mxu0 %v4916
    %8623 = vmatprep.subr.bf16.mxu0 %v4925
    %8624 = vmatpush1.bf16.msra.mxu0 %v4924
    %8625 = vmatprep.subr.bf16.mxu0 %v4933
    %8626 = vmatpush1.bf16.msra.mxu0 %v4932
    %8627 = vmatprep.subr.bf16.mxu0 %v4941
    %8628 = vmatpush1.bf16.msra.mxu0 %v4940
    %8629 = vmatprep.subr.bf16.mxu0 %v4949
    %8630 = vmatpush1.bf16.msra.mxu0 %v4948
    %8631 = vmatprep.subr.bf16.mxu0 %v4957
    %8632 = vmatpush1.bf16.msra.mxu0 %v4956
    %8633 = vmatprep.subr.bf16.mxu0 %v4965
    %8634 = vmatpush1.bf16.msra.mxu0 %v4964
    %8635 = vmatprep.subr.bf16.mxu0 %v4973
    %8636 = vmatpush1.bf16.msra.mxu0 %v4972
    %8637 = vmatprep.subr.bf16.mxu0 %v4981
    %8638 = vmatpush1.bf16.msra.mxu0 %v4980
    %8639 = vmatprep.subr.bf16.mxu0 %v4989
    %8640 = vmatpush1.bf16.msra.mxu0 %v4988
    %8641 = vmatprep.subr.bf16.mxu0 %v4997
    %8642 = vmatpush1.bf16.msra.mxu0 %v4996
    %8643 = vmatprep.subr.bf16.mxu0 %v5005
    %8644 = vmatpush1.bf16.msra.mxu0 %v5004
    %8645 = vmatprep.mubr.bf16.mxu0 %v1351
    %8646 = vmatmul.mubr.bf16.gmra.mrb[0].mxu0 %v1350
    %v8647 = vpop.f32.mrb[0].mxu0
    %v8648 = vadd.f32 0.0, %v8647
    %v8649 = vpop.f32.mrb[0].mxu0
    %v8650 = vadd.f32 0.0, %v8649
    %v8651 = vpop.f32.mrb[0].mxu0
    %v8652 = vadd.f32 0.0, %v8651
    %v8653 = vpop.f32.mrb[0].mxu0
    %v8654 = vadd.f32 0.0, %v8653
    %8655 = vmatprep.mubr.bf16.mxu0 %v1369
    %8656 = vmatmul.mubr.bf16.gmra.mrb[0].mxu0 %v1368
    %v8657 = vpop.f32.mrb[0].mxu0
    %v8658 = vadd.f32 0.0, %v8657
    %v8659 = vpop.f32.mrb[0].mxu0
    %v8660 = vadd.f32 0.0, %v8659
    %v8661 = vpop.f32.mrb[0].mxu0
    %v8662 = vadd.f32 0.0, %v8661
    %v8663 = vpop.f32.mrb[0].mxu0
    %v8664 = vadd.f32 0.0, %v8663
    %8665 = vdwg.mxu0
    %8666 = vmatprep.subr.bf16.mxu0 %v5013
    %8667 = vmatpush1.bf16.msra.mxu0 %v5012
    %8668 = vmatprep.subr.bf16.mxu0 %v5021
    %8669 = vmatpush1.bf16.msra.mxu0 %v5020
    %8670 = vmatprep.subr.bf16.mxu0 %v5029
    %8671 = vmatpush1.bf16.msra.mxu0 %v5028
    %8672 = vmatprep.subr.bf16.mxu0 %v5037
    %8673 = vmatpush1.bf16.msra.mxu0 %v5036
    %8674 = vmatprep.subr.bf16.mxu0 %v5045
    %8675 = vmatpush1.bf16.msra.mxu0 %v5044
    %8676 = vmatprep.subr.bf16.mxu0 %v5053
    %8677 = vmatpush1.bf16.msra.mxu0 %v5052
    %8678 = vmatprep.subr.bf16.mxu0 %v5061
    %8679 = vmatpush1.bf16.msra.mxu0 %v5060
    %8680 = vmatprep.subr.bf16.mxu0 %v5069
    %8681 = vmatpush1.bf16.msra.mxu0 %v5068
    %8682 = vmatprep.subr.bf16.mxu0 %v5077
    %8683 = vmatpush1.bf16.msra.mxu0 %v5076
    %8684 = vmatprep.subr.bf16.mxu0 %v5085
    %8685 = vmatpush1.bf16.msra.mxu0 %v5084
    %8686 = vmatprep.subr.bf16.mxu0 %v5093
    %8687 = vmatpush1.bf16.msra.mxu0 %v5092
    %8688 = vmatprep.subr.bf16.mxu0 %v5101
    %8689 = vmatpush1.bf16.msra.mxu0 %v5100
    %8690 = vmatprep.subr.bf16.mxu0 %v5109
    %8691 = vmatpush1.bf16.msra.mxu0 %v5108
    %8692 = vmatprep.subr.bf16.mxu0 %v5117
    %8693 = vmatpush1.bf16.msra.mxu0 %v5116
    %8694 = vmatprep.subr.bf16.mxu0 %v5125
    %8695 = vmatpush1.bf16.msra.mxu0 %v5124
    %8696 = vmatprep.subr.bf16.mxu0 %v5133
    %8697 = vmatpush1.bf16.msra.mxu0 %v5132
    %8698 = vmatprep.mubr.bf16.mxu0 %v1353
    %8699 = vmatmul.mubr.bf16.gmra.mrb[0].mxu0 %v1352
    %v8700 = vpop.f32.mrb[0].mxu0
    %v8701 = vadd.f32 %v8648, %v8700
    %v8702 = vpop.f32.mrb[0].mxu0
    %v8703 = vadd.f32 %v8650, %v8702
    %v8704 = vpop.f32.mrb[0].mxu0
    %v8705 = vadd.f32 %v8652, %v8704
    %v8706 = vpop.f32.mrb[0].mxu0
    %v8707 = vadd.f32 %v8654, %v8706
    %8708 = vmatprep.mubr.bf16.mxu0 %v1371
    %8709 = vmatmul.mubr.bf16.gmra.mrb[0].mxu0 %v1370
    %v8710 = vpop.f32.mrb[0].mxu0
    %v8711 = vadd.f32 %v8658, %v8710
    %v8712 = vpop.f32.mrb[0].mxu0
    %v8713 = vadd.f32 %v8660, %v8712
    %v8714 = vpop.f32.mrb[0].mxu0
    %v8715 = vadd.f32 %v8662, %v8714
    %v8716 = vpop.f32.mrb[0].mxu0
    %v8717 = vadd.f32 %v8664, %v8716
    %8718 = vdwg.mxu0
    %8719 = vmatprep.subr.bf16.mxu0 %v5141
    %8720 = vmatpush1.bf16.msra.mxu0 %v5140
    %8721 = vmatprep.subr.bf16.mxu0 %v5149
    %8722 = vmatpush1.bf16.msra.mxu0 %v5148
    %8723 = vmatprep.subr.bf16.mxu0 %v5157
    %8724 = vmatpush1.bf16.msra.mxu0 %v5156
    %8725 = vmatprep.subr.bf16.mxu0 %v5165
    %8726 = vmatpush1.bf16.msra.mxu0 %v5164
    %8727 = vmatprep.subr.bf16.mxu0 %v5173
    %8728 = vmatpush1.bf16.msra.mxu0 %v5172
    %8729 = vmatprep.subr.bf16.mxu0 %v5181
    %8730 = vmatpush1.bf16.msra.mxu0 %v5180
    %8731 = vmatprep.subr.bf16.mxu0 %v5189
    %8732 = vmatpush1.bf16.msra.mxu0 %v5188
    %8733 = vmatprep.subr.bf16.mxu0 %v5197
    %8734 = vmatpush1.bf16.msra.mxu0 %v5196
    %8735 = vmatprep.subr.bf16.mxu0 %v5205
    %8736 = vmatpush1.bf16.msra.mxu0 %v5204
    %8737 = vmatprep.subr.bf16.mxu0 %v5213
    %8738 = vmatpush1.bf16.msra.mxu0 %v5212
    %8739 = vmatprep.subr.bf16.mxu0 %v5221
    %8740 = vmatpush1.bf16.msra.mxu0 %v5220
    %8741 = vmatprep.subr.bf16.mxu0 %v5229
    %8742 = vmatpush1.bf16.msra.mxu0 %v5228
    %8743 = vmatprep.subr.bf16.mxu0 %v5237
    %8744 = vmatpush1.bf16.msra.mxu0 %v5236
    %8745 = vmatprep.subr.bf16.mxu0 %v5245
    %8746 = vmatpush1.bf16.msra.mxu0 %v5244
    %8747 = vmatprep.subr.bf16.mxu0 %v5253
    %8748 = vmatpush1.bf16.msra.mxu0 %v5252
    %8749 = vmatprep.subr.bf16.mxu0 %v5261
    %8750 = vmatpush1.bf16.msra.mxu0 %v5260
    %8751 = vmatprep.mubr.bf16.mxu0 %v1355
    %8752 = vmatmul.mubr.bf16.gmra.mrb[0].mxu0 %v1354
    %v8753 = vpop.f32.mrb[0].mxu0
    %v8754 = vadd.f32 %v8701, %v8753
    %v8755 = vpop.f32.mrb[0].mxu0
    %v8756 = vadd.f32 %v8703, %v8755
    %v8757 = vpop.f32.mrb[0].mxu0
    %v8758 = vadd.f32 %v8705, %v8757
    %v8759 = vpop.f32.mrb[0].mxu0
    %v8760 = vadd.f32 %v8707, %v8759
    %8761 = vmatprep.mubr.bf16.mxu0 %v1373
    %8762 = vmatmul.mubr.bf16.gmra.mrb[0].mxu0 %v1372
    %v8763 = vpop.f32.mrb[0].mxu0
    %v8764 = vadd.f32 %v8711, %v8763
    %v8765 = vpop.f32.mrb[0].mxu0
    %v8766 = vadd.f32 %v8713, %v8765
    %v8767 = vpop.f32.mrb[0].mxu0
    %v8768 = vadd.f32 %v8715, %v8767
    %v8769 = vpop.f32.mrb[0].mxu0
    %v8770 = vadd.f32 %v8717, %v8769
    %8771 = vdwg.mxu0
    %8772 = vmatprep.subr.bf16.mxu0 %v5269
    %8773 = vmatpush1.bf16.msra.mxu0 %v5268
    %8774 = vmatprep.subr.bf16.mxu0 %v5277
    %8775 = vmatpush1.bf16.msra.mxu0 %v5276
    %8776 = vmatprep.subr.bf16.mxu0 %v5285
    %8777 = vmatpush1.bf16.msra.mxu0 %v5284
    %8778 = vmatprep.subr.bf16.mxu0 %v5293
    %8779 = vmatpush1.bf16.msra.mxu0 %v5292
    %8780 = vmatprep.subr.bf16.mxu0 %v5301
    %8781 = vmatpush1.bf16.msra.mxu0 %v5300
    %8782 = vmatprep.subr.bf16.mxu0 %v5309
    %8783 = vmatpush1.bf16.msra.mxu0 %v5308
    %8784 = vmatprep.subr.bf16.mxu0 %v5317
    %8785 = vmatpush1.bf16.msra.mxu0 %v5316
    %8786 = vmatprep.subr.bf16.mxu0 %v5325
    %8787 = vmatpush1.bf16.msra.mxu0 %v5324
    %8788 = vmatprep.subr.bf16.mxu0 %v5333
    %8789 = vmatpush1.bf16.msra.mxu0 %v5332
    %8790 = vmatprep.subr.bf16.mxu0 %v5341
    %8791 = vmatpush1.bf16.msra.mxu0 %v5340
    %8792 = vmatprep.subr.bf16.mxu0 %v5349
    %8793 = vmatpush1.bf16.msra.mxu0 %v5348
    %8794 = vmatprep.subr.bf16.mxu0 %v5357
    %8795 = vmatpush1.bf16.msra.mxu0 %v5356
    %8796 = vmatprep.subr.bf16.mxu0 %v5365
    %8797 = vmatpush1.bf16.msra.mxu0 %v5364
    %8798 = vmatprep.subr.bf16.mxu0 %v5373
    %8799 = vmatpush1.bf16.msra.mxu0 %v5372
    %8800 = vmatprep.subr.bf16.mxu0 %v5381
    %8801 = vmatpush1.bf16.msra.mxu0 %v5380
    %8802 = vmatprep.subr.bf16.mxu0 %v5389
    %8803 = vmatpush1.bf16.msra.mxu0 %v5388
    %8804 = vmatprep.mubr.bf16.mxu0 %v1357
    %8805 = vmatmul.mubr.bf16.gmra.mrb[0].mxu0 %v1356
    %v8806 = vpop.f32.mrb[0].mxu0
    %v8807 = vadd.f32 %v8754, %v8806
    %v8808 = vpop.f32.mrb[0].mxu0
    %v8809 = vadd.f32 %v8756, %v8808
    %v8810 = vpop.f32.mrb[0].mxu0
    %v8811 = vadd.f32 %v8758, %v8810
    %v8812 = vpop.f32.mrb[0].mxu0
    %v8813 = vadd.f32 %v8760, %v8812
    %8814 = vmatprep.mubr.bf16.mxu0 %v1375
    %8815 = vmatmul.mubr.bf16.gmra.mrb[0].mxu0 %v1374
    %v8816 = vpop.f32.mrb[0].mxu0
    %v8817 = vadd.f32 %v8764, %v8816
    %v8818 = vpop.f32.mrb[0].mxu0
    %v8819 = vadd.f32 %v8766, %v8818
    %v8820 = vpop.f32.mrb[0].mxu0
    %v8821 = vadd.f32 %v8768, %v8820
    %v8822 = vpop.f32.mrb[0].mxu0
    %v8823 = vadd.f32 %v8770, %v8822
    %8824 = vdwg.mxu0
    %8825 = vmatprep.subr.bf16.mxu0 %v5397
    %8826 = vmatpush1.bf16.msra.mxu0 %v5396
    %8827 = vmatprep.subr.bf16.mxu0 %v5405
    %8828 = vmatpush1.bf16.msra.mxu0 %v5404
    %8829 = vmatprep.subr.bf16.mxu0 %v5413
    %8830 = vmatpush1.bf16.msra.mxu0 %v5412
    %8831 = vmatprep.subr.bf16.mxu0 %v5421
    %8832 = vmatpush1.bf16.msra.mxu0 %v5420
    %8833 = vmatprep.subr.bf16.mxu0 %v5429
    %8834 = vmatpush1.bf16.msra.mxu0 %v5428
    %8835 = vmatprep.subr.bf16.mxu0 %v5437
    %8836 = vmatpush1.bf16.msra.mxu0 %v5436
    %8837 = vmatprep.subr.bf16.mxu0 %v5445
    %8838 = vmatpush1.bf16.msra.mxu0 %v5444
    %8839 = vmatprep.subr.bf16.mxu0 %v5453
    %8840 = vmatpush1.bf16.msra.mxu0 %v5452
    %8841 = vmatprep.subr.bf16.mxu0 %v5461
    %8842 = vmatpush1.bf16.msra.mxu0 %v5460
    %8843 = vmatprep.subr.bf16.mxu0 %v5469
    %8844 = vmatpush1.bf16.msra.mxu0 %v5468
    %8845 = vmatprep.subr.bf16.mxu0 %v5477
    %8846 = vmatpush1.bf16.msra.mxu0 %v5476
    %8847 = vmatprep.subr.bf16.mxu0 %v5485
    %8848 = vmatpush1.bf16.msra.mxu0 %v5484
    %8849 = vmatprep.subr.bf16.mxu0 %v5493
    %8850 = vmatpush1.bf16.msra.mxu0 %v5492
    %8851 = vmatprep.subr.bf16.mxu0 %v5501
    %8852 = vmatpush1.bf16.msra.mxu0 %v5500
    %8853 = vmatprep.subr.bf16.mxu0 %v5509
    %8854 = vmatpush1.bf16.msra.mxu0 %v5508
    %8855 = vmatprep.subr.bf16.mxu0 %v5517
    %8856 = vmatpush1.bf16.msra.mxu0 %v5516
    %8857 = vmatprep.mubr.bf16.mxu0 %v1359
    %8858 = vmatmul.mubr.bf16.gmra.mrb[0].mxu0 %v1358
    %v8859 = vpop.f32.mrb[0].mxu0
    %v8860 = vadd.f32 %v8807, %v8859
    %v8861 = vpop.f32.mrb[0].mxu0
    %v8862 = vadd.f32 %v8809, %v8861
    %v8863 = vpop.f32.mrb[0].mxu0
    %v8864 = vadd.f32 %v8811, %v8863
    %v8865 = vpop.f32.mrb[0].mxu0
    %v8866 = vadd.f32 %v8813, %v8865
    %8867 = vmatprep.mubr.bf16.mxu0 %v1377
    %8868 = vmatmul.mubr.bf16.gmra.mrb[0].mxu0 %v1376
    %v8869 = vpop.f32.mrb[0].mxu0
    %v8870 = vadd.f32 %v8817, %v8869
    %v8871 = vpop.f32.mrb[0].mxu0
    %v8872 = vadd.f32 %v8819, %v8871
    %v8873 = vpop.f32.mrb[0].mxu0
    %v8874 = vadd.f32 %v8821, %v8873
    %v8875 = vpop.f32.mrb[0].mxu0
    %v8876 = vadd.f32 %v8823, %v8875
    %8877 = vdwg.mxu0
    %8878 = vmatprep.subr.bf16.mxu0 %v5525
    %8879 = vmatpush1.bf16.msra.mxu0 %v5524
    %8880 = vmatprep.subr.bf16.mxu0 %v5533
    %8881 = vmatpush1.bf16.msra.mxu0 %v5532
    %8882 = vmatprep.subr.bf16.mxu0 %v5541
    %8883 = vmatpush1.bf16.msra.mxu0 %v5540
    %8884 = vmatprep.subr.bf16.mxu0 %v5549
    %8885 = vmatpush1.bf16.msra.mxu0 %v5548
    %8886 = vmatprep.subr.bf16.mxu0 %v5557
    %8887 = vmatpush1.bf16.msra.mxu0 %v5556
    %8888 = vmatprep.subr.bf16.mxu0 %v5565
    %8889 = vmatpush1.bf16.msra.mxu0 %v5564
    %8890 = vmatprep.subr.bf16.mxu0 %v5573
    %8891 = vmatpush1.bf16.msra.mxu0 %v5572
    %8892 = vmatprep.subr.bf16.mxu0 %v5581
    %8893 = vmatpush1.bf16.msra.mxu0 %v5580
    %8894 = vmatprep.subr.bf16.mxu0 %v5589
    %8895 = vmatpush1.bf16.msra.mxu0 %v5588
    %8896 = vmatprep.subr.bf16.mxu0 %v5597
    %8897 = vmatpush1.bf16.msra.mxu0 %v5596
    %8898 = vmatprep.subr.bf16.mxu0 %v5605
    %8899 = vmatpush1.bf16.msra.mxu0 %v5604
    %8900 = vmatprep.subr.bf16.mxu0 %v5613
    %8901 = vmatpush1.bf16.msra.mxu0 %v5612
    %8902 = vmatprep.subr.bf16.mxu0 %v5621
    %8903 = vmatpush1.bf16.msra.mxu0 %v5620
    %8904 = vmatprep.subr.bf16.mxu0 %v5629
    %8905 = vmatpush1.bf16.msra.mxu0 %v5628
    %8906 = vmatprep.subr.bf16.mxu0 %v5637
    %8907 = vmatpush1.bf16.msra.mxu0 %v5636
    %8908 = vmatprep.subr.bf16.mxu0 %v5645
    %8909 = vmatpush1.bf16.msra.mxu0 %v5644
    %8910 = vmatprep.mubr.bf16.mxu0 %v1361
    %8911 = vmatmul.mubr.bf16.gmra.mrb[0].mxu0 %v1360
    %v8912 = vpop.f32.mrb[0].mxu0
    %v8913 = vadd.f32 %v8860, %v8912
    %v8914 = vpop.f32.mrb[0].mxu0
    %v8915 = vadd.f32 %v8862, %v8914
    %v8916 = vpop.f32.mrb[0].mxu0
    %v8917 = vadd.f32 %v8864, %v8916
    %v8918 = vpop.f32.mrb[0].mxu0
    %v8919 = vadd.f32 %v8866, %v8918
    %8920 = vmatprep.mubr.bf16.mxu0 %v1379
    %8921 = vmatmul.mubr.bf16.gmra.mrb[0].mxu0 %v1378
    %v8922 = vpop.f32.mrb[0].mxu0
    %v8923 = vadd.f32 %v8870, %v8922
    %v8924 = vpop.f32.mrb[0].mxu0
    %v8925 = vadd.f32 %v8872, %v8924
    %v8926 = vpop.f32.mrb[0].mxu0
    %v8927 = vadd.f32 %v8874, %v8926
    %v8928 = vpop.f32.mrb[0].mxu0
    %v8929 = vadd.f32 %v8876, %v8928
    %8930 = vdwg.mxu0
    %8931 = vmatprep.subr.bf16.mxu0 %v5653
    %8932 = vmatpush1.bf16.msra.mxu0 %v5652
    %8933 = vmatprep.subr.bf16.mxu0 %v5661
    %8934 = vmatpush1.bf16.msra.mxu0 %v5660
    %8935 = vmatprep.subr.bf16.mxu0 %v5669
    %8936 = vmatpush1.bf16.msra.mxu0 %v5668
    %8937 = vmatprep.subr.bf16.mxu0 %v5677
    %8938 = vmatpush1.bf16.msra.mxu0 %v5676
    %8939 = vmatprep.subr.bf16.mxu0 %v5685
    %8940 = vmatpush1.bf16.msra.mxu0 %v5684
    %8941 = vmatprep.subr.bf16.mxu0 %v5693
    %8942 = vmatpush1.bf16.msra.mxu0 %v5692
    %8943 = vmatprep.subr.bf16.mxu0 %v5701
    %8944 = vmatpush1.bf16.msra.mxu0 %v5700
    %8945 = vmatprep.subr.bf16.mxu0 %v5709
    %8946 = vmatpush1.bf16.msra.mxu0 %v5708
    %8947 = vmatprep.subr.bf16.mxu0 %v5717
    %8948 = vmatpush1.bf16.msra.mxu0 %v5716
    %8949 = vmatprep.subr.bf16.mxu0 %v5725
    %8950 = vmatpush1.bf16.msra.mxu0 %v5724
    %8951 = vmatprep.subr.bf16.mxu0 %v5733
    %8952 = vmatpush1.bf16.msra.mxu0 %v5732
    %8953 = vmatprep.subr.bf16.mxu0 %v5741
    %8954 = vmatpush1.bf16.msra.mxu0 %v5740
    %8955 = vmatprep.subr.bf16.mxu0 %v5749
    %8956 = vmatpush1.bf16.msra.mxu0 %v5748
    %8957 = vmatprep.subr.bf16.mxu0 %v5757
    %8958 = vmatpush1.bf16.msra.mxu0 %v5756
    %8959 = vmatprep.subr.bf16.mxu0 %v5765
    %8960 = vmatpush1.bf16.msra.mxu0 %v5764
    %8961 = vmatprep.subr.bf16.mxu0 %v5773
    %8962 = vmatpush1.bf16.msra.mxu0 %v5772
    %8963 = vmatprep.mubr.bf16.mxu0 %v1363
    %8964 = vmatmul.mubr.bf16.gmra.mrb[0].mxu0 %v1362
    %v8965 = vpop.f32.mrb[0].mxu0
    %v8966 = vadd.f32 %v8913, %v8965
    %v8967 = vpop.f32.mrb[0].mxu0
    %v8968 = vadd.f32 %v8915, %v8967
    %v8969 = vpop.f32.mrb[0].mxu0
    %v8970 = vadd.f32 %v8917, %v8969
    %v8971 = vpop.f32.mrb[0].mxu0
    %v8972 = vadd.f32 %v8919, %v8971
    %8973 = vmatprep.mubr.bf16.mxu0 %v1381
    %8974 = vmatmul.mubr.bf16.gmra.mrb[0].mxu0 %v1380
    %v8975 = vpop.f32.mrb[0].mxu0
    %v8976 = vadd.f32 %v8923, %v8975
    %v8977 = vpop.f32.mrb[0].mxu0
    %v8978 = vadd.f32 %v8925, %v8977
    %v8979 = vpop.f32.mrb[0].mxu0
    %v8980 = vadd.f32 %v8927, %v8979
    %v8981 = vpop.f32.mrb[0].mxu0
    %v8982 = vadd.f32 %v8929, %v8981
    %8983 = vdwg.mxu0
    %8984 = vmatprep.subr.bf16.mxu0 %v5781
    %8985 = vmatpush1.bf16.msra.mxu0 %v5780
    %8986 = vmatprep.subr.bf16.mxu0 %v5789
    %8987 = vmatpush1.bf16.msra.mxu0 %v5788
    %8988 = vmatprep.subr.bf16.mxu0 %v5797
    %8989 = vmatpush1.bf16.msra.mxu0 %v5796
    %8990 = vmatprep.subr.bf16.mxu0 %v5805
    %8991 = vmatpush1.bf16.msra.mxu0 %v5804
    %8992 = vmatprep.subr.bf16.mxu0 %v5813
    %8993 = vmatpush1.bf16.msra.mxu0 %v5812
    %8994 = vmatprep.subr.bf16.mxu0 %v5821
    %8995 = vmatpush1.bf16.msra.mxu0 %v5820
    %8996 = vmatprep.subr.bf16.mxu0 %v5829
    %8997 = vmatpush1.bf16.msra.mxu0 %v5828
    %8998 = vmatprep.subr.bf16.mxu0 %v5837
    %8999 = vmatpush1.bf16.msra.mxu0 %v5836
    %9000 = vmatprep.subr.bf16.mxu0 %v5845
    %9001 = vmatpush1.bf16.msra.mxu0 %v5844
    %9002 = vmatprep.subr.bf16.mxu0 %v5853
    %9003 = vmatpush1.bf16.msra.mxu0 %v5852
    %9004 = vmatprep.subr.bf16.mxu0 %v5861
    %9005 = vmatpush1.bf16.msra.mxu0 %v5860
    %9006 = vmatprep.subr.bf16.mxu0 %v5869
    %9007 = vmatpush1.bf16.msra.mxu0 %v5868
    %9008 = vmatprep.subr.bf16.mxu0 %v5877
    %9009 = vmatpush1.bf16.msra.mxu0 %v5876
    %9010 = vmatprep.subr.bf16.mxu0 %v5885
    %9011 = vmatpush1.bf16.msra.mxu0 %v5884
    %9012 = vmatprep.subr.bf16.mxu0 %v5893
    %9013 = vmatpush1.bf16.msra.mxu0 %v5892
    %9014 = vmatprep.subr.bf16.mxu0 %v5901
    %9015 = vmatpush1.bf16.msra.mxu0 %v5900
    %9016 = vmatprep.mubr.bf16.mxu0 %v1365
    %9017 = vmatmul.mubr.bf16.gmra.mrb[0].mxu0 %v1364
    %v9018 = vpop.f32.mrb[0].mxu0
    %v9019 = vadd.f32 %v8966, %v9018
    %v9020 = vpop.f32.mrb[0].mxu0
    %v9021 = vadd.f32 %v8968, %v9020
    %v9022 = vpop.f32.mrb[0].mxu0
    %v9023 = vadd.f32 %v8970, %v9022
    %v9024 = vpop.f32.mrb[0].mxu0
    %v9025 = vadd.f32 %v8972, %v9024
    %9026 = vmatprep.mubr.bf16.mxu0 %v1383
    %9027 = vmatmul.mubr.bf16.gmra.mrb[0].mxu0 %v1382
    %v9028 = vpop.f32.mrb[0].mxu0
    %v9029 = vadd.f32 %v8976, %v9028
    %v9030 = vpop.f32.mrb[0].mxu0
    %v9031 = vadd.f32 %v8978, %v9030
    %v9032 = vpop.f32.mrb[0].mxu0
    %v9033 = vadd.f32 %v8980, %v9032
    %v9034 = vpop.f32.mrb[0].mxu0
    %v9035 = vadd.f32 %v8982, %v9034
    %9036 = vdwg.mxu0
    %9037 = vmatprep.subr.bf16.mxu0 %v5909
    %9038 = vmatpush1.bf16.msra.mxu0 %v5908
    %9039 = vmatprep.subr.bf16.mxu0 %v5917
    %9040 = vmatpush1.bf16.msra.mxu0 %v5916
    %9041 = vmatprep.subr.bf16.mxu0 %v5925
    %9042 = vmatpush1.bf16.msra.mxu0 %v5924
    %9043 = vmatprep.subr.bf16.mxu0 %v5933
    %9044 = vmatpush1.bf16.msra.mxu0 %v5932
    %9045 = vmatprep.subr.bf16.mxu0 %v5941
    %9046 = vmatpush1.bf16.msra.mxu0 %v5940
    %9047 = vmatprep.subr.bf16.mxu0 %v5949
    %9048 = vmatpush1.bf16.msra.mxu0 %v5948
    %9049 = vmatprep.subr.bf16.mxu0 %v5957
    %9050 = vmatpush1.bf16.msra.mxu0 %v5956
    %9051 = vmatprep.subr.bf16.mxu0 %v5965
    %9052 = vmatpush1.bf16.msra.mxu0 %v5964
    %9053 = vmatprep.subr.bf16.mxu0 %v5973
    %9054 = vmatpush1.bf16.msra.mxu0 %v5972
    %9055 = vmatprep.subr.bf16.mxu0 %v5981
    %9056 = vmatpush1.bf16.msra.mxu0 %v5980
    %9057 = vmatprep.subr.bf16.mxu0 %v5989
    %9058 = vmatpush1.bf16.msra.mxu0 %v5988
    %9059 = vmatprep.subr.bf16.mxu0 %v5997
    %9060 = vmatpush1.bf16.msra.mxu0 %v5996
    %9061 = vmatprep.subr.bf16.mxu0 %v6005
    %9062 = vmatpush1.bf16.msra.mxu0 %v6004
    %9063 = vmatprep.subr.bf16.mxu0 %v6013
    %9064 = vmatpush1.bf16.msra.mxu0 %v6012
    %9065 = vmatprep.subr.bf16.mxu0 %v6021
    %9066 = vmatpush1.bf16.msra.mxu0 %v6020
    %9067 = vmatprep.subr.bf16.mxu0 %v6029
    %9068 = vmatpush1.bf16.msra.mxu0 %v6028
    %9069 = vmatprep.mubr.bf16.mxu0 %v1367
    %9070 = vmatmul.mubr.bf16.gmra.mrb[0].mxu0 %v1366
    %v9071 = vpop.f32.mrb[0].mxu0
    %v9072 = vadd.f32 %v9019, %v9071
    %v9073 = vpop.f32.mrb[0].mxu0
    %v9074 = vadd.f32 %v9021, %v9073
    %v9075 = vpop.f32.mrb[0].mxu0
    %v9076 = vadd.f32 %v9023, %v9075
    %v9077 = vpop.f32.mrb[0].mxu0
    %v9078 = vadd.f32 %v9025, %v9077
    %9079 = vmatprep.mubr.bf16.mxu0 %v1385
    %9080 = vmatmul.mubr.bf16.gmra.mrb[0].mxu0 %v1384
    %v9081 = vpop.f32.mrb[0].mxu0
    %v9082 = vadd.f32 %v9029, %v9081
    %v9083 = vpop.f32.mrb[0].mxu0
    %v9084 = vadd.f32 %v9031, %v9083
    %v9085 = vpop.f32.mrb[0].mxu0
    %v9086 = vadd.f32 %v9033, %v9085
    %v9087 = vpop.f32.mrb[0].mxu0
    %v9088 = vadd.f32 %v9035, %v9087
    %9089 = vdwg.mxu0
    %v9090 = vld [vmem:[#allocation4] sm:$0xff]
    %v9092 = vlaneseq
    %v9093 = vshrl.u32 %v9092, 7
    %v9094 = vsub.s32 0, %v9093
    %v9095 = vrot.slane %v9090, %v9094
    %v9096 = vlaneseq
    %v9097 = vshrl.u32 %v9096, 7
    %v9098 = vsub.s32 1, %v9097
    %v9099 = vrot.slane %v9090, %v9098
    %v9100 = vlaneseq
    %v9101 = vshrl.u32 %v9100, 7
    %v9102 = vsub.s32 2, %v9101
    %v9103 = vrot.slane %v9090, %v9102
    %v9104 = vlaneseq
    %v9105 = vshrl.u32 %v9104, 7
    %v9106 = vsub.s32 3, %v9105
    %v9107 = vrot.slane %v9090, %v9106
    %v9108 = vlaneseq
    %v9109 = vshrl.u32 %v9108, 7
    %v9110 = vsub.s32 4, %v9109
    %v9111 = vrot.slane %v9090, %v9110
    %v9112 = vlaneseq
    %v9113 = vshrl.u32 %v9112, 7
    %v9114 = vsub.s32 5, %v9113
    %v9115 = vrot.slane %v9090, %v9114
    %v9116 = vlaneseq
    %v9117 = vshrl.u32 %v9116, 7
    %v9118 = vsub.s32 6, %v9117
    %v9119 = vrot.slane %v9090, %v9118
    %v9120 = vlaneseq
    %v9121 = vshrl.u32 %v9120, 7
    %v9122 = vsub.s32 7, %v9121
    %v9123 = vrot.slane %v9090, %v9122
    %v9132 = vmul.f32 %v7641, %v9095
    %v9133 = vmul.f32 %v7643, %v9099
    %v9134 = vmul.f32 %v8118, %v9103
    %v9135 = vmul.f32 %v8120, %v9107
    %v9136 = vmul.f32 %v8595, %v9111
    %v9137 = vmul.f32 %v8597, %v9115
    %v9138 = vmul.f32 %v9072, %v9119
    %v9139 = vmul.f32 %v9074, %v9123
    %v9140 = vmul.f32 %v7645, %v9095
    %v9141 = vmul.f32 %v7647, %v9099
    %v9142 = vmul.f32 %v8122, %v9103
    %v9143 = vmul.f32 %v8124, %v9107
    %v9144 = vmul.f32 %v8599, %v9111
    %v9145 = vmul.f32 %v8601, %v9115
    %v9146 = vmul.f32 %v9076, %v9119
    %v9147 = vmul.f32 %v9078, %v9123
    %v9148 = vmul.f32 %v7651, %v9095
    %v9149 = vmul.f32 %v7653, %v9099
    %v9150 = vmul.f32 %v8128, %v9103
    %v9151 = vmul.f32 %v8130, %v9107
    %v9152 = vmul.f32 %v8605, %v9111
    %v9153 = vmul.f32 %v8607, %v9115
    %v9154 = vmul.f32 %v9082, %v9119
    %v9155 = vmul.f32 %v9084, %v9123
    %v9156 = vmul.f32 %v7655, %v9095
    %v9157 = vmul.f32 %v7657, %v9099
    %v9158 = vmul.f32 %v8132, %v9103
    %v9159 = vmul.f32 %v8134, %v9107
    %v9160 = vmul.f32 %v8609, %v9111
    %v9161 = vmul.f32 %v8611, %v9115
    %v9162 = vmul.f32 %v9086, %v9119
    %v9163 = vmul.f32 %v9088, %v9123
    %v9164 = vld [vmem:[#allocation6] sm:$0xff]
    %v9166 = vlaneseq
    %v9167 = vshrl.u32 %v9166, 7
    %v9168 = vsub.s32 0, %v9167
    %v9169 = vrot.slane %v9164, %v9168
    %v9170 = vlaneseq
    %v9171 = vshrl.u32 %v9170, 7
    %v9172 = vsub.s32 1, %v9171
    %v9173 = vrot.slane %v9164, %v9172
    %v9174 = vlaneseq
    %v9175 = vshrl.u32 %v9174, 7
    %v9176 = vsub.s32 2, %v9175
    %v9177 = vrot.slane %v9164, %v9176
    %v9178 = vlaneseq
    %v9179 = vshrl.u32 %v9178, 7
    %v9180 = vsub.s32 3, %v9179
    %v9181 = vrot.slane %v9164, %v9180
    %v9182 = vlaneseq
    %v9183 = vshrl.u32 %v9182, 7
    %v9184 = vsub.s32 4, %v9183
    %v9185 = vrot.slane %v9164, %v9184
    %v9186 = vlaneseq
    %v9187 = vshrl.u32 %v9186, 7
    %v9188 = vsub.s32 5, %v9187
    %v9189 = vrot.slane %v9164, %v9188
    %v9190 = vlaneseq
    %v9191 = vshrl.u32 %v9190, 7
    %v9192 = vsub.s32 6, %v9191
    %v9193 = vrot.slane %v9164, %v9192
    %v9194 = vlaneseq
    %v9195 = vshrl.u32 %v9194, 7
    %v9196 = vsub.s32 7, %v9195
    %v9197 = vrot.slane %v9164, %v9196
    %v9206 = vadd.f32 %v9132, %v9169
    %v9207 = vadd.f32 %v9133, %v9173
    %v9208 = vadd.f32 %v9134, %v9177
    %v9209 = vadd.f32 %v9135, %v9181
    %v9210 = vadd.f32 %v9136, %v9185
    %v9211 = vadd.f32 %v9137, %v9189
    %v9212 = vadd.f32 %v9138, %v9193
    %v9213 = vadd.f32 %v9139, %v9197
    %v9214 = vadd.f32 %v9140, %v9169
    %v9215 = vadd.f32 %v9141, %v9173
    %v9216 = vadd.f32 %v9142, %v9177
    %v9217 = vadd.f32 %v9143, %v9181
    %v9218 = vadd.f32 %v9144, %v9185
    %v9219 = vadd.f32 %v9145, %v9189
    %v9220 = vadd.f32 %v9146, %v9193
    %v9221 = vadd.f32 %v9147, %v9197
    %v9222 = vadd.f32 %v9148, %v9169
    %v9223 = vadd.f32 %v9149, %v9173
    %v9224 = vadd.f32 %v9150, %v9177
    %v9225 = vadd.f32 %v9151, %v9181
    %v9226 = vadd.f32 %v9152, %v9185
    %v9227 = vadd.f32 %v9153, %v9189
    %v9228 = vadd.f32 %v9154, %v9193
    %v9229 = vadd.f32 %v9155, %v9197
    %v9230 = vadd.f32 %v9156, %v9169
    %v9231 = vadd.f32 %v9157, %v9173
    %v9232 = vadd.f32 %v9158, %v9177
    %v9233 = vadd.f32 %v9159, %v9181
    %v9234 = vadd.f32 %v9160, %v9185
    %v9235 = vadd.f32 %v9161, %v9189
    %v9236 = vadd.f32 %v9162, %v9193
    %v9237 = vadd.f32 %v9163, %v9197
    %vm9238 = vcmp.gt.f32.partialorder %v9206, 0.0
    %vm9239 = vcmp.gt.f32.partialorder %v9207, 0.0
    %vm9240 = vcmp.gt.f32.partialorder %v9208, 0.0
    %vm9241 = vcmp.gt.f32.partialorder %v9209, 0.0
    %vm9242 = vcmp.gt.f32.partialorder %v9210, 0.0
    %vm9243 = vcmp.gt.f32.partialorder %v9211, 0.0
    %vm9244 = vcmp.gt.f32.partialorder %v9212, 0.0
    %vm9245 = vcmp.gt.f32.partialorder %v9213, 0.0
    %vm9246 = vcmp.gt.f32.partialorder %v9214, 0.0
    %vm9247 = vcmp.gt.f32.partialorder %v9215, 0.0
    %vm9248 = vcmp.gt.f32.partialorder %v9216, 0.0
    %vm9249 = vcmp.gt.f32.partialorder %v9217, 0.0
    %vm9250 = vcmp.gt.f32.partialorder %v9218, 0.0
    %vm9251 = vcmp.gt.f32.partialorder %v9219, 0.0
    %vm9252 = vcmp.gt.f32.partialorder %v9220, 0.0
    %vm9253 = vcmp.gt.f32.partialorder %v9221, 0.0
    %vm9254 = vcmp.gt.f32.partialorder %v9222, 0.0
    %vm9255 = vcmp.gt.f32.partialorder %v9223, 0.0
    %vm9256 = vcmp.gt.f32.partialorder %v9224, 0.0
    %vm9257 = vcmp.gt.f32.partialorder %v9225, 0.0
    %vm9258 = vcmp.gt.f32.partialorder %v9226, 0.0
    %vm9259 = vcmp.gt.f32.partialorder %v9227, 0.0
    %vm9260 = vcmp.gt.f32.partialorder %v9228, 0.0
    %vm9261 = vcmp.gt.f32.partialorder %v9229, 0.0
    %vm9262 = vcmp.gt.f32.partialorder %v9230, 0.0
    %vm9263 = vcmp.gt.f32.partialorder %v9231, 0.0
    %vm9264 = vcmp.gt.f32.partialorder %v9232, 0.0
    %vm9265 = vcmp.gt.f32.partialorder %v9233, 0.0
    %vm9266 = vcmp.gt.f32.partialorder %v9234, 0.0
    %vm9267 = vcmp.gt.f32.partialorder %v9235, 0.0
    %vm9268 = vcmp.gt.f32.partialorder %v9236, 0.0
    %vm9269 = vcmp.gt.f32.partialorder %v9237, 0.0
    %v9270 = vmul.f32 %v9206, 0.01
    %v9271 = vmul.f32 %v9207, 0.01
    %v9272 = vmul.f32 %v9208, 0.01
    %v9273 = vmul.f32 %v9209, 0.01
    %v9274 = vmul.f32 %v9210, 0.01
    %v9275 = vmul.f32 %v9211, 0.01
    %v9276 = vmul.f32 %v9212, 0.01
    %v9277 = vmul.f32 %v9213, 0.01
    %v9278 = vmul.f32 %v9214, 0.01
    %v9279 = vmul.f32 %v9215, 0.01
    %v9280 = vmul.f32 %v9216, 0.01
    %v9281 = vmul.f32 %v9217, 0.01
    %v9282 = vmul.f32 %v9218, 0.01
    %v9283 = vmul.f32 %v9219, 0.01
    %v9284 = vmul.f32 %v9220, 0.01
    %v9285 = vmul.f32 %v9221, 0.01
    %v9286 = vmul.f32 %v9222, 0.01
    %v9287 = vmul.f32 %v9223, 0.01
    %v9288 = vmul.f32 %v9224, 0.01
    %v9289 = vmul.f32 %v9225, 0.01
    %v9290 = vmul.f32 %v9226, 0.01
    %v9291 = vmul.f32 %v9227, 0.01
    %v9292 = vmul.f32 %v9228, 0.01
    %v9293 = vmul.f32 %v9229, 0.01
    %v9294 = vmul.f32 %v9230, 0.01
    %v9295 = vmul.f32 %v9231, 0.01
    %v9296 = vmul.f32 %v9232, 0.01
    %v9297 = vmul.f32 %v9233, 0.01
    %v9298 = vmul.f32 %v9234, 0.01
    %v9299 = vmul.f32 %v9235, 0.01
    %v9300 = vmul.f32 %v9236, 0.01
    %v9301 = vmul.f32 %v9237, 0.01
    %v9302 = vsel %vm9238, %v9206, %v9270
    %v9303 = vsel %vm9239, %v9207, %v9271
    %v9304 = vsel %vm9240, %v9208, %v9272
    %v9305 = vsel %vm9241, %v9209, %v9273
    %v9306 = vsel %vm9242, %v9210, %v9274
    %v9307 = vsel %vm9243, %v9211, %v9275
    %v9308 = vsel %vm9244, %v9212, %v9276
    %v9309 = vsel %vm9245, %v9213, %v9277
    %v9310 = vsel %vm9246, %v9214, %v9278
    %v9311 = vsel %vm9247, %v9215, %v9279
    %v9312 = vsel %vm9248, %v9216, %v9280
    %v9313 = vsel %vm9249, %v9217, %v9281
    %v9314 = vsel %vm9250, %v9218, %v9282
    %v9315 = vsel %vm9251, %v9219, %v9283
    %v9316 = vsel %vm9252, %v9220, %v9284
    %v9317 = vsel %vm9253, %v9221, %v9285
    %v9318 = vsel %vm9254, %v9222, %v9286
    %v9319 = vsel %vm9255, %v9223, %v9287
    %v9320 = vsel %vm9256, %v9224, %v9288
    %v9321 = vsel %vm9257, %v9225, %v9289
    %v9322 = vsel %vm9258, %v9226, %v9290
    %v9323 = vsel %vm9259, %v9227, %v9291
    %v9324 = vsel %vm9260, %v9228, %v9292
    %v9325 = vsel %vm9261, %v9229, %v9293
    %v9326 = vsel %vm9262, %v9230, %v9294
    %v9327 = vsel %vm9263, %v9231, %v9295
    %v9328 = vsel %vm9264, %v9232, %v9296
    %v9329 = vsel %vm9265, %v9233, %v9297
    %v9330 = vsel %vm9266, %v9234, %v9298
    %v9331 = vsel %vm9267, %v9235, %v9299
    %v9332 = vsel %vm9268, %v9236, %v9300
    %v9333 = vsel %vm9269, %v9237, %v9301
    %v9334 = vmax.f32 %v9302, %v9304
    %v9335 = vmax.f32 %v9303, %v9305
    %v9336 = vmax.f32 %v9310, %v9312
    %v9337 = vmax.f32 %v9311, %v9313
    %v9338 = vmax.f32 %v9318, %v9320
    %v9339 = vmax.f32 %v9319, %v9321
    %v9340 = vmax.f32 %v9326, %v9328
    %v9341 = vmax.f32 %v9327, %v9329
    %v9342 = vmax.f32 %v9306, %v9308
    %v9343 = vmax.f32 %v9307, %v9309
    %v9344 = vmax.f32 %v9314, %v9316
    %v9345 = vmax.f32 %v9315, %v9317
    %v9346 = vmax.f32 %v9322, %v9324
    %v9347 = vmax.f32 %v9323, %v9325
    %v9348 = vmax.f32 %v9330, %v9332
    %v9349 = vmax.f32 %v9331, %v9333
    %v9350 = vmax.f32 %v9334, %v9342
    %v9351 = vmax.f32 %v9335, %v9343
    %v9352 = vmax.f32 %v9336, %v9344
    %v9353 = vmax.f32 %v9337, %v9345
    %v9354 = vmax.f32 %v9338, %v9346
    %v9355 = vmax.f32 %v9339, %v9347
    %v9356 = vmax.f32 %v9340, %v9348
    %v9357 = vmax.f32 %v9341, %v9349
    %v9358 = vpack.c.bf16 %v9352, %v9350
    %v9359 = vpack.c.bf16 %v9353, %v9351
    %v9360 = vpack.c.bf16 %v9356, %v9354
    %v9361 = vpack.c.bf16 %v9357, %v9355
    %v9366 = vunpack.c.l.b16 %v9358
    %v9367 = vunpack.c.l.b16 %v9359
    %v9368 = vunpack.c.h.b16 %v9358
    %v9369 = vunpack.c.h.b16 %v9359
    %v9370 = vunpack.c.l.b16 %v9360
    %v9371 = vunpack.c.l.b16 %v9361
    %v9372 = vunpack.c.h.b16 %v9360
    %v9373 = vunpack.c.h.b16 %v9361
    %v9374 = vpack.c.b16 %v9367, %v9366
    %v9375 = vpack.c.b16 %v9369, %v9368
    %v9376 = vpack.c.b16 %v9371, %v9370
    %v9377 = vpack.c.b16 %v9373, %v9372
    %9382 = vst [vmem:[%s4] sm:$0xff] %v9374
    %9383 = vst [vmem:[%s4 + $0x8] sm:$0xff] %v9375
    %9384 = vst [vmem:[%s4 + $0x10] sm:$0xff] %v9376
    %9385 = vst [vmem:[%s4 + $0x18] sm:$0xff] %v9377
    // Predicated region
    $region30: #{net_forward.4} parent=1 // pred_check
      _
    $region31: #{net_forward.4} parent=1 // pred_check_branch
      %9387 = sbr.rel (0) target = $region33
    $region32: #{net_forward.4} parent=1 // pred_region
      _
    $region33: #{net_forward.4} parent=1 // pred_fallthru
      _
    // Predicated region
    $region34: #{net_forward.4} parent=1 // pred_check
      _
    $region35: #{net_forward.4} parent=1 // pred_check_branch
      %9389 = sbr.rel (0) target = $region37
    $region36: #{net_forward.4} parent=1 // pred_region
      _
    $region37: #{net_forward.4} parent=1 // pred_fallthru
      _
    %9390 = vsyncpa [#allocation3], 1
    %9391 = vsyncpa [#allocation5], 1

</llo_original>
